<compile_context>
chip_gen: v5e
topology: v5e:2x2
jax: 0.10.0
libtpu: 0.0.40
codegen_flags: <defaults>
</compile_context>

<pallas_src>
import jax
import jax.numpy as jnp
from jax.experimental import pallas as pl
from jax.experimental.pallas import tpu as pltpu

LANE = 128
NUM_ACTIVATIONS = 5
# Per-call budget for resident folded weights (keeps one fused call inside
# v7x's 64 MiB physical VMEM with room for tiles + working set).
WEIGHT_BUDGET_BYTES = 24 << 20


def _round_up(n, m):
    return ((n + m - 1) // m) * m


# ---------------------------------------------------------------------------
# Fixed, deterministic activation set (stand-in for torch's random.sample).
# Used by the pure-JAX reference; the kernel computes the same functions.
# ---------------------------------------------------------------------------
def _relu(x):
    return jnp.maximum(x, 0.0)


def _tanh(x):
    return jnp.tanh(x)


def _sigmoid(x):
    return jax.nn.sigmoid(x)


def _sine(x):
    return jnp.sin(x)


def _gaussian(x):
    return jnp.exp(-(x * x))


ACT_FNS = (_relu, _tanh, _sigmoid, _sine, _gaussian)


# ---------------------------------------------------------------------------
# Fused kernel over one batch tile: all layers of a group in one invocation.
#   x_ref                : (TB, Fin_pad_0)              f32
#   per layer l:
#     w_ref_l            : (A, Fin_pad_l, Fout_pad_l)   bf16, scale folded in
#     b_ref_l            : (1, Fout_pad_l)               f32
#   out_ref              : (TB, Fout_pad_last)           f32
# ---------------------------------------------------------------------------
def _make_fused_kernel(num_layers):
    def kernel(x_ref, *refs):
        out_ref = refs[-1]
        h = x_ref[...]                                       # (TB, Fin_pad) f32
        for l in range(num_layers):                          # static unroll
            w_ref = refs[2 * l]
            b_ref = refs[2 * l + 1]
            # --- elementwise activation bank (f32 on VPU/EUP) --------------
            pos = h >= 0.0
            e = jnp.exp(-jnp.abs(h))                         # in (0,1]: overflow-safe
            e2 = e * e
            inv1 = pl.reciprocal(1.0 + e, approx=True)       # EUP vrcp (cheap)
            inv2 = pl.reciprocal(1.0 + e2, approx=True)
            relu = jnp.maximum(h, 0.0)
            sigm = jnp.where(pos, 1.0, e) * inv1             # sigmoid(h)
            tanh = jnp.where(pos, 1.0, -1.0) * (1.0 - e2) * inv2
            sine = jnp.sin(h)
            gauss = jnp.exp(-(h * h))
            # --- 5 accumulated MXU dots (no concatenate / activation slab) --
            acc = None
            for i, a in enumerate((relu, tanh, sigm, sine, gauss)):
                d = jnp.dot(a.astype(jnp.bfloat16), w_ref[i],
                            preferred_element_type=jnp.float32)
                acc = d if acc is None else acc + d
            h = acc + b_ref[...]                             # (TB, Fout_pad) f32
        out_ref[...] = h
    return kernel


# ---------------------------------------------------------------------------
# Parameter prep (one time, outside the kernel): fold weight_scale.sum into
# the weights, transpose to (A, Fin_pad, Fout_pad), pad feature widths to
# multiples of 128, cast weights to bf16.
#
# Padding-correctness invariants (both required):
#  * padded OUTPUT columns are exactly zero (weight cols and bias padded 0);
#  * padded INPUT rows of the NEXT layer's weights are zero -- needed because
#    sigmoid(0)=0.5 / gaussian(0)=1 are nonzero on padded (zero) features.
# ---------------------------------------------------------------------------
def prepare_fused_params(params):
    fused = []
    prev_pad = None
    for (act_w, weight_scale, bias) in params:
        fout, fin, A = act_w.shape
        if prev_pad is None:
            fin_pad = _round_up(fin, LANE)          # lane-align first layer Fin
        else:
            assert prev_pad >= fin and prev_pad % LANE == 0
            fin_pad = prev_pad
        fout_pad = _round_up(fout, LANE)
        s = jnp.sum(weight_scale, axis=1)                          # (fout,)
        # (A, fin, fout) so that w[i] == activation_weights[:, :, i].T, scaled.
        w = jnp.transpose(act_w, (2, 1, 0)) * s[None, None, :]
        w = jnp.pad(w, ((0, 0), (0, fin_pad - fin), (0, fout_pad - fout)))
        w = w.astype(jnp.bfloat16)
        b = jnp.pad(bias, (0, fout_pad - fout)).reshape(1, fout_pad)
        fused.append((w, b.astype(jnp.float32)))
        prev_pad = fout_pad
    return fused


def _group_layers(fused_params, budget_bytes=WEIGHT_BUDGET_BYTES):
    """Split layers into consecutive groups whose resident weights fit VMEM."""
    groups, cur, cur_bytes = [], [], 0
    for (w, b) in fused_params:
        nbytes = w.size * w.dtype.itemsize + b.size * b.dtype.itemsize
        if cur and cur_bytes + nbytes > budget_bytes:
            groups.append(cur)
            cur, cur_bytes = [], 0
        cur.append((w, b))
        cur_bytes += nbytes
    if cur:
        groups.append(cur)
    return groups


def _call_group(h, group, tb, single_buffer_weights):
    """One fused pallas_call over a group of layers, tiled over the batch."""
    b_pad, fin_pad = h.shape
    fout_pad = group[-1][1].shape[1]
    grid = (b_pad // tb,)

    def _const_spec(shape):
        idx = lambda i: (0,) * len(shape)        # grid-invariant -> resident
        if single_buffer_weights:
            return pl.BlockSpec(shape, idx, pipeline_mode=pl.Buffered(1))
        return pl.BlockSpec(shape, idx)

    args = [h]
    in_specs = [pl.BlockSpec((tb, fin_pad), lambda i: (i, 0))]
    for (w, b) in group:
        args.extend([w, b])
        in_specs.append(_const_spec(w.shape))
        in_specs.append(_const_spec(b.shape))

    # Explicit VMEM budget: resident weights/biases + double-buffered x/out
    # tiles + elementwise working set + headroom.
    wbufs = 1 if single_buffer_weights else 2
    vmem = sum(wbufs * (w.size * w.dtype.itemsize + b.size * b.dtype.itemsize)
               for (w, b) in group)
    max_width = max([fin_pad] + [w.shape[2] for (w, _) in group])
    vmem += 2 * tb * (fin_pad + fout_pad) * 4      # pipelined x / out tiles
    vmem += 8 * tb * max_width * 4                 # activation temporaries
    vmem += 2 << 20                                # headroom
    vmem = int(min(max(vmem, 32 << 20), 100 << 20))

    return pl.pallas_call(
        _make_fused_kernel(len(group)),
        out_shape=jax.ShapeDtypeStruct((b_pad, fout_pad), jnp.float32),
        grid=grid,
        in_specs=in_specs,
        out_specs=pl.BlockSpec((tb, fout_pad), lambda i: (i, 0)),
        compiler_params=pltpu.CompilerParams(
            dimension_semantics=("parallel",),
            vmem_limit_bytes=vmem),
    )(*args)


def kan_network_forward(x, fused_params, out_features, *, batch_tile=None):
    """Fused KANNetwork forward: flatten + all KANLinear layers."""
    B = x.shape[0]
    x_flat = x.reshape(B, -1).astype(jnp.float32)    # torch: x.view(batch, -1)
    fin0 = x_flat.shape[1]
    fin0_pad = fused_params[0][0].shape[1]
    if fin0_pad != fin0:                             # lane-align first-layer Fin
        x_flat = jnp.pad(x_flat, ((0, 0), (0, fin0_pad - fin0)))

    # Batch tile: >=256 fills the v6e/v7x 256x256 MXU M-dim, 128 suits v5e;
    # small batches round up to the 8-sublane minimum.
    if batch_tile is None:
        tb = 256 if B >= 256 else (128 if B >= 128 else _round_up(B, 8))
    else:
        tb = batch_tile
    b_pad = _round_up(B, tb)
    if b_pad != B:
        x_flat = jnp.pad(x_flat, ((0, b_pad - B), (0, 0)))

    h = x_flat
    for group in _group_layers(fused_params):
        try:
            h = _call_group(h, group, tb, single_buffer_weights=True)
        except Exception:
            # pipeline_mode=pl.Buffered(1) unsupported -> default buffering.
            h = _call_group(h, group, tb, single_buffer_weights=False)
    return h[:B, :out_features]


# ---------------------------------------------------------------------------
# Deterministic synthetic parameter init (torch layout, well-conditioned).
#   activation_weights : (out, in, A); weight_scale : (out, in); bias : (out,)
# ---------------------------------------------------------------------------
def init_kan_network_params(key, in_channels, hidden_dims, out_channels):
    dims = [in_channels] + list(hidden_dims) + [out_channels]
    params = []
    for li in range(len(dims) - 1):
        fin, fout = dims[li], dims[li + 1]
        key, k1, k2, k3 = jax.random.split(key, 4)
        base = 1.0 / (NUM_ACTIVATIONS * fin)
        act_w = (jnp.full((fout, fin, NUM_ACTIVATIONS), base, jnp.float32)
                 + (0.2 * base) * jax.random.normal(
                     k1, (fout, fin, NUM_ACTIVATIONS), jnp.float32))
        weight_scale = (jnp.ones((fout, fin), jnp.float32)
                        + 0.1 * jax.random.normal(k2, (fout, fin), jnp.float32)
                        ) / fin
        bias = 0.1 * jax.random.normal(k3, (fout,), jnp.float32)
        params.append((act_w, weight_scale, bias))
    return params


# Pure-JAX reference (torch semantics, f32 throughout) for verification.
def kan_network_reference(x, params):
    B = x.shape[0]
    h = x.reshape(B, -1).astype(jnp.float32)
    for (act_w, weight_scale, bias) in params:
        fout = act_w.shape[0]
        acc = jnp.zeros((B, fout), jnp.float32)
        for i, act in enumerate(ACT_FNS):
            acc = acc + act(h) @ act_w[:, :, i].T
        h = acc * jnp.sum(weight_scale, axis=1)[None, :] + bias[None, :]
    return h


if __name__ == "__main__":
    key = jax.random.PRNGKey(0)
    key, kx = jax.random.split(key)

    # Small NCHW input: batch=2, channels=4, spatial=16x16 -> in_channels=1024
    B, C, H, W = 2, 4, 16, 16
    x = jax.random.normal(kx, (B, C, H, W), jnp.float32)

    in_channels = C * H * W          # 1024
    hidden_dims = [128]
    out_channels = 64

    params = init_kan_network_params(key, in_channels, hidden_dims,
                                     out_channels)
    fused_params = prepare_fused_params(params)      # one-time weight prep

    out = kan_network_forward(x, fused_params, out_channels)
    out = jax.block_until_ready(out)

    ref = kan_network_reference(x, params)
    assert out.shape == (B, out_channels)
    # bf16 weights/dot-inputs + approx reciprocals vs f32 reference
    assert jnp.allclose(out, ref, rtol=2e-2, atol=2e-2), "mismatch vs reference"

    print("KERNEL_OK")
</pallas_src>

<mosaic_0001>
module attributes {stable_mosaic.version = 11 : i64} {
  func.func @kernel(%arg0: i32, %arg1: memref<8x1024xf32, #tpu.memory_space<vmem>>, %arg2: memref<5x1024x128xbf16, #tpu.memory_space<vmem>>, %arg3: memref<1x128xf32, #tpu.memory_space<vmem>>, %arg4: memref<5x128x128xbf16, #tpu.memory_space<vmem>>, %arg5: memref<1x128xf32, #tpu.memory_space<vmem>>, %arg6: memref<8x128xf32, #tpu.memory_space<vmem>>) attributes {dimension_semantics = [#tpu.dimension_semantics<parallel>], iteration_bounds = array<i64: 1>, scalar_prefetch = 0 : i64, scratch_operands = 0 : i64, tpu.core_type = #tpu.core_type<tc>, window_params = [{transform_indices = @transform_0, window_bounds = array<i64: 8, 1024>}, {pipeline_mode = #tpu.pipeline_mode<synchronous>, transform_indices = @transform_1, window_bounds = array<i64: 5, 1024, 128>}, {pipeline_mode = #tpu.pipeline_mode<synchronous>, transform_indices = @transform_2, window_bounds = array<i64: 1, 128>}, {pipeline_mode = #tpu.pipeline_mode<synchronous>, transform_indices = @transform_3, window_bounds = array<i64: 5, 128, 128>}, {pipeline_mode = #tpu.pipeline_mode<synchronous>, transform_indices = @transform_4, window_bounds = array<i64: 1, 128>}, {transform_indices = @transform_5, window_bounds = array<i64: 8, 128>}]} {
    %c0 = arith.constant 0 : index
    %c0_0 = arith.constant 0 : index
    %0 = vector.load %arg1[%c0, %c0_0] : memref<8x1024xf32, #tpu.memory_space<vmem>>, vector<8x1024xf32>
    %cst = arith.constant 0.000000e+00 : f32
    %1 = vector.broadcast %cst : f32 to vector<8x1024xf32>
    %2 = arith.cmpf oge, %0, %1 : vector<8x1024xf32>
    %3 = math.absf %0 : vector<8x1024xf32>
    %cst_1 = arith.constant 0.000000e+00 : f32
    %4 = vector.broadcast %cst_1 : f32 to vector<8x1024xf32>
    %5 = arith.subf %4, %3 : vector<8x1024xf32>
    %6 = math.exp %5 : vector<8x1024xf32>
    %7 = arith.mulf %6, %6 : vector<8x1024xf32>
    %cst_2 = arith.constant 1.000000e+00 : f32
    %8 = vector.broadcast %cst_2 : f32 to vector<8x1024xf32>
    %9 = arith.addf %8, %6 : vector<8x1024xf32>
    %10 = tpu.reciprocal %9 {approx = true} : vector<8x1024xf32> -> vector<8x1024xf32>
    %cst_3 = arith.constant 1.000000e+00 : f32
    %11 = vector.broadcast %cst_3 : f32 to vector<8x1024xf32>
    %12 = arith.addf %11, %7 : vector<8x1024xf32>
    %13 = tpu.reciprocal %12 {approx = true} : vector<8x1024xf32> -> vector<8x1024xf32>
    %cst_4 = arith.constant 0.000000e+00 : f32
    %14 = vector.broadcast %cst_4 : f32 to vector<8x1024xf32>
    %15 = arith.maximumf %0, %14 : vector<8x1024xf32>
    %cst_5 = arith.constant 1.000000e+00 : f32
    %16 = vector.broadcast %cst_5 : f32 to vector<8x1024xf32>
    %17 = arith.select %2, %16, %6 : vector<8x1024xi1>, vector<8x1024xf32>
    %18 = arith.mulf %17, %10 : vector<8x1024xf32>
    %cst_6 = arith.constant 1.000000e+00 : f32
    %cst_7 = arith.constant -1.000000e+00 : f32
    %19 = vector.broadcast %cst_6 : f32 to vector<8x1024xf32>
    %20 = vector.broadcast %cst_7 : f32 to vector<8x1024xf32>
    %21 = arith.select %2, %19, %20 : vector<8x1024xi1>, vector<8x1024xf32>
    %cst_8 = arith.constant 1.000000e+00 : f32
    %22 = vector.broadcast %cst_8 : f32 to vector<8x1024xf32>
    %23 = arith.subf %22, %7 : vector<8x1024xf32>
    %24 = arith.mulf %21, %23 : vector<8x1024xf32>
    %25 = arith.mulf %24, %13 : vector<8x1024xf32>
    %26 = math.sin %0 : vector<8x1024xf32>
    %27 = arith.mulf %0, %0 : vector<8x1024xf32>
    %cst_9 = arith.constant 0.000000e+00 : f32
    %28 = vector.broadcast %cst_9 : f32 to vector<8x1024xf32>
    %29 = arith.subf %28, %27 : vector<8x1024xf32>
    %30 = math.exp %29 : vector<8x1024xf32>
    %31 = arith.truncf %15 : vector<8x1024xf32> to vector<8x1024xbf16>
    %c0_10 = arith.constant 0 : index
    %c0_11 = arith.constant 0 : index
    %c0_12 = arith.constant 0 : index
    %32 = vector.load %arg2[%c0_10, %c0_11, %c0_12] : memref<5x1024x128xbf16, #tpu.memory_space<vmem>>, vector<1x1024x128xbf16>
    %33 = vector.shape_cast %32 : vector<1x1024x128xbf16> to vector<1024x128xbf16>
    %cst_13 = arith.constant dense<0.000000e+00> : vector<8x128xf32>
    %34 = tpu.matmul %31, %33, %cst_13 {dimension_numbers = #tpu.dot_dimension_numbers<[1], [0], [0], [1], [0, 0, 1, 1], [], []>} : vector<8x1024xbf16>, vector<1024x128xbf16>, vector<8x128xf32> -> vector<8x128xf32>
    %35 = arith.truncf %25 : vector<8x1024xf32> to vector<8x1024xbf16>
    %c1 = arith.constant 1 : index
    %c0_14 = arith.constant 0 : index
    %c0_15 = arith.constant 0 : index
    %36 = vector.load %arg2[%c1, %c0_14, %c0_15] : memref<5x1024x128xbf16, #tpu.memory_space<vmem>>, vector<1x1024x128xbf16>
    %37 = vector.shape_cast %36 : vector<1x1024x128xbf16> to vector<1024x128xbf16>
    %cst_16 = arith.constant dense<0.000000e+00> : vector<8x128xf32>
    %38 = tpu.matmul %35, %37, %cst_16 {dimension_numbers = #tpu.dot_dimension_numbers<[1], [0], [0], [1], [0, 0, 1, 1], [], []>} : vector<8x1024xbf16>, vector<1024x128xbf16>, vector<8x128xf32> -> vector<8x128xf32>
    %39 = arith.addf %34, %38 : vector<8x128xf32>
    %40 = arith.truncf %18 : vector<8x1024xf32> to vector<8x1024xbf16>
    %c2 = arith.constant 2 : index
    %c0_17 = arith.constant 0 : index
    %c0_18 = arith.constant 0 : index
    %41 = vector.load %arg2[%c2, %c0_17, %c0_18] : memref<5x1024x128xbf16, #tpu.memory_space<vmem>>, vector<1x1024x128xbf16>
    %42 = vector.shape_cast %41 : vector<1x1024x128xbf16> to vector<1024x128xbf16>
    %cst_19 = arith.constant dense<0.000000e+00> : vector<8x128xf32>
    %43 = tpu.matmul %40, %42, %cst_19 {dimension_numbers = #tpu.dot_dimension_numbers<[1], [0], [0], [1], [0, 0, 1, 1], [], []>} : vector<8x1024xbf16>, vector<1024x128xbf16>, vector<8x128xf32> -> vector<8x128xf32>
    %44 = arith.addf %39, %43 : vector<8x128xf32>
    %45 = arith.truncf %26 : vector<8x1024xf32> to vector<8x1024xbf16>
    %c3 = arith.constant 3 : index
    %c0_20 = arith.constant 0 : index
    %c0_21 = arith.constant 0 : index
    %46 = vector.load %arg2[%c3, %c0_20, %c0_21] : memref<5x1024x128xbf16, #tpu.memory_space<vmem>>, vector<1x1024x128xbf16>
    %47 = vector.shape_cast %46 : vector<1x1024x128xbf16> to vector<1024x128xbf16>
    %cst_22 = arith.constant dense<0.000000e+00> : vector<8x128xf32>
    %48 = tpu.matmul %45, %47, %cst_22 {dimension_numbers = #tpu.dot_dimension_numbers<[1], [0], [0], [1], [0, 0, 1, 1], [], []>} : vector<8x1024xbf16>, vector<1024x128xbf16>, vector<8x128xf32> -> vector<8x128xf32>
    %49 = arith.addf %44, %48 : vector<8x128xf32>
    %50 = arith.truncf %30 : vector<8x1024xf32> to vector<8x1024xbf16>
    %c4 = arith.constant 4 : index
    %c0_23 = arith.constant 0 : index
    %c0_24 = arith.constant 0 : index
    %51 = vector.load %arg2[%c4, %c0_23, %c0_24] : memref<5x1024x128xbf16, #tpu.memory_space<vmem>>, vector<1x1024x128xbf16>
    %52 = vector.shape_cast %51 : vector<1x1024x128xbf16> to vector<1024x128xbf16>
    %cst_25 = arith.constant dense<0.000000e+00> : vector<8x128xf32>
    %53 = tpu.matmul %50, %52, %cst_25 {dimension_numbers = #tpu.dot_dimension_numbers<[1], [0], [0], [1], [0, 0, 1, 1], [], []>} : vector<8x1024xbf16>, vector<1024x128xbf16>, vector<8x128xf32> -> vector<8x128xf32>
    %54 = arith.addf %49, %53 : vector<8x128xf32>
    %c0_26 = arith.constant 0 : index
    %c0_27 = arith.constant 0 : index
    %55 = vector.load %arg3[%c0_26, %c0_27] : memref<1x128xf32, #tpu.memory_space<vmem>>, vector<1x128xf32>
    %56 = vector.broadcast %55 : vector<1x128xf32> to vector<8x128xf32>
    %57 = arith.addf %54, %56 : vector<8x128xf32>
    %cst_28 = arith.constant 0.000000e+00 : f32
    %58 = vector.broadcast %cst_28 : f32 to vector<8x128xf32>
    %59 = arith.cmpf oge, %57, %58 : vector<8x128xf32>
    %60 = math.absf %57 : vector<8x128xf32>
    %cst_29 = arith.constant 0.000000e+00 : f32
    %61 = vector.broadcast %cst_29 : f32 to vector<8x128xf32>
    %62 = arith.subf %61, %60 : vector<8x128xf32>
    %63 = math.exp %62 : vector<8x128xf32>
    %64 = arith.mulf %63, %63 : vector<8x128xf32>
    %cst_30 = arith.constant 1.000000e+00 : f32
    %65 = vector.broadcast %cst_30 : f32 to vector<8x128xf32>
    %66 = arith.addf %65, %63 : vector<8x128xf32>
    %67 = tpu.reciprocal %66 {approx = true} : vector<8x128xf32> -> vector<8x128xf32>
    %cst_31 = arith.constant 1.000000e+00 : f32
    %68 = vector.broadcast %cst_31 : f32 to vector<8x128xf32>
    %69 = arith.addf %68, %64 : vector<8x128xf32>
    %70 = tpu.reciprocal %69 {approx = true} : vector<8x128xf32> -> vector<8x128xf32>
    %cst_32 = arith.constant 0.000000e+00 : f32
    %71 = vector.broadcast %cst_32 : f32 to vector<8x128xf32>
    %72 = arith.maximumf %57, %71 : vector<8x128xf32>
    %cst_33 = arith.constant 1.000000e+00 : f32
    %73 = vector.broadcast %cst_33 : f32 to vector<8x128xf32>
    %74 = arith.select %59, %73, %63 : vector<8x128xi1>, vector<8x128xf32>
    %75 = arith.mulf %74, %67 : vector<8x128xf32>
    %cst_34 = arith.constant 1.000000e+00 : f32
    %cst_35 = arith.constant -1.000000e+00 : f32
    %76 = vector.broadcast %cst_34 : f32 to vector<8x128xf32>
    %77 = vector.broadcast %cst_35 : f32 to vector<8x128xf32>
    %78 = arith.select %59, %76, %77 : vector<8x128xi1>, vector<8x128xf32>
    %cst_36 = arith.constant 1.000000e+00 : f32
    %79 = vector.broadcast %cst_36 : f32 to vector<8x128xf32>
    %80 = arith.subf %79, %64 : vector<8x128xf32>
    %81 = arith.mulf %78, %80 : vector<8x128xf32>
    %82 = arith.mulf %81, %70 : vector<8x128xf32>
    %83 = math.sin %57 : vector<8x128xf32>
    %84 = arith.mulf %57, %57 : vector<8x128xf32>
    %cst_37 = arith.constant 0.000000e+00 : f32
    %85 = vector.broadcast %cst_37 : f32 to vector<8x128xf32>
    %86 = arith.subf %85, %84 : vector<8x128xf32>
    %87 = math.exp %86 : vector<8x128xf32>
    %88 = arith.truncf %72 : vector<8x128xf32> to vector<8x128xbf16>
    %c0_38 = arith.constant 0 : index
    %c0_39 = arith.constant 0 : index
    %c0_40 = arith.constant 0 : index
    %89 = vector.load %arg4[%c0_38, %c0_39, %c0_40] : memref<5x128x128xbf16, #tpu.memory_space<vmem>>, vector<1x128x128xbf16>
    %90 = vector.shape_cast %89 : vector<1x128x128xbf16> to vector<128x128xbf16>
    %cst_41 = arith.constant dense<0.000000e+00> : vector<8x128xf32>
    %91 = tpu.matmul %88, %90, %cst_41 {dimension_numbers = #tpu.dot_dimension_numbers<[1], [0], [0], [1], [0, 0, 1, 1], [], []>} : vector<8x128xbf16>, vector<128x128xbf16>, vector<8x128xf32> -> vector<8x128xf32>
    %92 = arith.truncf %82 : vector<8x128xf32> to vector<8x128xbf16>
    %c1_42 = arith.constant 1 : index
    %c0_43 = arith.constant 0 : index
    %c0_44 = arith.constant 0 : index
    %93 = vector.load %arg4[%c1_42, %c0_43, %c0_44] : memref<5x128x128xbf16, #tpu.memory_space<vmem>>, vector<1x128x128xbf16>
    %94 = vector.shape_cast %93 : vector<1x128x128xbf16> to vector<128x128xbf16>
    %cst_45 = arith.constant dense<0.000000e+00> : vector<8x128xf32>
    %95 = tpu.matmul %92, %94, %cst_45 {dimension_numbers = #tpu.dot_dimension_numbers<[1], [0], [0], [1], [0, 0, 1, 1], [], []>} : vector<8x128xbf16>, vector<128x128xbf16>, vector<8x128xf32> -> vector<8x128xf32>
    %96 = arith.addf %91, %95 : vector<8x128xf32>
    %97 = arith.truncf %75 : vector<8x128xf32> to vector<8x128xbf16>
    %c2_46 = arith.constant 2 : index
    %c0_47 = arith.constant 0 : index
    %c0_48 = arith.constant 0 : index
    %98 = vector.load %arg4[%c2_46, %c0_47, %c0_48] : memref<5x128x128xbf16, #tpu.memory_space<vmem>>, vector<1x128x128xbf16>
    %99 = vector.shape_cast %98 : vector<1x128x128xbf16> to vector<128x128xbf16>
    %cst_49 = arith.constant dense<0.000000e+00> : vector<8x128xf32>
    %100 = tpu.matmul %97, %99, %cst_49 {dimension_numbers = #tpu.dot_dimension_numbers<[1], [0], [0], [1], [0, 0, 1, 1], [], []>} : vector<8x128xbf16>, vector<128x128xbf16>, vector<8x128xf32> -> vector<8x128xf32>
    %101 = arith.addf %96, %100 : vector<8x128xf32>
    %102 = arith.truncf %83 : vector<8x128xf32> to vector<8x128xbf16>
    %c3_50 = arith.constant 3 : index
    %c0_51 = arith.constant 0 : index
    %c0_52 = arith.constant 0 : index
    %103 = vector.load %arg4[%c3_50, %c0_51, %c0_52] : memref<5x128x128xbf16, #tpu.memory_space<vmem>>, vector<1x128x128xbf16>
    %104 = vector.shape_cast %103 : vector<1x128x128xbf16> to vector<128x128xbf16>
    %cst_53 = arith.constant dense<0.000000e+00> : vector<8x128xf32>
    %105 = tpu.matmul %102, %104, %cst_53 {dimension_numbers = #tpu.dot_dimension_numbers<[1], [0], [0], [1], [0, 0, 1, 1], [], []>} : vector<8x128xbf16>, vector<128x128xbf16>, vector<8x128xf32> -> vector<8x128xf32>
    %106 = arith.addf %101, %105 : vector<8x128xf32>
    %107 = arith.truncf %87 : vector<8x128xf32> to vector<8x128xbf16>
    %c4_54 = arith.constant 4 : index
    %c0_55 = arith.constant 0 : index
    %c0_56 = arith.constant 0 : index
    %108 = vector.load %arg4[%c4_54, %c0_55, %c0_56] : memref<5x128x128xbf16, #tpu.memory_space<vmem>>, vector<1x128x128xbf16>
    %109 = vector.shape_cast %108 : vector<1x128x128xbf16> to vector<128x128xbf16>
    %cst_57 = arith.constant dense<0.000000e+00> : vector<8x128xf32>
    %110 = tpu.matmul %107, %109, %cst_57 {dimension_numbers = #tpu.dot_dimension_numbers<[1], [0], [0], [1], [0, 0, 1, 1], [], []>} : vector<8x128xbf16>, vector<128x128xbf16>, vector<8x128xf32> -> vector<8x128xf32>
    %111 = arith.addf %106, %110 : vector<8x128xf32>
    %c0_58 = arith.constant 0 : index
    %c0_59 = arith.constant 0 : index
    %112 = vector.load %arg5[%c0_58, %c0_59] : memref<1x128xf32, #tpu.memory_space<vmem>>, vector<1x128xf32>
    %113 = vector.broadcast %112 : vector<1x128xf32> to vector<8x128xf32>
    %114 = arith.addf %111, %113 : vector<8x128xf32>
    %c0_60 = arith.constant 0 : index
    %c0_61 = arith.constant 0 : index
    %115 = vector.load %arg6[%c0_60, %c0_61] : memref<8x128xf32, #tpu.memory_space<vmem>>, vector<8x128xf32>
    tpu.vector_store %arg6[%c0_60, %c0_61], %114 {strides = array<i32>} : memref<8x128xf32, #tpu.memory_space<vmem>>, vector<8x128xf32>,
    return
  }
  func.func @transform_0(%arg0: i32) -> (i32, i32) {
    %c0_i32 = arith.constant 0 : i32
    %c0_i32_0 = arith.constant 0 : i32
    return %arg0, %c0_i32 : i32, i32
  }
  func.func @transform_1(%arg0: i32) -> (i32, i32, i32) {
    %c0_i32 = arith.constant 0 : i32
    %c0_i32_0 = arith.constant 0 : i32
    %c0_i32_1 = arith.constant 0 : i32
    %c0_i32_2 = arith.constant 0 : i32
    return %c0_i32, %c0_i32_0, %c0_i32_1 : i32, i32, i32
  }
  func.func @transform_2(%arg0: i32) -> (i32, i32) {
    %c0_i32 = arith.constant 0 : i32
    %c0_i32_0 = arith.constant 0 : i32
    %c0_i32_1 = arith.constant 0 : i32
    return %c0_i32, %c0_i32_0 : i32, i32
  }
  func.func @transform_3(%arg0: i32) -> (i32, i32, i32) {
    %c0_i32 = arith.constant 0 : i32
    %c0_i32_0 = arith.constant 0 : i32
    %c0_i32_1 = arith.constant 0 : i32
    %c0_i32_2 = arith.constant 0 : i32
    return %c0_i32, %c0_i32_0, %c0_i32_1 : i32, i32, i32
  }
  func.func @transform_4(%arg0: i32) -> (i32, i32) {
    %c0_i32 = arith.constant 0 : i32
    %c0_i32_0 = arith.constant 0 : i32
    %c0_i32_1 = arith.constant 0 : i32
    return %c0_i32, %c0_i32_0 : i32, i32
  }
  func.func @transform_5(%arg0: i32) -> (i32, i32) {
    %c0_i32 = arith.constant 0 : i32
    %c0_i32_0 = arith.constant 0 : i32
    return %arg0, %c0_i32 : i32, i32
  }
}

module attributes {stable_mosaic.version = 11 : i64} {
  func.func @kernel(%arg0: i32, %arg1: memref<8x1024xf32, #tpu.memory_space<vmem>>, %arg2: memref<5x1024x128xbf16, #tpu.memory_space<vmem>>, %arg3: memref<1x128xf32, #tpu.memory_space<vmem>>, %arg4: memref<5x128x128xbf16, #tpu.memory_space<vmem>>, %arg5: memref<1x128xf32, #tpu.memory_space<vmem>>, %arg6: memref<8x128xf32, #tpu.memory_space<vmem>>) attributes {dimension_semantics = [#tpu.dimension_semantics<parallel>], iteration_bounds = array<i64: 1>, scalar_prefetch = 0 : i64, scratch_operands = 0 : i64, tpu.core_type = #tpu.core_type<tc>, window_params = [{transform_indices = @transform_0, window_bounds = array<i64: 8, 1024>}, {pipeline_mode = #tpu.pipeline_mode<synchronous>, transform_indices = @transform_1, window_bounds = array<i64: 5, 1024, 128>}, {pipeline_mode = #tpu.pipeline_mode<synchronous>, transform_indices = @transform_2, window_bounds = array<i64: 1, 128>}, {pipeline_mode = #tpu.pipeline_mode<synchronous>, transform_indices = @transform_3, window_bounds = array<i64: 5, 128, 128>}, {pipeline_mode = #tpu.pipeline_mode<synchronous>, transform_indices = @transform_4, window_bounds = array<i64: 1, 128>}, {transform_indices = @transform_5, window_bounds = array<i64: 8, 128>}]} {
    %c0 = arith.constant 0 : index
    %c0_0 = arith.constant 0 : index
    %0 = vector.load %arg1[%c0, %c0_0] : memref<8x1024xf32, #tpu.memory_space<vmem>>, vector<8x1024xf32>
    %cst = arith.constant 0.000000e+00 : f32
    %1 = vector.broadcast %cst : f32 to vector<8x1024xf32>
    %2 = arith.cmpf oge, %0, %1 : vector<8x1024xf32>
    %3 = math.absf %0 : vector<8x1024xf32>
    %cst_1 = arith.constant 0.000000e+00 : f32
    %4 = vector.broadcast %cst_1 : f32 to vector<8x1024xf32>
    %5 = arith.subf %4, %3 : vector<8x1024xf32>
    %6 = math.exp %5 : vector<8x1024xf32>
    %7 = arith.mulf %6, %6 : vector<8x1024xf32>
    %cst_2 = arith.constant 1.000000e+00 : f32
    %8 = vector.broadcast %cst_2 : f32 to vector<8x1024xf32>
    %9 = arith.addf %8, %6 : vector<8x1024xf32>
    %10 = tpu.reciprocal %9 {approx = true} : vector<8x1024xf32> -> vector<8x1024xf32>
    %cst_3 = arith.constant 1.000000e+00 : f32
    %11 = vector.broadcast %cst_3 : f32 to vector<8x1024xf32>
    %12 = arith.addf %11, %7 : vector<8x1024xf32>
    %13 = tpu.reciprocal %12 {approx = true} : vector<8x1024xf32> -> vector<8x1024xf32>
    %cst_4 = arith.constant 0.000000e+00 : f32
    %14 = vector.broadcast %cst_4 : f32 to vector<8x1024xf32>
    %15 = arith.maximumf %0, %14 : vector<8x1024xf32>
    %cst_5 = arith.constant 1.000000e+00 : f32
    %16 = vector.broadcast %cst_5 : f32 to vector<8x1024xf32>
    %17 = arith.select %2, %16, %6 : vector<8x1024xi1>, vector<8x1024xf32>
    %18 = arith.mulf %17, %10 : vector<8x1024xf32>
    %cst_6 = arith.constant 1.000000e+00 : f32
    %cst_7 = arith.constant -1.000000e+00 : f32
    %19 = vector.broadcast %cst_6 : f32 to vector<8x1024xf32>
    %20 = vector.broadcast %cst_7 : f32 to vector<8x1024xf32>
    %21 = arith.select %2, %19, %20 : vector<8x1024xi1>, vector<8x1024xf32>
    %cst_8 = arith.constant 1.000000e+00 : f32
    %22 = vector.broadcast %cst_8 : f32 to vector<8x1024xf32>
    %23 = arith.subf %22, %7 : vector<8x1024xf32>
    %24 = arith.mulf %21, %23 : vector<8x1024xf32>
    %25 = arith.mulf %24, %13 : vector<8x1024xf32>
    %26 = math.sin %0 : vector<8x1024xf32>
    %27 = arith.mulf %0, %0 : vector<8x1024xf32>
    %cst_9 = arith.constant 0.000000e+00 : f32
    %28 = vector.broadcast %cst_9 : f32 to vector<8x1024xf32>
    %29 = arith.subf %28, %27 : vector<8x1024xf32>
    %30 = math.exp %29 : vector<8x1024xf32>
    %31 = arith.truncf %15 : vector<8x1024xf32> to vector<8x1024xbf16>
    %c0_10 = arith.constant 0 : index
    %c0_11 = arith.constant 0 : index
    %c0_12 = arith.constant 0 : index
    %32 = vector.load %arg2[%c0_10, %c0_11, %c0_12] : memref<5x1024x128xbf16, #tpu.memory_space<vmem>>, vector<1x1024x128xbf16>
    %33 = vector.shape_cast %32 : vector<1x1024x128xbf16> to vector<1024x128xbf16>
    %cst_13 = arith.constant dense<0.000000e+00> : vector<8x128xf32>
    %34 = tpu.matmul %31, %33, %cst_13 {dimension_numbers = #tpu.dot_dimension_numbers<[1], [0], [0], [1], [0, 0, 1, 1], [], []>} : vector<8x1024xbf16>, vector<1024x128xbf16>, vector<8x128xf32> -> vector<8x128xf32>
    %35 = arith.truncf %25 : vector<8x1024xf32> to vector<8x1024xbf16>
    %c1 = arith.constant 1 : index
    %c0_14 = arith.constant 0 : index
    %c0_15 = arith.constant 0 : index
    %36 = vector.load %arg2[%c1, %c0_14, %c0_15] : memref<5x1024x128xbf16, #tpu.memory_space<vmem>>, vector<1x1024x128xbf16>
    %37 = vector.shape_cast %36 : vector<1x1024x128xbf16> to vector<1024x128xbf16>
    %cst_16 = arith.constant dense<0.000000e+00> : vector<8x128xf32>
    %38 = tpu.matmul %35, %37, %cst_16 {dimension_numbers = #tpu.dot_dimension_numbers<[1], [0], [0], [1], [0, 0, 1, 1], [], []>} : vector<8x1024xbf16>, vector<1024x128xbf16>, vector<8x128xf32> -> vector<8x128xf32>
    %39 = arith.addf %34, %38 : vector<8x128xf32>
    %40 = arith.truncf %18 : vector<8x1024xf32> to vector<8x1024xbf16>
    %c2 = arith.constant 2 : index
    %c0_17 = arith.constant 0 : index
    %c0_18 = arith.constant 0 : index
    %41 = vector.load %arg2[%c2, %c0_17, %c0_18] : memref<5x1024x128xbf16, #tpu.memory_space<vmem>>, vector<1x1024x128xbf16>
    %42 = vector.shape_cast %41 : vector<1x1024x128xbf16> to vector<1024x128xbf16>
    %cst_19 = arith.constant dense<0.000000e+00> : vector<8x128xf32>
    %43 = tpu.matmul %40, %42, %cst_19 {dimension_numbers = #tpu.dot_dimension_numbers<[1], [0], [0], [1], [0, 0, 1, 1], [], []>} : vector<8x1024xbf16>, vector<1024x128xbf16>, vector<8x128xf32> -> vector<8x128xf32>
    %44 = arith.addf %39, %43 : vector<8x128xf32>
    %45 = arith.truncf %26 : vector<8x1024xf32> to vector<8x1024xbf16>
    %c3 = arith.constant 3 : index
    %c0_20 = arith.constant 0 : index
    %c0_21 = arith.constant 0 : index
    %46 = vector.load %arg2[%c3, %c0_20, %c0_21] : memref<5x1024x128xbf16, #tpu.memory_space<vmem>>, vector<1x1024x128xbf16>
    %47 = vector.shape_cast %46 : vector<1x1024x128xbf16> to vector<1024x128xbf16>
    %cst_22 = arith.constant dense<0.000000e+00> : vector<8x128xf32>
    %48 = tpu.matmul %45, %47, %cst_22 {dimension_numbers = #tpu.dot_dimension_numbers<[1], [0], [0], [1], [0, 0, 1, 1], [], []>} : vector<8x1024xbf16>, vector<1024x128xbf16>, vector<8x128xf32> -> vector<8x128xf32>
    %49 = arith.addf %44, %48 : vector<8x128xf32>
    %50 = arith.truncf %30 : vector<8x1024xf32> to vector<8x1024xbf16>
    %c4 = arith.constant 4 : index
    %c0_23 = arith.constant 0 : index
    %c0_24 = arith.constant 0 : index
    %51 = vector.load %arg2[%c4, %c0_23, %c0_24] : memref<5x1024x128xbf16, #tpu.memory_space<vmem>>, vector<1x1024x128xbf16>
    %52 = vector.shape_cast %51 : vector<1x1024x128xbf16> to vector<1024x128xbf16>
    %cst_25 = arith.constant dense<0.000000e+00> : vector<8x128xf32>
    %53 = tpu.matmul %50, %52, %cst_25 {dimension_numbers = #tpu.dot_dimension_numbers<[1], [0], [0], [1], [0, 0, 1, 1], [], []>} : vector<8x1024xbf16>, vector<1024x128xbf16>, vector<8x128xf32> -> vector<8x128xf32>
    %54 = arith.addf %49, %53 : vector<8x128xf32>
    %c0_26 = arith.constant 0 : index
    %c0_27 = arith.constant 0 : index
    %55 = vector.load %arg3[%c0_26, %c0_27] : memref<1x128xf32, #tpu.memory_space<vmem>>, vector<1x128xf32>
    %56 = vector.broadcast %55 : vector<1x128xf32> to vector<8x128xf32>
    %57 = arith.addf %54, %56 : vector<8x128xf32>
    %cst_28 = arith.constant 0.000000e+00 : f32
    %58 = vector.broadcast %cst_28 : f32 to vector<8x128xf32>
    %59 = arith.cmpf oge, %57, %58 : vector<8x128xf32>
    %60 = math.absf %57 : vector<8x128xf32>
    %cst_29 = arith.constant 0.000000e+00 : f32
    %61 = vector.broadcast %cst_29 : f32 to vector<8x128xf32>
    %62 = arith.subf %61, %60 : vector<8x128xf32>
    %63 = math.exp %62 : vector<8x128xf32>
    %64 = arith.mulf %63, %63 : vector<8x128xf32>
    %cst_30 = arith.constant 1.000000e+00 : f32
    %65 = vector.broadcast %cst_30 : f32 to vector<8x128xf32>
    %66 = arith.addf %65, %63 : vector<8x128xf32>
    %67 = tpu.reciprocal %66 {approx = true} : vector<8x128xf32> -> vector<8x128xf32>
    %cst_31 = arith.constant 1.000000e+00 : f32
    %68 = vector.broadcast %cst_31 : f32 to vector<8x128xf32>
    %69 = arith.addf %68, %64 : vector<8x128xf32>
    %70 = tpu.reciprocal %69 {approx = true} : vector<8x128xf32> -> vector<8x128xf32>
    %cst_32 = arith.constant 0.000000e+00 : f32
    %71 = vector.broadcast %cst_32 : f32 to vector<8x128xf32>
    %72 = arith.maximumf %57, %71 : vector<8x128xf32>
    %cst_33 = arith.constant 1.000000e+00 : f32
    %73 = vector.broadcast %cst_33 : f32 to vector<8x128xf32>
    %74 = arith.select %59, %73, %63 : vector<8x128xi1>, vector<8x128xf32>
    %75 = arith.mulf %74, %67 : vector<8x128xf32>
    %cst_34 = arith.constant 1.000000e+00 : f32
    %cst_35 = arith.constant -1.000000e+00 : f32
    %76 = vector.broadcast %cst_34 : f32 to vector<8x128xf32>
    %77 = vector.broadcast %cst_35 : f32 to vector<8x128xf32>
    %78 = arith.select %59, %76, %77 : vector<8x128xi1>, vector<8x128xf32>
    %cst_36 = arith.constant 1.000000e+00 : f32
    %79 = vector.broadcast %cst_36 : f32 to vector<8x128xf32>
    %80 = arith.subf %79, %64 : vector<8x128xf32>
    %81 = arith.mulf %78, %80 : vector<8x128xf32>
    %82 = arith.mulf %81, %70 : vector<8x128xf32>
    %83 = math.sin %57 : vector<8x128xf32>
    %84 = arith.mulf %57, %57 : vector<8x128xf32>
    %cst_37 = arith.constant 0.000000e+00 : f32
    %85 = vector.broadcast %cst_37 : f32 to vector<8x128xf32>
    %86 = arith.subf %85, %84 : vector<8x128xf32>
    %87 = math.exp %86 : vector<8x128xf32>
    %88 = arith.truncf %72 : vector<8x128xf32> to vector<8x128xbf16>
    %c0_38 = arith.constant 0 : index
    %c0_39 = arith.constant 0 : index
    %c0_40 = arith.constant 0 : index
    %89 = vector.load %arg4[%c0_38, %c0_39, %c0_40] : memref<5x128x128xbf16, #tpu.memory_space<vmem>>, vector<1x128x128xbf16>
    %90 = vector.shape_cast %89 : vector<1x128x128xbf16> to vector<128x128xbf16>
    %cst_41 = arith.constant dense<0.000000e+00> : vector<8x128xf32>
    %91 = tpu.matmul %88, %90, %cst_41 {dimension_numbers = #tpu.dot_dimension_numbers<[1], [0], [0], [1], [0, 0, 1, 1], [], []>} : vector<8x128xbf16>, vector<128x128xbf16>, vector<8x128xf32> -> vector<8x128xf32>
    %92 = arith.truncf %82 : vector<8x128xf32> to vector<8x128xbf16>
    %c1_42 = arith.constant 1 : index
    %c0_43 = arith.constant 0 : index
    %c0_44 = arith.constant 0 : index
    %93 = vector.load %arg4[%c1_42, %c0_43, %c0_44] : memref<5x128x128xbf16, #tpu.memory_space<vmem>>, vector<1x128x128xbf16>
    %94 = vector.shape_cast %93 : vector<1x128x128xbf16> to vector<128x128xbf16>
    %cst_45 = arith.constant dense<0.000000e+00> : vector<8x128xf32>
    %95 = tpu.matmul %92, %94, %cst_45 {dimension_numbers = #tpu.dot_dimension_numbers<[1], [0], [0], [1], [0, 0, 1, 1], [], []>} : vector<8x128xbf16>, vector<128x128xbf16>, vector<8x128xf32> -> vector<8x128xf32>
    %96 = arith.addf %91, %95 : vector<8x128xf32>
    %97 = arith.truncf %75 : vector<8x128xf32> to vector<8x128xbf16>
    %c2_46 = arith.constant 2 : index
    %c0_47 = arith.constant 0 : index
    %c0_48 = arith.constant 0 : index
    %98 = vector.load %arg4[%c2_46, %c0_47, %c0_48] : memref<5x128x128xbf16, #tpu.memory_space<vmem>>, vector<1x128x128xbf16>
    %99 = vector.shape_cast %98 : vector<1x128x128xbf16> to vector<128x128xbf16>
    %cst_49 = arith.constant dense<0.000000e+00> : vector<8x128xf32>
    %100 = tpu.matmul %97, %99, %cst_49 {dimension_numbers = #tpu.dot_dimension_numbers<[1], [0], [0], [1], [0, 0, 1, 1], [], []>} : vector<8x128xbf16>, vector<128x128xbf16>, vector<8x128xf32> -> vector<8x128xf32>
    %101 = arith.addf %96, %100 : vector<8x128xf32>
    %102 = arith.truncf %83 : vector<8x128xf32> to vector<8x128xbf16>
    %c3_50 = arith.constant 3 : index
    %c0_51 = arith.constant 0 : index
    %c0_52 = arith.constant 0 : index
    %103 = vector.load %arg4[%c3_50, %c0_51, %c0_52] : memref<5x128x128xbf16, #tpu.memory_space<vmem>>, vector<1x128x128xbf16>
    %104 = vector.shape_cast %103 : vector<1x128x128xbf16> to vector<128x128xbf16>
    %cst_53 = arith.constant dense<0.000000e+00> : vector<8x128xf32>
    %105 = tpu.matmul %102, %104, %cst_53 {dimension_numbers = #tpu.dot_dimension_numbers<[1], [0], [0], [1], [0, 0, 1, 1], [], []>} : vector<8x128xbf16>, vector<128x128xbf16>, vector<8x128xf32> -> vector<8x128xf32>
    %106 = arith.addf %101, %105 : vector<8x128xf32>
    %107 = arith.truncf %87 : vector<8x128xf32> to vector<8x128xbf16>
    %c4_54 = arith.constant 4 : index
    %c0_55 = arith.constant 0 : index
    %c0_56 = arith.constant 0 : index
    %108 = vector.load %arg4[%c4_54, %c0_55, %c0_56] : memref<5x128x128xbf16, #tpu.memory_space<vmem>>, vector<1x128x128xbf16>
    %109 = vector.shape_cast %108 : vector<1x128x128xbf16> to vector<128x128xbf16>
    %cst_57 = arith.constant dense<0.000000e+00> : vector<8x128xf32>
    %110 = tpu.matmul %107, %109, %cst_57 {dimension_numbers = #tpu.dot_dimension_numbers<[1], [0], [0], [1], [0, 0, 1, 1], [], []>} : vector<8x128xbf16>, vector<128x128xbf16>, vector<8x128xf32> -> vector<8x128xf32>
    %111 = arith.addf %106, %110 : vector<8x128xf32>
    %c0_58 = arith.constant 0 : index
    %c0_59 = arith.constant 0 : index
    %112 = vector.load %arg5[%c0_58, %c0_59] : memref<1x128xf32, #tpu.memory_space<vmem>>, vector<1x128xf32>
    %113 = vector.broadcast %112 : vector<1x128xf32> to vector<8x128xf32>
    %114 = arith.addf %111, %113 : vector<8x128xf32>
    %c0_60 = arith.constant 0 : index
    %c0_61 = arith.constant 0 : index
    %115 = vector.load %arg6[%c0_60, %c0_61] : memref<8x128xf32, #tpu.memory_space<vmem>>, vector<8x128xf32>
    tpu.vector_store %arg6[%c0_60, %c0_61], %114 {strides = array<i32>} : memref<8x128xf32, #tpu.memory_space<vmem>>, vector<8x128xf32>,
    return
  }
  func.func @transform_0(%arg0: i32) -> (i32, i32) {
    %c0_i32 = arith.constant 0 : i32
    %c0_i32_0 = arith.constant 0 : i32
    return %arg0, %c0_i32 : i32, i32
  }
  func.func @transform_1(%arg0: i32) -> (i32, i32, i32) {
    %c0_i32 = arith.constant 0 : i32
    %c0_i32_0 = arith.constant 0 : i32
    %c0_i32_1 = arith.constant 0 : i32
    %c0_i32_2 = arith.constant 0 : i32
    return %c0_i32, %c0_i32_0, %c0_i32_1 : i32, i32, i32
  }
  func.func @transform_2(%arg0: i32) -> (i32, i32) {
    %c0_i32 = arith.constant 0 : i32
    %c0_i32_0 = arith.constant 0 : i32
    %c0_i32_1 = arith.constant 0 : i32
    return %c0_i32, %c0_i32_0 : i32, i32
  }
  func.func @transform_3(%arg0: i32) -> (i32, i32, i32) {
    %c0_i32 = arith.constant 0 : i32
    %c0_i32_0 = arith.constant 0 : i32
    %c0_i32_1 = arith.constant 0 : i32
    %c0_i32_2 = arith.constant 0 : i32
    return %c0_i32, %c0_i32_0, %c0_i32_1 : i32, i32, i32
  }
  func.func @transform_4(%arg0: i32) -> (i32, i32) {
    %c0_i32 = arith.constant 0 : i32
    %c0_i32_0 = arith.constant 0 : i32
    %c0_i32_1 = arith.constant 0 : i32
    return %c0_i32, %c0_i32_0 : i32, i32
  }
  func.func @transform_5(%arg0: i32) -> (i32, i32) {
    %c0_i32 = arith.constant 0 : i32
    %c0_i32_0 = arith.constant 0 : i32
    return %arg0, %c0_i32 : i32, i32
  }
}

</mosaic_0001>

<llo_original>
// kernel: tpu_custom_call.1
$region0: #{tpu_custom_call.1}
  #allocation0 [shape = 'u32[]', space=smem, size = 0x4, offset = 0x4, fixed_abs, tag = 'smem constant byte address 0x4 - core index']
  #allocation1 [shape = 'u32[72,128]{1,0:T(1,128)}', space=vmem, size = 0x9000, scoped, tag = 'internal scratch']
  %s0 = inlined_call_operand.hbm [shape: f32[8,1024], index: 0, kind: input, shape index: {}]
  %s1 = inlined_call_operand.hbm [shape: bf16[5,1024,128], index: 1, kind: input, shape index: {}]
  %s2 = inlined_call_operand.hbm [shape: f32[1,128], index: 2, kind: input, shape index: {}]
  %s3 = inlined_call_operand.hbm [shape: bf16[5,128,128], index: 3, kind: input, shape index: {}]
  %s4 = inlined_call_operand.hbm [shape: f32[1,128], index: 4, kind: input, shape index: {}]
  %s5 = inlined_call_operand.hbm [shape: f32[8,128], index: 5, kind: output, shape index: {}]
  %s6 = sld [smem:[#allocation0]]
  $region50: #{tpu_custom_call.1} parent=0
    _
  %s8 = ssub.s32 1, %s6
  %s9 = scalar_select 0, %s8, %s6
  $region1: #{tpu_custom_call.1} parent=0
    #allocation2 [shape = 'u8[32768]{0}', space=vmem, size = 0x8000, scoped, tag = 'input window, operand 0, single buffered']
    #allocation3 [shape = 's32[1]{0}', space=sflag, size = 0x4, scoped, tag = 'scoped memory for tpu_custom_call.1']
    #allocation4 [shape = 's32[1]{0}', space=sflag, size = 0x4, scoped, tag = 'scoped memory for tpu_custom_call.1']
    #allocation5 [shape = 'u8[1310720]{0}', space=vmem, size = 0x140000, scoped, tag = 'input window, operand 1, single buffered']
    #allocation6 [shape = 's32[1]{0}', space=sflag, size = 0x4, scoped, tag = 'scoped memory for tpu_custom_call.1']
    #allocation7 [shape = 'u8[512]{0}', space=vmem, size = 0x400, scoped, tag = 'input window, operand 2, single buffered']
    #allocation8 [shape = 'u8[163840]{0}', space=vmem, size = 0x28000, scoped, tag = 'input window, operand 3, single buffered']
    #allocation9 [shape = 's32[1]{0}', space=sflag, size = 0x4, scoped, tag = 'scoped memory for tpu_custom_call.1']
    #allocation10 [shape = 'u8[512]{0}', space=vmem, size = 0x400, scoped, tag = 'input window, operand 4, single buffered']
    #allocation11 [shape = 'u8[4096]{0}', space=vmem, size = 0x1000, scoped, tag = 'output window, operand 0, single buffered']
    %10 = vsyncpa [#allocation3], 0
    %11 = vsyncpa [#allocation6], 0
    %12 = vsyncpa [#allocation9], 0
    %13 = vsyncpa [#allocation4], 0
    // Predicated region
    $region2: #{tpu_custom_call.1} parent=1 // pred_check
      _
    $region3: #{tpu_custom_call.1} parent=1 // pred_check_branch
      %15 = sbr.rel (0) target = $region5
    $region4: #{tpu_custom_call.1} parent=1 // pred_region
      %17 = vsyncadd [#allocation3], 0
      %s19 = sshll.u32 %s0, 4
      %s20 = int_to_ptr.hbm [resolvable:$true] %s19
      %s21 = sshll.u32 [#allocation2], 4
      %s22 = int_to_ptr.vmem [resolvable:$true] %s21
      %24 = dma.hbm_to_vmem [thread:$0]  %s20, 1024, %s22, [#allocation3]
    $region5: #{tpu_custom_call.1} parent=1 // pred_fallthru
      _
    // Predicated region
    $region6: #{tpu_custom_call.1} parent=1 // pred_check
      _
    $region7: #{tpu_custom_call.1} parent=1 // pred_check_branch
      %26 = sbr.rel (0) target = $region9
    $region8: #{tpu_custom_call.1} parent=1 // pred_region
      %28 = vsyncadd [#allocation6], 0
      %s29 = sshll.u32 %s1, 4
      %s30 = int_to_ptr.hbm [resolvable:$true] %s29
      %s31 = sshll.u32 [#allocation5], 4
      %s32 = int_to_ptr.vmem [resolvable:$true] %s31
      %37 = dma.hbm_to_vmem [thread:$0]  %s30, 40960, %s32, [#allocation6], 64, 64, 4
    $region9: #{tpu_custom_call.1} parent=1 // pred_fallthru
      _
    // Predicated region
    $region10: #{tpu_custom_call.1} parent=1 // pred_check
      _
    $region11: #{tpu_custom_call.1} parent=1 // pred_check_branch
      %39 = sbr.rel (0) target = $region13
    $region12: #{tpu_custom_call.1} parent=1 // pred_region
      %41 = vsyncadd [#allocation6], 0
      %s43 = sshll.u32 %s2, 4
      %s44 = int_to_ptr.hbm [resolvable:$true] %s43
      %s45 = sshll.u32 [#allocation7], 4
      %s46 = int_to_ptr.vmem [resolvable:$true] %s45
      %48 = dma.hbm_to_vmem [thread:$0]  %s44, 16, %s46, [#allocation6]
    $region13: #{tpu_custom_call.1} parent=1 // pred_fallthru
      _
    // Predicated region
    $region14: #{tpu_custom_call.1} parent=1 // pred_check
      _
    $region15: #{tpu_custom_call.1} parent=1 // pred_check_branch
      %50 = sbr.rel (0) target = $region17
    $region16: #{tpu_custom_call.1} parent=1 // pred_region
      %52 = vsyncadd [#allocation9], 0
      %s53 = sshll.u32 %s3, 4
      %s54 = int_to_ptr.hbm [resolvable:$true] %s53
      %s55 = sshll.u32 [#allocation8], 4
      %s56 = int_to_ptr.vmem [resolvable:$true] %s55
      %61 = dma.hbm_to_vmem [thread:$0]  %s54, 5120, %s56, [#allocation9], 64, 64, 4
    $region17: #{tpu_custom_call.1} parent=1 // pred_fallthru
      _
    // Predicated region
    $region18: #{tpu_custom_call.1} parent=1 // pred_check
      _
    $region19: #{tpu_custom_call.1} parent=1 // pred_check_branch
      %63 = sbr.rel (0) target = $region21
    $region20: #{tpu_custom_call.1} parent=1 // pred_region
      %65 = vsyncadd [#allocation9], 0
      %s67 = sshll.u32 %s4, 4
      %s68 = int_to_ptr.hbm [resolvable:$true] %s67
      %s69 = sshll.u32 [#allocation10], 4
      %s70 = int_to_ptr.vmem [resolvable:$true] %s69
      %72 = dma.hbm_to_vmem [thread:$0]  %s68, 16, %s70, [#allocation9]
    $region21: #{tpu_custom_call.1} parent=1 // pred_fallthru
      _
    // Predicated region
    $region22: #{tpu_custom_call.1} parent=1 // pred_check
      _
    $region23: #{tpu_custom_call.1} parent=1 // pred_check_branch
      %74 = sbr.rel (0) target = $region25
    $region24: #{tpu_custom_call.1} parent=1 // pred_region
      %76 = dma.done [#allocation3], 1024
    $region25: #{tpu_custom_call.1} parent=1 // pred_fallthru
      _
    // Predicated region
    $region26: #{tpu_custom_call.1} parent=1 // pred_check
      _
    $region27: #{tpu_custom_call.1} parent=1 // pred_check_branch
      %78 = sbr.rel (0) target = $region29
    $region28: #{tpu_custom_call.1} parent=1 // pred_region
      %80 = dma.done [#allocation6], 40960
    $region29: #{tpu_custom_call.1} parent=1 // pred_fallthru
      _
    // Predicated region
    $region30: #{tpu_custom_call.1} parent=1 // pred_check
      _
    $region31: #{tpu_custom_call.1} parent=1 // pred_check_branch
      %82 = sbr.rel (0) target = $region33
    $region32: #{tpu_custom_call.1} parent=1 // pred_region
      %84 = dma.done [#allocation6], 16
    $region33: #{tpu_custom_call.1} parent=1 // pred_fallthru
      _
    // Predicated region
    $region34: #{tpu_custom_call.1} parent=1 // pred_check
      _
    $region35: #{tpu_custom_call.1} parent=1 // pred_check_branch
      %86 = sbr.rel (0) target = $region37
    $region36: #{tpu_custom_call.1} parent=1 // pred_region
      %88 = dma.done [#allocation9], 5120
    $region37: #{tpu_custom_call.1} parent=1 // pred_fallthru
      _
    // Predicated region
    $region38: #{tpu_custom_call.1} parent=1 // pred_check
      _
    $region39: #{tpu_custom_call.1} parent=1 // pred_check_branch
      %90 = sbr.rel (0) target = $region41
    $region40: #{tpu_custom_call.1} parent=1 // pred_region
      %92 = dma.done [#allocation9], 16
    $region41: #{tpu_custom_call.1} parent=1 // pred_fallthru
      _
    %v93 = vld [vmem:[#allocation2] sm:$0xff]
    %v94 = vld [vmem:[#allocation2 + $0x8] sm:$0xff]
    %v95 = vld [vmem:[#allocation2 + $0x10] sm:$0xff]
    %v96 = vld [vmem:[#allocation2 + $0x18] sm:$0xff]
    %v97 = vld [vmem:[#allocation2 + $0x20] sm:$0xff]
    %v98 = vld [vmem:[#allocation2 + $0x28] sm:$0xff]
    %v99 = vld [vmem:[#allocation2 + $0x30] sm:$0xff]
    %v100 = vld [vmem:[#allocation2 + $0x38] sm:$0xff]
    %vm101 = vcmp.ge.f32.partialorder %v93, 0.0
    %vm102 = vcmp.ge.f32.partialorder %v94, 0.0
    %vm103 = vcmp.ge.f32.partialorder %v95, 0.0
    %vm104 = vcmp.ge.f32.partialorder %v96, 0.0
    %vm105 = vcmp.ge.f32.partialorder %v97, 0.0
    %vm106 = vcmp.ge.f32.partialorder %v98, 0.0
    %vm107 = vcmp.ge.f32.partialorder %v99, 0.0
    %vm108 = vcmp.ge.f32.partialorder %v100, 0.0
    %v109 = vand.u32 2147483647, %v93
    %v110 = vand.u32 2147483647, %v94
    %v111 = vand.u32 2147483647, %v95
    %v112 = vand.u32 2147483647, %v96
    %v113 = vand.u32 2147483647, %v97
    %v114 = vand.u32 2147483647, %v98
    %v115 = vand.u32 2147483647, %v99
    %v116 = vand.u32 2147483647, %v100
    %v117 = vsub.f32 0.0, %v109
    %v118 = vsub.f32 0.0, %v110
    %v119 = vsub.f32 0.0, %v111
    %v120 = vsub.f32 0.0, %v112
    %v121 = vsub.f32 0.0, %v113
    %v122 = vsub.f32 0.0, %v114
    %v123 = vsub.f32 0.0, %v115
    %v124 = vsub.f32 0.0, %v116
    %v125 = vmul.f32 %v117, 1.442695
    %v126 = vpow.pop %v125
    %v127 = vmul.f32 %v118, 1.442695
    %v128 = vpow.pop %v127
    %v129 = vmul.f32 %v119, 1.442695
    %v130 = vpow.pop %v129
    %v131 = vmul.f32 %v120, 1.442695
    %v132 = vpow.pop %v131
    %v133 = vmul.f32 %v121, 1.442695
    %v134 = vpow.pop %v133
    %v135 = vmul.f32 %v122, 1.442695
    %v136 = vpow.pop %v135
    %v137 = vmul.f32 %v123, 1.442695
    %v138 = vpow.pop %v137
    %v139 = vmul.f32 %v124, 1.442695
    %v140 = vpow.pop %v139
    %v141 = vmul.f32 %v126, %v126
    %v142 = vmul.f32 %v128, %v128
    %v143 = vmul.f32 %v130, %v130
    %v144 = vmul.f32 %v132, %v132
    %v145 = vmul.f32 %v134, %v134
    %v146 = vmul.f32 %v136, %v136
    %v147 = vmul.f32 %v138, %v138
    %v148 = vmul.f32 %v140, %v140
    %v149 = vadd.f32 %v126, 1.0
    %v150 = vadd.f32 %v128, 1.0
    %v151 = vadd.f32 %v130, 1.0
    %v152 = vadd.f32 %v132, 1.0
    %v153 = vadd.f32 %v134, 1.0
    %v154 = vadd.f32 %v136, 1.0
    %v155 = vadd.f32 %v138, 1.0
    %v156 = vadd.f32 %v140, 1.0
    %v157 = vrcp.pop %v149
    %v158 = vrcp.pop %v150
    %v159 = vrcp.pop %v151
    %v160 = vrcp.pop %v152
    %v161 = vrcp.pop %v153
    %v162 = vrcp.pop %v154
    %v163 = vrcp.pop %v155
    %v164 = vrcp.pop %v156
    %v165 = vadd.f32 %v141, 1.0
    %v166 = vadd.f32 %v142, 1.0
    %v167 = vadd.f32 %v143, 1.0
    %v168 = vadd.f32 %v144, 1.0
    %v169 = vadd.f32 %v145, 1.0
    %v170 = vadd.f32 %v146, 1.0
    %v171 = vadd.f32 %v147, 1.0
    %v172 = vadd.f32 %v148, 1.0
    %v173 = vrcp.pop %v165
    %v174 = vrcp.pop %v166
    %v175 = vrcp.pop %v167
    %v176 = vrcp.pop %v168
    %v177 = vrcp.pop %v169
    %v178 = vrcp.pop %v170
    %v179 = vrcp.pop %v171
    %v180 = vrcp.pop %v172
    %v181 = vmax.f32 %v93, 0.0
    %v182 = vmax.f32 %v94, 0.0
    %v183 = vmax.f32 %v95, 0.0
    %v184 = vmax.f32 %v96, 0.0
    %v185 = vmax.f32 %v97, 0.0
    %v186 = vmax.f32 %v98, 0.0
    %v187 = vmax.f32 %v99, 0.0
    %v188 = vmax.f32 %v100, 0.0
    %v189 = vsel %vm101, 1.0, %v126
    %v190 = vsel %vm102, 1.0, %v128
    %v191 = vsel %vm103, 1.0, %v130
    %v192 = vsel %vm104, 1.0, %v132
    %v193 = vsel %vm105, 1.0, %v134
    %v194 = vsel %vm106, 1.0, %v136
    %v195 = vsel %vm107, 1.0, %v138
    %v196 = vsel %vm108, 1.0, %v140
    %v197 = vmul.f32 %v189, %v157
    %v198 = vmul.f32 %v190, %v158
    %v199 = vmul.f32 %v191, %v159
    %v200 = vmul.f32 %v192, %v160
    %v201 = vmul.f32 %v193, %v161
    %v202 = vmul.f32 %v194, %v162
    %v203 = vmul.f32 %v195, %v163
    %v204 = vmul.f32 %v196, %v164
    %v205 = vsel %vm101, 1.0, -1.0
    %v206 = vsel %vm102, 1.0, -1.0
    %v207 = vsel %vm103, 1.0, -1.0
    %v208 = vsel %vm104, 1.0, -1.0
    %v209 = vsel %vm105, 1.0, -1.0
    %v210 = vsel %vm106, 1.0, -1.0
    %v211 = vsel %vm107, 1.0, -1.0
    %v212 = vsel %vm108, 1.0, -1.0
    %v213 = vsub.f32 1.0, %v141
    %v214 = vsub.f32 1.0, %v142
    %v215 = vsub.f32 1.0, %v143
    %v216 = vsub.f32 1.0, %v144
    %v217 = vsub.f32 1.0, %v145
    %v218 = vsub.f32 1.0, %v146
    %v219 = vsub.f32 1.0, %v147
    %v220 = vsub.f32 1.0, %v148
    %v221 = vmul.f32 %v205, %v213
    %v222 = vmul.f32 %v206, %v214
    %v223 = vmul.f32 %v207, %v215
    %v224 = vmul.f32 %v208, %v216
    %v225 = vmul.f32 %v209, %v217
    %v226 = vmul.f32 %v210, %v218
    %v227 = vmul.f32 %v211, %v219
    %v228 = vmul.f32 %v212, %v220
    %v229 = vmul.f32 %v221, %v173
    %v230 = vmul.f32 %v222, %v174
    %v231 = vmul.f32 %v223, %v175
    %v232 = vmul.f32 %v224, %v176
    %v233 = vmul.f32 %v225, %v177
    %v234 = vmul.f32 %v226, %v178
    %v235 = vmul.f32 %v227, %v179
    %v236 = vmul.f32 %v228, %v180
    %v237 = vand.u32 2147483647, %v93
    %vm238 = vcmp.le.f32.partialorder %v237, 0.7853982
    %vm239 = vcmp.lt.s32.totalorder %v93, 0
    %v240 = vand.u32 %v93, 2139095040
    %v241 = vshrl.u32 %v240, 23
    %v242 = vsub.s32 %v241, 127
    %v243 = vand.u32 2147483647, %v93
    %v244 = vand.u32 %v243, 8388607
    %v245 = vor.u32 %v244, 8388608
    %v246 = vsub.s32 0, %v245
    %v247 = vadd.s32 %v242, 1
    %vm248 = vcmp.gt.s32.totalorder %v247, 0
    %v249 = vsel %vm248, %v247, 0
    %v250 = vshrl.u32 %v249, 5
    %v251 = vand.u32 %v249, 31
    %v252 = vsub.s32 32, %v251
    %v253 = vshrl.u32 683565275, %v252
    %v254 = vshll.u32 683565275, %v251
    %v255 = vshrl.u32 2475754826, %v252
    %v256 = vor.u32 %v254, %v255
    %v257 = vshll.u32 2475754826, %v251
    %v258 = vshrl.u32 2131351028, %v252
    %v259 = vor.u32 %v257, %v258
    %v260 = vshll.u32 2131351028, %v251
    %v261 = vshrl.u32 2102212464, %v252
    %v262 = vor.u32 %v260, %v261
    %v263 = vshll.u32 2102212464, %v251
    %v264 = vshrl.u32 920167782, %v252
    %v265 = vor.u32 %v263, %v264
    %v266 = vshll.u32 920167782, %v251
    %v267 = vshrl.u32 1326507024, %v252
    %v268 = vor.u32 %v266, %v267
    %vm269 = vcmp.lt.s32.totalorder %v250, 1
    %vm270 = vcmp.lt.s32.totalorder %v250, 2
    %vm271 = vcmp.lt.s32.totalorder %v250, 3
    %vm272 = vcmp.lt.s32.totalorder %v250, 4
    %v273 = vsel %vm269, %v253, %v256
    %v274 = vsel %vm272, %v262, 2102212464
    %v275 = vsel %vm271, %v259, %v274
    %v276 = vsel %vm270, %v273, %v275
    %v277 = vsel %vm269, %v256, %v259
    %v278 = vsel %vm272, %v265, 920167782
    %v279 = vsel %vm271, %v262, %v278
    %v280 = vsel %vm270, %v277, %v279
    %v281 = vsel %vm269, %v259, %v262
    %v282 = vsel %vm272, %v268, 1326507024
    %v283 = vsel %vm271, %v265, %v282
    %v284 = vsel %vm270, %v281, %v283
    %v285 = vshll.u32 %v245, 8
    %v286 = vand.u32 %v285, 65535
    %v287 = vshrl.u32 %v285, 16
    %v288 = vand.u32 %v284, 65535
    %v289 = vshrl.u32 %v284, 16
    %v290 = vmul.u32 %v286, %v288
    %v291 = vmul.u32 %v286, %v289
    %v292 = vmul.u32 %v287, %v288
    %v293 = vmul.u32 %v287, %v289
    %v294 = vshll.u32 %v291, 16
    %v295 = vshrl.u32 %v291, 16
    %v296 = vshll.u32 %v292, 16
    %v297 = vshrl.u32 %v292, 16
    %vm298 = vc.u32 %v290, %v294
    %v299 = vsel %vm298, 1, 0
    %v300 = vadd.s32 %v290, %v294
    %v301 = vadd.s32 %v293, %v299
    %vm302 = vc.u32 %v300, %v296
    %v303 = vsel %vm302, 1, 0
    %v304 = vadd.s32 %v300, %v296
    %v305 = vadd.s32 %v301, %v303
    %v306 = vadd.s32 %v305, %v295
    %v307 = vadd.s32 %v306, %v297
    %v308 = vand.u32 %v285, 65535
    %v309 = vshrl.u32 %v285, 16
    %v310 = vand.u32 %v280, 65535
    %v311 = vshrl.u32 %v280, 16
    %v312 = vmul.u32 %v308, %v310
    %v313 = vmul.u32 %v308, %v311
    %v314 = vmul.u32 %v309, %v310
    %v315 = vmul.u32 %v309, %v311
    %v316 = vshll.u32 %v313, 16
    %v317 = vshrl.u32 %v313, 16
    %v318 = vshll.u32 %v314, 16
    %v319 = vshrl.u32 %v314, 16
    %vm320 = vc.u32 %v312, %v316
    %v321 = vsel %vm320, 1, 0
    %v322 = vadd.s32 %v312, %v316
    %v323 = vadd.s32 %v315, %v321
    %vm324 = vc.u32 %v322, %v318
    %v325 = vsel %vm324, 1, 0
    %v326 = vadd.s32 %v322, %v318
    %v327 = vadd.s32 %v323, %v325
    %v328 = vadd.s32 %v327, %v317
    %v329 = vadd.s32 %v328, %v319
    %v330 = vmul.u32 %v285, %v276
    %v331 = vadd.s32 %v307, %v326
    %vm332 = vc.u32 %v307, %v326
    %v333 = vadd.s32 %v329, 1
    %v334 = vsel %vm332, %v333, %v329
    %v335 = vadd.s32 %v330, %v334
    %v336 = vadd.s32 %v335, 536870912
    %v337 = vshrl.u32 %v336, 30
    %v338 = vshll.u32 %v337, 30
    %v339 = vsub.s32 %v335, %v338
    %vm340 = vcmp.lt.s32.totalorder %v339, 0
    %v341 = vsub.s32 0, %v339
    %v342 = vsel %vm340, %v341, %v339
    %v343 = vclz %v342
    %v344 = vsub.s32 %v343, 2
    %vm345 = vcmp.gt.s32.totalorder 0, %v344
    %v346 = vsel %vm345, 0, %v344
    %v347 = vsub.s32 32, %v346
    %v348 = vshll.u32 %v339, %v346
    %v349 = vshrl.u32 %v331, %v347
    %v350 = vor.u32 %v348, %v349
    %v351 = vsub.s32 4294967266, %v346
    %v352 = vadd.s32 %v351, 127
    %v353 = vshll.u32 %v352, 23
    %v354 = vor.u32 4788187, %v353
    %v355 = vand.u32 2147483647, %v354
    %v357 = vcvt.s32.f32 %v350
    %v358 = vmul.f32 %v357, %v355
    %v359 = vxor.u32 %v358, 2147483648
    %v360 = vsel %vm239, %v359, %v358
    %v361 = vsub.s32 4, %v337
    %v362 = vsel %vm239, %v361, %v337
    %v363 = vsel %vm238, %v93, %v360
    %v364 = vsel %vm238, 0, %v362
    %v365 = vmul.f32 %v363, %v363
    %v366 = vmul.f32 %v365, -0.001358992
    %v367 = vadd.f32 %v366, 0.041655596
    %v368 = vmul.f32 %v365, %v367
    %v369 = vadd.f32 %v368, -0.4999988
    %v370 = vmul.f32 %v365, %v369
    %v371 = vadd.f32 1.0, %v370
    %v372 = vmul.f32 %v363, %v363
    %v373 = vmul.f32 %v372, -0.00019511016
    %v374 = vadd.f32 %v373, 0.008332121
    %v375 = vmul.f32 %v372, %v374
    %v376 = vadd.f32 %v375, -0.16666654
    %v377 = vmul.f32 %v372, %v376
    %v378 = vadd.f32 %v377, 1.0
    %v379 = vmul.f32 %v378, %v363
    %vm380 = vweird.f32 %v93
    %v381 = vadd.s32 %v364, 3
    %v382 = vand.u32 %v381, 3
    %vm383 = vcmp.lt.s32.totalorder %v382, 2
    %vm384 = vcmp.eq.s32.totalorder %v382, 0
    %v385 = vxor.u32 %v379, 2147483648
    %v386 = vsel %vm384, %v371, %v385
    %vm387 = vcmp.eq.s32.totalorder %v382, 2
    %v388 = vxor.u32 %v371, 2147483648
    %v389 = vsel %vm387, %v388, %v379
    %v390 = vsel %vm383, %v386, %v389
    %v391 = vsel %vm380, nan, %v390
    %v392 = vand.u32 2147483647, %v94
    %vm393 = vcmp.le.f32.partialorder %v392, 0.7853982
    %vm394 = vcmp.lt.s32.totalorder %v94, 0
    %v395 = vand.u32 %v94, 2139095040
    %v396 = vshrl.u32 %v395, 23
    %v397 = vsub.s32 %v396, 127
    %v398 = vand.u32 2147483647, %v94
    %v399 = vand.u32 %v398, 8388607
    %v400 = vor.u32 %v399, 8388608
    %v401 = vsub.s32 0, %v400
    %v402 = vadd.s32 %v397, 1
    %vm403 = vcmp.gt.s32.totalorder %v402, 0
    %v404 = vsel %vm403, %v402, 0
    %v405 = vshrl.u32 %v404, 5
    %v406 = vand.u32 %v404, 31
    %v407 = vsub.s32 32, %v406
    %v408 = vshrl.u32 683565275, %v407
    %v409 = vshll.u32 683565275, %v406
    %v410 = vshrl.u32 2475754826, %v407
    %v411 = vor.u32 %v409, %v410
    %v412 = vshll.u32 2475754826, %v406
    %v413 = vshrl.u32 2131351028, %v407
    %v414 = vor.u32 %v412, %v413
    %v415 = vshll.u32 2131351028, %v406
    %v416 = vshrl.u32 2102212464, %v407
    %v417 = vor.u32 %v415, %v416
    %v418 = vshll.u32 2102212464, %v406
    %v419 = vshrl.u32 920167782, %v407
    %v420 = vor.u32 %v418, %v419
    %v421 = vshll.u32 920167782, %v406
    %v422 = vshrl.u32 1326507024, %v407
    %v423 = vor.u32 %v421, %v422
    %vm424 = vcmp.lt.s32.totalorder %v405, 1
    %vm425 = vcmp.lt.s32.totalorder %v405, 2
    %vm426 = vcmp.lt.s32.totalorder %v405, 3
    %vm427 = vcmp.lt.s32.totalorder %v405, 4
    %v428 = vsel %vm424, %v408, %v411
    %v429 = vsel %vm427, %v417, 2102212464
    %v430 = vsel %vm426, %v414, %v429
    %v431 = vsel %vm425, %v428, %v430
    %v432 = vsel %vm424, %v411, %v414
    %v433 = vsel %vm427, %v420, 920167782
    %v434 = vsel %vm426, %v417, %v433
    %v435 = vsel %vm425, %v432, %v434
    %v436 = vsel %vm424, %v414, %v417
    %v437 = vsel %vm427, %v423, 1326507024
    %v438 = vsel %vm426, %v420, %v437
    %v439 = vsel %vm425, %v436, %v438
    %v440 = vshll.u32 %v400, 8
    %v441 = vand.u32 %v440, 65535
    %v442 = vshrl.u32 %v440, 16
    %v443 = vand.u32 %v439, 65535
    %v444 = vshrl.u32 %v439, 16
    %v445 = vmul.u32 %v441, %v443
    %v446 = vmul.u32 %v441, %v444
    %v447 = vmul.u32 %v442, %v443
    %v448 = vmul.u32 %v442, %v444
    %v449 = vshll.u32 %v446, 16
    %v450 = vshrl.u32 %v446, 16
    %v451 = vshll.u32 %v447, 16
    %v452 = vshrl.u32 %v447, 16
    %vm453 = vc.u32 %v445, %v449
    %v454 = vsel %vm453, 1, 0
    %v455 = vadd.s32 %v445, %v449
    %v456 = vadd.s32 %v448, %v454
    %vm457 = vc.u32 %v455, %v451
    %v458 = vsel %vm457, 1, 0
    %v459 = vadd.s32 %v455, %v451
    %v460 = vadd.s32 %v456, %v458
    %v461 = vadd.s32 %v460, %v450
    %v462 = vadd.s32 %v461, %v452
    %v463 = vand.u32 %v440, 65535
    %v464 = vshrl.u32 %v440, 16
    %v465 = vand.u32 %v435, 65535
    %v466 = vshrl.u32 %v435, 16
    %v467 = vmul.u32 %v463, %v465
    %v468 = vmul.u32 %v463, %v466
    %v469 = vmul.u32 %v464, %v465
    %v470 = vmul.u32 %v464, %v466
    %v471 = vshll.u32 %v468, 16
    %v472 = vshrl.u32 %v468, 16
    %v473 = vshll.u32 %v469, 16
    %v474 = vshrl.u32 %v469, 16
    %vm475 = vc.u32 %v467, %v471
    %v476 = vsel %vm475, 1, 0
    %v477 = vadd.s32 %v467, %v471
    %v478 = vadd.s32 %v470, %v476
    %vm479 = vc.u32 %v477, %v473
    %v480 = vsel %vm479, 1, 0
    %v481 = vadd.s32 %v477, %v473
    %v482 = vadd.s32 %v478, %v480
    %v483 = vadd.s32 %v482, %v472
    %v484 = vadd.s32 %v483, %v474
    %v485 = vmul.u32 %v440, %v431
    %v486 = vadd.s32 %v462, %v481
    %vm487 = vc.u32 %v462, %v481
    %v488 = vadd.s32 %v484, 1
    %v489 = vsel %vm487, %v488, %v484
    %v490 = vadd.s32 %v485, %v489
    %v491 = vadd.s32 %v490, 536870912
    %v492 = vshrl.u32 %v491, 30
    %v493 = vshll.u32 %v492, 30
    %v494 = vsub.s32 %v490, %v493
    %vm495 = vcmp.lt.s32.totalorder %v494, 0
    %v496 = vsub.s32 0, %v494
    %v497 = vsel %vm495, %v496, %v494
    %v498 = vclz %v497
    %v499 = vsub.s32 %v498, 2
    %vm500 = vcmp.gt.s32.totalorder 0, %v499
    %v501 = vsel %vm500, 0, %v499
    %v502 = vsub.s32 32, %v501
    %v503 = vshll.u32 %v494, %v501
    %v504 = vshrl.u32 %v486, %v502
    %v505 = vor.u32 %v503, %v504
    %v506 = vsub.s32 4294967266, %v501
    %v507 = vadd.s32 %v506, 127
    %v508 = vshll.u32 %v507, 23
    %v509 = vor.u32 4788187, %v508
    %v510 = vand.u32 2147483647, %v509
    %v512 = vcvt.s32.f32 %v505
    %v513 = vmul.f32 %v512, %v510
    %v514 = vxor.u32 %v513, 2147483648
    %v515 = vsel %vm394, %v514, %v513
    %v516 = vsub.s32 4, %v492
    %v517 = vsel %vm394, %v516, %v492
    %v518 = vsel %vm393, %v94, %v515
    %v519 = vsel %vm393, 0, %v517
    %v520 = vmul.f32 %v518, %v518
    %v521 = vmul.f32 %v520, -0.001358992
    %v522 = vadd.f32 %v521, 0.041655596
    %v523 = vmul.f32 %v520, %v522
    %v524 = vadd.f32 %v523, -0.4999988
    %v525 = vmul.f32 %v520, %v524
    %v526 = vadd.f32 1.0, %v525
    %v527 = vmul.f32 %v518, %v518
    %v528 = vmul.f32 %v527, -0.00019511016
    %v529 = vadd.f32 %v528, 0.008332121
    %v530 = vmul.f32 %v527, %v529
    %v531 = vadd.f32 %v530, -0.16666654
    %v532 = vmul.f32 %v527, %v531
    %v533 = vadd.f32 %v532, 1.0
    %v534 = vmul.f32 %v533, %v518
    %vm535 = vweird.f32 %v94
    %v536 = vadd.s32 %v519, 3
    %v537 = vand.u32 %v536, 3
    %vm538 = vcmp.lt.s32.totalorder %v537, 2
    %vm539 = vcmp.eq.s32.totalorder %v537, 0
    %v540 = vxor.u32 %v534, 2147483648
    %v541 = vsel %vm539, %v526, %v540
    %vm542 = vcmp.eq.s32.totalorder %v537, 2
    %v543 = vxor.u32 %v526, 2147483648
    %v544 = vsel %vm542, %v543, %v534
    %v545 = vsel %vm538, %v541, %v544
    %v546 = vsel %vm535, nan, %v545
    %v547 = vand.u32 2147483647, %v95
    %vm548 = vcmp.le.f32.partialorder %v547, 0.7853982
    %vm549 = vcmp.lt.s32.totalorder %v95, 0
    %v550 = vand.u32 %v95, 2139095040
    %v551 = vshrl.u32 %v550, 23
    %v552 = vsub.s32 %v551, 127
    %v553 = vand.u32 2147483647, %v95
    %v554 = vand.u32 %v553, 8388607
    %v555 = vor.u32 %v554, 8388608
    %v556 = vsub.s32 0, %v555
    %v557 = vadd.s32 %v552, 1
    %vm558 = vcmp.gt.s32.totalorder %v557, 0
    %v559 = vsel %vm558, %v557, 0
    %v560 = vshrl.u32 %v559, 5
    %v561 = vand.u32 %v559, 31
    %v562 = vsub.s32 32, %v561
    %v563 = vshrl.u32 683565275, %v562
    %v564 = vshll.u32 683565275, %v561
    %v565 = vshrl.u32 2475754826, %v562
    %v566 = vor.u32 %v564, %v565
    %v567 = vshll.u32 2475754826, %v561
    %v568 = vshrl.u32 2131351028, %v562
    %v569 = vor.u32 %v567, %v568
    %v570 = vshll.u32 2131351028, %v561
    %v571 = vshrl.u32 2102212464, %v562
    %v572 = vor.u32 %v570, %v571
    %v573 = vshll.u32 2102212464, %v561
    %v574 = vshrl.u32 920167782, %v562
    %v575 = vor.u32 %v573, %v574
    %v576 = vshll.u32 920167782, %v561
    %v577 = vshrl.u32 1326507024, %v562
    %v578 = vor.u32 %v576, %v577
    %vm579 = vcmp.lt.s32.totalorder %v560, 1
    %vm580 = vcmp.lt.s32.totalorder %v560, 2
    %vm581 = vcmp.lt.s32.totalorder %v560, 3
    %vm582 = vcmp.lt.s32.totalorder %v560, 4
    %v583 = vsel %vm579, %v563, %v566
    %v584 = vsel %vm582, %v572, 2102212464
    %v585 = vsel %vm581, %v569, %v584
    %v586 = vsel %vm580, %v583, %v585
    %v587 = vsel %vm579, %v566, %v569
    %v588 = vsel %vm582, %v575, 920167782
    %v589 = vsel %vm581, %v572, %v588
    %v590 = vsel %vm580, %v587, %v589
    %v591 = vsel %vm579, %v569, %v572
    %v592 = vsel %vm582, %v578, 1326507024
    %v593 = vsel %vm581, %v575, %v592
    %v594 = vsel %vm580, %v591, %v593
    %v595 = vshll.u32 %v555, 8
    %v596 = vand.u32 %v595, 65535
    %v597 = vshrl.u32 %v595, 16
    %v598 = vand.u32 %v594, 65535
    %v599 = vshrl.u32 %v594, 16
    %v600 = vmul.u32 %v596, %v598
    %v601 = vmul.u32 %v596, %v599
    %v602 = vmul.u32 %v597, %v598
    %v603 = vmul.u32 %v597, %v599
    %v604 = vshll.u32 %v601, 16
    %v605 = vshrl.u32 %v601, 16
    %v606 = vshll.u32 %v602, 16
    %v607 = vshrl.u32 %v602, 16
    %vm608 = vc.u32 %v600, %v604
    %v609 = vsel %vm608, 1, 0
    %v610 = vadd.s32 %v600, %v604
    %v611 = vadd.s32 %v603, %v609
    %vm612 = vc.u32 %v610, %v606
    %v613 = vsel %vm612, 1, 0
    %v614 = vadd.s32 %v610, %v606
    %v615 = vadd.s32 %v611, %v613
    %v616 = vadd.s32 %v615, %v605
    %v617 = vadd.s32 %v616, %v607
    %v618 = vand.u32 %v595, 65535
    %v619 = vshrl.u32 %v595, 16
    %v620 = vand.u32 %v590, 65535
    %v621 = vshrl.u32 %v590, 16
    %v622 = vmul.u32 %v618, %v620
    %v623 = vmul.u32 %v618, %v621
    %v624 = vmul.u32 %v619, %v620
    %v625 = vmul.u32 %v619, %v621
    %v626 = vshll.u32 %v623, 16
    %v627 = vshrl.u32 %v623, 16
    %v628 = vshll.u32 %v624, 16
    %v629 = vshrl.u32 %v624, 16
    %vm630 = vc.u32 %v622, %v626
    %v631 = vsel %vm630, 1, 0
    %v632 = vadd.s32 %v622, %v626
    %v633 = vadd.s32 %v625, %v631
    %vm634 = vc.u32 %v632, %v628
    %v635 = vsel %vm634, 1, 0
    %v636 = vadd.s32 %v632, %v628
    %v637 = vadd.s32 %v633, %v635
    %v638 = vadd.s32 %v637, %v627
    %v639 = vadd.s32 %v638, %v629
    %v640 = vmul.u32 %v595, %v586
    %v641 = vadd.s32 %v617, %v636
    %vm642 = vc.u32 %v617, %v636
    %v643 = vadd.s32 %v639, 1
    %v644 = vsel %vm642, %v643, %v639
    %v645 = vadd.s32 %v640, %v644
    %v646 = vadd.s32 %v645, 536870912
    %v647 = vshrl.u32 %v646, 30
    %v648 = vshll.u32 %v647, 30
    %v649 = vsub.s32 %v645, %v648
    %vm650 = vcmp.lt.s32.totalorder %v649, 0
    %v651 = vsub.s32 0, %v649
    %v652 = vsel %vm650, %v651, %v649
    %v653 = vclz %v652
    %v654 = vsub.s32 %v653, 2
    %vm655 = vcmp.gt.s32.totalorder 0, %v654
    %v656 = vsel %vm655, 0, %v654
    %v657 = vsub.s32 32, %v656
    %v658 = vshll.u32 %v649, %v656
    %v659 = vshrl.u32 %v641, %v657
    %v660 = vor.u32 %v658, %v659
    %v661 = vsub.s32 4294967266, %v656
    %v662 = vadd.s32 %v661, 127
    %v663 = vshll.u32 %v662, 23
    %v664 = vor.u32 4788187, %v663
    %v665 = vand.u32 2147483647, %v664
    %v667 = vcvt.s32.f32 %v660
    %v668 = vmul.f32 %v667, %v665
    %v669 = vxor.u32 %v668, 2147483648
    %v670 = vsel %vm549, %v669, %v668
    %v671 = vsub.s32 4, %v647
    %v672 = vsel %vm549, %v671, %v647
    %v673 = vsel %vm548, %v95, %v670
    %v674 = vsel %vm548, 0, %v672
    %v675 = vmul.f32 %v673, %v673
    %v676 = vmul.f32 %v675, -0.001358992
    %v677 = vadd.f32 %v676, 0.041655596
    %v678 = vmul.f32 %v675, %v677
    %v679 = vadd.f32 %v678, -0.4999988
    %v680 = vmul.f32 %v675, %v679
    %v681 = vadd.f32 1.0, %v680
    %v682 = vmul.f32 %v673, %v673
    %v683 = vmul.f32 %v682, -0.00019511016
    %v684 = vadd.f32 %v683, 0.008332121
    %v685 = vmul.f32 %v682, %v684
    %v686 = vadd.f32 %v685, -0.16666654
    %v687 = vmul.f32 %v682, %v686
    %v688 = vadd.f32 %v687, 1.0
    %v689 = vmul.f32 %v688, %v673
    %vm690 = vweird.f32 %v95
    %v691 = vadd.s32 %v674, 3
    %v692 = vand.u32 %v691, 3
    %vm693 = vcmp.lt.s32.totalorder %v692, 2
    %vm694 = vcmp.eq.s32.totalorder %v692, 0
    %v695 = vxor.u32 %v689, 2147483648
    %v696 = vsel %vm694, %v681, %v695
    %vm697 = vcmp.eq.s32.totalorder %v692, 2
    %v698 = vxor.u32 %v681, 2147483648
    %v699 = vsel %vm697, %v698, %v689
    %v700 = vsel %vm693, %v696, %v699
    %v701 = vsel %vm690, nan, %v700
    %v702 = vand.u32 2147483647, %v96
    %vm703 = vcmp.le.f32.partialorder %v702, 0.7853982
    %vm704 = vcmp.lt.s32.totalorder %v96, 0
    %v705 = vand.u32 %v96, 2139095040
    %v706 = vshrl.u32 %v705, 23
    %v707 = vsub.s32 %v706, 127
    %v708 = vand.u32 2147483647, %v96
    %v709 = vand.u32 %v708, 8388607
    %v710 = vor.u32 %v709, 8388608
    %v711 = vsub.s32 0, %v710
    %v712 = vadd.s32 %v707, 1
    %vm713 = vcmp.gt.s32.totalorder %v712, 0
    %v714 = vsel %vm713, %v712, 0
    %v715 = vshrl.u32 %v714, 5
    %v716 = vand.u32 %v714, 31
    %v717 = vsub.s32 32, %v716
    %v718 = vshrl.u32 683565275, %v717
    %v719 = vshll.u32 683565275, %v716
    %v720 = vshrl.u32 2475754826, %v717
    %v721 = vor.u32 %v719, %v720
    %v722 = vshll.u32 2475754826, %v716
    %v723 = vshrl.u32 2131351028, %v717
    %v724 = vor.u32 %v722, %v723
    %v725 = vshll.u32 2131351028, %v716
    %v726 = vshrl.u32 2102212464, %v717
    %v727 = vor.u32 %v725, %v726
    %v728 = vshll.u32 2102212464, %v716
    %v729 = vshrl.u32 920167782, %v717
    %v730 = vor.u32 %v728, %v729
    %v731 = vshll.u32 920167782, %v716
    %v732 = vshrl.u32 1326507024, %v717
    %v733 = vor.u32 %v731, %v732
    %vm734 = vcmp.lt.s32.totalorder %v715, 1
    %vm735 = vcmp.lt.s32.totalorder %v715, 2
    %vm736 = vcmp.lt.s32.totalorder %v715, 3
    %vm737 = vcmp.lt.s32.totalorder %v715, 4
    %v738 = vsel %vm734, %v718, %v721
    %v739 = vsel %vm737, %v727, 2102212464
    %v740 = vsel %vm736, %v724, %v739
    %v741 = vsel %vm735, %v738, %v740
    %v742 = vsel %vm734, %v721, %v724
    %v743 = vsel %vm737, %v730, 920167782
    %v744 = vsel %vm736, %v727, %v743
    %v745 = vsel %vm735, %v742, %v744
    %v746 = vsel %vm734, %v724, %v727
    %v747 = vsel %vm737, %v733, 1326507024
    %v748 = vsel %vm736, %v730, %v747
    %v749 = vsel %vm735, %v746, %v748
    %v750 = vshll.u32 %v710, 8
    %v751 = vand.u32 %v750, 65535
    %v752 = vshrl.u32 %v750, 16
    %v753 = vand.u32 %v749, 65535
    %v754 = vshrl.u32 %v749, 16
    %v755 = vmul.u32 %v751, %v753
    %v756 = vmul.u32 %v751, %v754
    %v757 = vmul.u32 %v752, %v753
    %v758 = vmul.u32 %v752, %v754
    %v759 = vshll.u32 %v756, 16
    %v760 = vshrl.u32 %v756, 16
    %v761 = vshll.u32 %v757, 16
    %v762 = vshrl.u32 %v757, 16
    %vm763 = vc.u32 %v755, %v759
    %v764 = vsel %vm763, 1, 0
    %v765 = vadd.s32 %v755, %v759
    %v766 = vadd.s32 %v758, %v764
    %vm767 = vc.u32 %v765, %v761
    %v768 = vsel %vm767, 1, 0
    %v769 = vadd.s32 %v765, %v761
    %v770 = vadd.s32 %v766, %v768
    %v771 = vadd.s32 %v770, %v760
    %v772 = vadd.s32 %v771, %v762
    %v773 = vand.u32 %v750, 65535
    %v774 = vshrl.u32 %v750, 16
    %v775 = vand.u32 %v745, 65535
    %v776 = vshrl.u32 %v745, 16
    %v777 = vmul.u32 %v773, %v775
    %v778 = vmul.u32 %v773, %v776
    %v779 = vmul.u32 %v774, %v775
    %v780 = vmul.u32 %v774, %v776
    %v781 = vshll.u32 %v778, 16
    %v782 = vshrl.u32 %v778, 16
    %v783 = vshll.u32 %v779, 16
    %v784 = vshrl.u32 %v779, 16
    %vm785 = vc.u32 %v777, %v781
    %v786 = vsel %vm785, 1, 0
    %v787 = vadd.s32 %v777, %v781
    %v788 = vadd.s32 %v780, %v786
    %vm789 = vc.u32 %v787, %v783
    %v790 = vsel %vm789, 1, 0
    %v791 = vadd.s32 %v787, %v783
    %v792 = vadd.s32 %v788, %v790
    %v793 = vadd.s32 %v792, %v782
    %v794 = vadd.s32 %v793, %v784
    %v795 = vmul.u32 %v750, %v741
    %v796 = vadd.s32 %v772, %v791
    %vm797 = vc.u32 %v772, %v791
    %v798 = vadd.s32 %v794, 1
    %v799 = vsel %vm797, %v798, %v794
    %v800 = vadd.s32 %v795, %v799
    %v801 = vadd.s32 %v800, 536870912
    %v802 = vshrl.u32 %v801, 30
    %v803 = vshll.u32 %v802, 30
    %v804 = vsub.s32 %v800, %v803
    %vm805 = vcmp.lt.s32.totalorder %v804, 0
    %v806 = vsub.s32 0, %v804
    %v807 = vsel %vm805, %v806, %v804
    %v808 = vclz %v807
    %v809 = vsub.s32 %v808, 2
    %vm810 = vcmp.gt.s32.totalorder 0, %v809
    %v811 = vsel %vm810, 0, %v809
    %v812 = vsub.s32 32, %v811
    %v813 = vshll.u32 %v804, %v811
    %v814 = vshrl.u32 %v796, %v812
    %v815 = vor.u32 %v813, %v814
    %v816 = vsub.s32 4294967266, %v811
    %v817 = vadd.s32 %v816, 127
    %v818 = vshll.u32 %v817, 23
    %v819 = vor.u32 4788187, %v818
    %v820 = vand.u32 2147483647, %v819
    %v822 = vcvt.s32.f32 %v815
    %v823 = vmul.f32 %v822, %v820
    %v824 = vxor.u32 %v823, 2147483648
    %v825 = vsel %vm704, %v824, %v823
    %v826 = vsub.s32 4, %v802
    %v827 = vsel %vm704, %v826, %v802
    %v828 = vsel %vm703, %v96, %v825
    %v829 = vsel %vm703, 0, %v827
    %v830 = vmul.f32 %v828, %v828
    %v831 = vmul.f32 %v830, -0.001358992
    %v832 = vadd.f32 %v831, 0.041655596
    %v833 = vmul.f32 %v830, %v832
    %v834 = vadd.f32 %v833, -0.4999988
    %v835 = vmul.f32 %v830, %v834
    %v836 = vadd.f32 1.0, %v835
    %v837 = vmul.f32 %v828, %v828
    %v838 = vmul.f32 %v837, -0.00019511016
    %v839 = vadd.f32 %v838, 0.008332121
    %v840 = vmul.f32 %v837, %v839
    %v841 = vadd.f32 %v840, -0.16666654
    %v842 = vmul.f32 %v837, %v841
    %v843 = vadd.f32 %v842, 1.0
    %v844 = vmul.f32 %v843, %v828
    %vm845 = vweird.f32 %v96
    %v846 = vadd.s32 %v829, 3
    %v847 = vand.u32 %v846, 3
    %vm848 = vcmp.lt.s32.totalorder %v847, 2
    %vm849 = vcmp.eq.s32.totalorder %v847, 0
    %v850 = vxor.u32 %v844, 2147483648
    %v851 = vsel %vm849, %v836, %v850
    %vm852 = vcmp.eq.s32.totalorder %v847, 2
    %v853 = vxor.u32 %v836, 2147483648
    %v854 = vsel %vm852, %v853, %v844
    %v855 = vsel %vm848, %v851, %v854
    %v856 = vsel %vm845, nan, %v855
    %v857 = vand.u32 2147483647, %v97
    %vm858 = vcmp.le.f32.partialorder %v857, 0.7853982
    %vm859 = vcmp.lt.s32.totalorder %v97, 0
    %v860 = vand.u32 %v97, 2139095040
    %v861 = vshrl.u32 %v860, 23
    %v862 = vsub.s32 %v861, 127
    %v863 = vand.u32 2147483647, %v97
    %v864 = vand.u32 %v863, 8388607
    %v865 = vor.u32 %v864, 8388608
    %v866 = vsub.s32 0, %v865
    %v867 = vadd.s32 %v862, 1
    %vm868 = vcmp.gt.s32.totalorder %v867, 0
    %v869 = vsel %vm868, %v867, 0
    %v870 = vshrl.u32 %v869, 5
    %v871 = vand.u32 %v869, 31
    %v872 = vsub.s32 32, %v871
    %v873 = vshrl.u32 683565275, %v872
    %v874 = vshll.u32 683565275, %v871
    %v875 = vshrl.u32 2475754826, %v872
    %v876 = vor.u32 %v874, %v875
    %v877 = vshll.u32 2475754826, %v871
    %v878 = vshrl.u32 2131351028, %v872
    %v879 = vor.u32 %v877, %v878
    %v880 = vshll.u32 2131351028, %v871
    %v881 = vshrl.u32 2102212464, %v872
    %v882 = vor.u32 %v880, %v881
    %v883 = vshll.u32 2102212464, %v871
    %v884 = vshrl.u32 920167782, %v872
    %v885 = vor.u32 %v883, %v884
    %v886 = vshll.u32 920167782, %v871
    %v887 = vshrl.u32 1326507024, %v872
    %v888 = vor.u32 %v886, %v887
    %vm889 = vcmp.lt.s32.totalorder %v870, 1
    %vm890 = vcmp.lt.s32.totalorder %v870, 2
    %vm891 = vcmp.lt.s32.totalorder %v870, 3
    %vm892 = vcmp.lt.s32.totalorder %v870, 4
    %v893 = vsel %vm889, %v873, %v876
    %v894 = vsel %vm892, %v882, 2102212464
    %v895 = vsel %vm891, %v879, %v894
    %v896 = vsel %vm890, %v893, %v895
    %v897 = vsel %vm889, %v876, %v879
    %v898 = vsel %vm892, %v885, 920167782
    %v899 = vsel %vm891, %v882, %v898
    %v900 = vsel %vm890, %v897, %v899
    %v901 = vsel %vm889, %v879, %v882
    %v902 = vsel %vm892, %v888, 1326507024
    %v903 = vsel %vm891, %v885, %v902
    %v904 = vsel %vm890, %v901, %v903
    %v905 = vshll.u32 %v865, 8
    %v906 = vand.u32 %v905, 65535
    %v907 = vshrl.u32 %v905, 16
    %v908 = vand.u32 %v904, 65535
    %v909 = vshrl.u32 %v904, 16
    %v910 = vmul.u32 %v906, %v908
    %v911 = vmul.u32 %v906, %v909
    %v912 = vmul.u32 %v907, %v908
    %v913 = vmul.u32 %v907, %v909
    %v914 = vshll.u32 %v911, 16
    %v915 = vshrl.u32 %v911, 16
    %v916 = vshll.u32 %v912, 16
    %v917 = vshrl.u32 %v912, 16
    %vm918 = vc.u32 %v910, %v914
    %v919 = vsel %vm918, 1, 0
    %v920 = vadd.s32 %v910, %v914
    %v921 = vadd.s32 %v913, %v919
    %vm922 = vc.u32 %v920, %v916
    %v923 = vsel %vm922, 1, 0
    %v924 = vadd.s32 %v920, %v916
    %v925 = vadd.s32 %v921, %v923
    %v926 = vadd.s32 %v925, %v915
    %v927 = vadd.s32 %v926, %v917
    %v928 = vand.u32 %v905, 65535
    %v929 = vshrl.u32 %v905, 16
    %v930 = vand.u32 %v900, 65535
    %v931 = vshrl.u32 %v900, 16
    %v932 = vmul.u32 %v928, %v930
    %v933 = vmul.u32 %v928, %v931
    %v934 = vmul.u32 %v929, %v930
    %v935 = vmul.u32 %v929, %v931
    %v936 = vshll.u32 %v933, 16
    %v937 = vshrl.u32 %v933, 16
    %v938 = vshll.u32 %v934, 16
    %v939 = vshrl.u32 %v934, 16
    %vm940 = vc.u32 %v932, %v936
    %v941 = vsel %vm940, 1, 0
    %v942 = vadd.s32 %v932, %v936
    %v943 = vadd.s32 %v935, %v941
    %vm944 = vc.u32 %v942, %v938
    %v945 = vsel %vm944, 1, 0
    %v946 = vadd.s32 %v942, %v938
    %v947 = vadd.s32 %v943, %v945
    %v948 = vadd.s32 %v947, %v937
    %v949 = vadd.s32 %v948, %v939
    %v950 = vmul.u32 %v905, %v896
    %v951 = vadd.s32 %v927, %v946
    %vm952 = vc.u32 %v927, %v946
    %v953 = vadd.s32 %v949, 1
    %v954 = vsel %vm952, %v953, %v949
    %v955 = vadd.s32 %v950, %v954
    %v956 = vadd.s32 %v955, 536870912
    %v957 = vshrl.u32 %v956, 30
    %v958 = vshll.u32 %v957, 30
    %v959 = vsub.s32 %v955, %v958
    %vm960 = vcmp.lt.s32.totalorder %v959, 0
    %v961 = vsub.s32 0, %v959
    %v962 = vsel %vm960, %v961, %v959
    %v963 = vclz %v962
    %v964 = vsub.s32 %v963, 2
    %vm965 = vcmp.gt.s32.totalorder 0, %v964
    %v966 = vsel %vm965, 0, %v964
    %v967 = vsub.s32 32, %v966
    %v968 = vshll.u32 %v959, %v966
    %v969 = vshrl.u32 %v951, %v967
    %v970 = vor.u32 %v968, %v969
    %v971 = vsub.s32 4294967266, %v966
    %v972 = vadd.s32 %v971, 127
    %v973 = vshll.u32 %v972, 23
    %v974 = vor.u32 4788187, %v973
    %v975 = vand.u32 2147483647, %v974
    %v977 = vcvt.s32.f32 %v970
    %v978 = vmul.f32 %v977, %v975
    %v979 = vxor.u32 %v978, 2147483648
    %v980 = vsel %vm859, %v979, %v978
    %v981 = vsub.s32 4, %v957
    %v982 = vsel %vm859, %v981, %v957
    %v983 = vsel %vm858, %v97, %v980
    %v984 = vsel %vm858, 0, %v982
    %v985 = vmul.f32 %v983, %v983
    %v986 = vmul.f32 %v985, -0.001358992
    %v987 = vadd.f32 %v986, 0.041655596
    %v988 = vmul.f32 %v985, %v987
    %v989 = vadd.f32 %v988, -0.4999988
    %v990 = vmul.f32 %v985, %v989
    %v991 = vadd.f32 1.0, %v990
    %v992 = vmul.f32 %v983, %v983
    %v993 = vmul.f32 %v992, -0.00019511016
    %v994 = vadd.f32 %v993, 0.008332121
    %v995 = vmul.f32 %v992, %v994
    %v996 = vadd.f32 %v995, -0.16666654
    %v997 = vmul.f32 %v992, %v996
    %v998 = vadd.f32 %v997, 1.0
    %v999 = vmul.f32 %v998, %v983
    %vm1000 = vweird.f32 %v97
    %v1001 = vadd.s32 %v984, 3
    %v1002 = vand.u32 %v1001, 3
    %vm1003 = vcmp.lt.s32.totalorder %v1002, 2
    %vm1004 = vcmp.eq.s32.totalorder %v1002, 0
    %v1005 = vxor.u32 %v999, 2147483648
    %v1006 = vsel %vm1004, %v991, %v1005
    %vm1007 = vcmp.eq.s32.totalorder %v1002, 2
    %v1008 = vxor.u32 %v991, 2147483648
    %v1009 = vsel %vm1007, %v1008, %v999
    %v1010 = vsel %vm1003, %v1006, %v1009
    %v1011 = vsel %vm1000, nan, %v1010
    %v1012 = vand.u32 2147483647, %v98
    %vm1013 = vcmp.le.f32.partialorder %v1012, 0.7853982
    %vm1014 = vcmp.lt.s32.totalorder %v98, 0
    %v1015 = vand.u32 %v98, 2139095040
    %v1016 = vshrl.u32 %v1015, 23
    %v1017 = vsub.s32 %v1016, 127
    %v1018 = vand.u32 2147483647, %v98
    %v1019 = vand.u32 %v1018, 8388607
    %v1020 = vor.u32 %v1019, 8388608
    %v1021 = vsub.s32 0, %v1020
    %v1022 = vadd.s32 %v1017, 1
    %vm1023 = vcmp.gt.s32.totalorder %v1022, 0
    %v1024 = vsel %vm1023, %v1022, 0
    %v1025 = vshrl.u32 %v1024, 5
    %v1026 = vand.u32 %v1024, 31
    %v1027 = vsub.s32 32, %v1026
    %v1028 = vshrl.u32 683565275, %v1027
    %v1029 = vshll.u32 683565275, %v1026
    %v1030 = vshrl.u32 2475754826, %v1027
    %v1031 = vor.u32 %v1029, %v1030
    %v1032 = vshll.u32 2475754826, %v1026
    %v1033 = vshrl.u32 2131351028, %v1027
    %v1034 = vor.u32 %v1032, %v1033
    %v1035 = vshll.u32 2131351028, %v1026
    %v1036 = vshrl.u32 2102212464, %v1027
    %v1037 = vor.u32 %v1035, %v1036
    %v1038 = vshll.u32 2102212464, %v1026
    %v1039 = vshrl.u32 920167782, %v1027
    %v1040 = vor.u32 %v1038, %v1039
    %v1041 = vshll.u32 920167782, %v1026
    %v1042 = vshrl.u32 1326507024, %v1027
    %v1043 = vor.u32 %v1041, %v1042
    %vm1044 = vcmp.lt.s32.totalorder %v1025, 1
    %vm1045 = vcmp.lt.s32.totalorder %v1025, 2
    %vm1046 = vcmp.lt.s32.totalorder %v1025, 3
    %vm1047 = vcmp.lt.s32.totalorder %v1025, 4
    %v1048 = vsel %vm1044, %v1028, %v1031
    %v1049 = vsel %vm1047, %v1037, 2102212464
    %v1050 = vsel %vm1046, %v1034, %v1049
    %v1051 = vsel %vm1045, %v1048, %v1050
    %v1052 = vsel %vm1044, %v1031, %v1034
    %v1053 = vsel %vm1047, %v1040, 920167782
    %v1054 = vsel %vm1046, %v1037, %v1053
    %v1055 = vsel %vm1045, %v1052, %v1054
    %v1056 = vsel %vm1044, %v1034, %v1037
    %v1057 = vsel %vm1047, %v1043, 1326507024
    %v1058 = vsel %vm1046, %v1040, %v1057
    %v1059 = vsel %vm1045, %v1056, %v1058
    %v1060 = vshll.u32 %v1020, 8
    %v1061 = vand.u32 %v1060, 65535
    %v1062 = vshrl.u32 %v1060, 16
    %v1063 = vand.u32 %v1059, 65535
    %v1064 = vshrl.u32 %v1059, 16
    %v1065 = vmul.u32 %v1061, %v1063
    %v1066 = vmul.u32 %v1061, %v1064
    %v1067 = vmul.u32 %v1062, %v1063
    %v1068 = vmul.u32 %v1062, %v1064
    %v1069 = vshll.u32 %v1066, 16
    %v1070 = vshrl.u32 %v1066, 16
    %v1071 = vshll.u32 %v1067, 16
    %v1072 = vshrl.u32 %v1067, 16
    %vm1073 = vc.u32 %v1065, %v1069
    %v1074 = vsel %vm1073, 1, 0
    %v1075 = vadd.s32 %v1065, %v1069
    %v1076 = vadd.s32 %v1068, %v1074
    %vm1077 = vc.u32 %v1075, %v1071
    %v1078 = vsel %vm1077, 1, 0
    %v1079 = vadd.s32 %v1075, %v1071
    %v1080 = vadd.s32 %v1076, %v1078
    %v1081 = vadd.s32 %v1080, %v1070
    %v1082 = vadd.s32 %v1081, %v1072
    %v1083 = vand.u32 %v1060, 65535
    %v1084 = vshrl.u32 %v1060, 16
    %v1085 = vand.u32 %v1055, 65535
    %v1086 = vshrl.u32 %v1055, 16
    %v1087 = vmul.u32 %v1083, %v1085
    %v1088 = vmul.u32 %v1083, %v1086
    %v1089 = vmul.u32 %v1084, %v1085
    %v1090 = vmul.u32 %v1084, %v1086
    %v1091 = vshll.u32 %v1088, 16
    %v1092 = vshrl.u32 %v1088, 16
    %v1093 = vshll.u32 %v1089, 16
    %v1094 = vshrl.u32 %v1089, 16
    %vm1095 = vc.u32 %v1087, %v1091
    %v1096 = vsel %vm1095, 1, 0
    %v1097 = vadd.s32 %v1087, %v1091
    %v1098 = vadd.s32 %v1090, %v1096
    %vm1099 = vc.u32 %v1097, %v1093
    %v1100 = vsel %vm1099, 1, 0
    %v1101 = vadd.s32 %v1097, %v1093
    %v1102 = vadd.s32 %v1098, %v1100
    %v1103 = vadd.s32 %v1102, %v1092
    %v1104 = vadd.s32 %v1103, %v1094
    %v1105 = vmul.u32 %v1060, %v1051
    %v1106 = vadd.s32 %v1082, %v1101
    %vm1107 = vc.u32 %v1082, %v1101
    %v1108 = vadd.s32 %v1104, 1
    %v1109 = vsel %vm1107, %v1108, %v1104
    %v1110 = vadd.s32 %v1105, %v1109
    %v1111 = vadd.s32 %v1110, 536870912
    %v1112 = vshrl.u32 %v1111, 30
    %v1113 = vshll.u32 %v1112, 30
    %v1114 = vsub.s32 %v1110, %v1113
    %vm1115 = vcmp.lt.s32.totalorder %v1114, 0
    %v1116 = vsub.s32 0, %v1114
    %v1117 = vsel %vm1115, %v1116, %v1114
    %v1118 = vclz %v1117
    %v1119 = vsub.s32 %v1118, 2
    %vm1120 = vcmp.gt.s32.totalorder 0, %v1119
    %v1121 = vsel %vm1120, 0, %v1119
    %v1122 = vsub.s32 32, %v1121
    %v1123 = vshll.u32 %v1114, %v1121
    %v1124 = vshrl.u32 %v1106, %v1122
    %v1125 = vor.u32 %v1123, %v1124
    %v1126 = vsub.s32 4294967266, %v1121
    %v1127 = vadd.s32 %v1126, 127
    %v1128 = vshll.u32 %v1127, 23
    %v1129 = vor.u32 4788187, %v1128
    %v1130 = vand.u32 2147483647, %v1129
    %v1132 = vcvt.s32.f32 %v1125
    %v1133 = vmul.f32 %v1132, %v1130
    %v1134 = vxor.u32 %v1133, 2147483648
    %v1135 = vsel %vm1014, %v1134, %v1133
    %v1136 = vsub.s32 4, %v1112
    %v1137 = vsel %vm1014, %v1136, %v1112
    %v1138 = vsel %vm1013, %v98, %v1135
    %v1139 = vsel %vm1013, 0, %v1137
    %v1140 = vmul.f32 %v1138, %v1138
    %v1141 = vmul.f32 %v1140, -0.001358992
    %v1142 = vadd.f32 %v1141, 0.041655596
    %v1143 = vmul.f32 %v1140, %v1142
    %v1144 = vadd.f32 %v1143, -0.4999988
    %v1145 = vmul.f32 %v1140, %v1144
    %v1146 = vadd.f32 1.0, %v1145
    %v1147 = vmul.f32 %v1138, %v1138
    %v1148 = vmul.f32 %v1147, -0.00019511016
    %v1149 = vadd.f32 %v1148, 0.008332121
    %v1150 = vmul.f32 %v1147, %v1149
    %v1151 = vadd.f32 %v1150, -0.16666654
    %v1152 = vmul.f32 %v1147, %v1151
    %v1153 = vadd.f32 %v1152, 1.0
    %v1154 = vmul.f32 %v1153, %v1138
    %vm1155 = vweird.f32 %v98
    %v1156 = vadd.s32 %v1139, 3
    %v1157 = vand.u32 %v1156, 3
    %vm1158 = vcmp.lt.s32.totalorder %v1157, 2
    %vm1159 = vcmp.eq.s32.totalorder %v1157, 0
    %v1160 = vxor.u32 %v1154, 2147483648
    %v1161 = vsel %vm1159, %v1146, %v1160
    %vm1162 = vcmp.eq.s32.totalorder %v1157, 2
    %v1163 = vxor.u32 %v1146, 2147483648
    %v1164 = vsel %vm1162, %v1163, %v1154
    %v1165 = vsel %vm1158, %v1161, %v1164
    %v1166 = vsel %vm1155, nan, %v1165
    %v1167 = vand.u32 2147483647, %v99
    %vm1168 = vcmp.le.f32.partialorder %v1167, 0.7853982
    %vm1169 = vcmp.lt.s32.totalorder %v99, 0
    %v1170 = vand.u32 %v99, 2139095040
    %v1171 = vshrl.u32 %v1170, 23
    %v1172 = vsub.s32 %v1171, 127
    %v1173 = vand.u32 2147483647, %v99
    %v1174 = vand.u32 %v1173, 8388607
    %v1175 = vor.u32 %v1174, 8388608
    %v1176 = vsub.s32 0, %v1175
    %v1177 = vadd.s32 %v1172, 1
    %vm1178 = vcmp.gt.s32.totalorder %v1177, 0
    %v1179 = vsel %vm1178, %v1177, 0
    %v1180 = vshrl.u32 %v1179, 5
    %v1181 = vand.u32 %v1179, 31
    %v1182 = vsub.s32 32, %v1181
    %v1183 = vshrl.u32 683565275, %v1182
    %v1184 = vshll.u32 683565275, %v1181
    %v1185 = vshrl.u32 2475754826, %v1182
    %v1186 = vor.u32 %v1184, %v1185
    %v1187 = vshll.u32 2475754826, %v1181
    %v1188 = vshrl.u32 2131351028, %v1182
    %v1189 = vor.u32 %v1187, %v1188
    %v1190 = vshll.u32 2131351028, %v1181
    %v1191 = vshrl.u32 2102212464, %v1182
    %v1192 = vor.u32 %v1190, %v1191
    %v1193 = vshll.u32 2102212464, %v1181
    %v1194 = vshrl.u32 920167782, %v1182
    %v1195 = vor.u32 %v1193, %v1194
    %v1196 = vshll.u32 920167782, %v1181
    %v1197 = vshrl.u32 1326507024, %v1182
    %v1198 = vor.u32 %v1196, %v1197
    %vm1199 = vcmp.lt.s32.totalorder %v1180, 1
    %vm1200 = vcmp.lt.s32.totalorder %v1180, 2
    %vm1201 = vcmp.lt.s32.totalorder %v1180, 3
    %vm1202 = vcmp.lt.s32.totalorder %v1180, 4
    %v1203 = vsel %vm1199, %v1183, %v1186
    %v1204 = vsel %vm1202, %v1192, 2102212464
    %v1205 = vsel %vm1201, %v1189, %v1204
    %v1206 = vsel %vm1200, %v1203, %v1205
    %v1207 = vsel %vm1199, %v1186, %v1189
    %v1208 = vsel %vm1202, %v1195, 920167782
    %v1209 = vsel %vm1201, %v1192, %v1208
    %v1210 = vsel %vm1200, %v1207, %v1209
    %v1211 = vsel %vm1199, %v1189, %v1192
    %v1212 = vsel %vm1202, %v1198, 1326507024
    %v1213 = vsel %vm1201, %v1195, %v1212
    %v1214 = vsel %vm1200, %v1211, %v1213
    %v1215 = vshll.u32 %v1175, 8
    %v1216 = vand.u32 %v1215, 65535
    %v1217 = vshrl.u32 %v1215, 16
    %v1218 = vand.u32 %v1214, 65535
    %v1219 = vshrl.u32 %v1214, 16
    %v1220 = vmul.u32 %v1216, %v1218
    %v1221 = vmul.u32 %v1216, %v1219
    %v1222 = vmul.u32 %v1217, %v1218
    %v1223 = vmul.u32 %v1217, %v1219
    %v1224 = vshll.u32 %v1221, 16
    %v1225 = vshrl.u32 %v1221, 16
    %v1226 = vshll.u32 %v1222, 16
    %v1227 = vshrl.u32 %v1222, 16
    %vm1228 = vc.u32 %v1220, %v1224
    %v1229 = vsel %vm1228, 1, 0
    %v1230 = vadd.s32 %v1220, %v1224
    %v1231 = vadd.s32 %v1223, %v1229
    %vm1232 = vc.u32 %v1230, %v1226
    %v1233 = vsel %vm1232, 1, 0
    %v1234 = vadd.s32 %v1230, %v1226
    %v1235 = vadd.s32 %v1231, %v1233
    %v1236 = vadd.s32 %v1235, %v1225
    %v1237 = vadd.s32 %v1236, %v1227
    %v1238 = vand.u32 %v1215, 65535
    %v1239 = vshrl.u32 %v1215, 16
    %v1240 = vand.u32 %v1210, 65535
    %v1241 = vshrl.u32 %v1210, 16
    %v1242 = vmul.u32 %v1238, %v1240
    %v1243 = vmul.u32 %v1238, %v1241
    %v1244 = vmul.u32 %v1239, %v1240
    %v1245 = vmul.u32 %v1239, %v1241
    %v1246 = vshll.u32 %v1243, 16
    %v1247 = vshrl.u32 %v1243, 16
    %v1248 = vshll.u32 %v1244, 16
    %v1249 = vshrl.u32 %v1244, 16
    %vm1250 = vc.u32 %v1242, %v1246
    %v1251 = vsel %vm1250, 1, 0
    %v1252 = vadd.s32 %v1242, %v1246
    %v1253 = vadd.s32 %v1245, %v1251
    %vm1254 = vc.u32 %v1252, %v1248
    %v1255 = vsel %vm1254, 1, 0
    %v1256 = vadd.s32 %v1252, %v1248
    %v1257 = vadd.s32 %v1253, %v1255
    %v1258 = vadd.s32 %v1257, %v1247
    %v1259 = vadd.s32 %v1258, %v1249
    %v1260 = vmul.u32 %v1215, %v1206
    %v1261 = vadd.s32 %v1237, %v1256
    %vm1262 = vc.u32 %v1237, %v1256
    %v1263 = vadd.s32 %v1259, 1
    %v1264 = vsel %vm1262, %v1263, %v1259
    %v1265 = vadd.s32 %v1260, %v1264
    %v1266 = vadd.s32 %v1265, 536870912
    %v1267 = vshrl.u32 %v1266, 30
    %v1268 = vshll.u32 %v1267, 30
    %v1269 = vsub.s32 %v1265, %v1268
    %vm1270 = vcmp.lt.s32.totalorder %v1269, 0
    %v1271 = vsub.s32 0, %v1269
    %v1272 = vsel %vm1270, %v1271, %v1269
    %v1273 = vclz %v1272
    %v1274 = vsub.s32 %v1273, 2
    %vm1275 = vcmp.gt.s32.totalorder 0, %v1274
    %v1276 = vsel %vm1275, 0, %v1274
    %v1277 = vsub.s32 32, %v1276
    %v1278 = vshll.u32 %v1269, %v1276
    %v1279 = vshrl.u32 %v1261, %v1277
    %v1280 = vor.u32 %v1278, %v1279
    %v1281 = vsub.s32 4294967266, %v1276
    %v1282 = vadd.s32 %v1281, 127
    %v1283 = vshll.u32 %v1282, 23
    %v1284 = vor.u32 4788187, %v1283
    %v1285 = vand.u32 2147483647, %v1284
    %v1287 = vcvt.s32.f32 %v1280
    %v1288 = vmul.f32 %v1287, %v1285
    %v1289 = vxor.u32 %v1288, 2147483648
    %v1290 = vsel %vm1169, %v1289, %v1288
    %v1291 = vsub.s32 4, %v1267
    %v1292 = vsel %vm1169, %v1291, %v1267
    %v1293 = vsel %vm1168, %v99, %v1290
    %v1294 = vsel %vm1168, 0, %v1292
    %v1295 = vmul.f32 %v1293, %v1293
    %v1296 = vmul.f32 %v1295, -0.001358992
    %v1297 = vadd.f32 %v1296, 0.041655596
    %v1298 = vmul.f32 %v1295, %v1297
    %v1299 = vadd.f32 %v1298, -0.4999988
    %v1300 = vmul.f32 %v1295, %v1299
    %v1301 = vadd.f32 1.0, %v1300
    %v1302 = vmul.f32 %v1293, %v1293
    %v1303 = vmul.f32 %v1302, -0.00019511016
    %v1304 = vadd.f32 %v1303, 0.008332121
    %v1305 = vmul.f32 %v1302, %v1304
    %v1306 = vadd.f32 %v1305, -0.16666654
    %v1307 = vmul.f32 %v1302, %v1306
    %v1308 = vadd.f32 %v1307, 1.0
    %v1309 = vmul.f32 %v1308, %v1293
    %vm1310 = vweird.f32 %v99
    %v1311 = vadd.s32 %v1294, 3
    %v1312 = vand.u32 %v1311, 3
    %vm1313 = vcmp.lt.s32.totalorder %v1312, 2
    %vm1314 = vcmp.eq.s32.totalorder %v1312, 0
    %v1315 = vxor.u32 %v1309, 2147483648
    %v1316 = vsel %vm1314, %v1301, %v1315
    %vm1317 = vcmp.eq.s32.totalorder %v1312, 2
    %v1318 = vxor.u32 %v1301, 2147483648
    %v1319 = vsel %vm1317, %v1318, %v1309
    %v1320 = vsel %vm1313, %v1316, %v1319
    %v1321 = vsel %vm1310, nan, %v1320
    %v1322 = vand.u32 2147483647, %v100
    %vm1323 = vcmp.le.f32.partialorder %v1322, 0.7853982
    %vm1324 = vcmp.lt.s32.totalorder %v100, 0
    %v1325 = vand.u32 %v100, 2139095040
    %v1326 = vshrl.u32 %v1325, 23
    %v1327 = vsub.s32 %v1326, 127
    %v1328 = vand.u32 2147483647, %v100
    %v1329 = vand.u32 %v1328, 8388607
    %v1330 = vor.u32 %v1329, 8388608
    %v1331 = vsub.s32 0, %v1330
    %v1332 = vadd.s32 %v1327, 1
    %vm1333 = vcmp.gt.s32.totalorder %v1332, 0
    %v1334 = vsel %vm1333, %v1332, 0
    %v1335 = vshrl.u32 %v1334, 5
    %v1336 = vand.u32 %v1334, 31
    %v1337 = vsub.s32 32, %v1336
    %v1338 = vshrl.u32 683565275, %v1337
    %v1339 = vshll.u32 683565275, %v1336
    %v1340 = vshrl.u32 2475754826, %v1337
    %v1341 = vor.u32 %v1339, %v1340
    %v1342 = vshll.u32 2475754826, %v1336
    %v1343 = vshrl.u32 2131351028, %v1337
    %v1344 = vor.u32 %v1342, %v1343
    %v1345 = vshll.u32 2131351028, %v1336
    %v1346 = vshrl.u32 2102212464, %v1337
    %v1347 = vor.u32 %v1345, %v1346
    %v1348 = vshll.u32 2102212464, %v1336
    %v1349 = vshrl.u32 920167782, %v1337
    %v1350 = vor.u32 %v1348, %v1349
    %v1351 = vshll.u32 920167782, %v1336
    %v1352 = vshrl.u32 1326507024, %v1337
    %v1353 = vor.u32 %v1351, %v1352
    %vm1354 = vcmp.lt.s32.totalorder %v1335, 1
    %vm1355 = vcmp.lt.s32.totalorder %v1335, 2
    %vm1356 = vcmp.lt.s32.totalorder %v1335, 3
    %vm1357 = vcmp.lt.s32.totalorder %v1335, 4
    %v1358 = vsel %vm1354, %v1338, %v1341
    %v1359 = vsel %vm1357, %v1347, 2102212464
    %v1360 = vsel %vm1356, %v1344, %v1359
    %v1361 = vsel %vm1355, %v1358, %v1360
    %v1362 = vsel %vm1354, %v1341, %v1344
    %v1363 = vsel %vm1357, %v1350, 920167782
    %v1364 = vsel %vm1356, %v1347, %v1363
    %v1365 = vsel %vm1355, %v1362, %v1364
    %v1366 = vsel %vm1354, %v1344, %v1347
    %v1367 = vsel %vm1357, %v1353, 1326507024
    %v1368 = vsel %vm1356, %v1350, %v1367
    %v1369 = vsel %vm1355, %v1366, %v1368
    %v1370 = vshll.u32 %v1330, 8
    %v1371 = vand.u32 %v1370, 65535
    %v1372 = vshrl.u32 %v1370, 16
    %v1373 = vand.u32 %v1369, 65535
    %v1374 = vshrl.u32 %v1369, 16
    %v1375 = vmul.u32 %v1371, %v1373
    %v1376 = vmul.u32 %v1371, %v1374
    %v1377 = vmul.u32 %v1372, %v1373
    %v1378 = vmul.u32 %v1372, %v1374
    %v1379 = vshll.u32 %v1376, 16
    %v1380 = vshrl.u32 %v1376, 16
    %v1381 = vshll.u32 %v1377, 16
    %v1382 = vshrl.u32 %v1377, 16
    %vm1383 = vc.u32 %v1375, %v1379
    %v1384 = vsel %vm1383, 1, 0
    %v1385 = vadd.s32 %v1375, %v1379
    %v1386 = vadd.s32 %v1378, %v1384
    %vm1387 = vc.u32 %v1385, %v1381
    %v1388 = vsel %vm1387, 1, 0
    %v1389 = vadd.s32 %v1385, %v1381
    %v1390 = vadd.s32 %v1386, %v1388
    %v1391 = vadd.s32 %v1390, %v1380
    %v1392 = vadd.s32 %v1391, %v1382
    %v1393 = vand.u32 %v1370, 65535
    %v1394 = vshrl.u32 %v1370, 16
    %v1395 = vand.u32 %v1365, 65535
    %v1396 = vshrl.u32 %v1365, 16
    %v1397 = vmul.u32 %v1393, %v1395
    %v1398 = vmul.u32 %v1393, %v1396
    %v1399 = vmul.u32 %v1394, %v1395
    %v1400 = vmul.u32 %v1394, %v1396
    %v1401 = vshll.u32 %v1398, 16
    %v1402 = vshrl.u32 %v1398, 16
    %v1403 = vshll.u32 %v1399, 16
    %v1404 = vshrl.u32 %v1399, 16
    %vm1405 = vc.u32 %v1397, %v1401
    %v1406 = vsel %vm1405, 1, 0
    %v1407 = vadd.s32 %v1397, %v1401
    %v1408 = vadd.s32 %v1400, %v1406
    %vm1409 = vc.u32 %v1407, %v1403
    %v1410 = vsel %vm1409, 1, 0
    %v1411 = vadd.s32 %v1407, %v1403
    %v1412 = vadd.s32 %v1408, %v1410
    %v1413 = vadd.s32 %v1412, %v1402
    %v1414 = vadd.s32 %v1413, %v1404
    %v1415 = vmul.u32 %v1370, %v1361
    %v1416 = vadd.s32 %v1392, %v1411
    %vm1417 = vc.u32 %v1392, %v1411
    %v1418 = vadd.s32 %v1414, 1
    %v1419 = vsel %vm1417, %v1418, %v1414
    %v1420 = vadd.s32 %v1415, %v1419
    %v1421 = vadd.s32 %v1420, 536870912
    %v1422 = vshrl.u32 %v1421, 30
    %v1423 = vshll.u32 %v1422, 30
    %v1424 = vsub.s32 %v1420, %v1423
    %vm1425 = vcmp.lt.s32.totalorder %v1424, 0
    %v1426 = vsub.s32 0, %v1424
    %v1427 = vsel %vm1425, %v1426, %v1424
    %v1428 = vclz %v1427
    %v1429 = vsub.s32 %v1428, 2
    %vm1430 = vcmp.gt.s32.totalorder 0, %v1429
    %v1431 = vsel %vm1430, 0, %v1429
    %v1432 = vsub.s32 32, %v1431
    %v1433 = vshll.u32 %v1424, %v1431
    %v1434 = vshrl.u32 %v1416, %v1432
    %v1435 = vor.u32 %v1433, %v1434
    %v1436 = vsub.s32 4294967266, %v1431
    %v1437 = vadd.s32 %v1436, 127
    %v1438 = vshll.u32 %v1437, 23
    %v1439 = vor.u32 4788187, %v1438
    %v1440 = vand.u32 2147483647, %v1439
    %v1442 = vcvt.s32.f32 %v1435
    %v1443 = vmul.f32 %v1442, %v1440
    %v1444 = vxor.u32 %v1443, 2147483648
    %v1445 = vsel %vm1324, %v1444, %v1443
    %v1446 = vsub.s32 4, %v1422
    %v1447 = vsel %vm1324, %v1446, %v1422
    %v1448 = vsel %vm1323, %v100, %v1445
    %v1449 = vsel %vm1323, 0, %v1447
    %v1450 = vmul.f32 %v1448, %v1448
    %v1451 = vmul.f32 %v1450, -0.001358992
    %v1452 = vadd.f32 %v1451, 0.041655596
    %v1453 = vmul.f32 %v1450, %v1452
    %v1454 = vadd.f32 %v1453, -0.4999988
    %v1455 = vmul.f32 %v1450, %v1454
    %v1456 = vadd.f32 1.0, %v1455
    %v1457 = vmul.f32 %v1448, %v1448
    %v1458 = vmul.f32 %v1457, -0.00019511016
    %v1459 = vadd.f32 %v1458, 0.008332121
    %v1460 = vmul.f32 %v1457, %v1459
    %v1461 = vadd.f32 %v1460, -0.16666654
    %v1462 = vmul.f32 %v1457, %v1461
    %v1463 = vadd.f32 %v1462, 1.0
    %v1464 = vmul.f32 %v1463, %v1448
    %vm1465 = vweird.f32 %v100
    %v1466 = vadd.s32 %v1449, 3
    %v1467 = vand.u32 %v1466, 3
    %vm1468 = vcmp.lt.s32.totalorder %v1467, 2
    %vm1469 = vcmp.eq.s32.totalorder %v1467, 0
    %v1470 = vxor.u32 %v1464, 2147483648
    %v1471 = vsel %vm1469, %v1456, %v1470
    %vm1472 = vcmp.eq.s32.totalorder %v1467, 2
    %v1473 = vxor.u32 %v1456, 2147483648
    %v1474 = vsel %vm1472, %v1473, %v1464
    %v1475 = vsel %vm1468, %v1471, %v1474
    %v1476 = vsel %vm1465, nan, %v1475
    %v1477 = vmul.f32 %v93, %v93
    %v1478 = vmul.f32 %v94, %v94
    %v1479 = vmul.f32 %v95, %v95
    %v1480 = vmul.f32 %v96, %v96
    %v1481 = vmul.f32 %v97, %v97
    %v1482 = vmul.f32 %v98, %v98
    %v1483 = vmul.f32 %v99, %v99
    %v1484 = vmul.f32 %v100, %v100
    %v1485 = vsub.f32 0.0, %v1477
    %v1486 = vsub.f32 0.0, %v1478
    %v1487 = vsub.f32 0.0, %v1479
    %v1488 = vsub.f32 0.0, %v1480
    %v1489 = vsub.f32 0.0, %v1481
    %v1490 = vsub.f32 0.0, %v1482
    %v1491 = vsub.f32 0.0, %v1483
    %v1492 = vsub.f32 0.0, %v1484
    %v1493 = vmul.f32 %v1485, 1.442695
    %v1494 = vpow.pop %v1493
    %v1495 = vmul.f32 %v1486, 1.442695
    %v1496 = vpow.pop %v1495
    %v1497 = vmul.f32 %v1487, 1.442695
    %v1498 = vpow.pop %v1497
    %v1499 = vmul.f32 %v1488, 1.442695
    %v1500 = vpow.pop %v1499
    %v1501 = vmul.f32 %v1489, 1.442695
    %v1502 = vpow.pop %v1501
    %v1503 = vmul.f32 %v1490, 1.442695
    %v1504 = vpow.pop %v1503
    %v1505 = vmul.f32 %v1491, 1.442695
    %v1506 = vpow.pop %v1505
    %v1507 = vmul.f32 %v1492, 1.442695
    %v1508 = vpow.pop %v1507
    %v1509 = vpack.c.bf16 %v181, %v181
    %v1510 = vpack.c.bf16 %v182, %v182
    %v1511 = vpack.c.bf16 %v183, %v183
    %v1512 = vpack.c.bf16 %v184, %v184
    %v1513 = vpack.c.bf16 %v185, %v185
    %v1514 = vpack.c.bf16 %v186, %v186
    %v1515 = vpack.c.bf16 %v187, %v187
    %v1516 = vpack.c.bf16 %v188, %v188
    %v1517 = vld [vmem:[#allocation5] sm:$0xf]
    %v1518 = vld [vmem:[#allocation5 + $0x4] sm:$0xf]
    %v1519 = vld [vmem:[#allocation5 + $0x8] sm:$0xf]
    %v1520 = vld [vmem:[#allocation5 + $0xc] sm:$0xf]
    %v1521 = vld [vmem:[#allocation5 + $0x10] sm:$0xf]
    %v1522 = vld [vmem:[#allocation5 + $0x14] sm:$0xf]
    %v1523 = vld [vmem:[#allocation5 + $0x18] sm:$0xf]
    %v1524 = vld [vmem:[#allocation5 + $0x1c] sm:$0xf]
    %v1525 = vld [vmem:[#allocation5 + $0x20] sm:$0xf]
    %v1526 = vld [vmem:[#allocation5 + $0x24] sm:$0xf]
    %v1527 = vld [vmem:[#allocation5 + $0x28] sm:$0xf]
    %v1528 = vld [vmem:[#allocation5 + $0x2c] sm:$0xf]
    %v1529 = vld [vmem:[#allocation5 + $0x30] sm:$0xf]
    %v1530 = vld [vmem:[#allocation5 + $0x34] sm:$0xf]
    %v1531 = vld [vmem:[#allocation5 + $0x38] sm:$0xf]
    %v1532 = vld [vmem:[#allocation5 + $0x3c] sm:$0xf]
    %v1533 = vld [vmem:[#allocation5 + $0x40] sm:$0xf]
    %v1534 = vld [vmem:[#allocation5 + $0x44] sm:$0xf]
    %v1535 = vld [vmem:[#allocation5 + $0x48] sm:$0xf]
    %v1536 = vld [vmem:[#allocation5 + $0x4c] sm:$0xf]
    %v1537 = vld [vmem:[#allocation5 + $0x50] sm:$0xf]
    %v1538 = vld [vmem:[#allocation5 + $0x54] sm:$0xf]
    %v1539 = vld [vmem:[#allocation5 + $0x58] sm:$0xf]
    %v1540 = vld [vmem:[#allocation5 + $0x5c] sm:$0xf]
    %v1541 = vld [vmem:[#allocation5 + $0x60] sm:$0xf]
    %v1542 = vld [vmem:[#allocation5 + $0x64] sm:$0xf]
    %v1543 = vld [vmem:[#allocation5 + $0x68] sm:$0xf]
    %v1544 = vld [vmem:[#allocation5 + $0x6c] sm:$0xf]
    %v1545 = vld [vmem:[#allocation5 + $0x70] sm:$0xf]
    %v1546 = vld [vmem:[#allocation5 + $0x74] sm:$0xf]
    %v1547 = vld [vmem:[#allocation5 + $0x78] sm:$0xf]
    %v1548 = vld [vmem:[#allocation5 + $0x7c] sm:$0xf]
    %v1549 = vld [vmem:[#allocation5 + $0x80] sm:$0xf]
    %v1550 = vld [vmem:[#allocation5 + $0x84] sm:$0xf]
    %v1551 = vld [vmem:[#allocation5 + $0x88] sm:$0xf]
    %v1552 = vld [vmem:[#allocation5 + $0x8c] sm:$0xf]
    %v1553 = vld [vmem:[#allocation5 + $0x90] sm:$0xf]
    %v1554 = vld [vmem:[#allocation5 + $0x94] sm:$0xf]
    %v1555 = vld [vmem:[#allocation5 + $0x98] sm:$0xf]
    %v1556 = vld [vmem:[#allocation5 + $0x9c] sm:$0xf]
    %v1557 = vld [vmem:[#allocation5 + $0xa0] sm:$0xf]
    %v1558 = vld [vmem:[#allocation5 + $0xa4] sm:$0xf]
    %v1559 = vld [vmem:[#allocation5 + $0xa8] sm:$0xf]
    %v1560 = vld [vmem:[#allocation5 + $0xac] sm:$0xf]
    %v1561 = vld [vmem:[#allocation5 + $0xb0] sm:$0xf]
    %v1562 = vld [vmem:[#allocation5 + $0xb4] sm:$0xf]
    %v1563 = vld [vmem:[#allocation5 + $0xb8] sm:$0xf]
    %v1564 = vld [vmem:[#allocation5 + $0xbc] sm:$0xf]
    %v1565 = vld [vmem:[#allocation5 + $0xc0] sm:$0xf]
    %v1566 = vld [vmem:[#allocation5 + $0xc4] sm:$0xf]
    %v1567 = vld [vmem:[#allocation5 + $0xc8] sm:$0xf]
    %v1568 = vld [vmem:[#allocation5 + $0xcc] sm:$0xf]
    %v1569 = vld [vmem:[#allocation5 + $0xd0] sm:$0xf]
    %v1570 = vld [vmem:[#allocation5 + $0xd4] sm:$0xf]
    %v1571 = vld [vmem:[#allocation5 + $0xd8] sm:$0xf]
    %v1572 = vld [vmem:[#allocation5 + $0xdc] sm:$0xf]
    %v1573 = vld [vmem:[#allocation5 + $0xe0] sm:$0xf]
    %v1574 = vld [vmem:[#allocation5 + $0xe4] sm:$0xf]
    %v1575 = vld [vmem:[#allocation5 + $0xe8] sm:$0xf]
    %v1576 = vld [vmem:[#allocation5 + $0xec] sm:$0xf]
    %v1577 = vld [vmem:[#allocation5 + $0xf0] sm:$0xf]
    %v1578 = vld [vmem:[#allocation5 + $0xf4] sm:$0xf]
    %v1579 = vld [vmem:[#allocation5 + $0xf8] sm:$0xf]
    %v1580 = vld [vmem:[#allocation5 + $0xfc] sm:$0xf]
    %v1581 = vld [vmem:[#allocation5 + $0x100] sm:$0xf]
    %v1582 = vld [vmem:[#allocation5 + $0x104] sm:$0xf]
    %v1583 = vld [vmem:[#allocation5 + $0x108] sm:$0xf]
    %v1584 = vld [vmem:[#allocation5 + $0x10c] sm:$0xf]
    %v1585 = vld [vmem:[#allocation5 + $0x110] sm:$0xf]
    %v1586 = vld [vmem:[#allocation5 + $0x114] sm:$0xf]
    %v1587 = vld [vmem:[#allocation5 + $0x118] sm:$0xf]
    %v1588 = vld [vmem:[#allocation5 + $0x11c] sm:$0xf]
    %v1589 = vld [vmem:[#allocation5 + $0x120] sm:$0xf]
    %v1590 = vld [vmem:[#allocation5 + $0x124] sm:$0xf]
    %v1591 = vld [vmem:[#allocation5 + $0x128] sm:$0xf]
    %v1592 = vld [vmem:[#allocation5 + $0x12c] sm:$0xf]
    %v1593 = vld [vmem:[#allocation5 + $0x130] sm:$0xf]
    %v1594 = vld [vmem:[#allocation5 + $0x134] sm:$0xf]
    %v1595 = vld [vmem:[#allocation5 + $0x138] sm:$0xf]
    %v1596 = vld [vmem:[#allocation5 + $0x13c] sm:$0xf]
    %v1597 = vld [vmem:[#allocation5 + $0x140] sm:$0xf]
    %v1598 = vld [vmem:[#allocation5 + $0x144] sm:$0xf]
    %v1599 = vld [vmem:[#allocation5 + $0x148] sm:$0xf]
    %v1600 = vld [vmem:[#allocation5 + $0x14c] sm:$0xf]
    %v1601 = vld [vmem:[#allocation5 + $0x150] sm:$0xf]
    %v1602 = vld [vmem:[#allocation5 + $0x154] sm:$0xf]
    %v1603 = vld [vmem:[#allocation5 + $0x158] sm:$0xf]
    %v1604 = vld [vmem:[#allocation5 + $0x15c] sm:$0xf]
    %v1605 = vld [vmem:[#allocation5 + $0x160] sm:$0xf]
    %v1606 = vld [vmem:[#allocation5 + $0x164] sm:$0xf]
    %v1607 = vld [vmem:[#allocation5 + $0x168] sm:$0xf]
    %v1608 = vld [vmem:[#allocation5 + $0x16c] sm:$0xf]
    %v1609 = vld [vmem:[#allocation5 + $0x170] sm:$0xf]
    %v1610 = vld [vmem:[#allocation5 + $0x174] sm:$0xf]
    %v1611 = vld [vmem:[#allocation5 + $0x178] sm:$0xf]
    %v1612 = vld [vmem:[#allocation5 + $0x17c] sm:$0xf]
    %v1613 = vld [vmem:[#allocation5 + $0x180] sm:$0xf]
    %v1614 = vld [vmem:[#allocation5 + $0x184] sm:$0xf]
    %v1615 = vld [vmem:[#allocation5 + $0x188] sm:$0xf]
    %v1616 = vld [vmem:[#allocation5 + $0x18c] sm:$0xf]
    %v1617 = vld [vmem:[#allocation5 + $0x190] sm:$0xf]
    %v1618 = vld [vmem:[#allocation5 + $0x194] sm:$0xf]
    %v1619 = vld [vmem:[#allocation5 + $0x198] sm:$0xf]
    %v1620 = vld [vmem:[#allocation5 + $0x19c] sm:$0xf]
    %v1621 = vld [vmem:[#allocation5 + $0x1a0] sm:$0xf]
    %v1622 = vld [vmem:[#allocation5 + $0x1a4] sm:$0xf]
    %v1623 = vld [vmem:[#allocation5 + $0x1a8] sm:$0xf]
    %v1624 = vld [vmem:[#allocation5 + $0x1ac] sm:$0xf]
    %v1625 = vld [vmem:[#allocation5 + $0x1b0] sm:$0xf]
    %v1626 = vld [vmem:[#allocation5 + $0x1b4] sm:$0xf]
    %v1627 = vld [vmem:[#allocation5 + $0x1b8] sm:$0xf]
    %v1628 = vld [vmem:[#allocation5 + $0x1bc] sm:$0xf]
    %v1629 = vld [vmem:[#allocation5 + $0x1c0] sm:$0xf]
    %v1630 = vld [vmem:[#allocation5 + $0x1c4] sm:$0xf]
    %v1631 = vld [vmem:[#allocation5 + $0x1c8] sm:$0xf]
    %v1632 = vld [vmem:[#allocation5 + $0x1cc] sm:$0xf]
    %v1633 = vld [vmem:[#allocation5 + $0x1d0] sm:$0xf]
    %v1634 = vld [vmem:[#allocation5 + $0x1d4] sm:$0xf]
    %v1635 = vld [vmem:[#allocation5 + $0x1d8] sm:$0xf]
    %v1636 = vld [vmem:[#allocation5 + $0x1dc] sm:$0xf]
    %v1637 = vld [vmem:[#allocation5 + $0x1e0] sm:$0xf]
    %v1638 = vld [vmem:[#allocation5 + $0x1e4] sm:$0xf]
    %v1639 = vld [vmem:[#allocation5 + $0x1e8] sm:$0xf]
    %v1640 = vld [vmem:[#allocation5 + $0x1ec] sm:$0xf]
    %v1641 = vld [vmem:[#allocation5 + $0x1f0] sm:$0xf]
    %v1642 = vld [vmem:[#allocation5 + $0x1f4] sm:$0xf]
    %v1643 = vld [vmem:[#allocation5 + $0x1f8] sm:$0xf]
    %v1644 = vld [vmem:[#allocation5 + $0x1fc] sm:$0xf]
    %v1645 = vpack.c.bf16 %v229, %v229
    %v1646 = vpack.c.bf16 %v230, %v230
    %v1647 = vpack.c.bf16 %v231, %v231
    %v1648 = vpack.c.bf16 %v232, %v232
    %v1649 = vpack.c.bf16 %v233, %v233
    %v1650 = vpack.c.bf16 %v234, %v234
    %v1651 = vpack.c.bf16 %v235, %v235
    %v1652 = vpack.c.bf16 %v236, %v236
    %s1653 = scalar_lea.vmem [#allocation5], 512
    %v1654 = vld [vmem:[%s1653] sm:$0xf]
    %v1655 = vld [vmem:[%s1653 + $0x4] sm:$0xf]
    %v1656 = vld [vmem:[%s1653 + $0x8] sm:$0xf]
    %v1657 = vld [vmem:[%s1653 + $0xc] sm:$0xf]
    %v1658 = vld [vmem:[%s1653 + $0x10] sm:$0xf]
    %v1659 = vld [vmem:[%s1653 + $0x14] sm:$0xf]
    %v1660 = vld [vmem:[%s1653 + $0x18] sm:$0xf]
    %v1661 = vld [vmem:[%s1653 + $0x1c] sm:$0xf]
    %v1662 = vld [vmem:[%s1653 + $0x20] sm:$0xf]
    %v1663 = vld [vmem:[%s1653 + $0x24] sm:$0xf]
    %v1664 = vld [vmem:[%s1653 + $0x28] sm:$0xf]
    %v1665 = vld [vmem:[%s1653 + $0x2c] sm:$0xf]
    %v1666 = vld [vmem:[%s1653 + $0x30] sm:$0xf]
    %v1667 = vld [vmem:[%s1653 + $0x34] sm:$0xf]
    %v1668 = vld [vmem:[%s1653 + $0x38] sm:$0xf]
    %v1669 = vld [vmem:[%s1653 + $0x3c] sm:$0xf]
    %v1670 = vld [vmem:[%s1653 + $0x40] sm:$0xf]
    %v1671 = vld [vmem:[%s1653 + $0x44] sm:$0xf]
    %v1672 = vld [vmem:[%s1653 + $0x48] sm:$0xf]
    %v1673 = vld [vmem:[%s1653 + $0x4c] sm:$0xf]
    %v1674 = vld [vmem:[%s1653 + $0x50] sm:$0xf]
    %v1675 = vld [vmem:[%s1653 + $0x54] sm:$0xf]
    %v1676 = vld [vmem:[%s1653 + $0x58] sm:$0xf]
    %v1677 = vld [vmem:[%s1653 + $0x5c] sm:$0xf]
    %v1678 = vld [vmem:[%s1653 + $0x60] sm:$0xf]
    %v1679 = vld [vmem:[%s1653 + $0x64] sm:$0xf]
    %v1680 = vld [vmem:[%s1653 + $0x68] sm:$0xf]
    %v1681 = vld [vmem:[%s1653 + $0x6c] sm:$0xf]
    %v1682 = vld [vmem:[%s1653 + $0x70] sm:$0xf]
    %v1683 = vld [vmem:[%s1653 + $0x74] sm:$0xf]
    %v1684 = vld [vmem:[%s1653 + $0x78] sm:$0xf]
    %v1685 = vld [vmem:[%s1653 + $0x7c] sm:$0xf]
    %v1686 = vld [vmem:[%s1653 + $0x80] sm:$0xf]
    %v1687 = vld [vmem:[%s1653 + $0x84] sm:$0xf]
    %v1688 = vld [vmem:[%s1653 + $0x88] sm:$0xf]
    %v1689 = vld [vmem:[%s1653 + $0x8c] sm:$0xf]
    %v1690 = vld [vmem:[%s1653 + $0x90] sm:$0xf]
    %v1691 = vld [vmem:[%s1653 + $0x94] sm:$0xf]
    %v1692 = vld [vmem:[%s1653 + $0x98] sm:$0xf]
    %v1693 = vld [vmem:[%s1653 + $0x9c] sm:$0xf]
    %v1694 = vld [vmem:[%s1653 + $0xa0] sm:$0xf]
    %v1695 = vld [vmem:[%s1653 + $0xa4] sm:$0xf]
    %v1696 = vld [vmem:[%s1653 + $0xa8] sm:$0xf]
    %v1697 = vld [vmem:[%s1653 + $0xac] sm:$0xf]
    %v1698 = vld [vmem:[%s1653 + $0xb0] sm:$0xf]
    %v1699 = vld [vmem:[%s1653 + $0xb4] sm:$0xf]
    %v1700 = vld [vmem:[%s1653 + $0xb8] sm:$0xf]
    %v1701 = vld [vmem:[%s1653 + $0xbc] sm:$0xf]
    %v1702 = vld [vmem:[%s1653 + $0xc0] sm:$0xf]
    %v1703 = vld [vmem:[%s1653 + $0xc4] sm:$0xf]
    %v1704 = vld [vmem:[%s1653 + $0xc8] sm:$0xf]
    %v1705 = vld [vmem:[%s1653 + $0xcc] sm:$0xf]
    %v1706 = vld [vmem:[%s1653 + $0xd0] sm:$0xf]
    %v1707 = vld [vmem:[%s1653 + $0xd4] sm:$0xf]
    %v1708 = vld [vmem:[%s1653 + $0xd8] sm:$0xf]
    %v1709 = vld [vmem:[%s1653 + $0xdc] sm:$0xf]
    %v1710 = vld [vmem:[%s1653 + $0xe0] sm:$0xf]
    %v1711 = vld [vmem:[%s1653 + $0xe4] sm:$0xf]
    %v1712 = vld [vmem:[%s1653 + $0xe8] sm:$0xf]
    %v1713 = vld [vmem:[%s1653 + $0xec] sm:$0xf]
    %v1714 = vld [vmem:[%s1653 + $0xf0] sm:$0xf]
    %v1715 = vld [vmem:[%s1653 + $0xf4] sm:$0xf]
    %v1716 = vld [vmem:[%s1653 + $0xf8] sm:$0xf]
    %v1717 = vld [vmem:[%s1653 + $0xfc] sm:$0xf]
    %v1718 = vld [vmem:[%s1653 + $0x100] sm:$0xf]
    %v1719 = vld [vmem:[%s1653 + $0x104] sm:$0xf]
    %v1720 = vld [vmem:[%s1653 + $0x108] sm:$0xf]
    %v1721 = vld [vmem:[%s1653 + $0x10c] sm:$0xf]
    %v1722 = vld [vmem:[%s1653 + $0x110] sm:$0xf]
    %v1723 = vld [vmem:[%s1653 + $0x114] sm:$0xf]
    %v1724 = vld [vmem:[%s1653 + $0x118] sm:$0xf]
    %v1725 = vld [vmem:[%s1653 + $0x11c] sm:$0xf]
    %v1726 = vld [vmem:[%s1653 + $0x120] sm:$0xf]
    %v1727 = vld [vmem:[%s1653 + $0x124] sm:$0xf]
    %v1728 = vld [vmem:[%s1653 + $0x128] sm:$0xf]
    %v1729 = vld [vmem:[%s1653 + $0x12c] sm:$0xf]
    %v1730 = vld [vmem:[%s1653 + $0x130] sm:$0xf]
    %v1731 = vld [vmem:[%s1653 + $0x134] sm:$0xf]
    %v1732 = vld [vmem:[%s1653 + $0x138] sm:$0xf]
    %v1733 = vld [vmem:[%s1653 + $0x13c] sm:$0xf]
    %v1734 = vld [vmem:[%s1653 + $0x140] sm:$0xf]
    %v1735 = vld [vmem:[%s1653 + $0x144] sm:$0xf]
    %v1736 = vld [vmem:[%s1653 + $0x148] sm:$0xf]
    %v1737 = vld [vmem:[%s1653 + $0x14c] sm:$0xf]
    %v1738 = vld [vmem:[%s1653 + $0x150] sm:$0xf]
    %v1739 = vld [vmem:[%s1653 + $0x154] sm:$0xf]
    %v1740 = vld [vmem:[%s1653 + $0x158] sm:$0xf]
    %v1741 = vld [vmem:[%s1653 + $0x15c] sm:$0xf]
    %v1742 = vld [vmem:[%s1653 + $0x160] sm:$0xf]
    %v1743 = vld [vmem:[%s1653 + $0x164] sm:$0xf]
    %v1744 = vld [vmem:[%s1653 + $0x168] sm:$0xf]
    %v1745 = vld [vmem:[%s1653 + $0x16c] sm:$0xf]
    %v1746 = vld [vmem:[%s1653 + $0x170] sm:$0xf]
    %v1747 = vld [vmem:[%s1653 + $0x174] sm:$0xf]
    %v1748 = vld [vmem:[%s1653 + $0x178] sm:$0xf]
    %v1749 = vld [vmem:[%s1653 + $0x17c] sm:$0xf]
    %v1750 = vld [vmem:[%s1653 + $0x180] sm:$0xf]
    %v1751 = vld [vmem:[%s1653 + $0x184] sm:$0xf]
    %v1752 = vld [vmem:[%s1653 + $0x188] sm:$0xf]
    %v1753 = vld [vmem:[%s1653 + $0x18c] sm:$0xf]
    %v1754 = vld [vmem:[%s1653 + $0x190] sm:$0xf]
    %v1755 = vld [vmem:[%s1653 + $0x194] sm:$0xf]
    %v1756 = vld [vmem:[%s1653 + $0x198] sm:$0xf]
    %v1757 = vld [vmem:[%s1653 + $0x19c] sm:$0xf]
    %v1758 = vld [vmem:[%s1653 + $0x1a0] sm:$0xf]
    %v1759 = vld [vmem:[%s1653 + $0x1a4] sm:$0xf]
    %v1760 = vld [vmem:[%s1653 + $0x1a8] sm:$0xf]
    %v1761 = vld [vmem:[%s1653 + $0x1ac] sm:$0xf]
    %v1762 = vld [vmem:[%s1653 + $0x1b0] sm:$0xf]
    %v1763 = vld [vmem:[%s1653 + $0x1b4] sm:$0xf]
    %v1764 = vld [vmem:[%s1653 + $0x1b8] sm:$0xf]
    %v1765 = vld [vmem:[%s1653 + $0x1bc] sm:$0xf]
    %v1766 = vld [vmem:[%s1653 + $0x1c0] sm:$0xf]
    %v1767 = vld [vmem:[%s1653 + $0x1c4] sm:$0xf]
    %v1768 = vld [vmem:[%s1653 + $0x1c8] sm:$0xf]
    %v1769 = vld [vmem:[%s1653 + $0x1cc] sm:$0xf]
    %v1770 = vld [vmem:[%s1653 + $0x1d0] sm:$0xf]
    %v1771 = vld [vmem:[%s1653 + $0x1d4] sm:$0xf]
    %v1772 = vld [vmem:[%s1653 + $0x1d8] sm:$0xf]
    %v1773 = vld [vmem:[%s1653 + $0x1dc] sm:$0xf]
    %v1774 = vld [vmem:[%s1653 + $0x1e0] sm:$0xf]
    %v1775 = vld [vmem:[%s1653 + $0x1e4] sm:$0xf]
    %v1776 = vld [vmem:[%s1653 + $0x1e8] sm:$0xf]
    %v1777 = vld [vmem:[%s1653 + $0x1ec] sm:$0xf]
    %v1778 = vld [vmem:[%s1653 + $0x1f0] sm:$0xf]
    %v1779 = vld [vmem:[%s1653 + $0x1f4] sm:$0xf]
    %v1780 = vld [vmem:[%s1653 + $0x1f8] sm:$0xf]
    %v1781 = vld [vmem:[%s1653 + $0x1fc] sm:$0xf]
    %v1910 = vunpack.c.l.b16 %v1654
    %v1911 = vunpack.c.l.b16 %v1655
    %v1912 = vunpack.c.l.b16 %v1656
    %v1913 = vunpack.c.l.b16 %v1657
    %v1914 = vunpack.c.l.b16 %v1658
    %v1915 = vunpack.c.l.b16 %v1659
    %v1916 = vunpack.c.l.b16 %v1660
    %v1917 = vunpack.c.l.b16 %v1661
    %v1918 = vunpack.c.l.b16 %v1662
    %v1919 = vunpack.c.l.b16 %v1663
    %v1920 = vunpack.c.l.b16 %v1664
    %v1921 = vunpack.c.l.b16 %v1665
    %v1922 = vunpack.c.l.b16 %v1666
    %v1923 = vunpack.c.l.b16 %v1667
    %v1924 = vunpack.c.l.b16 %v1668
    %v1925 = vunpack.c.l.b16 %v1669
    %v1926 = vunpack.c.l.b16 %v1670
    %v1927 = vunpack.c.l.b16 %v1671
    %v1928 = vunpack.c.l.b16 %v1672
    %v1929 = vunpack.c.l.b16 %v1673
    %v1930 = vunpack.c.l.b16 %v1674
    %v1931 = vunpack.c.l.b16 %v1675
    %v1932 = vunpack.c.l.b16 %v1676
    %v1933 = vunpack.c.l.b16 %v1677
    %v1934 = vunpack.c.l.b16 %v1678
    %v1935 = vunpack.c.l.b16 %v1679
    %v1936 = vunpack.c.l.b16 %v1680
    %v1937 = vunpack.c.l.b16 %v1681
    %v1938 = vunpack.c.l.b16 %v1682
    %v1939 = vunpack.c.l.b16 %v1683
    %v1940 = vunpack.c.l.b16 %v1684
    %v1941 = vunpack.c.l.b16 %v1685
    %v1942 = vunpack.c.l.b16 %v1686
    %v1943 = vunpack.c.l.b16 %v1687
    %v1944 = vunpack.c.l.b16 %v1688
    %v1945 = vunpack.c.l.b16 %v1689
    %v1946 = vunpack.c.l.b16 %v1690
    %v1947 = vunpack.c.l.b16 %v1691
    %v1948 = vunpack.c.l.b16 %v1692
    %v1949 = vunpack.c.l.b16 %v1693
    %v1950 = vunpack.c.l.b16 %v1694
    %v1951 = vunpack.c.l.b16 %v1695
    %v1952 = vunpack.c.l.b16 %v1696
    %v1953 = vunpack.c.l.b16 %v1697
    %v1954 = vunpack.c.l.b16 %v1698
    %v1955 = vunpack.c.l.b16 %v1699
    %v1956 = vunpack.c.l.b16 %v1700
    %v1957 = vunpack.c.l.b16 %v1701
    %v1958 = vunpack.c.l.b16 %v1702
    %v1959 = vunpack.c.l.b16 %v1703
    %v1960 = vunpack.c.l.b16 %v1704
    %v1961 = vunpack.c.l.b16 %v1705
    %v1962 = vunpack.c.l.b16 %v1706
    %v1963 = vunpack.c.l.b16 %v1707
    %v1964 = vunpack.c.l.b16 %v1708
    %v1965 = vunpack.c.l.b16 %v1709
    %v1966 = vunpack.c.l.b16 %v1710
    %v1967 = vunpack.c.l.b16 %v1711
    %v1968 = vunpack.c.l.b16 %v1712
    %v1969 = vunpack.c.l.b16 %v1713
    %v1970 = vunpack.c.l.b16 %v1714
    %v1971 = vunpack.c.l.b16 %v1715
    %v1972 = vunpack.c.l.b16 %v1716
    %v1973 = vunpack.c.l.b16 %v1717
    %v1974 = vunpack.c.l.b16 %v1718
    %v1975 = vunpack.c.l.b16 %v1719
    %v1976 = vunpack.c.l.b16 %v1720
    %v1977 = vunpack.c.l.b16 %v1721
    %v1978 = vunpack.c.l.b16 %v1722
    %v1979 = vunpack.c.l.b16 %v1723
    %v1980 = vunpack.c.l.b16 %v1724
    %v1981 = vunpack.c.l.b16 %v1725
    %v1982 = vunpack.c.l.b16 %v1726
    %v1983 = vunpack.c.l.b16 %v1727
    %v1984 = vunpack.c.l.b16 %v1728
    %v1985 = vunpack.c.l.b16 %v1729
    %v1986 = vunpack.c.l.b16 %v1730
    %v1987 = vunpack.c.l.b16 %v1731
    %v1988 = vunpack.c.l.b16 %v1732
    %v1989 = vunpack.c.l.b16 %v1733
    %v1990 = vunpack.c.l.b16 %v1734
    %v1991 = vunpack.c.l.b16 %v1735
    %v1992 = vunpack.c.l.b16 %v1736
    %v1993 = vunpack.c.l.b16 %v1737
    %v1994 = vunpack.c.l.b16 %v1738
    %v1995 = vunpack.c.l.b16 %v1739
    %v1996 = vunpack.c.l.b16 %v1740
    %v1997 = vunpack.c.l.b16 %v1741
    %v1998 = vunpack.c.l.b16 %v1742
    %v1999 = vunpack.c.l.b16 %v1743
    %v2000 = vunpack.c.l.b16 %v1744
    %v2001 = vunpack.c.l.b16 %v1745
    %v2002 = vunpack.c.l.b16 %v1746
    %v2003 = vunpack.c.l.b16 %v1747
    %v2004 = vunpack.c.l.b16 %v1748
    %v2005 = vunpack.c.l.b16 %v1749
    %v2006 = vunpack.c.l.b16 %v1750
    %v2007 = vunpack.c.l.b16 %v1751
    %v2008 = vunpack.c.l.b16 %v1752
    %v2009 = vunpack.c.l.b16 %v1753
    %v2010 = vunpack.c.l.b16 %v1754
    %v2011 = vunpack.c.l.b16 %v1755
    %v2012 = vunpack.c.l.b16 %v1756
    %v2013 = vunpack.c.l.b16 %v1757
    %v2014 = vunpack.c.l.b16 %v1758
    %v2015 = vunpack.c.l.b16 %v1759
    %v2016 = vunpack.c.l.b16 %v1760
    %v2017 = vunpack.c.l.b16 %v1761
    %v2018 = vunpack.c.l.b16 %v1762
    %v2019 = vunpack.c.l.b16 %v1763
    %v2020 = vunpack.c.l.b16 %v1764
    %v2021 = vunpack.c.l.b16 %v1765
    %v2022 = vunpack.c.l.b16 %v1766
    %v2023 = vunpack.c.l.b16 %v1767
    %v2024 = vunpack.c.l.b16 %v1768
    %v2025 = vunpack.c.l.b16 %v1769
    %v2026 = vunpack.c.l.b16 %v1770
    %v2027 = vunpack.c.l.b16 %v1771
    %v2028 = vunpack.c.l.b16 %v1772
    %v2029 = vunpack.c.l.b16 %v1773
    %v2030 = vunpack.c.l.b16 %v1774
    %v2031 = vunpack.c.l.b16 %v1775
    %v2032 = vunpack.c.l.b16 %v1776
    %v2033 = vunpack.c.l.b16 %v1777
    %v2034 = vunpack.c.l.b16 %v1778
    %v2035 = vunpack.c.l.b16 %v1779
    %v2036 = vunpack.c.l.b16 %v1780
    %v2037 = vunpack.c.l.b16 %v1781
    %v2038 = vpack.c.b16 %v1911, %v1910
    %v2039 = vpack.c.b16 %v1913, %v1912
    %v2040 = vpack.c.b16 %v1915, %v1914
    %v2041 = vpack.c.b16 %v1917, %v1916
    %v2042 = vpack.c.b16 %v1919, %v1918
    %v2043 = vpack.c.b16 %v1921, %v1920
    %v2044 = vpack.c.b16 %v1923, %v1922
    %v2045 = vpack.c.b16 %v1925, %v1924
    %v2046 = vpack.c.b16 %v1927, %v1926
    %v2047 = vpack.c.b16 %v1929, %v1928
    %v2048 = vpack.c.b16 %v1931, %v1930
    %v2049 = vpack.c.b16 %v1933, %v1932
    %v2050 = vpack.c.b16 %v1935, %v1934
    %v2051 = vpack.c.b16 %v1937, %v1936
    %v2052 = vpack.c.b16 %v1939, %v1938
    %v2053 = vpack.c.b16 %v1941, %v1940
    %v2054 = vpack.c.b16 %v1943, %v1942
    %v2055 = vpack.c.b16 %v1945, %v1944
    %v2056 = vpack.c.b16 %v1947, %v1946
    %v2057 = vpack.c.b16 %v1949, %v1948
    %v2058 = vpack.c.b16 %v1951, %v1950
    %v2059 = vpack.c.b16 %v1953, %v1952
    %v2060 = vpack.c.b16 %v1955, %v1954
    %v2061 = vpack.c.b16 %v1957, %v1956
    %v2062 = vpack.c.b16 %v1959, %v1958
    %v2063 = vpack.c.b16 %v1961, %v1960
    %v2064 = vpack.c.b16 %v1963, %v1962
    %v2065 = vpack.c.b16 %v1965, %v1964
    %v2066 = vpack.c.b16 %v1967, %v1966
    %v2067 = vpack.c.b16 %v1969, %v1968
    %v2068 = vpack.c.b16 %v1971, %v1970
    %v2069 = vpack.c.b16 %v1973, %v1972
    %v2070 = vpack.c.b16 %v1975, %v1974
    %v2071 = vpack.c.b16 %v1977, %v1976
    %v2072 = vpack.c.b16 %v1979, %v1978
    %v2073 = vpack.c.b16 %v1981, %v1980
    %v2074 = vpack.c.b16 %v1983, %v1982
    %v2075 = vpack.c.b16 %v1985, %v1984
    %v2076 = vpack.c.b16 %v1987, %v1986
    %v2077 = vpack.c.b16 %v1989, %v1988
    %v2078 = vpack.c.b16 %v1991, %v1990
    %v2079 = vpack.c.b16 %v1993, %v1992
    %v2080 = vpack.c.b16 %v1995, %v1994
    %v2081 = vpack.c.b16 %v1997, %v1996
    %v2082 = vpack.c.b16 %v1999, %v1998
    %v2083 = vpack.c.b16 %v2001, %v2000
    %v2084 = vpack.c.b16 %v2003, %v2002
    %v2085 = vpack.c.b16 %v2005, %v2004
    %v2086 = vpack.c.b16 %v2007, %v2006
    %v2087 = vpack.c.b16 %v2009, %v2008
    %v2088 = vpack.c.b16 %v2011, %v2010
    %v2089 = vpack.c.b16 %v2013, %v2012
    %v2090 = vpack.c.b16 %v2015, %v2014
    %v2091 = vpack.c.b16 %v2017, %v2016
    %v2092 = vpack.c.b16 %v2019, %v2018
    %v2093 = vpack.c.b16 %v2021, %v2020
    %v2094 = vpack.c.b16 %v2023, %v2022
    %v2095 = vpack.c.b16 %v2025, %v2024
    %v2096 = vpack.c.b16 %v2027, %v2026
    %v2097 = vpack.c.b16 %v2029, %v2028
    %v2098 = vpack.c.b16 %v2031, %v2030
    %v2099 = vpack.c.b16 %v2033, %v2032
    %v2100 = vpack.c.b16 %v2035, %v2034
    %v2101 = vpack.c.b16 %v2037, %v2036
    %2166 = vmatpush.bf16.msra.mxu0 %v2045
    %2167 = vmatpush.bf16.msra.mxu0 %v2044
    %2168 = vmatpush.bf16.msra.mxu0 %v2043
    %2169 = vmatpush.bf16.msra.mxu0 %v2042
    %2170 = vmatpush.bf16.msra.mxu0 %v2041
    %2171 = vmatpush.bf16.msra.mxu0 %v2040
    %2172 = vmatpush.bf16.msra.mxu0 %v2039
    %2173 = vmatpush.bf16.msra.mxu0 %v2038
    %2174 = vmatmul.bf16.gmra.mxu0 %v1645
    %v2175 = vpop.f32.mrf.mxu0
    %v2176 = vadd.f32 0.0, %v2175
    %v2177 = vpop.f32.mrf.mxu0
    %2178 = vdwg.mxu0
    %2179 = vmatpush.bf16.msra.mxu0 %v2053
    %2180 = vmatpush.bf16.msra.mxu0 %v2052
    %2181 = vmatpush.bf16.msra.mxu0 %v2051
    %2182 = vmatpush.bf16.msra.mxu0 %v2050
    %2183 = vmatpush.bf16.msra.mxu0 %v2049
    %2184 = vmatpush.bf16.msra.mxu0 %v2048
    %2185 = vmatpush.bf16.msra.mxu0 %v2047
    %2186 = vmatpush.bf16.msra.mxu0 %v2046
    %2187 = vmatmul.bf16.gmra.mxu0 %v1646
    %v2188 = vpop.f32.mrf.mxu0
    %v2189 = vadd.f32 %v2176, %v2188
    %v2190 = vpop.f32.mrf.mxu0
    %2191 = vdwg.mxu0
    %2192 = vmatpush.bf16.msra.mxu0 %v2061
    %2193 = vmatpush.bf16.msra.mxu0 %v2060
    %2194 = vmatpush.bf16.msra.mxu0 %v2059
    %2195 = vmatpush.bf16.msra.mxu0 %v2058
    %2196 = vmatpush.bf16.msra.mxu0 %v2057
    %2197 = vmatpush.bf16.msra.mxu0 %v2056
    %2198 = vmatpush.bf16.msra.mxu0 %v2055
    %2199 = vmatpush.bf16.msra.mxu0 %v2054
    %2200 = vmatmul.bf16.gmra.mxu0 %v1647
    %v2201 = vpop.f32.mrf.mxu0
    %v2202 = vadd.f32 %v2189, %v2201
    %v2203 = vpop.f32.mrf.mxu0
    %2204 = vdwg.mxu0
    %2205 = vmatpush.bf16.msra.mxu0 %v2069
    %2206 = vmatpush.bf16.msra.mxu0 %v2068
    %2207 = vmatpush.bf16.msra.mxu0 %v2067
    %2208 = vmatpush.bf16.msra.mxu0 %v2066
    %2209 = vmatpush.bf16.msra.mxu0 %v2065
    %2210 = vmatpush.bf16.msra.mxu0 %v2064
    %2211 = vmatpush.bf16.msra.mxu0 %v2063
    %2212 = vmatpush.bf16.msra.mxu0 %v2062
    %2213 = vmatmul.bf16.gmra.mxu0 %v1648
    %v2214 = vpop.f32.mrf.mxu0
    %v2215 = vadd.f32 %v2202, %v2214
    %v2216 = vpop.f32.mrf.mxu0
    %2217 = vdwg.mxu0
    %2218 = vmatpush.bf16.msra.mxu0 %v2077
    %2219 = vmatpush.bf16.msra.mxu0 %v2076
    %2220 = vmatpush.bf16.msra.mxu0 %v2075
    %2221 = vmatpush.bf16.msra.mxu0 %v2074
    %2222 = vmatpush.bf16.msra.mxu0 %v2073
    %2223 = vmatpush.bf16.msra.mxu0 %v2072
    %2224 = vmatpush.bf16.msra.mxu0 %v2071
    %2225 = vmatpush.bf16.msra.mxu0 %v2070
    %2226 = vmatmul.bf16.gmra.mxu0 %v1649
    %v2227 = vpop.f32.mrf.mxu0
    %v2228 = vadd.f32 %v2215, %v2227
    %v2229 = vpop.f32.mrf.mxu0
    %2230 = vdwg.mxu0
    %2231 = vmatpush.bf16.msra.mxu0 %v2085
    %2232 = vmatpush.bf16.msra.mxu0 %v2084
    %2233 = vmatpush.bf16.msra.mxu0 %v2083
    %2234 = vmatpush.bf16.msra.mxu0 %v2082
    %2235 = vmatpush.bf16.msra.mxu0 %v2081
    %2236 = vmatpush.bf16.msra.mxu0 %v2080
    %2237 = vmatpush.bf16.msra.mxu0 %v2079
    %2238 = vmatpush.bf16.msra.mxu0 %v2078
    %2239 = vmatmul.bf16.gmra.mxu0 %v1650
    %v2240 = vpop.f32.mrf.mxu0
    %v2241 = vadd.f32 %v2228, %v2240
    %v2242 = vpop.f32.mrf.mxu0
    %2243 = vdwg.mxu0
    %2244 = vmatpush.bf16.msra.mxu0 %v2093
    %2245 = vmatpush.bf16.msra.mxu0 %v2092
    %2246 = vmatpush.bf16.msra.mxu0 %v2091
    %2247 = vmatpush.bf16.msra.mxu0 %v2090
    %2248 = vmatpush.bf16.msra.mxu0 %v2089
    %2249 = vmatpush.bf16.msra.mxu0 %v2088
    %2250 = vmatpush.bf16.msra.mxu0 %v2087
    %2251 = vmatpush.bf16.msra.mxu0 %v2086
    %2252 = vmatmul.bf16.gmra.mxu0 %v1651
    %v2253 = vpop.f32.mrf.mxu0
    %v2254 = vadd.f32 %v2241, %v2253
    %v2255 = vpop.f32.mrf.mxu0
    %2256 = vdwg.mxu0
    %2257 = vmatpush.bf16.msra.mxu0 %v2101
    %2258 = vmatpush.bf16.msra.mxu0 %v2100
    %2259 = vmatpush.bf16.msra.mxu0 %v2099
    %2260 = vmatpush.bf16.msra.mxu0 %v2098
    %2261 = vmatpush.bf16.msra.mxu0 %v2097
    %2262 = vmatpush.bf16.msra.mxu0 %v2096
    %2263 = vmatpush.bf16.msra.mxu0 %v2095
    %2264 = vmatpush.bf16.msra.mxu0 %v2094
    %2265 = vmatmul.bf16.gmra.mxu0 %v1652
    %v2266 = vpop.f32.mrf.mxu0
    %v2267 = vadd.f32 %v2254, %v2266
    %v2268 = vpop.f32.mrf.mxu0
    %2269 = vdwg.mxu0
    %v2398 = vunpack.c.l.b16 %v1517
    %v2399 = vunpack.c.l.b16 %v1518
    %v2400 = vunpack.c.l.b16 %v1519
    %v2401 = vunpack.c.l.b16 %v1520
    %v2402 = vunpack.c.l.b16 %v1521
    %v2403 = vunpack.c.l.b16 %v1522
    %v2404 = vunpack.c.l.b16 %v1523
    %v2405 = vunpack.c.l.b16 %v1524
    %v2406 = vunpack.c.l.b16 %v1525
    %v2407 = vunpack.c.l.b16 %v1526
    %v2408 = vunpack.c.l.b16 %v1527
    %v2409 = vunpack.c.l.b16 %v1528
    %v2410 = vunpack.c.l.b16 %v1529
    %v2411 = vunpack.c.l.b16 %v1530
    %v2412 = vunpack.c.l.b16 %v1531
    %v2413 = vunpack.c.l.b16 %v1532
    %v2414 = vunpack.c.l.b16 %v1533
    %v2415 = vunpack.c.l.b16 %v1534
    %v2416 = vunpack.c.l.b16 %v1535
    %v2417 = vunpack.c.l.b16 %v1536
    %v2418 = vunpack.c.l.b16 %v1537
    %v2419 = vunpack.c.l.b16 %v1538
    %v2420 = vunpack.c.l.b16 %v1539
    %v2421 = vunpack.c.l.b16 %v1540
    %v2422 = vunpack.c.l.b16 %v1541
    %v2423 = vunpack.c.l.b16 %v1542
    %v2424 = vunpack.c.l.b16 %v1543
    %v2425 = vunpack.c.l.b16 %v1544
    %v2426 = vunpack.c.l.b16 %v1545
    %v2427 = vunpack.c.l.b16 %v1546
    %v2428 = vunpack.c.l.b16 %v1547
    %v2429 = vunpack.c.l.b16 %v1548
    %v2430 = vunpack.c.l.b16 %v1549
    %v2431 = vunpack.c.l.b16 %v1550
    %v2432 = vunpack.c.l.b16 %v1551
    %v2433 = vunpack.c.l.b16 %v1552
    %v2434 = vunpack.c.l.b16 %v1553
    %v2435 = vunpack.c.l.b16 %v1554
    %v2436 = vunpack.c.l.b16 %v1555
    %v2437 = vunpack.c.l.b16 %v1556
    %v2438 = vunpack.c.l.b16 %v1557
    %v2439 = vunpack.c.l.b16 %v1558
    %v2440 = vunpack.c.l.b16 %v1559
    %v2441 = vunpack.c.l.b16 %v1560
    %v2442 = vunpack.c.l.b16 %v1561
    %v2443 = vunpack.c.l.b16 %v1562
    %v2444 = vunpack.c.l.b16 %v1563
    %v2445 = vunpack.c.l.b16 %v1564
    %v2446 = vunpack.c.l.b16 %v1565
    %v2447 = vunpack.c.l.b16 %v1566
    %v2448 = vunpack.c.l.b16 %v1567
    %v2449 = vunpack.c.l.b16 %v1568
    %v2450 = vunpack.c.l.b16 %v1569
    %v2451 = vunpack.c.l.b16 %v1570
    %v2452 = vunpack.c.l.b16 %v1571
    %v2453 = vunpack.c.l.b16 %v1572
    %v2454 = vunpack.c.l.b16 %v1573
    %v2455 = vunpack.c.l.b16 %v1574
    %v2456 = vunpack.c.l.b16 %v1575
    %v2457 = vunpack.c.l.b16 %v1576
    %v2458 = vunpack.c.l.b16 %v1577
    %v2459 = vunpack.c.l.b16 %v1578
    %v2460 = vunpack.c.l.b16 %v1579
    %v2461 = vunpack.c.l.b16 %v1580
    %v2462 = vunpack.c.l.b16 %v1581
    %v2463 = vunpack.c.l.b16 %v1582
    %v2464 = vunpack.c.l.b16 %v1583
    %v2465 = vunpack.c.l.b16 %v1584
    %v2466 = vunpack.c.l.b16 %v1585
    %v2467 = vunpack.c.l.b16 %v1586
    %v2468 = vunpack.c.l.b16 %v1587
    %v2469 = vunpack.c.l.b16 %v1588
    %v2470 = vunpack.c.l.b16 %v1589
    %v2471 = vunpack.c.l.b16 %v1590
    %v2472 = vunpack.c.l.b16 %v1591
    %v2473 = vunpack.c.l.b16 %v1592
    %v2474 = vunpack.c.l.b16 %v1593
    %v2475 = vunpack.c.l.b16 %v1594
    %v2476 = vunpack.c.l.b16 %v1595
    %v2477 = vunpack.c.l.b16 %v1596
    %v2478 = vunpack.c.l.b16 %v1597
    %v2479 = vunpack.c.l.b16 %v1598
    %v2480 = vunpack.c.l.b16 %v1599
    %v2481 = vunpack.c.l.b16 %v1600
    %v2482 = vunpack.c.l.b16 %v1601
    %v2483 = vunpack.c.l.b16 %v1602
    %v2484 = vunpack.c.l.b16 %v1603
    %v2485 = vunpack.c.l.b16 %v1604
    %v2486 = vunpack.c.l.b16 %v1605
    %v2487 = vunpack.c.l.b16 %v1606
    %v2488 = vunpack.c.l.b16 %v1607
    %v2489 = vunpack.c.l.b16 %v1608
    %v2490 = vunpack.c.l.b16 %v1609
    %v2491 = vunpack.c.l.b16 %v1610
    %v2492 = vunpack.c.l.b16 %v1611
    %v2493 = vunpack.c.l.b16 %v1612
    %v2494 = vunpack.c.l.b16 %v1613
    %v2495 = vunpack.c.l.b16 %v1614
    %v2496 = vunpack.c.l.b16 %v1615
    %v2497 = vunpack.c.l.b16 %v1616
    %v2498 = vunpack.c.l.b16 %v1617
    %v2499 = vunpack.c.l.b16 %v1618
    %v2500 = vunpack.c.l.b16 %v1619
    %v2501 = vunpack.c.l.b16 %v1620
    %v2502 = vunpack.c.l.b16 %v1621
    %v2503 = vunpack.c.l.b16 %v1622
    %v2504 = vunpack.c.l.b16 %v1623
    %v2505 = vunpack.c.l.b16 %v1624
    %v2506 = vunpack.c.l.b16 %v1625
    %v2507 = vunpack.c.l.b16 %v1626
    %v2508 = vunpack.c.l.b16 %v1627
    %v2509 = vunpack.c.l.b16 %v1628
    %v2510 = vunpack.c.l.b16 %v1629
    %v2511 = vunpack.c.l.b16 %v1630
    %v2512 = vunpack.c.l.b16 %v1631
    %v2513 = vunpack.c.l.b16 %v1632
    %v2514 = vunpack.c.l.b16 %v1633
    %v2515 = vunpack.c.l.b16 %v1634
    %v2516 = vunpack.c.l.b16 %v1635
    %v2517 = vunpack.c.l.b16 %v1636
    %v2518 = vunpack.c.l.b16 %v1637
    %v2519 = vunpack.c.l.b16 %v1638
    %v2520 = vunpack.c.l.b16 %v1639
    %v2521 = vunpack.c.l.b16 %v1640
    %v2522 = vunpack.c.l.b16 %v1641
    %v2523 = vunpack.c.l.b16 %v1642
    %v2524 = vunpack.c.l.b16 %v1643
    %v2525 = vunpack.c.l.b16 %v1644
    %v2526 = vpack.c.b16 %v2399, %v2398
    %v2527 = vpack.c.b16 %v2401, %v2400
    %v2528 = vpack.c.b16 %v2403, %v2402
    %v2529 = vpack.c.b16 %v2405, %v2404
    %v2530 = vpack.c.b16 %v2407, %v2406
    %v2531 = vpack.c.b16 %v2409, %v2408
    %v2532 = vpack.c.b16 %v2411, %v2410
    %v2533 = vpack.c.b16 %v2413, %v2412
    %v2534 = vpack.c.b16 %v2415, %v2414
    %v2535 = vpack.c.b16 %v2417, %v2416
    %v2536 = vpack.c.b16 %v2419, %v2418
    %v2537 = vpack.c.b16 %v2421, %v2420
    %v2538 = vpack.c.b16 %v2423, %v2422
    %v2539 = vpack.c.b16 %v2425, %v2424
    %v2540 = vpack.c.b16 %v2427, %v2426
    %v2541 = vpack.c.b16 %v2429, %v2428
    %v2542 = vpack.c.b16 %v2431, %v2430
    %v2543 = vpack.c.b16 %v2433, %v2432
    %v2544 = vpack.c.b16 %v2435, %v2434
    %v2545 = vpack.c.b16 %v2437, %v2436
    %v2546 = vpack.c.b16 %v2439, %v2438
    %v2547 = vpack.c.b16 %v2441, %v2440
    %v2548 = vpack.c.b16 %v2443, %v2442
    %v2549 = vpack.c.b16 %v2445, %v2444
    %v2550 = vpack.c.b16 %v2447, %v2446
    %v2551 = vpack.c.b16 %v2449, %v2448
    %v2552 = vpack.c.b16 %v2451, %v2450
    %v2553 = vpack.c.b16 %v2453, %v2452
    %v2554 = vpack.c.b16 %v2455, %v2454
    %v2555 = vpack.c.b16 %v2457, %v2456
    %v2556 = vpack.c.b16 %v2459, %v2458
    %v2557 = vpack.c.b16 %v2461, %v2460
    %v2558 = vpack.c.b16 %v2463, %v2462
    %v2559 = vpack.c.b16 %v2465, %v2464
    %v2560 = vpack.c.b16 %v2467, %v2466
    %v2561 = vpack.c.b16 %v2469, %v2468
    %v2562 = vpack.c.b16 %v2471, %v2470
    %v2563 = vpack.c.b16 %v2473, %v2472
    %v2564 = vpack.c.b16 %v2475, %v2474
    %v2565 = vpack.c.b16 %v2477, %v2476
    %v2566 = vpack.c.b16 %v2479, %v2478
    %v2567 = vpack.c.b16 %v2481, %v2480
    %v2568 = vpack.c.b16 %v2483, %v2482
    %v2569 = vpack.c.b16 %v2485, %v2484
    %v2570 = vpack.c.b16 %v2487, %v2486
    %v2571 = vpack.c.b16 %v2489, %v2488
    %v2572 = vpack.c.b16 %v2491, %v2490
    %v2573 = vpack.c.b16 %v2493, %v2492
    %v2574 = vpack.c.b16 %v2495, %v2494
    %v2575 = vpack.c.b16 %v2497, %v2496
    %v2576 = vpack.c.b16 %v2499, %v2498
    %v2577 = vpack.c.b16 %v2501, %v2500
    %v2578 = vpack.c.b16 %v2503, %v2502
    %v2579 = vpack.c.b16 %v2505, %v2504
    %v2580 = vpack.c.b16 %v2507, %v2506
    %v2581 = vpack.c.b16 %v2509, %v2508
    %v2582 = vpack.c.b16 %v2511, %v2510
    %v2583 = vpack.c.b16 %v2513, %v2512
    %v2584 = vpack.c.b16 %v2515, %v2514
    %v2585 = vpack.c.b16 %v2517, %v2516
    %v2586 = vpack.c.b16 %v2519, %v2518
    %v2587 = vpack.c.b16 %v2521, %v2520
    %v2588 = vpack.c.b16 %v2523, %v2522
    %v2589 = vpack.c.b16 %v2525, %v2524
    %2654 = vmatpush.bf16.msra.mxu0 %v2533
    %2655 = vmatpush.bf16.msra.mxu0 %v2532
    %2656 = vmatpush.bf16.msra.mxu0 %v2531
    %2657 = vmatpush.bf16.msra.mxu0 %v2530
    %2658 = vmatpush.bf16.msra.mxu0 %v2529
    %2659 = vmatpush.bf16.msra.mxu0 %v2528
    %2660 = vmatpush.bf16.msra.mxu0 %v2527
    %2661 = vmatpush.bf16.msra.mxu0 %v2526
    %2662 = vmatmul.bf16.gmra.mxu0 %v1509
    %v2663 = vpop.f32.mrf.mxu0
    %v2664 = vadd.f32 %v2267, %v2663
    %v2665 = vpop.f32.mrf.mxu0
    %2666 = vdwg.mxu0
    %2667 = vmatpush.bf16.msra.mxu0 %v2541
    %2668 = vmatpush.bf16.msra.mxu0 %v2540
    %2669 = vmatpush.bf16.msra.mxu0 %v2539
    %2670 = vmatpush.bf16.msra.mxu0 %v2538
    %2671 = vmatpush.bf16.msra.mxu0 %v2537
    %2672 = vmatpush.bf16.msra.mxu0 %v2536
    %2673 = vmatpush.bf16.msra.mxu0 %v2535
    %2674 = vmatpush.bf16.msra.mxu0 %v2534
    %2675 = vmatmul.bf16.gmra.mxu0 %v1510
    %v2676 = vpop.f32.mrf.mxu0
    %v2677 = vadd.f32 %v2664, %v2676
    %v2678 = vpop.f32.mrf.mxu0
    %2679 = vdwg.mxu0
    %2680 = vmatpush.bf16.msra.mxu0 %v2549
    %2681 = vmatpush.bf16.msra.mxu0 %v2548
    %2682 = vmatpush.bf16.msra.mxu0 %v2547
    %2683 = vmatpush.bf16.msra.mxu0 %v2546
    %2684 = vmatpush.bf16.msra.mxu0 %v2545
    %2685 = vmatpush.bf16.msra.mxu0 %v2544
    %2686 = vmatpush.bf16.msra.mxu0 %v2543
    %2687 = vmatpush.bf16.msra.mxu0 %v2542
    %2688 = vmatmul.bf16.gmra.mxu0 %v1511
    %v2689 = vpop.f32.mrf.mxu0
    %v2690 = vadd.f32 %v2677, %v2689
    %v2691 = vpop.f32.mrf.mxu0
    %2692 = vdwg.mxu0
    %2693 = vmatpush.bf16.msra.mxu0 %v2557
    %2694 = vmatpush.bf16.msra.mxu0 %v2556
    %2695 = vmatpush.bf16.msra.mxu0 %v2555
    %2696 = vmatpush.bf16.msra.mxu0 %v2554
    %2697 = vmatpush.bf16.msra.mxu0 %v2553
    %2698 = vmatpush.bf16.msra.mxu0 %v2552
    %2699 = vmatpush.bf16.msra.mxu0 %v2551
    %2700 = vmatpush.bf16.msra.mxu0 %v2550
    %2701 = vmatmul.bf16.gmra.mxu0 %v1512
    %v2702 = vpop.f32.mrf.mxu0
    %v2703 = vadd.f32 %v2690, %v2702
    %v2704 = vpop.f32.mrf.mxu0
    %2705 = vdwg.mxu0
    %2706 = vmatpush.bf16.msra.mxu0 %v2565
    %2707 = vmatpush.bf16.msra.mxu0 %v2564
    %2708 = vmatpush.bf16.msra.mxu0 %v2563
    %2709 = vmatpush.bf16.msra.mxu0 %v2562
    %2710 = vmatpush.bf16.msra.mxu0 %v2561
    %2711 = vmatpush.bf16.msra.mxu0 %v2560
    %2712 = vmatpush.bf16.msra.mxu0 %v2559
    %2713 = vmatpush.bf16.msra.mxu0 %v2558
    %2714 = vmatmul.bf16.gmra.mxu0 %v1513
    %v2715 = vpop.f32.mrf.mxu0
    %v2716 = vadd.f32 %v2703, %v2715
    %v2717 = vpop.f32.mrf.mxu0
    %2718 = vdwg.mxu0
    %2719 = vmatpush.bf16.msra.mxu0 %v2573
    %2720 = vmatpush.bf16.msra.mxu0 %v2572
    %2721 = vmatpush.bf16.msra.mxu0 %v2571
    %2722 = vmatpush.bf16.msra.mxu0 %v2570
    %2723 = vmatpush.bf16.msra.mxu0 %v2569
    %2724 = vmatpush.bf16.msra.mxu0 %v2568
    %2725 = vmatpush.bf16.msra.mxu0 %v2567
    %2726 = vmatpush.bf16.msra.mxu0 %v2566
    %2727 = vmatmul.bf16.gmra.mxu0 %v1514
    %v2728 = vpop.f32.mrf.mxu0
    %v2729 = vadd.f32 %v2716, %v2728
    %v2730 = vpop.f32.mrf.mxu0
    %2731 = vdwg.mxu0
    %2732 = vmatpush.bf16.msra.mxu0 %v2581
    %2733 = vmatpush.bf16.msra.mxu0 %v2580
    %2734 = vmatpush.bf16.msra.mxu0 %v2579
    %2735 = vmatpush.bf16.msra.mxu0 %v2578
    %2736 = vmatpush.bf16.msra.mxu0 %v2577
    %2737 = vmatpush.bf16.msra.mxu0 %v2576
    %2738 = vmatpush.bf16.msra.mxu0 %v2575
    %2739 = vmatpush.bf16.msra.mxu0 %v2574
    %2740 = vmatmul.bf16.gmra.mxu0 %v1515
    %v2741 = vpop.f32.mrf.mxu0
    %v2742 = vadd.f32 %v2729, %v2741
    %v2743 = vpop.f32.mrf.mxu0
    %2744 = vdwg.mxu0
    %2745 = vmatpush.bf16.msra.mxu0 %v2589
    %2746 = vmatpush.bf16.msra.mxu0 %v2588
    %2747 = vmatpush.bf16.msra.mxu0 %v2587
    %2748 = vmatpush.bf16.msra.mxu0 %v2586
    %2749 = vmatpush.bf16.msra.mxu0 %v2585
    %2750 = vmatpush.bf16.msra.mxu0 %v2584
    %2751 = vmatpush.bf16.msra.mxu0 %v2583
    %2752 = vmatpush.bf16.msra.mxu0 %v2582
    %2753 = vmatmul.bf16.gmra.mxu0 %v1516
    %v2754 = vpop.f32.mrf.mxu0
    %v2755 = vadd.f32 %v2742, %v2754
    %v2756 = vpop.f32.mrf.mxu0
    %2757 = vdwg.mxu0
    %v2758 = vpack.c.bf16 %v197, %v197
    %v2759 = vpack.c.bf16 %v198, %v198
    %v2760 = vpack.c.bf16 %v199, %v199
    %v2761 = vpack.c.bf16 %v200, %v200
    %v2762 = vpack.c.bf16 %v201, %v201
    %v2763 = vpack.c.bf16 %v202, %v202
    %v2764 = vpack.c.bf16 %v203, %v203
    %v2765 = vpack.c.bf16 %v204, %v204
    %s2766 = scalar_lea.vmem [#allocation5], 1024
    %v2767 = vld [vmem:[%s2766] sm:$0xf]
    %v2768 = vld [vmem:[%s2766 + $0x4] sm:$0xf]
    %v2769 = vld [vmem:[%s2766 + $0x8] sm:$0xf]
    %v2770 = vld [vmem:[%s2766 + $0xc] sm:$0xf]
    %v2771 = vld [vmem:[%s2766 + $0x10] sm:$0xf]
    %v2772 = vld [vmem:[%s2766 + $0x14] sm:$0xf]
    %v2773 = vld [vmem:[%s2766 + $0x18] sm:$0xf]
    %v2774 = vld [vmem:[%s2766 + $0x1c] sm:$0xf]
    %v2775 = vld [vmem:[%s2766 + $0x20] sm:$0xf]
    %v2776 = vld [vmem:[%s2766 + $0x24] sm:$0xf]
    %v2777 = vld [vmem:[%s2766 + $0x28] sm:$0xf]
    %v2778 = vld [vmem:[%s2766 + $0x2c] sm:$0xf]
    %v2779 = vld [vmem:[%s2766 + $0x30] sm:$0xf]
    %v2780 = vld [vmem:[%s2766 + $0x34] sm:$0xf]
    %v2781 = vld [vmem:[%s2766 + $0x38] sm:$0xf]
    %v2782 = vld [vmem:[%s2766 + $0x3c] sm:$0xf]
    %v2783 = vld [vmem:[%s2766 + $0x40] sm:$0xf]
    %v2784 = vld [vmem:[%s2766 + $0x44] sm:$0xf]
    %v2785 = vld [vmem:[%s2766 + $0x48] sm:$0xf]
    %v2786 = vld [vmem:[%s2766 + $0x4c] sm:$0xf]
    %v2787 = vld [vmem:[%s2766 + $0x50] sm:$0xf]
    %v2788 = vld [vmem:[%s2766 + $0x54] sm:$0xf]
    %v2789 = vld [vmem:[%s2766 + $0x58] sm:$0xf]
    %v2790 = vld [vmem:[%s2766 + $0x5c] sm:$0xf]
    %v2791 = vld [vmem:[%s2766 + $0x60] sm:$0xf]
    %v2792 = vld [vmem:[%s2766 + $0x64] sm:$0xf]
    %v2793 = vld [vmem:[%s2766 + $0x68] sm:$0xf]
    %v2794 = vld [vmem:[%s2766 + $0x6c] sm:$0xf]
    %v2795 = vld [vmem:[%s2766 + $0x70] sm:$0xf]
    %v2796 = vld [vmem:[%s2766 + $0x74] sm:$0xf]
    %v2797 = vld [vmem:[%s2766 + $0x78] sm:$0xf]
    %v2798 = vld [vmem:[%s2766 + $0x7c] sm:$0xf]
    %v2799 = vld [vmem:[%s2766 + $0x80] sm:$0xf]
    %v2800 = vld [vmem:[%s2766 + $0x84] sm:$0xf]
    %v2801 = vld [vmem:[%s2766 + $0x88] sm:$0xf]
    %v2802 = vld [vmem:[%s2766 + $0x8c] sm:$0xf]
    %v2803 = vld [vmem:[%s2766 + $0x90] sm:$0xf]
    %v2804 = vld [vmem:[%s2766 + $0x94] sm:$0xf]
    %v2805 = vld [vmem:[%s2766 + $0x98] sm:$0xf]
    %v2806 = vld [vmem:[%s2766 + $0x9c] sm:$0xf]
    %v2807 = vld [vmem:[%s2766 + $0xa0] sm:$0xf]
    %v2808 = vld [vmem:[%s2766 + $0xa4] sm:$0xf]
    %v2809 = vld [vmem:[%s2766 + $0xa8] sm:$0xf]
    %v2810 = vld [vmem:[%s2766 + $0xac] sm:$0xf]
    %v2811 = vld [vmem:[%s2766 + $0xb0] sm:$0xf]
    %v2812 = vld [vmem:[%s2766 + $0xb4] sm:$0xf]
    %v2813 = vld [vmem:[%s2766 + $0xb8] sm:$0xf]
    %v2814 = vld [vmem:[%s2766 + $0xbc] sm:$0xf]
    %v2815 = vld [vmem:[%s2766 + $0xc0] sm:$0xf]
    %v2816 = vld [vmem:[%s2766 + $0xc4] sm:$0xf]
    %v2817 = vld [vmem:[%s2766 + $0xc8] sm:$0xf]
    %v2818 = vld [vmem:[%s2766 + $0xcc] sm:$0xf]
    %v2819 = vld [vmem:[%s2766 + $0xd0] sm:$0xf]
    %v2820 = vld [vmem:[%s2766 + $0xd4] sm:$0xf]
    %v2821 = vld [vmem:[%s2766 + $0xd8] sm:$0xf]
    %v2822 = vld [vmem:[%s2766 + $0xdc] sm:$0xf]
    %v2823 = vld [vmem:[%s2766 + $0xe0] sm:$0xf]
    %v2824 = vld [vmem:[%s2766 + $0xe4] sm:$0xf]
    %v2825 = vld [vmem:[%s2766 + $0xe8] sm:$0xf]
    %v2826 = vld [vmem:[%s2766 + $0xec] sm:$0xf]
    %v2827 = vld [vmem:[%s2766 + $0xf0] sm:$0xf]
    %v2828 = vld [vmem:[%s2766 + $0xf4] sm:$0xf]
    %v2829 = vld [vmem:[%s2766 + $0xf8] sm:$0xf]
    %v2830 = vld [vmem:[%s2766 + $0xfc] sm:$0xf]
    %v2831 = vld [vmem:[%s2766 + $0x100] sm:$0xf]
    %v2832 = vld [vmem:[%s2766 + $0x104] sm:$0xf]
    %v2833 = vld [vmem:[%s2766 + $0x108] sm:$0xf]
    %v2834 = vld [vmem:[%s2766 + $0x10c] sm:$0xf]
    %v2835 = vld [vmem:[%s2766 + $0x110] sm:$0xf]
    %v2836 = vld [vmem:[%s2766 + $0x114] sm:$0xf]
    %v2837 = vld [vmem:[%s2766 + $0x118] sm:$0xf]
    %v2838 = vld [vmem:[%s2766 + $0x11c] sm:$0xf]
    %v2839 = vld [vmem:[%s2766 + $0x120] sm:$0xf]
    %v2840 = vld [vmem:[%s2766 + $0x124] sm:$0xf]
    %v2841 = vld [vmem:[%s2766 + $0x128] sm:$0xf]
    %v2842 = vld [vmem:[%s2766 + $0x12c] sm:$0xf]
    %v2843 = vld [vmem:[%s2766 + $0x130] sm:$0xf]
    %v2844 = vld [vmem:[%s2766 + $0x134] sm:$0xf]
    %v2845 = vld [vmem:[%s2766 + $0x138] sm:$0xf]
    %v2846 = vld [vmem:[%s2766 + $0x13c] sm:$0xf]
    %v2847 = vld [vmem:[%s2766 + $0x140] sm:$0xf]
    %v2848 = vld [vmem:[%s2766 + $0x144] sm:$0xf]
    %v2849 = vld [vmem:[%s2766 + $0x148] sm:$0xf]
    %v2850 = vld [vmem:[%s2766 + $0x14c] sm:$0xf]
    %v2851 = vld [vmem:[%s2766 + $0x150] sm:$0xf]
    %v2852 = vld [vmem:[%s2766 + $0x154] sm:$0xf]
    %v2853 = vld [vmem:[%s2766 + $0x158] sm:$0xf]
    %v2854 = vld [vmem:[%s2766 + $0x15c] sm:$0xf]
    %v2855 = vld [vmem:[%s2766 + $0x160] sm:$0xf]
    %v2856 = vld [vmem:[%s2766 + $0x164] sm:$0xf]
    %v2857 = vld [vmem:[%s2766 + $0x168] sm:$0xf]
    %v2858 = vld [vmem:[%s2766 + $0x16c] sm:$0xf]
    %v2859 = vld [vmem:[%s2766 + $0x170] sm:$0xf]
    %v2860 = vld [vmem:[%s2766 + $0x174] sm:$0xf]
    %v2861 = vld [vmem:[%s2766 + $0x178] sm:$0xf]
    %v2862 = vld [vmem:[%s2766 + $0x17c] sm:$0xf]
    %v2863 = vld [vmem:[%s2766 + $0x180] sm:$0xf]
    %v2864 = vld [vmem:[%s2766 + $0x184] sm:$0xf]
    %v2865 = vld [vmem:[%s2766 + $0x188] sm:$0xf]
    %v2866 = vld [vmem:[%s2766 + $0x18c] sm:$0xf]
    %v2867 = vld [vmem:[%s2766 + $0x190] sm:$0xf]
    %v2868 = vld [vmem:[%s2766 + $0x194] sm:$0xf]
    %v2869 = vld [vmem:[%s2766 + $0x198] sm:$0xf]
    %v2870 = vld [vmem:[%s2766 + $0x19c] sm:$0xf]
    %v2871 = vld [vmem:[%s2766 + $0x1a0] sm:$0xf]
    %v2872 = vld [vmem:[%s2766 + $0x1a4] sm:$0xf]
    %v2873 = vld [vmem:[%s2766 + $0x1a8] sm:$0xf]
    %v2874 = vld [vmem:[%s2766 + $0x1ac] sm:$0xf]
    %v2875 = vld [vmem:[%s2766 + $0x1b0] sm:$0xf]
    %v2876 = vld [vmem:[%s2766 + $0x1b4] sm:$0xf]
    %v2877 = vld [vmem:[%s2766 + $0x1b8] sm:$0xf]
    %v2878 = vld [vmem:[%s2766 + $0x1bc] sm:$0xf]
    %v2879 = vld [vmem:[%s2766 + $0x1c0] sm:$0xf]
    %v2880 = vld [vmem:[%s2766 + $0x1c4] sm:$0xf]
    %v2881 = vld [vmem:[%s2766 + $0x1c8] sm:$0xf]
    %v2882 = vld [vmem:[%s2766 + $0x1cc] sm:$0xf]
    %v2883 = vld [vmem:[%s2766 + $0x1d0] sm:$0xf]
    %v2884 = vld [vmem:[%s2766 + $0x1d4] sm:$0xf]
    %v2885 = vld [vmem:[%s2766 + $0x1d8] sm:$0xf]
    %v2886 = vld [vmem:[%s2766 + $0x1dc] sm:$0xf]
    %v2887 = vld [vmem:[%s2766 + $0x1e0] sm:$0xf]
    %v2888 = vld [vmem:[%s2766 + $0x1e4] sm:$0xf]
    %v2889 = vld [vmem:[%s2766 + $0x1e8] sm:$0xf]
    %v2890 = vld [vmem:[%s2766 + $0x1ec] sm:$0xf]
    %v2891 = vld [vmem:[%s2766 + $0x1f0] sm:$0xf]
    %v2892 = vld [vmem:[%s2766 + $0x1f4] sm:$0xf]
    %v2893 = vld [vmem:[%s2766 + $0x1f8] sm:$0xf]
    %v2894 = vld [vmem:[%s2766 + $0x1fc] sm:$0xf]
    %v3023 = vunpack.c.l.b16 %v2767
    %v3024 = vunpack.c.l.b16 %v2768
    %v3025 = vunpack.c.l.b16 %v2769
    %v3026 = vunpack.c.l.b16 %v2770
    %v3027 = vunpack.c.l.b16 %v2771
    %v3028 = vunpack.c.l.b16 %v2772
    %v3029 = vunpack.c.l.b16 %v2773
    %v3030 = vunpack.c.l.b16 %v2774
    %v3031 = vunpack.c.l.b16 %v2775
    %v3032 = vunpack.c.l.b16 %v2776
    %v3033 = vunpack.c.l.b16 %v2777
    %v3034 = vunpack.c.l.b16 %v2778
    %v3035 = vunpack.c.l.b16 %v2779
    %v3036 = vunpack.c.l.b16 %v2780
    %v3037 = vunpack.c.l.b16 %v2781
    %v3038 = vunpack.c.l.b16 %v2782
    %v3039 = vunpack.c.l.b16 %v2783
    %v3040 = vunpack.c.l.b16 %v2784
    %v3041 = vunpack.c.l.b16 %v2785
    %v3042 = vunpack.c.l.b16 %v2786
    %v3043 = vunpack.c.l.b16 %v2787
    %v3044 = vunpack.c.l.b16 %v2788
    %v3045 = vunpack.c.l.b16 %v2789
    %v3046 = vunpack.c.l.b16 %v2790
    %v3047 = vunpack.c.l.b16 %v2791
    %v3048 = vunpack.c.l.b16 %v2792
    %v3049 = vunpack.c.l.b16 %v2793
    %v3050 = vunpack.c.l.b16 %v2794
    %v3051 = vunpack.c.l.b16 %v2795
    %v3052 = vunpack.c.l.b16 %v2796
    %v3053 = vunpack.c.l.b16 %v2797
    %v3054 = vunpack.c.l.b16 %v2798
    %v3055 = vunpack.c.l.b16 %v2799
    %v3056 = vunpack.c.l.b16 %v2800
    %v3057 = vunpack.c.l.b16 %v2801
    %v3058 = vunpack.c.l.b16 %v2802
    %v3059 = vunpack.c.l.b16 %v2803
    %v3060 = vunpack.c.l.b16 %v2804
    %v3061 = vunpack.c.l.b16 %v2805
    %v3062 = vunpack.c.l.b16 %v2806
    %v3063 = vunpack.c.l.b16 %v2807
    %v3064 = vunpack.c.l.b16 %v2808
    %v3065 = vunpack.c.l.b16 %v2809
    %v3066 = vunpack.c.l.b16 %v2810
    %v3067 = vunpack.c.l.b16 %v2811
    %v3068 = vunpack.c.l.b16 %v2812
    %v3069 = vunpack.c.l.b16 %v2813
    %v3070 = vunpack.c.l.b16 %v2814
    %v3071 = vunpack.c.l.b16 %v2815
    %v3072 = vunpack.c.l.b16 %v2816
    %v3073 = vunpack.c.l.b16 %v2817
    %v3074 = vunpack.c.l.b16 %v2818
    %v3075 = vunpack.c.l.b16 %v2819
    %v3076 = vunpack.c.l.b16 %v2820
    %v3077 = vunpack.c.l.b16 %v2821
    %v3078 = vunpack.c.l.b16 %v2822
    %v3079 = vunpack.c.l.b16 %v2823
    %v3080 = vunpack.c.l.b16 %v2824
    %v3081 = vunpack.c.l.b16 %v2825
    %v3082 = vunpack.c.l.b16 %v2826
    %v3083 = vunpack.c.l.b16 %v2827
    %v3084 = vunpack.c.l.b16 %v2828
    %v3085 = vunpack.c.l.b16 %v2829
    %v3086 = vunpack.c.l.b16 %v2830
    %v3087 = vunpack.c.l.b16 %v2831
    %v3088 = vunpack.c.l.b16 %v2832
    %v3089 = vunpack.c.l.b16 %v2833
    %v3090 = vunpack.c.l.b16 %v2834
    %v3091 = vunpack.c.l.b16 %v2835
    %v3092 = vunpack.c.l.b16 %v2836
    %v3093 = vunpack.c.l.b16 %v2837
    %v3094 = vunpack.c.l.b16 %v2838
    %v3095 = vunpack.c.l.b16 %v2839
    %v3096 = vunpack.c.l.b16 %v2840
    %v3097 = vunpack.c.l.b16 %v2841
    %v3098 = vunpack.c.l.b16 %v2842
    %v3099 = vunpack.c.l.b16 %v2843
    %v3100 = vunpack.c.l.b16 %v2844
    %v3101 = vunpack.c.l.b16 %v2845
    %v3102 = vunpack.c.l.b16 %v2846
    %v3103 = vunpack.c.l.b16 %v2847
    %v3104 = vunpack.c.l.b16 %v2848
    %v3105 = vunpack.c.l.b16 %v2849
    %v3106 = vunpack.c.l.b16 %v2850
    %v3107 = vunpack.c.l.b16 %v2851
    %v3108 = vunpack.c.l.b16 %v2852
    %v3109 = vunpack.c.l.b16 %v2853
    %v3110 = vunpack.c.l.b16 %v2854
    %v3111 = vunpack.c.l.b16 %v2855
    %v3112 = vunpack.c.l.b16 %v2856
    %v3113 = vunpack.c.l.b16 %v2857
    %v3114 = vunpack.c.l.b16 %v2858
    %v3115 = vunpack.c.l.b16 %v2859
    %v3116 = vunpack.c.l.b16 %v2860
    %v3117 = vunpack.c.l.b16 %v2861
    %v3118 = vunpack.c.l.b16 %v2862
    %v3119 = vunpack.c.l.b16 %v2863
    %v3120 = vunpack.c.l.b16 %v2864
    %v3121 = vunpack.c.l.b16 %v2865
    %v3122 = vunpack.c.l.b16 %v2866
    %v3123 = vunpack.c.l.b16 %v2867
    %v3124 = vunpack.c.l.b16 %v2868
    %v3125 = vunpack.c.l.b16 %v2869
    %v3126 = vunpack.c.l.b16 %v2870
    %v3127 = vunpack.c.l.b16 %v2871
    %v3128 = vunpack.c.l.b16 %v2872
    %v3129 = vunpack.c.l.b16 %v2873
    %v3130 = vunpack.c.l.b16 %v2874
    %v3131 = vunpack.c.l.b16 %v2875
    %v3132 = vunpack.c.l.b16 %v2876
    %v3133 = vunpack.c.l.b16 %v2877
    %v3134 = vunpack.c.l.b16 %v2878
    %v3135 = vunpack.c.l.b16 %v2879
    %v3136 = vunpack.c.l.b16 %v2880
    %v3137 = vunpack.c.l.b16 %v2881
    %v3138 = vunpack.c.l.b16 %v2882
    %v3139 = vunpack.c.l.b16 %v2883
    %v3140 = vunpack.c.l.b16 %v2884
    %v3141 = vunpack.c.l.b16 %v2885
    %v3142 = vunpack.c.l.b16 %v2886
    %v3143 = vunpack.c.l.b16 %v2887
    %v3144 = vunpack.c.l.b16 %v2888
    %v3145 = vunpack.c.l.b16 %v2889
    %v3146 = vunpack.c.l.b16 %v2890
    %v3147 = vunpack.c.l.b16 %v2891
    %v3148 = vunpack.c.l.b16 %v2892
    %v3149 = vunpack.c.l.b16 %v2893
    %v3150 = vunpack.c.l.b16 %v2894
    %v3151 = vpack.c.b16 %v3024, %v3023
    %v3152 = vpack.c.b16 %v3026, %v3025
    %v3153 = vpack.c.b16 %v3028, %v3027
    %v3154 = vpack.c.b16 %v3030, %v3029
    %v3155 = vpack.c.b16 %v3032, %v3031
    %v3156 = vpack.c.b16 %v3034, %v3033
    %v3157 = vpack.c.b16 %v3036, %v3035
    %v3158 = vpack.c.b16 %v3038, %v3037
    %v3159 = vpack.c.b16 %v3040, %v3039
    %v3160 = vpack.c.b16 %v3042, %v3041
    %v3161 = vpack.c.b16 %v3044, %v3043
    %v3162 = vpack.c.b16 %v3046, %v3045
    %v3163 = vpack.c.b16 %v3048, %v3047
    %v3164 = vpack.c.b16 %v3050, %v3049
    %v3165 = vpack.c.b16 %v3052, %v3051
    %v3166 = vpack.c.b16 %v3054, %v3053
    %v3167 = vpack.c.b16 %v3056, %v3055
    %v3168 = vpack.c.b16 %v3058, %v3057
    %v3169 = vpack.c.b16 %v3060, %v3059
    %v3170 = vpack.c.b16 %v3062, %v3061
    %v3171 = vpack.c.b16 %v3064, %v3063
    %v3172 = vpack.c.b16 %v3066, %v3065
    %v3173 = vpack.c.b16 %v3068, %v3067
    %v3174 = vpack.c.b16 %v3070, %v3069
    %v3175 = vpack.c.b16 %v3072, %v3071
    %v3176 = vpack.c.b16 %v3074, %v3073
    %v3177 = vpack.c.b16 %v3076, %v3075
    %v3178 = vpack.c.b16 %v3078, %v3077
    %v3179 = vpack.c.b16 %v3080, %v3079
    %v3180 = vpack.c.b16 %v3082, %v3081
    %v3181 = vpack.c.b16 %v3084, %v3083
    %v3182 = vpack.c.b16 %v3086, %v3085
    %v3183 = vpack.c.b16 %v3088, %v3087
    %v3184 = vpack.c.b16 %v3090, %v3089
    %v3185 = vpack.c.b16 %v3092, %v3091
    %v3186 = vpack.c.b16 %v3094, %v3093
    %v3187 = vpack.c.b16 %v3096, %v3095
    %v3188 = vpack.c.b16 %v3098, %v3097
    %v3189 = vpack.c.b16 %v3100, %v3099
    %v3190 = vpack.c.b16 %v3102, %v3101
    %v3191 = vpack.c.b16 %v3104, %v3103
    %v3192 = vpack.c.b16 %v3106, %v3105
    %v3193 = vpack.c.b16 %v3108, %v3107
    %v3194 = vpack.c.b16 %v3110, %v3109
    %v3195 = vpack.c.b16 %v3112, %v3111
    %v3196 = vpack.c.b16 %v3114, %v3113
    %v3197 = vpack.c.b16 %v3116, %v3115
    %v3198 = vpack.c.b16 %v3118, %v3117
    %v3199 = vpack.c.b16 %v3120, %v3119
    %v3200 = vpack.c.b16 %v3122, %v3121
    %v3201 = vpack.c.b16 %v3124, %v3123
    %v3202 = vpack.c.b16 %v3126, %v3125
    %v3203 = vpack.c.b16 %v3128, %v3127
    %v3204 = vpack.c.b16 %v3130, %v3129
    %v3205 = vpack.c.b16 %v3132, %v3131
    %v3206 = vpack.c.b16 %v3134, %v3133
    %v3207 = vpack.c.b16 %v3136, %v3135
    %v3208 = vpack.c.b16 %v3138, %v3137
    %v3209 = vpack.c.b16 %v3140, %v3139
    %v3210 = vpack.c.b16 %v3142, %v3141
    %v3211 = vpack.c.b16 %v3144, %v3143
    %v3212 = vpack.c.b16 %v3146, %v3145
    %v3213 = vpack.c.b16 %v3148, %v3147
    %v3214 = vpack.c.b16 %v3150, %v3149
    %3279 = vmatpush.bf16.msra.mxu0 %v3158
    %3280 = vmatpush.bf16.msra.mxu0 %v3157
    %3281 = vmatpush.bf16.msra.mxu0 %v3156
    %3282 = vmatpush.bf16.msra.mxu0 %v3155
    %3283 = vmatpush.bf16.msra.mxu0 %v3154
    %3284 = vmatpush.bf16.msra.mxu0 %v3153
    %3285 = vmatpush.bf16.msra.mxu0 %v3152
    %3286 = vmatpush.bf16.msra.mxu0 %v3151
    %3287 = vmatmul.bf16.gmra.mxu0 %v2758
    %v3288 = vpop.f32.mrf.mxu0
    %v3289 = vadd.f32 0.0, %v3288
    %v3290 = vpop.f32.mrf.mxu0
    %3291 = vdwg.mxu0
    %3292 = vmatpush.bf16.msra.mxu0 %v3166
    %3293 = vmatpush.bf16.msra.mxu0 %v3165
    %3294 = vmatpush.bf16.msra.mxu0 %v3164
    %3295 = vmatpush.bf16.msra.mxu0 %v3163
    %3296 = vmatpush.bf16.msra.mxu0 %v3162
    %3297 = vmatpush.bf16.msra.mxu0 %v3161
    %3298 = vmatpush.bf16.msra.mxu0 %v3160
    %3299 = vmatpush.bf16.msra.mxu0 %v3159
    %3300 = vmatmul.bf16.gmra.mxu0 %v2759
    %v3301 = vpop.f32.mrf.mxu0
    %v3302 = vadd.f32 %v3289, %v3301
    %v3303 = vpop.f32.mrf.mxu0
    %3304 = vdwg.mxu0
    %3305 = vmatpush.bf16.msra.mxu0 %v3174
    %3306 = vmatpush.bf16.msra.mxu0 %v3173
    %3307 = vmatpush.bf16.msra.mxu0 %v3172
    %3308 = vmatpush.bf16.msra.mxu0 %v3171
    %3309 = vmatpush.bf16.msra.mxu0 %v3170
    %3310 = vmatpush.bf16.msra.mxu0 %v3169
    %3311 = vmatpush.bf16.msra.mxu0 %v3168
    %3312 = vmatpush.bf16.msra.mxu0 %v3167
    %3313 = vmatmul.bf16.gmra.mxu0 %v2760
    %v3314 = vpop.f32.mrf.mxu0
    %v3315 = vadd.f32 %v3302, %v3314
    %v3316 = vpop.f32.mrf.mxu0
    %3317 = vdwg.mxu0
    %3318 = vmatpush.bf16.msra.mxu0 %v3182
    %3319 = vmatpush.bf16.msra.mxu0 %v3181
    %3320 = vmatpush.bf16.msra.mxu0 %v3180
    %3321 = vmatpush.bf16.msra.mxu0 %v3179
    %3322 = vmatpush.bf16.msra.mxu0 %v3178
    %3323 = vmatpush.bf16.msra.mxu0 %v3177
    %3324 = vmatpush.bf16.msra.mxu0 %v3176
    %3325 = vmatpush.bf16.msra.mxu0 %v3175
    %3326 = vmatmul.bf16.gmra.mxu0 %v2761
    %v3327 = vpop.f32.mrf.mxu0
    %v3328 = vadd.f32 %v3315, %v3327
    %v3329 = vpop.f32.mrf.mxu0
    %3330 = vdwg.mxu0
    %3331 = vmatpush.bf16.msra.mxu0 %v3190
    %3332 = vmatpush.bf16.msra.mxu0 %v3189
    %3333 = vmatpush.bf16.msra.mxu0 %v3188
    %3334 = vmatpush.bf16.msra.mxu0 %v3187
    %3335 = vmatpush.bf16.msra.mxu0 %v3186
    %3336 = vmatpush.bf16.msra.mxu0 %v3185
    %3337 = vmatpush.bf16.msra.mxu0 %v3184
    %3338 = vmatpush.bf16.msra.mxu0 %v3183
    %3339 = vmatmul.bf16.gmra.mxu0 %v2762
    %v3340 = vpop.f32.mrf.mxu0
    %v3341 = vadd.f32 %v3328, %v3340
    %v3342 = vpop.f32.mrf.mxu0
    %3343 = vdwg.mxu0
    %3344 = vmatpush.bf16.msra.mxu0 %v3198
    %3345 = vmatpush.bf16.msra.mxu0 %v3197
    %3346 = vmatpush.bf16.msra.mxu0 %v3196
    %3347 = vmatpush.bf16.msra.mxu0 %v3195
    %3348 = vmatpush.bf16.msra.mxu0 %v3194
    %3349 = vmatpush.bf16.msra.mxu0 %v3193
    %3350 = vmatpush.bf16.msra.mxu0 %v3192
    %3351 = vmatpush.bf16.msra.mxu0 %v3191
    %3352 = vmatmul.bf16.gmra.mxu0 %v2763
    %v3353 = vpop.f32.mrf.mxu0
    %v3354 = vadd.f32 %v3341, %v3353
    %v3355 = vpop.f32.mrf.mxu0
    %3356 = vdwg.mxu0
    %3357 = vmatpush.bf16.msra.mxu0 %v3206
    %3358 = vmatpush.bf16.msra.mxu0 %v3205
    %3359 = vmatpush.bf16.msra.mxu0 %v3204
    %3360 = vmatpush.bf16.msra.mxu0 %v3203
    %3361 = vmatpush.bf16.msra.mxu0 %v3202
    %3362 = vmatpush.bf16.msra.mxu0 %v3201
    %3363 = vmatpush.bf16.msra.mxu0 %v3200
    %3364 = vmatpush.bf16.msra.mxu0 %v3199
    %3365 = vmatmul.bf16.gmra.mxu0 %v2764
    %v3366 = vpop.f32.mrf.mxu0
    %v3367 = vadd.f32 %v3354, %v3366
    %v3368 = vpop.f32.mrf.mxu0
    %3369 = vdwg.mxu0
    %3370 = vmatpush.bf16.msra.mxu0 %v3214
    %3371 = vmatpush.bf16.msra.mxu0 %v3213
    %3372 = vmatpush.bf16.msra.mxu0 %v3212
    %3373 = vmatpush.bf16.msra.mxu0 %v3211
    %3374 = vmatpush.bf16.msra.mxu0 %v3210
    %3375 = vmatpush.bf16.msra.mxu0 %v3209
    %3376 = vmatpush.bf16.msra.mxu0 %v3208
    %3377 = vmatpush.bf16.msra.mxu0 %v3207
    %3378 = vmatmul.bf16.gmra.mxu0 %v2765
    %v3379 = vpop.f32.mrf.mxu0
    %v3380 = vadd.f32 %v3367, %v3379
    %v3381 = vpop.f32.mrf.mxu0
    %3382 = vdwg.mxu0
    %v3383 = vadd.f32 %v2755, %v3380
    %v3384 = vpack.c.bf16 %v391, %v391
    %v3385 = vpack.c.bf16 %v546, %v546
    %v3386 = vpack.c.bf16 %v701, %v701
    %v3387 = vpack.c.bf16 %v856, %v856
    %v3388 = vpack.c.bf16 %v1011, %v1011
    %v3389 = vpack.c.bf16 %v1166, %v1166
    %v3390 = vpack.c.bf16 %v1321, %v1321
    %v3391 = vpack.c.bf16 %v1476, %v1476
    %s3392 = scalar_lea.vmem [#allocation5], 1536
    %v3393 = vld [vmem:[%s3392] sm:$0xf]
    %v3394 = vld [vmem:[%s3392 + $0x4] sm:$0xf]
    %v3395 = vld [vmem:[%s3392 + $0x8] sm:$0xf]
    %v3396 = vld [vmem:[%s3392 + $0xc] sm:$0xf]
    %v3397 = vld [vmem:[%s3392 + $0x10] sm:$0xf]
    %v3398 = vld [vmem:[%s3392 + $0x14] sm:$0xf]
    %v3399 = vld [vmem:[%s3392 + $0x18] sm:$0xf]
    %v3400 = vld [vmem:[%s3392 + $0x1c] sm:$0xf]
    %v3401 = vld [vmem:[%s3392 + $0x20] sm:$0xf]
    %v3402 = vld [vmem:[%s3392 + $0x24] sm:$0xf]
    %v3403 = vld [vmem:[%s3392 + $0x28] sm:$0xf]
    %v3404 = vld [vmem:[%s3392 + $0x2c] sm:$0xf]
    %v3405 = vld [vmem:[%s3392 + $0x30] sm:$0xf]
    %v3406 = vld [vmem:[%s3392 + $0x34] sm:$0xf]
    %v3407 = vld [vmem:[%s3392 + $0x38] sm:$0xf]
    %v3408 = vld [vmem:[%s3392 + $0x3c] sm:$0xf]
    %v3409 = vld [vmem:[%s3392 + $0x40] sm:$0xf]
    %v3410 = vld [vmem:[%s3392 + $0x44] sm:$0xf]
    %v3411 = vld [vmem:[%s3392 + $0x48] sm:$0xf]
    %v3412 = vld [vmem:[%s3392 + $0x4c] sm:$0xf]
    %v3413 = vld [vmem:[%s3392 + $0x50] sm:$0xf]
    %v3414 = vld [vmem:[%s3392 + $0x54] sm:$0xf]
    %v3415 = vld [vmem:[%s3392 + $0x58] sm:$0xf]
    %v3416 = vld [vmem:[%s3392 + $0x5c] sm:$0xf]
    %v3417 = vld [vmem:[%s3392 + $0x60] sm:$0xf]
    %v3418 = vld [vmem:[%s3392 + $0x64] sm:$0xf]
    %v3419 = vld [vmem:[%s3392 + $0x68] sm:$0xf]
    %v3420 = vld [vmem:[%s3392 + $0x6c] sm:$0xf]
    %v3421 = vld [vmem:[%s3392 + $0x70] sm:$0xf]
    %v3422 = vld [vmem:[%s3392 + $0x74] sm:$0xf]
    %v3423 = vld [vmem:[%s3392 + $0x78] sm:$0xf]
    %v3424 = vld [vmem:[%s3392 + $0x7c] sm:$0xf]
    %v3425 = vld [vmem:[%s3392 + $0x80] sm:$0xf]
    %v3426 = vld [vmem:[%s3392 + $0x84] sm:$0xf]
    %v3427 = vld [vmem:[%s3392 + $0x88] sm:$0xf]
    %v3428 = vld [vmem:[%s3392 + $0x8c] sm:$0xf]
    %v3429 = vld [vmem:[%s3392 + $0x90] sm:$0xf]
    %v3430 = vld [vmem:[%s3392 + $0x94] sm:$0xf]
    %v3431 = vld [vmem:[%s3392 + $0x98] sm:$0xf]
    %v3432 = vld [vmem:[%s3392 + $0x9c] sm:$0xf]
    %v3433 = vld [vmem:[%s3392 + $0xa0] sm:$0xf]
    %v3434 = vld [vmem:[%s3392 + $0xa4] sm:$0xf]
    %v3435 = vld [vmem:[%s3392 + $0xa8] sm:$0xf]
    %v3436 = vld [vmem:[%s3392 + $0xac] sm:$0xf]
    %v3437 = vld [vmem:[%s3392 + $0xb0] sm:$0xf]
    %v3438 = vld [vmem:[%s3392 + $0xb4] sm:$0xf]
    %v3439 = vld [vmem:[%s3392 + $0xb8] sm:$0xf]
    %v3440 = vld [vmem:[%s3392 + $0xbc] sm:$0xf]
    %v3441 = vld [vmem:[%s3392 + $0xc0] sm:$0xf]
    %v3442 = vld [vmem:[%s3392 + $0xc4] sm:$0xf]
    %v3443 = vld [vmem:[%s3392 + $0xc8] sm:$0xf]
    %v3444 = vld [vmem:[%s3392 + $0xcc] sm:$0xf]
    %v3445 = vld [vmem:[%s3392 + $0xd0] sm:$0xf]
    %v3446 = vld [vmem:[%s3392 + $0xd4] sm:$0xf]
    %v3447 = vld [vmem:[%s3392 + $0xd8] sm:$0xf]
    %v3448 = vld [vmem:[%s3392 + $0xdc] sm:$0xf]
    %v3449 = vld [vmem:[%s3392 + $0xe0] sm:$0xf]
    %v3450 = vld [vmem:[%s3392 + $0xe4] sm:$0xf]
    %v3451 = vld [vmem:[%s3392 + $0xe8] sm:$0xf]
    %v3452 = vld [vmem:[%s3392 + $0xec] sm:$0xf]
    %v3453 = vld [vmem:[%s3392 + $0xf0] sm:$0xf]
    %v3454 = vld [vmem:[%s3392 + $0xf4] sm:$0xf]
    %v3455 = vld [vmem:[%s3392 + $0xf8] sm:$0xf]
    %v3456 = vld [vmem:[%s3392 + $0xfc] sm:$0xf]
    %v3457 = vld [vmem:[%s3392 + $0x100] sm:$0xf]
    %v3458 = vld [vmem:[%s3392 + $0x104] sm:$0xf]
    %v3459 = vld [vmem:[%s3392 + $0x108] sm:$0xf]
    %v3460 = vld [vmem:[%s3392 + $0x10c] sm:$0xf]
    %v3461 = vld [vmem:[%s3392 + $0x110] sm:$0xf]
    %v3462 = vld [vmem:[%s3392 + $0x114] sm:$0xf]
    %v3463 = vld [vmem:[%s3392 + $0x118] sm:$0xf]
    %v3464 = vld [vmem:[%s3392 + $0x11c] sm:$0xf]
    %v3465 = vld [vmem:[%s3392 + $0x120] sm:$0xf]
    %v3466 = vld [vmem:[%s3392 + $0x124] sm:$0xf]
    %v3467 = vld [vmem:[%s3392 + $0x128] sm:$0xf]
    %v3468 = vld [vmem:[%s3392 + $0x12c] sm:$0xf]
    %v3469 = vld [vmem:[%s3392 + $0x130] sm:$0xf]
    %v3470 = vld [vmem:[%s3392 + $0x134] sm:$0xf]
    %v3471 = vld [vmem:[%s3392 + $0x138] sm:$0xf]
    %v3472 = vld [vmem:[%s3392 + $0x13c] sm:$0xf]
    %v3473 = vld [vmem:[%s3392 + $0x140] sm:$0xf]
    %v3474 = vld [vmem:[%s3392 + $0x144] sm:$0xf]
    %v3475 = vld [vmem:[%s3392 + $0x148] sm:$0xf]
    %v3476 = vld [vmem:[%s3392 + $0x14c] sm:$0xf]
    %v3477 = vld [vmem:[%s3392 + $0x150] sm:$0xf]
    %v3478 = vld [vmem:[%s3392 + $0x154] sm:$0xf]
    %v3479 = vld [vmem:[%s3392 + $0x158] sm:$0xf]
    %v3480 = vld [vmem:[%s3392 + $0x15c] sm:$0xf]
    %v3481 = vld [vmem:[%s3392 + $0x160] sm:$0xf]
    %v3482 = vld [vmem:[%s3392 + $0x164] sm:$0xf]
    %v3483 = vld [vmem:[%s3392 + $0x168] sm:$0xf]
    %v3484 = vld [vmem:[%s3392 + $0x16c] sm:$0xf]
    %v3485 = vld [vmem:[%s3392 + $0x170] sm:$0xf]
    %v3486 = vld [vmem:[%s3392 + $0x174] sm:$0xf]
    %v3487 = vld [vmem:[%s3392 + $0x178] sm:$0xf]
    %v3488 = vld [vmem:[%s3392 + $0x17c] sm:$0xf]
    %v3489 = vld [vmem:[%s3392 + $0x180] sm:$0xf]
    %v3490 = vld [vmem:[%s3392 + $0x184] sm:$0xf]
    %v3491 = vld [vmem:[%s3392 + $0x188] sm:$0xf]
    %v3492 = vld [vmem:[%s3392 + $0x18c] sm:$0xf]
    %v3493 = vld [vmem:[%s3392 + $0x190] sm:$0xf]
    %v3494 = vld [vmem:[%s3392 + $0x194] sm:$0xf]
    %v3495 = vld [vmem:[%s3392 + $0x198] sm:$0xf]
    %v3496 = vld [vmem:[%s3392 + $0x19c] sm:$0xf]
    %v3497 = vld [vmem:[%s3392 + $0x1a0] sm:$0xf]
    %v3498 = vld [vmem:[%s3392 + $0x1a4] sm:$0xf]
    %v3499 = vld [vmem:[%s3392 + $0x1a8] sm:$0xf]
    %v3500 = vld [vmem:[%s3392 + $0x1ac] sm:$0xf]
    %v3501 = vld [vmem:[%s3392 + $0x1b0] sm:$0xf]
    %v3502 = vld [vmem:[%s3392 + $0x1b4] sm:$0xf]
    %v3503 = vld [vmem:[%s3392 + $0x1b8] sm:$0xf]
    %v3504 = vld [vmem:[%s3392 + $0x1bc] sm:$0xf]
    %v3505 = vld [vmem:[%s3392 + $0x1c0] sm:$0xf]
    %v3506 = vld [vmem:[%s3392 + $0x1c4] sm:$0xf]
    %v3507 = vld [vmem:[%s3392 + $0x1c8] sm:$0xf]
    %v3508 = vld [vmem:[%s3392 + $0x1cc] sm:$0xf]
    %v3509 = vld [vmem:[%s3392 + $0x1d0] sm:$0xf]
    %v3510 = vld [vmem:[%s3392 + $0x1d4] sm:$0xf]
    %v3511 = vld [vmem:[%s3392 + $0x1d8] sm:$0xf]
    %v3512 = vld [vmem:[%s3392 + $0x1dc] sm:$0xf]
    %v3513 = vld [vmem:[%s3392 + $0x1e0] sm:$0xf]
    %v3514 = vld [vmem:[%s3392 + $0x1e4] sm:$0xf]
    %v3515 = vld [vmem:[%s3392 + $0x1e8] sm:$0xf]
    %v3516 = vld [vmem:[%s3392 + $0x1ec] sm:$0xf]
    %v3517 = vld [vmem:[%s3392 + $0x1f0] sm:$0xf]
    %v3518 = vld [vmem:[%s3392 + $0x1f4] sm:$0xf]
    %v3519 = vld [vmem:[%s3392 + $0x1f8] sm:$0xf]
    %v3520 = vld [vmem:[%s3392 + $0x1fc] sm:$0xf]
    %v3649 = vunpack.c.l.b16 %v3393
    %v3650 = vunpack.c.l.b16 %v3394
    %v3651 = vunpack.c.l.b16 %v3395
    %v3652 = vunpack.c.l.b16 %v3396
    %v3653 = vunpack.c.l.b16 %v3397
    %v3654 = vunpack.c.l.b16 %v3398
    %v3655 = vunpack.c.l.b16 %v3399
    %v3656 = vunpack.c.l.b16 %v3400
    %v3657 = vunpack.c.l.b16 %v3401
    %v3658 = vunpack.c.l.b16 %v3402
    %v3659 = vunpack.c.l.b16 %v3403
    %v3660 = vunpack.c.l.b16 %v3404
    %v3661 = vunpack.c.l.b16 %v3405
    %v3662 = vunpack.c.l.b16 %v3406
    %v3663 = vunpack.c.l.b16 %v3407
    %v3664 = vunpack.c.l.b16 %v3408
    %v3665 = vunpack.c.l.b16 %v3409
    %v3666 = vunpack.c.l.b16 %v3410
    %v3667 = vunpack.c.l.b16 %v3411
    %v3668 = vunpack.c.l.b16 %v3412
    %v3669 = vunpack.c.l.b16 %v3413
    %v3670 = vunpack.c.l.b16 %v3414
    %v3671 = vunpack.c.l.b16 %v3415
    %v3672 = vunpack.c.l.b16 %v3416
    %v3673 = vunpack.c.l.b16 %v3417
    %v3674 = vunpack.c.l.b16 %v3418
    %v3675 = vunpack.c.l.b16 %v3419
    %v3676 = vunpack.c.l.b16 %v3420
    %v3677 = vunpack.c.l.b16 %v3421
    %v3678 = vunpack.c.l.b16 %v3422
    %v3679 = vunpack.c.l.b16 %v3423
    %v3680 = vunpack.c.l.b16 %v3424
    %v3681 = vunpack.c.l.b16 %v3425
    %v3682 = vunpack.c.l.b16 %v3426
    %v3683 = vunpack.c.l.b16 %v3427
    %v3684 = vunpack.c.l.b16 %v3428
    %v3685 = vunpack.c.l.b16 %v3429
    %v3686 = vunpack.c.l.b16 %v3430
    %v3687 = vunpack.c.l.b16 %v3431
    %v3688 = vunpack.c.l.b16 %v3432
    %v3689 = vunpack.c.l.b16 %v3433
    %v3690 = vunpack.c.l.b16 %v3434
    %v3691 = vunpack.c.l.b16 %v3435
    %v3692 = vunpack.c.l.b16 %v3436
    %v3693 = vunpack.c.l.b16 %v3437
    %v3694 = vunpack.c.l.b16 %v3438
    %v3695 = vunpack.c.l.b16 %v3439
    %v3696 = vunpack.c.l.b16 %v3440
    %v3697 = vunpack.c.l.b16 %v3441
    %v3698 = vunpack.c.l.b16 %v3442
    %v3699 = vunpack.c.l.b16 %v3443
    %v3700 = vunpack.c.l.b16 %v3444
    %v3701 = vunpack.c.l.b16 %v3445
    %v3702 = vunpack.c.l.b16 %v3446
    %v3703 = vunpack.c.l.b16 %v3447
    %v3704 = vunpack.c.l.b16 %v3448
    %v3705 = vunpack.c.l.b16 %v3449
    %v3706 = vunpack.c.l.b16 %v3450
    %v3707 = vunpack.c.l.b16 %v3451
    %v3708 = vunpack.c.l.b16 %v3452
    %v3709 = vunpack.c.l.b16 %v3453
    %v3710 = vunpack.c.l.b16 %v3454
    %v3711 = vunpack.c.l.b16 %v3455
    %v3712 = vunpack.c.l.b16 %v3456
    %v3713 = vunpack.c.l.b16 %v3457
    %v3714 = vunpack.c.l.b16 %v3458
    %v3715 = vunpack.c.l.b16 %v3459
    %v3716 = vunpack.c.l.b16 %v3460
    %v3717 = vunpack.c.l.b16 %v3461
    %v3718 = vunpack.c.l.b16 %v3462
    %v3719 = vunpack.c.l.b16 %v3463
    %v3720 = vunpack.c.l.b16 %v3464
    %v3721 = vunpack.c.l.b16 %v3465
    %v3722 = vunpack.c.l.b16 %v3466
    %v3723 = vunpack.c.l.b16 %v3467
    %v3724 = vunpack.c.l.b16 %v3468
    %v3725 = vunpack.c.l.b16 %v3469
    %v3726 = vunpack.c.l.b16 %v3470
    %v3727 = vunpack.c.l.b16 %v3471
    %v3728 = vunpack.c.l.b16 %v3472
    %v3729 = vunpack.c.l.b16 %v3473
    %v3730 = vunpack.c.l.b16 %v3474
    %v3731 = vunpack.c.l.b16 %v3475
    %v3732 = vunpack.c.l.b16 %v3476
    %v3733 = vunpack.c.l.b16 %v3477
    %v3734 = vunpack.c.l.b16 %v3478
    %v3735 = vunpack.c.l.b16 %v3479
    %v3736 = vunpack.c.l.b16 %v3480
    %v3737 = vunpack.c.l.b16 %v3481
    %v3738 = vunpack.c.l.b16 %v3482
    %v3739 = vunpack.c.l.b16 %v3483
    %v3740 = vunpack.c.l.b16 %v3484
    %v3741 = vunpack.c.l.b16 %v3485
    %v3742 = vunpack.c.l.b16 %v3486
    %v3743 = vunpack.c.l.b16 %v3487
    %v3744 = vunpack.c.l.b16 %v3488
    %v3745 = vunpack.c.l.b16 %v3489
    %v3746 = vunpack.c.l.b16 %v3490
    %v3747 = vunpack.c.l.b16 %v3491
    %v3748 = vunpack.c.l.b16 %v3492
    %v3749 = vunpack.c.l.b16 %v3493
    %v3750 = vunpack.c.l.b16 %v3494
    %v3751 = vunpack.c.l.b16 %v3495
    %v3752 = vunpack.c.l.b16 %v3496
    %v3753 = vunpack.c.l.b16 %v3497
    %v3754 = vunpack.c.l.b16 %v3498
    %v3755 = vunpack.c.l.b16 %v3499
    %v3756 = vunpack.c.l.b16 %v3500
    %v3757 = vunpack.c.l.b16 %v3501
    %v3758 = vunpack.c.l.b16 %v3502
    %v3759 = vunpack.c.l.b16 %v3503
    %v3760 = vunpack.c.l.b16 %v3504
    %v3761 = vunpack.c.l.b16 %v3505
    %v3762 = vunpack.c.l.b16 %v3506
    %v3763 = vunpack.c.l.b16 %v3507
    %v3764 = vunpack.c.l.b16 %v3508
    %v3765 = vunpack.c.l.b16 %v3509
    %v3766 = vunpack.c.l.b16 %v3510
    %v3767 = vunpack.c.l.b16 %v3511
    %v3768 = vunpack.c.l.b16 %v3512
    %v3769 = vunpack.c.l.b16 %v3513
    %v3770 = vunpack.c.l.b16 %v3514
    %v3771 = vunpack.c.l.b16 %v3515
    %v3772 = vunpack.c.l.b16 %v3516
    %v3773 = vunpack.c.l.b16 %v3517
    %v3774 = vunpack.c.l.b16 %v3518
    %v3775 = vunpack.c.l.b16 %v3519
    %v3776 = vunpack.c.l.b16 %v3520
    %v3777 = vpack.c.b16 %v3650, %v3649
    %v3778 = vpack.c.b16 %v3652, %v3651
    %v3779 = vpack.c.b16 %v3654, %v3653
    %v3780 = vpack.c.b16 %v3656, %v3655
    %v3781 = vpack.c.b16 %v3658, %v3657
    %v3782 = vpack.c.b16 %v3660, %v3659
    %v3783 = vpack.c.b16 %v3662, %v3661
    %v3784 = vpack.c.b16 %v3664, %v3663
    %v3785 = vpack.c.b16 %v3666, %v3665
    %v3786 = vpack.c.b16 %v3668, %v3667
    %v3787 = vpack.c.b16 %v3670, %v3669
    %v3788 = vpack.c.b16 %v3672, %v3671
    %v3789 = vpack.c.b16 %v3674, %v3673
    %v3790 = vpack.c.b16 %v3676, %v3675
    %v3791 = vpack.c.b16 %v3678, %v3677
    %v3792 = vpack.c.b16 %v3680, %v3679
    %v3793 = vpack.c.b16 %v3682, %v3681
    %v3794 = vpack.c.b16 %v3684, %v3683
    %v3795 = vpack.c.b16 %v3686, %v3685
    %v3796 = vpack.c.b16 %v3688, %v3687
    %v3797 = vpack.c.b16 %v3690, %v3689
    %v3798 = vpack.c.b16 %v3692, %v3691
    %v3799 = vpack.c.b16 %v3694, %v3693
    %v3800 = vpack.c.b16 %v3696, %v3695
    %v3801 = vpack.c.b16 %v3698, %v3697
    %v3802 = vpack.c.b16 %v3700, %v3699
    %v3803 = vpack.c.b16 %v3702, %v3701
    %v3804 = vpack.c.b16 %v3704, %v3703
    %v3805 = vpack.c.b16 %v3706, %v3705
    %v3806 = vpack.c.b16 %v3708, %v3707
    %v3807 = vpack.c.b16 %v3710, %v3709
    %v3808 = vpack.c.b16 %v3712, %v3711
    %v3809 = vpack.c.b16 %v3714, %v3713
    %v3810 = vpack.c.b16 %v3716, %v3715
    %v3811 = vpack.c.b16 %v3718, %v3717
    %v3812 = vpack.c.b16 %v3720, %v3719
    %v3813 = vpack.c.b16 %v3722, %v3721
    %v3814 = vpack.c.b16 %v3724, %v3723
    %v3815 = vpack.c.b16 %v3726, %v3725
    %v3816 = vpack.c.b16 %v3728, %v3727
    %v3817 = vpack.c.b16 %v3730, %v3729
    %v3818 = vpack.c.b16 %v3732, %v3731
    %v3819 = vpack.c.b16 %v3734, %v3733
    %v3820 = vpack.c.b16 %v3736, %v3735
    %v3821 = vpack.c.b16 %v3738, %v3737
    %v3822 = vpack.c.b16 %v3740, %v3739
    %v3823 = vpack.c.b16 %v3742, %v3741
    %v3824 = vpack.c.b16 %v3744, %v3743
    %v3825 = vpack.c.b16 %v3746, %v3745
    %v3826 = vpack.c.b16 %v3748, %v3747
    %v3827 = vpack.c.b16 %v3750, %v3749
    %v3828 = vpack.c.b16 %v3752, %v3751
    %v3829 = vpack.c.b16 %v3754, %v3753
    %v3830 = vpack.c.b16 %v3756, %v3755
    %v3831 = vpack.c.b16 %v3758, %v3757
    %v3832 = vpack.c.b16 %v3760, %v3759
    %v3833 = vpack.c.b16 %v3762, %v3761
    %v3834 = vpack.c.b16 %v3764, %v3763
    %v3835 = vpack.c.b16 %v3766, %v3765
    %v3836 = vpack.c.b16 %v3768, %v3767
    %v3837 = vpack.c.b16 %v3770, %v3769
    %v3838 = vpack.c.b16 %v3772, %v3771
    %v3839 = vpack.c.b16 %v3774, %v3773
    %v3840 = vpack.c.b16 %v3776, %v3775
    %3905 = vmatpush.bf16.msra.mxu0 %v3784
    %3906 = vmatpush.bf16.msra.mxu0 %v3783
    %3907 = vmatpush.bf16.msra.mxu0 %v3782
    %3908 = vmatpush.bf16.msra.mxu0 %v3781
    %3909 = vmatpush.bf16.msra.mxu0 %v3780
    %3910 = vmatpush.bf16.msra.mxu0 %v3779
    %3911 = vmatpush.bf16.msra.mxu0 %v3778
    %3912 = vmatpush.bf16.msra.mxu0 %v3777
    %3913 = vmatmul.bf16.gmra.mxu0 %v3384
    %v3914 = vpop.f32.mrf.mxu0
    %v3915 = vadd.f32 0.0, %v3914
    %v3916 = vpop.f32.mrf.mxu0
    %3917 = vdwg.mxu0
    %3918 = vmatpush.bf16.msra.mxu0 %v3792
    %3919 = vmatpush.bf16.msra.mxu0 %v3791
    %3920 = vmatpush.bf16.msra.mxu0 %v3790
    %3921 = vmatpush.bf16.msra.mxu0 %v3789
    %3922 = vmatpush.bf16.msra.mxu0 %v3788
    %3923 = vmatpush.bf16.msra.mxu0 %v3787
    %3924 = vmatpush.bf16.msra.mxu0 %v3786
    %3925 = vmatpush.bf16.msra.mxu0 %v3785
    %3926 = vmatmul.bf16.gmra.mxu0 %v3385
    %v3927 = vpop.f32.mrf.mxu0
    %v3928 = vadd.f32 %v3915, %v3927
    %v3929 = vpop.f32.mrf.mxu0
    %3930 = vdwg.mxu0
    %3931 = vmatpush.bf16.msra.mxu0 %v3800
    %3932 = vmatpush.bf16.msra.mxu0 %v3799
    %3933 = vmatpush.bf16.msra.mxu0 %v3798
    %3934 = vmatpush.bf16.msra.mxu0 %v3797
    %3935 = vmatpush.bf16.msra.mxu0 %v3796
    %3936 = vmatpush.bf16.msra.mxu0 %v3795
    %3937 = vmatpush.bf16.msra.mxu0 %v3794
    %3938 = vmatpush.bf16.msra.mxu0 %v3793
    %3939 = vmatmul.bf16.gmra.mxu0 %v3386
    %v3940 = vpop.f32.mrf.mxu0
    %v3941 = vadd.f32 %v3928, %v3940
    %v3942 = vpop.f32.mrf.mxu0
    %3943 = vdwg.mxu0
    %3944 = vmatpush.bf16.msra.mxu0 %v3808
    %3945 = vmatpush.bf16.msra.mxu0 %v3807
    %3946 = vmatpush.bf16.msra.mxu0 %v3806
    %3947 = vmatpush.bf16.msra.mxu0 %v3805
    %3948 = vmatpush.bf16.msra.mxu0 %v3804
    %3949 = vmatpush.bf16.msra.mxu0 %v3803
    %3950 = vmatpush.bf16.msra.mxu0 %v3802
    %3951 = vmatpush.bf16.msra.mxu0 %v3801
    %3952 = vmatmul.bf16.gmra.mxu0 %v3387
    %v3953 = vpop.f32.mrf.mxu0
    %v3954 = vadd.f32 %v3941, %v3953
    %v3955 = vpop.f32.mrf.mxu0
    %3956 = vdwg.mxu0
    %3957 = vmatpush.bf16.msra.mxu0 %v3816
    %3958 = vmatpush.bf16.msra.mxu0 %v3815
    %3959 = vmatpush.bf16.msra.mxu0 %v3814
    %3960 = vmatpush.bf16.msra.mxu0 %v3813
    %3961 = vmatpush.bf16.msra.mxu0 %v3812
    %3962 = vmatpush.bf16.msra.mxu0 %v3811
    %3963 = vmatpush.bf16.msra.mxu0 %v3810
    %3964 = vmatpush.bf16.msra.mxu0 %v3809
    %3965 = vmatmul.bf16.gmra.mxu0 %v3388
    %v3966 = vpop.f32.mrf.mxu0
    %v3967 = vadd.f32 %v3954, %v3966
    %v3968 = vpop.f32.mrf.mxu0
    %3969 = vdwg.mxu0
    %3970 = vmatpush.bf16.msra.mxu0 %v3824
    %3971 = vmatpush.bf16.msra.mxu0 %v3823
    %3972 = vmatpush.bf16.msra.mxu0 %v3822
    %3973 = vmatpush.bf16.msra.mxu0 %v3821
    %3974 = vmatpush.bf16.msra.mxu0 %v3820
    %3975 = vmatpush.bf16.msra.mxu0 %v3819
    %3976 = vmatpush.bf16.msra.mxu0 %v3818
    %3977 = vmatpush.bf16.msra.mxu0 %v3817
    %3978 = vmatmul.bf16.gmra.mxu0 %v3389
    %v3979 = vpop.f32.mrf.mxu0
    %v3980 = vadd.f32 %v3967, %v3979
    %v3981 = vpop.f32.mrf.mxu0
    %3982 = vdwg.mxu0
    %3983 = vmatpush.bf16.msra.mxu0 %v3832
    %3984 = vmatpush.bf16.msra.mxu0 %v3831
    %3985 = vmatpush.bf16.msra.mxu0 %v3830
    %3986 = vmatpush.bf16.msra.mxu0 %v3829
    %3987 = vmatpush.bf16.msra.mxu0 %v3828
    %3988 = vmatpush.bf16.msra.mxu0 %v3827
    %3989 = vmatpush.bf16.msra.mxu0 %v3826
    %3990 = vmatpush.bf16.msra.mxu0 %v3825
    %3991 = vmatmul.bf16.gmra.mxu0 %v3390
    %v3992 = vpop.f32.mrf.mxu0
    %v3993 = vadd.f32 %v3980, %v3992
    %v3994 = vpop.f32.mrf.mxu0
    %3995 = vdwg.mxu0
    %3996 = vmatpush.bf16.msra.mxu0 %v3840
    %3997 = vmatpush.bf16.msra.mxu0 %v3839
    %3998 = vmatpush.bf16.msra.mxu0 %v3838
    %3999 = vmatpush.bf16.msra.mxu0 %v3837
    %4000 = vmatpush.bf16.msra.mxu0 %v3836
    %4001 = vmatpush.bf16.msra.mxu0 %v3835
    %4002 = vmatpush.bf16.msra.mxu0 %v3834
    %4003 = vmatpush.bf16.msra.mxu0 %v3833
    %4004 = vmatmul.bf16.gmra.mxu0 %v3391
    %v4005 = vpop.f32.mrf.mxu0
    %v4006 = vadd.f32 %v3993, %v4005
    %v4007 = vpop.f32.mrf.mxu0
    %4008 = vdwg.mxu0
    %v4009 = vadd.f32 %v3383, %v4006
    %v4010 = vpack.c.bf16 %v1494, %v1494
    %v4011 = vpack.c.bf16 %v1496, %v1496
    %v4012 = vpack.c.bf16 %v1498, %v1498
    %v4013 = vpack.c.bf16 %v1500, %v1500
    %v4014 = vpack.c.bf16 %v1502, %v1502
    %v4015 = vpack.c.bf16 %v1504, %v1504
    %v4016 = vpack.c.bf16 %v1506, %v1506
    %v4017 = vpack.c.bf16 %v1508, %v1508
    %s4018 = scalar_lea.vmem [#allocation5], 2048
    %v4019 = vld [vmem:[%s4018] sm:$0xf]
    %v4020 = vld [vmem:[%s4018 + $0x4] sm:$0xf]
    %v4021 = vld [vmem:[%s4018 + $0x8] sm:$0xf]
    %v4022 = vld [vmem:[%s4018 + $0xc] sm:$0xf]
    %v4023 = vld [vmem:[%s4018 + $0x10] sm:$0xf]
    %v4024 = vld [vmem:[%s4018 + $0x14] sm:$0xf]
    %v4025 = vld [vmem:[%s4018 + $0x18] sm:$0xf]
    %v4026 = vld [vmem:[%s4018 + $0x1c] sm:$0xf]
    %v4027 = vld [vmem:[%s4018 + $0x20] sm:$0xf]
    %v4028 = vld [vmem:[%s4018 + $0x24] sm:$0xf]
    %v4029 = vld [vmem:[%s4018 + $0x28] sm:$0xf]
    %v4030 = vld [vmem:[%s4018 + $0x2c] sm:$0xf]
    %v4031 = vld [vmem:[%s4018 + $0x30] sm:$0xf]
    %v4032 = vld [vmem:[%s4018 + $0x34] sm:$0xf]
    %v4033 = vld [vmem:[%s4018 + $0x38] sm:$0xf]
    %v4034 = vld [vmem:[%s4018 + $0x3c] sm:$0xf]
    %v4035 = vld [vmem:[%s4018 + $0x40] sm:$0xf]
    %v4036 = vld [vmem:[%s4018 + $0x44] sm:$0xf]
    %v4037 = vld [vmem:[%s4018 + $0x48] sm:$0xf]
    %v4038 = vld [vmem:[%s4018 + $0x4c] sm:$0xf]
    %v4039 = vld [vmem:[%s4018 + $0x50] sm:$0xf]
    %v4040 = vld [vmem:[%s4018 + $0x54] sm:$0xf]
    %v4041 = vld [vmem:[%s4018 + $0x58] sm:$0xf]
    %v4042 = vld [vmem:[%s4018 + $0x5c] sm:$0xf]
    %v4043 = vld [vmem:[%s4018 + $0x60] sm:$0xf]
    %v4044 = vld [vmem:[%s4018 + $0x64] sm:$0xf]
    %v4045 = vld [vmem:[%s4018 + $0x68] sm:$0xf]
    %v4046 = vld [vmem:[%s4018 + $0x6c] sm:$0xf]
    %v4047 = vld [vmem:[%s4018 + $0x70] sm:$0xf]
    %v4048 = vld [vmem:[%s4018 + $0x74] sm:$0xf]
    %v4049 = vld [vmem:[%s4018 + $0x78] sm:$0xf]
    %v4050 = vld [vmem:[%s4018 + $0x7c] sm:$0xf]
    %v4051 = vld [vmem:[%s4018 + $0x80] sm:$0xf]
    %v4052 = vld [vmem:[%s4018 + $0x84] sm:$0xf]
    %v4053 = vld [vmem:[%s4018 + $0x88] sm:$0xf]
    %v4054 = vld [vmem:[%s4018 + $0x8c] sm:$0xf]
    %v4055 = vld [vmem:[%s4018 + $0x90] sm:$0xf]
    %v4056 = vld [vmem:[%s4018 + $0x94] sm:$0xf]
    %v4057 = vld [vmem:[%s4018 + $0x98] sm:$0xf]
    %v4058 = vld [vmem:[%s4018 + $0x9c] sm:$0xf]
    %v4059 = vld [vmem:[%s4018 + $0xa0] sm:$0xf]
    %v4060 = vld [vmem:[%s4018 + $0xa4] sm:$0xf]
    %v4061 = vld [vmem:[%s4018 + $0xa8] sm:$0xf]
    %v4062 = vld [vmem:[%s4018 + $0xac] sm:$0xf]
    %v4063 = vld [vmem:[%s4018 + $0xb0] sm:$0xf]
    %v4064 = vld [vmem:[%s4018 + $0xb4] sm:$0xf]
    %v4065 = vld [vmem:[%s4018 + $0xb8] sm:$0xf]
    %v4066 = vld [vmem:[%s4018 + $0xbc] sm:$0xf]
    %v4067 = vld [vmem:[%s4018 + $0xc0] sm:$0xf]
    %v4068 = vld [vmem:[%s4018 + $0xc4] sm:$0xf]
    %v4069 = vld [vmem:[%s4018 + $0xc8] sm:$0xf]
    %v4070 = vld [vmem:[%s4018 + $0xcc] sm:$0xf]
    %v4071 = vld [vmem:[%s4018 + $0xd0] sm:$0xf]
    %v4072 = vld [vmem:[%s4018 + $0xd4] sm:$0xf]
    %v4073 = vld [vmem:[%s4018 + $0xd8] sm:$0xf]
    %v4074 = vld [vmem:[%s4018 + $0xdc] sm:$0xf]
    %v4075 = vld [vmem:[%s4018 + $0xe0] sm:$0xf]
    %v4076 = vld [vmem:[%s4018 + $0xe4] sm:$0xf]
    %v4077 = vld [vmem:[%s4018 + $0xe8] sm:$0xf]
    %v4078 = vld [vmem:[%s4018 + $0xec] sm:$0xf]
    %v4079 = vld [vmem:[%s4018 + $0xf0] sm:$0xf]
    %v4080 = vld [vmem:[%s4018 + $0xf4] sm:$0xf]
    %v4081 = vld [vmem:[%s4018 + $0xf8] sm:$0xf]
    %v4082 = vld [vmem:[%s4018 + $0xfc] sm:$0xf]
    %v4083 = vld [vmem:[%s4018 + $0x100] sm:$0xf]
    %v4084 = vld [vmem:[%s4018 + $0x104] sm:$0xf]
    %v4085 = vld [vmem:[%s4018 + $0x108] sm:$0xf]
    %v4086 = vld [vmem:[%s4018 + $0x10c] sm:$0xf]
    %v4087 = vld [vmem:[%s4018 + $0x110] sm:$0xf]
    %v4088 = vld [vmem:[%s4018 + $0x114] sm:$0xf]
    %v4089 = vld [vmem:[%s4018 + $0x118] sm:$0xf]
    %v4090 = vld [vmem:[%s4018 + $0x11c] sm:$0xf]
    %v4091 = vld [vmem:[%s4018 + $0x120] sm:$0xf]
    %v4092 = vld [vmem:[%s4018 + $0x124] sm:$0xf]
    %v4093 = vld [vmem:[%s4018 + $0x128] sm:$0xf]
    %v4094 = vld [vmem:[%s4018 + $0x12c] sm:$0xf]
    %v4095 = vld [vmem:[%s4018 + $0x130] sm:$0xf]
    %v4096 = vld [vmem:[%s4018 + $0x134] sm:$0xf]
    %v4097 = vld [vmem:[%s4018 + $0x138] sm:$0xf]
    %v4098 = vld [vmem:[%s4018 + $0x13c] sm:$0xf]
    %v4099 = vld [vmem:[%s4018 + $0x140] sm:$0xf]
    %v4100 = vld [vmem:[%s4018 + $0x144] sm:$0xf]
    %v4101 = vld [vmem:[%s4018 + $0x148] sm:$0xf]
    %v4102 = vld [vmem:[%s4018 + $0x14c] sm:$0xf]
    %v4103 = vld [vmem:[%s4018 + $0x150] sm:$0xf]
    %v4104 = vld [vmem:[%s4018 + $0x154] sm:$0xf]
    %v4105 = vld [vmem:[%s4018 + $0x158] sm:$0xf]
    %v4106 = vld [vmem:[%s4018 + $0x15c] sm:$0xf]
    %v4107 = vld [vmem:[%s4018 + $0x160] sm:$0xf]
    %v4108 = vld [vmem:[%s4018 + $0x164] sm:$0xf]
    %v4109 = vld [vmem:[%s4018 + $0x168] sm:$0xf]
    %v4110 = vld [vmem:[%s4018 + $0x16c] sm:$0xf]
    %v4111 = vld [vmem:[%s4018 + $0x170] sm:$0xf]
    %v4112 = vld [vmem:[%s4018 + $0x174] sm:$0xf]
    %v4113 = vld [vmem:[%s4018 + $0x178] sm:$0xf]
    %v4114 = vld [vmem:[%s4018 + $0x17c] sm:$0xf]
    %v4115 = vld [vmem:[%s4018 + $0x180] sm:$0xf]
    %v4116 = vld [vmem:[%s4018 + $0x184] sm:$0xf]
    %v4117 = vld [vmem:[%s4018 + $0x188] sm:$0xf]
    %v4118 = vld [vmem:[%s4018 + $0x18c] sm:$0xf]
    %v4119 = vld [vmem:[%s4018 + $0x190] sm:$0xf]
    %v4120 = vld [vmem:[%s4018 + $0x194] sm:$0xf]
    %v4121 = vld [vmem:[%s4018 + $0x198] sm:$0xf]
    %v4122 = vld [vmem:[%s4018 + $0x19c] sm:$0xf]
    %v4123 = vld [vmem:[%s4018 + $0x1a0] sm:$0xf]
    %v4124 = vld [vmem:[%s4018 + $0x1a4] sm:$0xf]
    %v4125 = vld [vmem:[%s4018 + $0x1a8] sm:$0xf]
    %v4126 = vld [vmem:[%s4018 + $0x1ac] sm:$0xf]
    %v4127 = vld [vmem:[%s4018 + $0x1b0] sm:$0xf]
    %v4128 = vld [vmem:[%s4018 + $0x1b4] sm:$0xf]
    %v4129 = vld [vmem:[%s4018 + $0x1b8] sm:$0xf]
    %v4130 = vld [vmem:[%s4018 + $0x1bc] sm:$0xf]
    %v4131 = vld [vmem:[%s4018 + $0x1c0] sm:$0xf]
    %v4132 = vld [vmem:[%s4018 + $0x1c4] sm:$0xf]
    %v4133 = vld [vmem:[%s4018 + $0x1c8] sm:$0xf]
    %v4134 = vld [vmem:[%s4018 + $0x1cc] sm:$0xf]
    %v4135 = vld [vmem:[%s4018 + $0x1d0] sm:$0xf]
    %v4136 = vld [vmem:[%s4018 + $0x1d4] sm:$0xf]
    %v4137 = vld [vmem:[%s4018 + $0x1d8] sm:$0xf]
    %v4138 = vld [vmem:[%s4018 + $0x1dc] sm:$0xf]
    %v4139 = vld [vmem:[%s4018 + $0x1e0] sm:$0xf]
    %v4140 = vld [vmem:[%s4018 + $0x1e4] sm:$0xf]
    %v4141 = vld [vmem:[%s4018 + $0x1e8] sm:$0xf]
    %v4142 = vld [vmem:[%s4018 + $0x1ec] sm:$0xf]
    %v4143 = vld [vmem:[%s4018 + $0x1f0] sm:$0xf]
    %v4144 = vld [vmem:[%s4018 + $0x1f4] sm:$0xf]
    %v4145 = vld [vmem:[%s4018 + $0x1f8] sm:$0xf]
    %v4146 = vld [vmem:[%s4018 + $0x1fc] sm:$0xf]
    %v4275 = vunpack.c.l.b16 %v4019
    %v4276 = vunpack.c.l.b16 %v4020
    %v4277 = vunpack.c.l.b16 %v4021
    %v4278 = vunpack.c.l.b16 %v4022
    %v4279 = vunpack.c.l.b16 %v4023
    %v4280 = vunpack.c.l.b16 %v4024
    %v4281 = vunpack.c.l.b16 %v4025
    %v4282 = vunpack.c.l.b16 %v4026
    %v4283 = vunpack.c.l.b16 %v4027
    %v4284 = vunpack.c.l.b16 %v4028
    %v4285 = vunpack.c.l.b16 %v4029
    %v4286 = vunpack.c.l.b16 %v4030
    %v4287 = vunpack.c.l.b16 %v4031
    %v4288 = vunpack.c.l.b16 %v4032
    %v4289 = vunpack.c.l.b16 %v4033
    %v4290 = vunpack.c.l.b16 %v4034
    %v4291 = vunpack.c.l.b16 %v4035
    %v4292 = vunpack.c.l.b16 %v4036
    %v4293 = vunpack.c.l.b16 %v4037
    %v4294 = vunpack.c.l.b16 %v4038
    %v4295 = vunpack.c.l.b16 %v4039
    %v4296 = vunpack.c.l.b16 %v4040
    %v4297 = vunpack.c.l.b16 %v4041
    %v4298 = vunpack.c.l.b16 %v4042
    %v4299 = vunpack.c.l.b16 %v4043
    %v4300 = vunpack.c.l.b16 %v4044
    %v4301 = vunpack.c.l.b16 %v4045
    %v4302 = vunpack.c.l.b16 %v4046
    %v4303 = vunpack.c.l.b16 %v4047
    %v4304 = vunpack.c.l.b16 %v4048
    %v4305 = vunpack.c.l.b16 %v4049
    %v4306 = vunpack.c.l.b16 %v4050
    %v4307 = vunpack.c.l.b16 %v4051
    %v4308 = vunpack.c.l.b16 %v4052
    %v4309 = vunpack.c.l.b16 %v4053
    %v4310 = vunpack.c.l.b16 %v4054
    %v4311 = vunpack.c.l.b16 %v4055
    %v4312 = vunpack.c.l.b16 %v4056
    %v4313 = vunpack.c.l.b16 %v4057
    %v4314 = vunpack.c.l.b16 %v4058
    %v4315 = vunpack.c.l.b16 %v4059
    %v4316 = vunpack.c.l.b16 %v4060
    %v4317 = vunpack.c.l.b16 %v4061
    %v4318 = vunpack.c.l.b16 %v4062
    %v4319 = vunpack.c.l.b16 %v4063
    %v4320 = vunpack.c.l.b16 %v4064
    %v4321 = vunpack.c.l.b16 %v4065
    %v4322 = vunpack.c.l.b16 %v4066
    %v4323 = vunpack.c.l.b16 %v4067
    %v4324 = vunpack.c.l.b16 %v4068
    %v4325 = vunpack.c.l.b16 %v4069
    %v4326 = vunpack.c.l.b16 %v4070
    %v4327 = vunpack.c.l.b16 %v4071
    %v4328 = vunpack.c.l.b16 %v4072
    %v4329 = vunpack.c.l.b16 %v4073
    %v4330 = vunpack.c.l.b16 %v4074
    %v4331 = vunpack.c.l.b16 %v4075
    %v4332 = vunpack.c.l.b16 %v4076
    %v4333 = vunpack.c.l.b16 %v4077
    %v4334 = vunpack.c.l.b16 %v4078
    %v4335 = vunpack.c.l.b16 %v4079
    %v4336 = vunpack.c.l.b16 %v4080
    %v4337 = vunpack.c.l.b16 %v4081
    %v4338 = vunpack.c.l.b16 %v4082
    %v4339 = vunpack.c.l.b16 %v4083
    %v4340 = vunpack.c.l.b16 %v4084
    %v4341 = vunpack.c.l.b16 %v4085
    %v4342 = vunpack.c.l.b16 %v4086
    %v4343 = vunpack.c.l.b16 %v4087
    %v4344 = vunpack.c.l.b16 %v4088
    %v4345 = vunpack.c.l.b16 %v4089
    %v4346 = vunpack.c.l.b16 %v4090
    %v4347 = vunpack.c.l.b16 %v4091
    %v4348 = vunpack.c.l.b16 %v4092
    %v4349 = vunpack.c.l.b16 %v4093
    %v4350 = vunpack.c.l.b16 %v4094
    %v4351 = vunpack.c.l.b16 %v4095
    %v4352 = vunpack.c.l.b16 %v4096
    %v4353 = vunpack.c.l.b16 %v4097
    %v4354 = vunpack.c.l.b16 %v4098
    %v4355 = vunpack.c.l.b16 %v4099
    %v4356 = vunpack.c.l.b16 %v4100
    %v4357 = vunpack.c.l.b16 %v4101
    %v4358 = vunpack.c.l.b16 %v4102
    %v4359 = vunpack.c.l.b16 %v4103
    %v4360 = vunpack.c.l.b16 %v4104
    %v4361 = vunpack.c.l.b16 %v4105
    %v4362 = vunpack.c.l.b16 %v4106
    %v4363 = vunpack.c.l.b16 %v4107
    %v4364 = vunpack.c.l.b16 %v4108
    %v4365 = vunpack.c.l.b16 %v4109
    %v4366 = vunpack.c.l.b16 %v4110
    %v4367 = vunpack.c.l.b16 %v4111
    %v4368 = vunpack.c.l.b16 %v4112
    %v4369 = vunpack.c.l.b16 %v4113
    %v4370 = vunpack.c.l.b16 %v4114
    %v4371 = vunpack.c.l.b16 %v4115
    %v4372 = vunpack.c.l.b16 %v4116
    %v4373 = vunpack.c.l.b16 %v4117
    %v4374 = vunpack.c.l.b16 %v4118
    %v4375 = vunpack.c.l.b16 %v4119
    %v4376 = vunpack.c.l.b16 %v4120
    %v4377 = vunpack.c.l.b16 %v4121
    %v4378 = vunpack.c.l.b16 %v4122
    %v4379 = vunpack.c.l.b16 %v4123
    %v4380 = vunpack.c.l.b16 %v4124
    %v4381 = vunpack.c.l.b16 %v4125
    %v4382 = vunpack.c.l.b16 %v4126
    %v4383 = vunpack.c.l.b16 %v4127
    %v4384 = vunpack.c.l.b16 %v4128
    %v4385 = vunpack.c.l.b16 %v4129
    %v4386 = vunpack.c.l.b16 %v4130
    %v4387 = vunpack.c.l.b16 %v4131
    %v4388 = vunpack.c.l.b16 %v4132
    %v4389 = vunpack.c.l.b16 %v4133
    %v4390 = vunpack.c.l.b16 %v4134
    %v4391 = vunpack.c.l.b16 %v4135
    %v4392 = vunpack.c.l.b16 %v4136
    %v4393 = vunpack.c.l.b16 %v4137
    %v4394 = vunpack.c.l.b16 %v4138
    %v4395 = vunpack.c.l.b16 %v4139
    %v4396 = vunpack.c.l.b16 %v4140
    %v4397 = vunpack.c.l.b16 %v4141
    %v4398 = vunpack.c.l.b16 %v4142
    %v4399 = vunpack.c.l.b16 %v4143
    %v4400 = vunpack.c.l.b16 %v4144
    %v4401 = vunpack.c.l.b16 %v4145
    %v4402 = vunpack.c.l.b16 %v4146
    %v4403 = vpack.c.b16 %v4276, %v4275
    %v4404 = vpack.c.b16 %v4278, %v4277
    %v4405 = vpack.c.b16 %v4280, %v4279
    %v4406 = vpack.c.b16 %v4282, %v4281
    %v4407 = vpack.c.b16 %v4284, %v4283
    %v4408 = vpack.c.b16 %v4286, %v4285
    %v4409 = vpack.c.b16 %v4288, %v4287
    %v4410 = vpack.c.b16 %v4290, %v4289
    %v4411 = vpack.c.b16 %v4292, %v4291
    %v4412 = vpack.c.b16 %v4294, %v4293
    %v4413 = vpack.c.b16 %v4296, %v4295
    %v4414 = vpack.c.b16 %v4298, %v4297
    %v4415 = vpack.c.b16 %v4300, %v4299
    %v4416 = vpack.c.b16 %v4302, %v4301
    %v4417 = vpack.c.b16 %v4304, %v4303
    %v4418 = vpack.c.b16 %v4306, %v4305
    %v4419 = vpack.c.b16 %v4308, %v4307
    %v4420 = vpack.c.b16 %v4310, %v4309
    %v4421 = vpack.c.b16 %v4312, %v4311
    %v4422 = vpack.c.b16 %v4314, %v4313
    %v4423 = vpack.c.b16 %v4316, %v4315
    %v4424 = vpack.c.b16 %v4318, %v4317
    %v4425 = vpack.c.b16 %v4320, %v4319
    %v4426 = vpack.c.b16 %v4322, %v4321
    %v4427 = vpack.c.b16 %v4324, %v4323
    %v4428 = vpack.c.b16 %v4326, %v4325
    %v4429 = vpack.c.b16 %v4328, %v4327
    %v4430 = vpack.c.b16 %v4330, %v4329
    %v4431 = vpack.c.b16 %v4332, %v4331
    %v4432 = vpack.c.b16 %v4334, %v4333
    %v4433 = vpack.c.b16 %v4336, %v4335
    %v4434 = vpack.c.b16 %v4338, %v4337
    %v4435 = vpack.c.b16 %v4340, %v4339
    %v4436 = vpack.c.b16 %v4342, %v4341
    %v4437 = vpack.c.b16 %v4344, %v4343
    %v4438 = vpack.c.b16 %v4346, %v4345
    %v4439 = vpack.c.b16 %v4348, %v4347
    %v4440 = vpack.c.b16 %v4350, %v4349
    %v4441 = vpack.c.b16 %v4352, %v4351
    %v4442 = vpack.c.b16 %v4354, %v4353
    %v4443 = vpack.c.b16 %v4356, %v4355
    %v4444 = vpack.c.b16 %v4358, %v4357
    %v4445 = vpack.c.b16 %v4360, %v4359
    %v4446 = vpack.c.b16 %v4362, %v4361
    %v4447 = vpack.c.b16 %v4364, %v4363
    %v4448 = vpack.c.b16 %v4366, %v4365
    %v4449 = vpack.c.b16 %v4368, %v4367
    %v4450 = vpack.c.b16 %v4370, %v4369
    %v4451 = vpack.c.b16 %v4372, %v4371
    %v4452 = vpack.c.b16 %v4374, %v4373
    %v4453 = vpack.c.b16 %v4376, %v4375
    %v4454 = vpack.c.b16 %v4378, %v4377
    %v4455 = vpack.c.b16 %v4380, %v4379
    %v4456 = vpack.c.b16 %v4382, %v4381
    %v4457 = vpack.c.b16 %v4384, %v4383
    %v4458 = vpack.c.b16 %v4386, %v4385
    %v4459 = vpack.c.b16 %v4388, %v4387
    %v4460 = vpack.c.b16 %v4390, %v4389
    %v4461 = vpack.c.b16 %v4392, %v4391
    %v4462 = vpack.c.b16 %v4394, %v4393
    %v4463 = vpack.c.b16 %v4396, %v4395
    %v4464 = vpack.c.b16 %v4398, %v4397
    %v4465 = vpack.c.b16 %v4400, %v4399
    %v4466 = vpack.c.b16 %v4402, %v4401
    %4531 = vmatpush.bf16.msra.mxu0 %v4410
    %4532 = vmatpush.bf16.msra.mxu0 %v4409
    %4533 = vmatpush.bf16.msra.mxu0 %v4408
    %4534 = vmatpush.bf16.msra.mxu0 %v4407
    %4535 = vmatpush.bf16.msra.mxu0 %v4406
    %4536 = vmatpush.bf16.msra.mxu0 %v4405
    %4537 = vmatpush.bf16.msra.mxu0 %v4404
    %4538 = vmatpush.bf16.msra.mxu0 %v4403
    %4539 = vmatmul.bf16.gmra.mxu0 %v4010
    %v4540 = vpop.f32.mrf.mxu0
    %v4541 = vadd.f32 0.0, %v4540
    %v4542 = vpop.f32.mrf.mxu0
    %4543 = vdwg.mxu0
    %4544 = vmatpush.bf16.msra.mxu0 %v4418
    %4545 = vmatpush.bf16.msra.mxu0 %v4417
    %4546 = vmatpush.bf16.msra.mxu0 %v4416
    %4547 = vmatpush.bf16.msra.mxu0 %v4415
    %4548 = vmatpush.bf16.msra.mxu0 %v4414
    %4549 = vmatpush.bf16.msra.mxu0 %v4413
    %4550 = vmatpush.bf16.msra.mxu0 %v4412
    %4551 = vmatpush.bf16.msra.mxu0 %v4411
    %4552 = vmatmul.bf16.gmra.mxu0 %v4011
    %v4553 = vpop.f32.mrf.mxu0
    %v4554 = vadd.f32 %v4541, %v4553
    %v4555 = vpop.f32.mrf.mxu0
    %4556 = vdwg.mxu0
    %4557 = vmatpush.bf16.msra.mxu0 %v4426
    %4558 = vmatpush.bf16.msra.mxu0 %v4425
    %4559 = vmatpush.bf16.msra.mxu0 %v4424
    %4560 = vmatpush.bf16.msra.mxu0 %v4423
    %4561 = vmatpush.bf16.msra.mxu0 %v4422
    %4562 = vmatpush.bf16.msra.mxu0 %v4421
    %4563 = vmatpush.bf16.msra.mxu0 %v4420
    %4564 = vmatpush.bf16.msra.mxu0 %v4419
    %4565 = vmatmul.bf16.gmra.mxu0 %v4012
    %v4566 = vpop.f32.mrf.mxu0
    %v4567 = vadd.f32 %v4554, %v4566
    %v4568 = vpop.f32.mrf.mxu0
    %4569 = vdwg.mxu0
    %4570 = vmatpush.bf16.msra.mxu0 %v4434
    %4571 = vmatpush.bf16.msra.mxu0 %v4433
    %4572 = vmatpush.bf16.msra.mxu0 %v4432
    %4573 = vmatpush.bf16.msra.mxu0 %v4431
    %4574 = vmatpush.bf16.msra.mxu0 %v4430
    %4575 = vmatpush.bf16.msra.mxu0 %v4429
    %4576 = vmatpush.bf16.msra.mxu0 %v4428
    %4577 = vmatpush.bf16.msra.mxu0 %v4427
    %4578 = vmatmul.bf16.gmra.mxu0 %v4013
    %v4579 = vpop.f32.mrf.mxu0
    %v4580 = vadd.f32 %v4567, %v4579
    %v4581 = vpop.f32.mrf.mxu0
    %4582 = vdwg.mxu0
    %4583 = vmatpush.bf16.msra.mxu0 %v4442
    %4584 = vmatpush.bf16.msra.mxu0 %v4441
    %4585 = vmatpush.bf16.msra.mxu0 %v4440
    %4586 = vmatpush.bf16.msra.mxu0 %v4439
    %4587 = vmatpush.bf16.msra.mxu0 %v4438
    %4588 = vmatpush.bf16.msra.mxu0 %v4437
    %4589 = vmatpush.bf16.msra.mxu0 %v4436
    %4590 = vmatpush.bf16.msra.mxu0 %v4435
    %4591 = vmatmul.bf16.gmra.mxu0 %v4014
    %v4592 = vpop.f32.mrf.mxu0
    %v4593 = vadd.f32 %v4580, %v4592
    %v4594 = vpop.f32.mrf.mxu0
    %4595 = vdwg.mxu0
    %4596 = vmatpush.bf16.msra.mxu0 %v4450
    %4597 = vmatpush.bf16.msra.mxu0 %v4449
    %4598 = vmatpush.bf16.msra.mxu0 %v4448
    %4599 = vmatpush.bf16.msra.mxu0 %v4447
    %4600 = vmatpush.bf16.msra.mxu0 %v4446
    %4601 = vmatpush.bf16.msra.mxu0 %v4445
    %4602 = vmatpush.bf16.msra.mxu0 %v4444
    %4603 = vmatpush.bf16.msra.mxu0 %v4443
    %4604 = vmatmul.bf16.gmra.mxu0 %v4015
    %v4605 = vpop.f32.mrf.mxu0
    %v4606 = vadd.f32 %v4593, %v4605
    %v4607 = vpop.f32.mrf.mxu0
    %4608 = vdwg.mxu0
    %4609 = vmatpush.bf16.msra.mxu0 %v4458
    %4610 = vmatpush.bf16.msra.mxu0 %v4457
    %4611 = vmatpush.bf16.msra.mxu0 %v4456
    %4612 = vmatpush.bf16.msra.mxu0 %v4455
    %4613 = vmatpush.bf16.msra.mxu0 %v4454
    %4614 = vmatpush.bf16.msra.mxu0 %v4453
    %4615 = vmatpush.bf16.msra.mxu0 %v4452
    %4616 = vmatpush.bf16.msra.mxu0 %v4451
    %4617 = vmatmul.bf16.gmra.mxu0 %v4016
    %v4618 = vpop.f32.mrf.mxu0
    %v4619 = vadd.f32 %v4606, %v4618
    %v4620 = vpop.f32.mrf.mxu0
    %4621 = vdwg.mxu0
    %4622 = vmatpush.bf16.msra.mxu0 %v4466
    %4623 = vmatpush.bf16.msra.mxu0 %v4465
    %4624 = vmatpush.bf16.msra.mxu0 %v4464
    %4625 = vmatpush.bf16.msra.mxu0 %v4463
    %4626 = vmatpush.bf16.msra.mxu0 %v4462
    %4627 = vmatpush.bf16.msra.mxu0 %v4461
    %4628 = vmatpush.bf16.msra.mxu0 %v4460
    %4629 = vmatpush.bf16.msra.mxu0 %v4459
    %4630 = vmatmul.bf16.gmra.mxu0 %v4017
    %v4631 = vpop.f32.mrf.mxu0
    %v4632 = vadd.f32 %v4619, %v4631
    %v4633 = vpop.f32.mrf.mxu0
    %4634 = vdwg.mxu0
    %v4635 = vadd.f32 %v4009, %v4632
    %v4636 = vld [vmem:[#allocation7] sm:$0x1]
    %v4638 = vperm.slane %v4636, 0
    %v4640 = vadd.f32 %v4635, %v4638
    %vm4641 = vcmp.ge.f32.partialorder %v4640, 0.0
    %v4642 = vand.u32 2147483647, %v4640
    %v4643 = vsub.f32 0.0, %v4642
    %v4644 = vmul.f32 %v4643, 1.442695
    %v4645 = vpow.pop %v4644
    %v4646 = vmul.f32 %v4645, %v4645
    %v4647 = vadd.f32 %v4645, 1.0
    %v4648 = vrcp.pop %v4647
    %v4649 = vadd.f32 %v4646, 1.0
    %v4650 = vrcp.pop %v4649
    %v4651 = vmax.f32 %v4640, 0.0
    %v4652 = vsel %vm4641, 1.0, %v4645
    %v4653 = vmul.f32 %v4652, %v4648
    %v4654 = vsel %vm4641, 1.0, -1.0
    %v4655 = vsub.f32 1.0, %v4646
    %v4656 = vmul.f32 %v4654, %v4655
    %v4657 = vmul.f32 %v4656, %v4650
    %v4658 = vand.u32 2147483647, %v4640
    %vm4659 = vcmp.le.f32.partialorder %v4658, 0.7853982
    %vm4660 = vcmp.lt.s32.totalorder %v4640, 0
    %v4661 = vand.u32 %v4640, 2139095040
    %v4662 = vshrl.u32 %v4661, 23
    %v4663 = vsub.s32 %v4662, 127
    %v4664 = vand.u32 2147483647, %v4640
    %v4665 = vand.u32 %v4664, 8388607
    %v4666 = vor.u32 %v4665, 8388608
    %v4667 = vsub.s32 0, %v4666
    %v4668 = vadd.s32 %v4663, 1
    %vm4669 = vcmp.gt.s32.totalorder %v4668, 0
    %v4670 = vsel %vm4669, %v4668, 0
    %v4671 = vshrl.u32 %v4670, 5
    %v4672 = vand.u32 %v4670, 31
    %v4673 = vsub.s32 32, %v4672
    %v4674 = vshrl.u32 683565275, %v4673
    %v4675 = vshll.u32 683565275, %v4672
    %v4676 = vshrl.u32 2475754826, %v4673
    %v4677 = vor.u32 %v4675, %v4676
    %v4678 = vshll.u32 2475754826, %v4672
    %v4679 = vshrl.u32 2131351028, %v4673
    %v4680 = vor.u32 %v4678, %v4679
    %v4681 = vshll.u32 2131351028, %v4672
    %v4682 = vshrl.u32 2102212464, %v4673
    %v4683 = vor.u32 %v4681, %v4682
    %v4684 = vshll.u32 2102212464, %v4672
    %v4685 = vshrl.u32 920167782, %v4673
    %v4686 = vor.u32 %v4684, %v4685
    %v4687 = vshll.u32 920167782, %v4672
    %v4688 = vshrl.u32 1326507024, %v4673
    %v4689 = vor.u32 %v4687, %v4688
    %vm4690 = vcmp.lt.s32.totalorder %v4671, 1
    %vm4691 = vcmp.lt.s32.totalorder %v4671, 2
    %vm4692 = vcmp.lt.s32.totalorder %v4671, 3
    %vm4693 = vcmp.lt.s32.totalorder %v4671, 4
    %v4694 = vsel %vm4690, %v4674, %v4677
    %v4695 = vsel %vm4693, %v4683, 2102212464
    %v4696 = vsel %vm4692, %v4680, %v4695
    %v4697 = vsel %vm4691, %v4694, %v4696
    %v4698 = vsel %vm4690, %v4677, %v4680
    %v4699 = vsel %vm4693, %v4686, 920167782
    %v4700 = vsel %vm4692, %v4683, %v4699
    %v4701 = vsel %vm4691, %v4698, %v4700
    %v4702 = vsel %vm4690, %v4680, %v4683
    %v4703 = vsel %vm4693, %v4689, 1326507024
    %v4704 = vsel %vm4692, %v4686, %v4703
    %v4705 = vsel %vm4691, %v4702, %v4704
    %v4706 = vshll.u32 %v4666, 8
    %v4707 = vand.u32 %v4706, 65535
    %v4708 = vshrl.u32 %v4706, 16
    %v4709 = vand.u32 %v4705, 65535
    %v4710 = vshrl.u32 %v4705, 16
    %v4711 = vmul.u32 %v4707, %v4709
    %v4712 = vmul.u32 %v4707, %v4710
    %v4713 = vmul.u32 %v4708, %v4709
    %v4714 = vmul.u32 %v4708, %v4710
    %v4715 = vshll.u32 %v4712, 16
    %v4716 = vshrl.u32 %v4712, 16
    %v4717 = vshll.u32 %v4713, 16
    %v4718 = vshrl.u32 %v4713, 16
    %vm4719 = vc.u32 %v4711, %v4715
    %v4720 = vsel %vm4719, 1, 0
    %v4721 = vadd.s32 %v4711, %v4715
    %v4722 = vadd.s32 %v4714, %v4720
    %vm4723 = vc.u32 %v4721, %v4717
    %v4724 = vsel %vm4723, 1, 0
    %v4725 = vadd.s32 %v4721, %v4717
    %v4726 = vadd.s32 %v4722, %v4724
    %v4727 = vadd.s32 %v4726, %v4716
    %v4728 = vadd.s32 %v4727, %v4718
    %v4729 = vand.u32 %v4706, 65535
    %v4730 = vshrl.u32 %v4706, 16
    %v4731 = vand.u32 %v4701, 65535
    %v4732 = vshrl.u32 %v4701, 16
    %v4733 = vmul.u32 %v4729, %v4731
    %v4734 = vmul.u32 %v4729, %v4732
    %v4735 = vmul.u32 %v4730, %v4731
    %v4736 = vmul.u32 %v4730, %v4732
    %v4737 = vshll.u32 %v4734, 16
    %v4738 = vshrl.u32 %v4734, 16
    %v4739 = vshll.u32 %v4735, 16
    %v4740 = vshrl.u32 %v4735, 16
    %vm4741 = vc.u32 %v4733, %v4737
    %v4742 = vsel %vm4741, 1, 0
    %v4743 = vadd.s32 %v4733, %v4737
    %v4744 = vadd.s32 %v4736, %v4742
    %vm4745 = vc.u32 %v4743, %v4739
    %v4746 = vsel %vm4745, 1, 0
    %v4747 = vadd.s32 %v4743, %v4739
    %v4748 = vadd.s32 %v4744, %v4746
    %v4749 = vadd.s32 %v4748, %v4738
    %v4750 = vadd.s32 %v4749, %v4740
    %v4751 = vmul.u32 %v4706, %v4697
    %v4752 = vadd.s32 %v4728, %v4747
    %vm4753 = vc.u32 %v4728, %v4747
    %v4754 = vadd.s32 %v4750, 1
    %v4755 = vsel %vm4753, %v4754, %v4750
    %v4756 = vadd.s32 %v4751, %v4755
    %v4757 = vadd.s32 %v4756, 536870912
    %v4758 = vshrl.u32 %v4757, 30
    %v4759 = vshll.u32 %v4758, 30
    %v4760 = vsub.s32 %v4756, %v4759
    %vm4761 = vcmp.lt.s32.totalorder %v4760, 0
    %v4762 = vsub.s32 0, %v4760
    %v4763 = vsel %vm4761, %v4762, %v4760
    %v4764 = vclz %v4763
    %v4765 = vsub.s32 %v4764, 2
    %vm4766 = vcmp.gt.s32.totalorder 0, %v4765
    %v4767 = vsel %vm4766, 0, %v4765
    %v4768 = vsub.s32 32, %v4767
    %v4769 = vshll.u32 %v4760, %v4767
    %v4770 = vshrl.u32 %v4752, %v4768
    %v4771 = vor.u32 %v4769, %v4770
    %v4772 = vsub.s32 4294967266, %v4767
    %v4773 = vadd.s32 %v4772, 127
    %v4774 = vshll.u32 %v4773, 23
    %v4775 = vor.u32 4788187, %v4774
    %v4776 = vand.u32 2147483647, %v4775
    %v4778 = vcvt.s32.f32 %v4771
    %v4779 = vmul.f32 %v4778, %v4776
    %v4780 = vxor.u32 %v4779, 2147483648
    %v4781 = vsel %vm4660, %v4780, %v4779
    %v4782 = vsub.s32 4, %v4758
    %v4783 = vsel %vm4660, %v4782, %v4758
    %v4784 = vsel %vm4659, %v4640, %v4781
    %v4785 = vsel %vm4659, 0, %v4783
    %v4786 = vmul.f32 %v4784, %v4784
    %v4787 = vmul.f32 %v4786, -0.001358992
    %v4788 = vadd.f32 %v4787, 0.041655596
    %v4789 = vmul.f32 %v4786, %v4788
    %v4790 = vadd.f32 %v4789, -0.4999988
    %v4791 = vmul.f32 %v4786, %v4790
    %v4792 = vadd.f32 1.0, %v4791
    %v4793 = vmul.f32 %v4784, %v4784
    %v4794 = vmul.f32 %v4793, -0.00019511016
    %v4795 = vadd.f32 %v4794, 0.008332121
    %v4796 = vmul.f32 %v4793, %v4795
    %v4797 = vadd.f32 %v4796, -0.16666654
    %v4798 = vmul.f32 %v4793, %v4797
    %v4799 = vadd.f32 %v4798, 1.0
    %v4800 = vmul.f32 %v4799, %v4784
    %vm4801 = vweird.f32 %v4640
    %v4802 = vadd.s32 %v4785, 3
    %v4803 = vand.u32 %v4802, 3
    %vm4804 = vcmp.lt.s32.totalorder %v4803, 2
    %vm4805 = vcmp.eq.s32.totalorder %v4803, 0
    %v4806 = vxor.u32 %v4800, 2147483648
    %v4807 = vsel %vm4805, %v4792, %v4806
    %vm4808 = vcmp.eq.s32.totalorder %v4803, 2
    %v4809 = vxor.u32 %v4792, 2147483648
    %v4810 = vsel %vm4808, %v4809, %v4800
    %v4811 = vsel %vm4804, %v4807, %v4810
    %v4812 = vsel %vm4801, nan, %v4811
    %v4813 = vmul.f32 %v4640, %v4640
    %v4814 = vsub.f32 0.0, %v4813
    %v4815 = vmul.f32 %v4814, 1.442695
    %v4816 = vpow.pop %v4815
    %v4817 = vpack.c.bf16 %v4651, %v4651
    %v4818 = vld [vmem:[#allocation8] sm:$0xf]
    %v4819 = vld [vmem:[#allocation8 + $0x4] sm:$0xf]
    %v4820 = vld [vmem:[#allocation8 + $0x8] sm:$0xf]
    %v4821 = vld [vmem:[#allocation8 + $0xc] sm:$0xf]
    %v4822 = vld [vmem:[#allocation8 + $0x10] sm:$0xf]
    %v4823 = vld [vmem:[#allocation8 + $0x14] sm:$0xf]
    %v4824 = vld [vmem:[#allocation8 + $0x18] sm:$0xf]
    %v4825 = vld [vmem:[#allocation8 + $0x1c] sm:$0xf]
    %v4826 = vld [vmem:[#allocation8 + $0x20] sm:$0xf]
    %v4827 = vld [vmem:[#allocation8 + $0x24] sm:$0xf]
    %v4828 = vld [vmem:[#allocation8 + $0x28] sm:$0xf]
    %v4829 = vld [vmem:[#allocation8 + $0x2c] sm:$0xf]
    %v4830 = vld [vmem:[#allocation8 + $0x30] sm:$0xf]
    %v4831 = vld [vmem:[#allocation8 + $0x34] sm:$0xf]
    %v4832 = vld [vmem:[#allocation8 + $0x38] sm:$0xf]
    %v4833 = vld [vmem:[#allocation8 + $0x3c] sm:$0xf]
    %v4834 = vpack.c.bf16 %v4657, %v4657
    %s4835 = scalar_lea.vmem [#allocation8], 64
    %v4836 = vld [vmem:[%s4835] sm:$0xf]
    %v4837 = vld [vmem:[%s4835 + $0x4] sm:$0xf]
    %v4838 = vld [vmem:[%s4835 + $0x8] sm:$0xf]
    %v4839 = vld [vmem:[%s4835 + $0xc] sm:$0xf]
    %v4840 = vld [vmem:[%s4835 + $0x10] sm:$0xf]
    %v4841 = vld [vmem:[%s4835 + $0x14] sm:$0xf]
    %v4842 = vld [vmem:[%s4835 + $0x18] sm:$0xf]
    %v4843 = vld [vmem:[%s4835 + $0x1c] sm:$0xf]
    %v4844 = vld [vmem:[%s4835 + $0x20] sm:$0xf]
    %v4845 = vld [vmem:[%s4835 + $0x24] sm:$0xf]
    %v4846 = vld [vmem:[%s4835 + $0x28] sm:$0xf]
    %v4847 = vld [vmem:[%s4835 + $0x2c] sm:$0xf]
    %v4848 = vld [vmem:[%s4835 + $0x30] sm:$0xf]
    %v4849 = vld [vmem:[%s4835 + $0x34] sm:$0xf]
    %v4850 = vld [vmem:[%s4835 + $0x38] sm:$0xf]
    %v4851 = vld [vmem:[%s4835 + $0x3c] sm:$0xf]
    %v4868 = vunpack.c.l.b16 %v4836
    %v4869 = vunpack.c.l.b16 %v4837
    %v4870 = vunpack.c.l.b16 %v4838
    %v4871 = vunpack.c.l.b16 %v4839
    %v4872 = vunpack.c.l.b16 %v4840
    %v4873 = vunpack.c.l.b16 %v4841
    %v4874 = vunpack.c.l.b16 %v4842
    %v4875 = vunpack.c.l.b16 %v4843
    %v4876 = vunpack.c.l.b16 %v4844
    %v4877 = vunpack.c.l.b16 %v4845
    %v4878 = vunpack.c.l.b16 %v4846
    %v4879 = vunpack.c.l.b16 %v4847
    %v4880 = vunpack.c.l.b16 %v4848
    %v4881 = vunpack.c.l.b16 %v4849
    %v4882 = vunpack.c.l.b16 %v4850
    %v4883 = vunpack.c.l.b16 %v4851
    %v4884 = vpack.c.b16 %v4869, %v4868
    %v4885 = vpack.c.b16 %v4871, %v4870
    %v4886 = vpack.c.b16 %v4873, %v4872
    %v4887 = vpack.c.b16 %v4875, %v4874
    %v4888 = vpack.c.b16 %v4877, %v4876
    %v4889 = vpack.c.b16 %v4879, %v4878
    %v4890 = vpack.c.b16 %v4881, %v4880
    %v4891 = vpack.c.b16 %v4883, %v4882
    %4900 = vmatpush.bf16.msra.mxu0 %v4891
    %4901 = vmatpush.bf16.msra.mxu0 %v4890
    %4902 = vmatpush.bf16.msra.mxu0 %v4889
    %4903 = vmatpush.bf16.msra.mxu0 %v4888
    %4904 = vmatpush.bf16.msra.mxu0 %v4887
    %4905 = vmatpush.bf16.msra.mxu0 %v4886
    %4906 = vmatpush.bf16.msra.mxu0 %v4885
    %4907 = vmatpush.bf16.msra.mxu0 %v4884
    %4908 = vmatmul.bf16.gmra.mxu0 %v4834
    %v4909 = vpop.f32.mrf.mxu0
    %v4910 = vadd.f32 0.0, %v4909
    %v4911 = vpop.f32.mrf.mxu0
    %4912 = vdwg.mxu0
    %v4929 = vunpack.c.l.b16 %v4818
    %v4930 = vunpack.c.l.b16 %v4819
    %v4931 = vunpack.c.l.b16 %v4820
    %v4932 = vunpack.c.l.b16 %v4821
    %v4933 = vunpack.c.l.b16 %v4822
    %v4934 = vunpack.c.l.b16 %v4823
    %v4935 = vunpack.c.l.b16 %v4824
    %v4936 = vunpack.c.l.b16 %v4825
    %v4937 = vunpack.c.l.b16 %v4826
    %v4938 = vunpack.c.l.b16 %v4827
    %v4939 = vunpack.c.l.b16 %v4828
    %v4940 = vunpack.c.l.b16 %v4829
    %v4941 = vunpack.c.l.b16 %v4830
    %v4942 = vunpack.c.l.b16 %v4831
    %v4943 = vunpack.c.l.b16 %v4832
    %v4944 = vunpack.c.l.b16 %v4833
    %v4945 = vpack.c.b16 %v4930, %v4929
    %v4946 = vpack.c.b16 %v4932, %v4931
    %v4947 = vpack.c.b16 %v4934, %v4933
    %v4948 = vpack.c.b16 %v4936, %v4935
    %v4949 = vpack.c.b16 %v4938, %v4937
    %v4950 = vpack.c.b16 %v4940, %v4939
    %v4951 = vpack.c.b16 %v4942, %v4941
    %v4952 = vpack.c.b16 %v4944, %v4943
    %4961 = vmatpush.bf16.msra.mxu0 %v4952
    %4962 = vmatpush.bf16.msra.mxu0 %v4951
    %4963 = vmatpush.bf16.msra.mxu0 %v4950
    %4964 = vmatpush.bf16.msra.mxu0 %v4949
    %4965 = vmatpush.bf16.msra.mxu0 %v4948
    %4966 = vmatpush.bf16.msra.mxu0 %v4947
    %4967 = vmatpush.bf16.msra.mxu0 %v4946
    %4968 = vmatpush.bf16.msra.mxu0 %v4945
    %4969 = vmatmul.bf16.gmra.mxu0 %v4817
    %v4970 = vpop.f32.mrf.mxu0
    %v4971 = vadd.f32 %v4910, %v4970
    %v4972 = vpop.f32.mrf.mxu0
    %4973 = vdwg.mxu0
    %v4974 = vpack.c.bf16 %v4653, %v4653
    %s4975 = scalar_lea.vmem [#allocation8], 128
    %v4976 = vld [vmem:[%s4975] sm:$0xf]
    %v4977 = vld [vmem:[%s4975 + $0x4] sm:$0xf]
    %v4978 = vld [vmem:[%s4975 + $0x8] sm:$0xf]
    %v4979 = vld [vmem:[%s4975 + $0xc] sm:$0xf]
    %v4980 = vld [vmem:[%s4975 + $0x10] sm:$0xf]
    %v4981 = vld [vmem:[%s4975 + $0x14] sm:$0xf]
    %v4982 = vld [vmem:[%s4975 + $0x18] sm:$0xf]
    %v4983 = vld [vmem:[%s4975 + $0x1c] sm:$0xf]
    %v4984 = vld [vmem:[%s4975 + $0x20] sm:$0xf]
    %v4985 = vld [vmem:[%s4975 + $0x24] sm:$0xf]
    %v4986 = vld [vmem:[%s4975 + $0x28] sm:$0xf]
    %v4987 = vld [vmem:[%s4975 + $0x2c] sm:$0xf]
    %v4988 = vld [vmem:[%s4975 + $0x30] sm:$0xf]
    %v4989 = vld [vmem:[%s4975 + $0x34] sm:$0xf]
    %v4990 = vld [vmem:[%s4975 + $0x38] sm:$0xf]
    %v4991 = vld [vmem:[%s4975 + $0x3c] sm:$0xf]
    %v5008 = vunpack.c.l.b16 %v4976
    %v5009 = vunpack.c.l.b16 %v4977
    %v5010 = vunpack.c.l.b16 %v4978
    %v5011 = vunpack.c.l.b16 %v4979
    %v5012 = vunpack.c.l.b16 %v4980
    %v5013 = vunpack.c.l.b16 %v4981
    %v5014 = vunpack.c.l.b16 %v4982
    %v5015 = vunpack.c.l.b16 %v4983
    %v5016 = vunpack.c.l.b16 %v4984
    %v5017 = vunpack.c.l.b16 %v4985
    %v5018 = vunpack.c.l.b16 %v4986
    %v5019 = vunpack.c.l.b16 %v4987
    %v5020 = vunpack.c.l.b16 %v4988
    %v5021 = vunpack.c.l.b16 %v4989
    %v5022 = vunpack.c.l.b16 %v4990
    %v5023 = vunpack.c.l.b16 %v4991
    %v5024 = vpack.c.b16 %v5009, %v5008
    %v5025 = vpack.c.b16 %v5011, %v5010
    %v5026 = vpack.c.b16 %v5013, %v5012
    %v5027 = vpack.c.b16 %v5015, %v5014
    %v5028 = vpack.c.b16 %v5017, %v5016
    %v5029 = vpack.c.b16 %v5019, %v5018
    %v5030 = vpack.c.b16 %v5021, %v5020
    %v5031 = vpack.c.b16 %v5023, %v5022
    %5040 = vmatpush.bf16.msra.mxu0 %v5031
    %5041 = vmatpush.bf16.msra.mxu0 %v5030
    %5042 = vmatpush.bf16.msra.mxu0 %v5029
    %5043 = vmatpush.bf16.msra.mxu0 %v5028
    %5044 = vmatpush.bf16.msra.mxu0 %v5027
    %5045 = vmatpush.bf16.msra.mxu0 %v5026
    %5046 = vmatpush.bf16.msra.mxu0 %v5025
    %5047 = vmatpush.bf16.msra.mxu0 %v5024
    %5048 = vmatmul.bf16.gmra.mxu0 %v4974
    %v5049 = vpop.f32.mrf.mxu0
    %v5050 = vadd.f32 0.0, %v5049
    %v5051 = vpop.f32.mrf.mxu0
    %5052 = vdwg.mxu0
    %v5053 = vadd.f32 %v4971, %v5050
    %v5054 = vpack.c.bf16 %v4812, %v4812
    %s5055 = scalar_lea.vmem [#allocation8], 192
    %v5056 = vld [vmem:[%s5055] sm:$0xf]
    %v5057 = vld [vmem:[%s5055 + $0x4] sm:$0xf]
    %v5058 = vld [vmem:[%s5055 + $0x8] sm:$0xf]
    %v5059 = vld [vmem:[%s5055 + $0xc] sm:$0xf]
    %v5060 = vld [vmem:[%s5055 + $0x10] sm:$0xf]
    %v5061 = vld [vmem:[%s5055 + $0x14] sm:$0xf]
    %v5062 = vld [vmem:[%s5055 + $0x18] sm:$0xf]
    %v5063 = vld [vmem:[%s5055 + $0x1c] sm:$0xf]
    %v5064 = vld [vmem:[%s5055 + $0x20] sm:$0xf]
    %v5065 = vld [vmem:[%s5055 + $0x24] sm:$0xf]
    %v5066 = vld [vmem:[%s5055 + $0x28] sm:$0xf]
    %v5067 = vld [vmem:[%s5055 + $0x2c] sm:$0xf]
    %v5068 = vld [vmem:[%s5055 + $0x30] sm:$0xf]
    %v5069 = vld [vmem:[%s5055 + $0x34] sm:$0xf]
    %v5070 = vld [vmem:[%s5055 + $0x38] sm:$0xf]
    %v5071 = vld [vmem:[%s5055 + $0x3c] sm:$0xf]
    %v5088 = vunpack.c.l.b16 %v5056
    %v5089 = vunpack.c.l.b16 %v5057
    %v5090 = vunpack.c.l.b16 %v5058
    %v5091 = vunpack.c.l.b16 %v5059
    %v5092 = vunpack.c.l.b16 %v5060
    %v5093 = vunpack.c.l.b16 %v5061
    %v5094 = vunpack.c.l.b16 %v5062
    %v5095 = vunpack.c.l.b16 %v5063
    %v5096 = vunpack.c.l.b16 %v5064
    %v5097 = vunpack.c.l.b16 %v5065
    %v5098 = vunpack.c.l.b16 %v5066
    %v5099 = vunpack.c.l.b16 %v5067
    %v5100 = vunpack.c.l.b16 %v5068
    %v5101 = vunpack.c.l.b16 %v5069
    %v5102 = vunpack.c.l.b16 %v5070
    %v5103 = vunpack.c.l.b16 %v5071
    %v5104 = vpack.c.b16 %v5089, %v5088
    %v5105 = vpack.c.b16 %v5091, %v5090
    %v5106 = vpack.c.b16 %v5093, %v5092
    %v5107 = vpack.c.b16 %v5095, %v5094
    %v5108 = vpack.c.b16 %v5097, %v5096
    %v5109 = vpack.c.b16 %v5099, %v5098
    %v5110 = vpack.c.b16 %v5101, %v5100
    %v5111 = vpack.c.b16 %v5103, %v5102
    %5120 = vmatpush.bf16.msra.mxu0 %v5111
    %5121 = vmatpush.bf16.msra.mxu0 %v5110
    %5122 = vmatpush.bf16.msra.mxu0 %v5109
    %5123 = vmatpush.bf16.msra.mxu0 %v5108
    %5124 = vmatpush.bf16.msra.mxu0 %v5107
    %5125 = vmatpush.bf16.msra.mxu0 %v5106
    %5126 = vmatpush.bf16.msra.mxu0 %v5105
    %5127 = vmatpush.bf16.msra.mxu0 %v5104
    %5128 = vmatmul.bf16.gmra.mxu0 %v5054
    %v5129 = vpop.f32.mrf.mxu0
    %v5130 = vadd.f32 0.0, %v5129
    %v5131 = vpop.f32.mrf.mxu0
    %5132 = vdwg.mxu0
    %v5133 = vadd.f32 %v5053, %v5130
    %v5134 = vpack.c.bf16 %v4816, %v4816
    %s5135 = scalar_lea.vmem [#allocation8], 256
    %v5136 = vld [vmem:[%s5135] sm:$0xf]
    %v5137 = vld [vmem:[%s5135 + $0x4] sm:$0xf]
    %v5138 = vld [vmem:[%s5135 + $0x8] sm:$0xf]
    %v5139 = vld [vmem:[%s5135 + $0xc] sm:$0xf]
    %v5140 = vld [vmem:[%s5135 + $0x10] sm:$0xf]
    %v5141 = vld [vmem:[%s5135 + $0x14] sm:$0xf]
    %v5142 = vld [vmem:[%s5135 + $0x18] sm:$0xf]
    %v5143 = vld [vmem:[%s5135 + $0x1c] sm:$0xf]
    %v5144 = vld [vmem:[%s5135 + $0x20] sm:$0xf]
    %v5145 = vld [vmem:[%s5135 + $0x24] sm:$0xf]
    %v5146 = vld [vmem:[%s5135 + $0x28] sm:$0xf]
    %v5147 = vld [vmem:[%s5135 + $0x2c] sm:$0xf]
    %v5148 = vld [vmem:[%s5135 + $0x30] sm:$0xf]
    %v5149 = vld [vmem:[%s5135 + $0x34] sm:$0xf]
    %v5150 = vld [vmem:[%s5135 + $0x38] sm:$0xf]
    %v5151 = vld [vmem:[%s5135 + $0x3c] sm:$0xf]
    %v5168 = vunpack.c.l.b16 %v5136
    %v5169 = vunpack.c.l.b16 %v5137
    %v5170 = vunpack.c.l.b16 %v5138
    %v5171 = vunpack.c.l.b16 %v5139
    %v5172 = vunpack.c.l.b16 %v5140
    %v5173 = vunpack.c.l.b16 %v5141
    %v5174 = vunpack.c.l.b16 %v5142
    %v5175 = vunpack.c.l.b16 %v5143
    %v5176 = vunpack.c.l.b16 %v5144
    %v5177 = vunpack.c.l.b16 %v5145
    %v5178 = vunpack.c.l.b16 %v5146
    %v5179 = vunpack.c.l.b16 %v5147
    %v5180 = vunpack.c.l.b16 %v5148
    %v5181 = vunpack.c.l.b16 %v5149
    %v5182 = vunpack.c.l.b16 %v5150
    %v5183 = vunpack.c.l.b16 %v5151
    %v5184 = vpack.c.b16 %v5169, %v5168
    %v5185 = vpack.c.b16 %v5171, %v5170
    %v5186 = vpack.c.b16 %v5173, %v5172
    %v5187 = vpack.c.b16 %v5175, %v5174
    %v5188 = vpack.c.b16 %v5177, %v5176
    %v5189 = vpack.c.b16 %v5179, %v5178
    %v5190 = vpack.c.b16 %v5181, %v5180
    %v5191 = vpack.c.b16 %v5183, %v5182
    %5200 = vmatpush.bf16.msra.mxu0 %v5191
    %5201 = vmatpush.bf16.msra.mxu0 %v5190
    %5202 = vmatpush.bf16.msra.mxu0 %v5189
    %5203 = vmatpush.bf16.msra.mxu0 %v5188
    %5204 = vmatpush.bf16.msra.mxu0 %v5187
    %5205 = vmatpush.bf16.msra.mxu0 %v5186
    %5206 = vmatpush.bf16.msra.mxu0 %v5185
    %5207 = vmatpush.bf16.msra.mxu0 %v5184
    %5208 = vmatmul.bf16.gmra.mxu0 %v5134
    %v5209 = vpop.f32.mrf.mxu0
    %v5210 = vadd.f32 0.0, %v5209
    %v5211 = vpop.f32.mrf.mxu0
    %5212 = vdwg.mxu0
    %v5213 = vadd.f32 %v5133, %v5210
    %v5214 = vld [vmem:[#allocation10] sm:$0x1]
    %v5216 = vperm.slane %v5214, 0
    %v5218 = vadd.f32 %v5213, %v5216
    %5219 = vst [vmem:[#allocation11] sm:$0xff] %v5218
    // Predicated region
    $region42: #{tpu_custom_call.1} parent=1 // pred_check
      _
    $region43: #{tpu_custom_call.1} parent=1 // pred_check_branch
      %5221 = sbr.rel (0) target = $region45
    $region44: #{tpu_custom_call.1} parent=1 // pred_region
      %5223 = vsyncadd [#allocation4], 0
      %s5225 = sshll.u32 [#allocation11], 4
      %s5226 = int_to_ptr.vmem [resolvable:$true] %s5225
      %s5227 = sshll.u32 %s5, 4
      %s5228 = int_to_ptr.hbm [resolvable:$true] %s5227
      %5230 = dma.vmem_to_hbm [thread:$0]  %s5226, 128, %s5228, [#allocation4]
    $region45: #{tpu_custom_call.1} parent=1 // pred_fallthru
      _
    // Predicated region
    $region46: #{tpu_custom_call.1} parent=1 // pred_check
      _
    $region47: #{tpu_custom_call.1} parent=1 // pred_check_branch
      %5232 = sbr.rel (0) target = $region49
    $region48: #{tpu_custom_call.1} parent=1 // pred_region
      %5234 = dma.done [#allocation4], 128
    $region49: #{tpu_custom_call.1} parent=1 // pred_fallthru
      _
    %5235 = vsyncpa [#allocation3], 1
    %5236 = vsyncpa [#allocation6], 1
    %5237 = vsyncpa [#allocation9], 1
    %5238 = vsyncpa [#allocation4], 1

// kernel: tpu_custom_call.1
$region0: #{tpu_custom_call.1}
  #allocation0 [shape = 'u32[]', space=smem, size = 0x4, offset = 0x4, fixed_abs, tag = 'smem constant byte address 0x4 - core index']
  #allocation1 [shape = 'u32[72,128]{1,0:T(1,128)}', space=vmem, size = 0x9000, scoped, tag = 'internal scratch']
  %s0 = inlined_call_operand.hbm [shape: f32[8,1024], index: 0, kind: input, shape index: {}]
  %s1 = inlined_call_operand.hbm [shape: bf16[5,1024,128], index: 1, kind: input, shape index: {}]
  %s2 = inlined_call_operand.hbm [shape: f32[1,128], index: 2, kind: input, shape index: {}]
  %s3 = inlined_call_operand.hbm [shape: bf16[5,128,128], index: 3, kind: input, shape index: {}]
  %s4 = inlined_call_operand.hbm [shape: f32[1,128], index: 4, kind: input, shape index: {}]
  %s5 = inlined_call_operand.hbm [shape: f32[8,128], index: 5, kind: output, shape index: {}]
  %s6 = sld [smem:[#allocation0]]
  $region50: #{tpu_custom_call.1} parent=0
    _
  %s8 = ssub.s32 1, %s6
  %s9 = scalar_select 0, %s8, %s6
  $region1: #{tpu_custom_call.1} parent=0
    #allocation2 [shape = 'u8[32768]{0}', space=vmem, size = 0x8000, scoped, tag = 'input window, operand 0, single buffered']
    #allocation3 [shape = 's32[1]{0}', space=sflag, size = 0x4, scoped, tag = 'scoped memory for tpu_custom_call.1']
    #allocation4 [shape = 's32[1]{0}', space=sflag, size = 0x4, scoped, tag = 'scoped memory for tpu_custom_call.1']
    #allocation5 [shape = 'u8[1310720]{0}', space=vmem, size = 0x140000, scoped, tag = 'input window, operand 1, single buffered']
    #allocation6 [shape = 's32[1]{0}', space=sflag, size = 0x4, scoped, tag = 'scoped memory for tpu_custom_call.1']
    #allocation7 [shape = 'u8[512]{0}', space=vmem, size = 0x400, scoped, tag = 'input window, operand 2, single buffered']
    #allocation8 [shape = 'u8[163840]{0}', space=vmem, size = 0x28000, scoped, tag = 'input window, operand 3, single buffered']
    #allocation9 [shape = 's32[1]{0}', space=sflag, size = 0x4, scoped, tag = 'scoped memory for tpu_custom_call.1']
    #allocation10 [shape = 'u8[512]{0}', space=vmem, size = 0x400, scoped, tag = 'input window, operand 4, single buffered']
    #allocation11 [shape = 'u8[4096]{0}', space=vmem, size = 0x1000, scoped, tag = 'output window, operand 0, single buffered']
    %10 = vsyncpa [#allocation3], 0
    %11 = vsyncpa [#allocation6], 0
    %12 = vsyncpa [#allocation9], 0
    %13 = vsyncpa [#allocation4], 0
    // Predicated region
    $region2: #{tpu_custom_call.1} parent=1 // pred_check
      _
    $region3: #{tpu_custom_call.1} parent=1 // pred_check_branch
      %15 = sbr.rel (0) target = $region5
    $region4: #{tpu_custom_call.1} parent=1 // pred_region
      %17 = vsyncadd [#allocation3], 0
      %s19 = sshll.u32 %s0, 4
      %s20 = int_to_ptr.hbm [resolvable:$true] %s19
      %s21 = sshll.u32 [#allocation2], 4
      %s22 = int_to_ptr.vmem [resolvable:$true] %s21
      %24 = dma.hbm_to_vmem [thread:$0]  %s20, 1024, %s22, [#allocation3]
    $region5: #{tpu_custom_call.1} parent=1 // pred_fallthru
      _
    // Predicated region
    $region6: #{tpu_custom_call.1} parent=1 // pred_check
      _
    $region7: #{tpu_custom_call.1} parent=1 // pred_check_branch
      %26 = sbr.rel (0) target = $region9
    $region8: #{tpu_custom_call.1} parent=1 // pred_region
      %28 = vsyncadd [#allocation6], 0
      %s29 = sshll.u32 %s1, 4
      %s30 = int_to_ptr.hbm [resolvable:$true] %s29
      %s31 = sshll.u32 [#allocation5], 4
      %s32 = int_to_ptr.vmem [resolvable:$true] %s31
      %37 = dma.hbm_to_vmem [thread:$0]  %s30, 40960, %s32, [#allocation6], 64, 64, 4
    $region9: #{tpu_custom_call.1} parent=1 // pred_fallthru
      _
    // Predicated region
    $region10: #{tpu_custom_call.1} parent=1 // pred_check
      _
    $region11: #{tpu_custom_call.1} parent=1 // pred_check_branch
      %39 = sbr.rel (0) target = $region13
    $region12: #{tpu_custom_call.1} parent=1 // pred_region
      %41 = vsyncadd [#allocation6], 0
      %s43 = sshll.u32 %s2, 4
      %s44 = int_to_ptr.hbm [resolvable:$true] %s43
      %s45 = sshll.u32 [#allocation7], 4
      %s46 = int_to_ptr.vmem [resolvable:$true] %s45
      %48 = dma.hbm_to_vmem [thread:$0]  %s44, 16, %s46, [#allocation6]
    $region13: #{tpu_custom_call.1} parent=1 // pred_fallthru
      _
    // Predicated region
    $region14: #{tpu_custom_call.1} parent=1 // pred_check
      _
    $region15: #{tpu_custom_call.1} parent=1 // pred_check_branch
      %50 = sbr.rel (0) target = $region17
    $region16: #{tpu_custom_call.1} parent=1 // pred_region
      %52 = vsyncadd [#allocation9], 0
      %s53 = sshll.u32 %s3, 4
      %s54 = int_to_ptr.hbm [resolvable:$true] %s53
      %s55 = sshll.u32 [#allocation8], 4
      %s56 = int_to_ptr.vmem [resolvable:$true] %s55
      %61 = dma.hbm_to_vmem [thread:$0]  %s54, 5120, %s56, [#allocation9], 64, 64, 4
    $region17: #{tpu_custom_call.1} parent=1 // pred_fallthru
      _
    // Predicated region
    $region18: #{tpu_custom_call.1} parent=1 // pred_check
      _
    $region19: #{tpu_custom_call.1} parent=1 // pred_check_branch
      %63 = sbr.rel (0) target = $region21
    $region20: #{tpu_custom_call.1} parent=1 // pred_region
      %65 = vsyncadd [#allocation9], 0
      %s67 = sshll.u32 %s4, 4
      %s68 = int_to_ptr.hbm [resolvable:$true] %s67
      %s69 = sshll.u32 [#allocation10], 4
      %s70 = int_to_ptr.vmem [resolvable:$true] %s69
      %72 = dma.hbm_to_vmem [thread:$0]  %s68, 16, %s70, [#allocation9]
    $region21: #{tpu_custom_call.1} parent=1 // pred_fallthru
      _
    // Predicated region
    $region22: #{tpu_custom_call.1} parent=1 // pred_check
      _
    $region23: #{tpu_custom_call.1} parent=1 // pred_check_branch
      %74 = sbr.rel (0) target = $region25
    $region24: #{tpu_custom_call.1} parent=1 // pred_region
      %76 = dma.done [#allocation3], 1024
    $region25: #{tpu_custom_call.1} parent=1 // pred_fallthru
      _
    // Predicated region
    $region26: #{tpu_custom_call.1} parent=1 // pred_check
      _
    $region27: #{tpu_custom_call.1} parent=1 // pred_check_branch
      %78 = sbr.rel (0) target = $region29
    $region28: #{tpu_custom_call.1} parent=1 // pred_region
      %80 = dma.done [#allocation6], 40960
    $region29: #{tpu_custom_call.1} parent=1 // pred_fallthru
      _
    // Predicated region
    $region30: #{tpu_custom_call.1} parent=1 // pred_check
      _
    $region31: #{tpu_custom_call.1} parent=1 // pred_check_branch
      %82 = sbr.rel (0) target = $region33
    $region32: #{tpu_custom_call.1} parent=1 // pred_region
      %84 = dma.done [#allocation6], 16
    $region33: #{tpu_custom_call.1} parent=1 // pred_fallthru
      _
    // Predicated region
    $region34: #{tpu_custom_call.1} parent=1 // pred_check
      _
    $region35: #{tpu_custom_call.1} parent=1 // pred_check_branch
      %86 = sbr.rel (0) target = $region37
    $region36: #{tpu_custom_call.1} parent=1 // pred_region
      %88 = dma.done [#allocation9], 5120
    $region37: #{tpu_custom_call.1} parent=1 // pred_fallthru
      _
    // Predicated region
    $region38: #{tpu_custom_call.1} parent=1 // pred_check
      _
    $region39: #{tpu_custom_call.1} parent=1 // pred_check_branch
      %90 = sbr.rel (0) target = $region41
    $region40: #{tpu_custom_call.1} parent=1 // pred_region
      %92 = dma.done [#allocation9], 16
    $region41: #{tpu_custom_call.1} parent=1 // pred_fallthru
      _
    %v93 = vld [vmem:[#allocation2] sm:$0xff]
    %v94 = vld [vmem:[#allocation2 + $0x8] sm:$0xff]
    %v95 = vld [vmem:[#allocation2 + $0x10] sm:$0xff]
    %v96 = vld [vmem:[#allocation2 + $0x18] sm:$0xff]
    %v97 = vld [vmem:[#allocation2 + $0x20] sm:$0xff]
    %v98 = vld [vmem:[#allocation2 + $0x28] sm:$0xff]
    %v99 = vld [vmem:[#allocation2 + $0x30] sm:$0xff]
    %v100 = vld [vmem:[#allocation2 + $0x38] sm:$0xff]
    %vm101 = vcmp.ge.f32.partialorder %v93, 0.0
    %vm102 = vcmp.ge.f32.partialorder %v94, 0.0
    %vm103 = vcmp.ge.f32.partialorder %v95, 0.0
    %vm104 = vcmp.ge.f32.partialorder %v96, 0.0
    %vm105 = vcmp.ge.f32.partialorder %v97, 0.0
    %vm106 = vcmp.ge.f32.partialorder %v98, 0.0
    %vm107 = vcmp.ge.f32.partialorder %v99, 0.0
    %vm108 = vcmp.ge.f32.partialorder %v100, 0.0
    %v109 = vand.u32 2147483647, %v93
    %v110 = vand.u32 2147483647, %v94
    %v111 = vand.u32 2147483647, %v95
    %v112 = vand.u32 2147483647, %v96
    %v113 = vand.u32 2147483647, %v97
    %v114 = vand.u32 2147483647, %v98
    %v115 = vand.u32 2147483647, %v99
    %v116 = vand.u32 2147483647, %v100
    %v117 = vsub.f32 0.0, %v109
    %v118 = vsub.f32 0.0, %v110
    %v119 = vsub.f32 0.0, %v111
    %v120 = vsub.f32 0.0, %v112
    %v121 = vsub.f32 0.0, %v113
    %v122 = vsub.f32 0.0, %v114
    %v123 = vsub.f32 0.0, %v115
    %v124 = vsub.f32 0.0, %v116
    %v125 = vmul.f32 %v117, 1.442695
    %v126 = vpow.pop %v125
    %v127 = vmul.f32 %v118, 1.442695
    %v128 = vpow.pop %v127
    %v129 = vmul.f32 %v119, 1.442695
    %v130 = vpow.pop %v129
    %v131 = vmul.f32 %v120, 1.442695
    %v132 = vpow.pop %v131
    %v133 = vmul.f32 %v121, 1.442695
    %v134 = vpow.pop %v133
    %v135 = vmul.f32 %v122, 1.442695
    %v136 = vpow.pop %v135
    %v137 = vmul.f32 %v123, 1.442695
    %v138 = vpow.pop %v137
    %v139 = vmul.f32 %v124, 1.442695
    %v140 = vpow.pop %v139
    %v141 = vmul.f32 %v126, %v126
    %v142 = vmul.f32 %v128, %v128
    %v143 = vmul.f32 %v130, %v130
    %v144 = vmul.f32 %v132, %v132
    %v145 = vmul.f32 %v134, %v134
    %v146 = vmul.f32 %v136, %v136
    %v147 = vmul.f32 %v138, %v138
    %v148 = vmul.f32 %v140, %v140
    %v149 = vadd.f32 %v126, 1.0
    %v150 = vadd.f32 %v128, 1.0
    %v151 = vadd.f32 %v130, 1.0
    %v152 = vadd.f32 %v132, 1.0
    %v153 = vadd.f32 %v134, 1.0
    %v154 = vadd.f32 %v136, 1.0
    %v155 = vadd.f32 %v138, 1.0
    %v156 = vadd.f32 %v140, 1.0
    %v157 = vrcp.pop %v149
    %v158 = vrcp.pop %v150
    %v159 = vrcp.pop %v151
    %v160 = vrcp.pop %v152
    %v161 = vrcp.pop %v153
    %v162 = vrcp.pop %v154
    %v163 = vrcp.pop %v155
    %v164 = vrcp.pop %v156
    %v165 = vadd.f32 %v141, 1.0
    %v166 = vadd.f32 %v142, 1.0
    %v167 = vadd.f32 %v143, 1.0
    %v168 = vadd.f32 %v144, 1.0
    %v169 = vadd.f32 %v145, 1.0
    %v170 = vadd.f32 %v146, 1.0
    %v171 = vadd.f32 %v147, 1.0
    %v172 = vadd.f32 %v148, 1.0
    %v173 = vrcp.pop %v165
    %v174 = vrcp.pop %v166
    %v175 = vrcp.pop %v167
    %v176 = vrcp.pop %v168
    %v177 = vrcp.pop %v169
    %v178 = vrcp.pop %v170
    %v179 = vrcp.pop %v171
    %v180 = vrcp.pop %v172
    %v181 = vmax.f32 %v93, 0.0
    %v182 = vmax.f32 %v94, 0.0
    %v183 = vmax.f32 %v95, 0.0
    %v184 = vmax.f32 %v96, 0.0
    %v185 = vmax.f32 %v97, 0.0
    %v186 = vmax.f32 %v98, 0.0
    %v187 = vmax.f32 %v99, 0.0
    %v188 = vmax.f32 %v100, 0.0
    %v189 = vsel %vm101, 1.0, %v126
    %v190 = vsel %vm102, 1.0, %v128
    %v191 = vsel %vm103, 1.0, %v130
    %v192 = vsel %vm104, 1.0, %v132
    %v193 = vsel %vm105, 1.0, %v134
    %v194 = vsel %vm106, 1.0, %v136
    %v195 = vsel %vm107, 1.0, %v138
    %v196 = vsel %vm108, 1.0, %v140
    %v197 = vmul.f32 %v189, %v157
    %v198 = vmul.f32 %v190, %v158
    %v199 = vmul.f32 %v191, %v159
    %v200 = vmul.f32 %v192, %v160
    %v201 = vmul.f32 %v193, %v161
    %v202 = vmul.f32 %v194, %v162
    %v203 = vmul.f32 %v195, %v163
    %v204 = vmul.f32 %v196, %v164
    %v205 = vsel %vm101, 1.0, -1.0
    %v206 = vsel %vm102, 1.0, -1.0
    %v207 = vsel %vm103, 1.0, -1.0
    %v208 = vsel %vm104, 1.0, -1.0
    %v209 = vsel %vm105, 1.0, -1.0
    %v210 = vsel %vm106, 1.0, -1.0
    %v211 = vsel %vm107, 1.0, -1.0
    %v212 = vsel %vm108, 1.0, -1.0
    %v213 = vsub.f32 1.0, %v141
    %v214 = vsub.f32 1.0, %v142
    %v215 = vsub.f32 1.0, %v143
    %v216 = vsub.f32 1.0, %v144
    %v217 = vsub.f32 1.0, %v145
    %v218 = vsub.f32 1.0, %v146
    %v219 = vsub.f32 1.0, %v147
    %v220 = vsub.f32 1.0, %v148
    %v221 = vmul.f32 %v205, %v213
    %v222 = vmul.f32 %v206, %v214
    %v223 = vmul.f32 %v207, %v215
    %v224 = vmul.f32 %v208, %v216
    %v225 = vmul.f32 %v209, %v217
    %v226 = vmul.f32 %v210, %v218
    %v227 = vmul.f32 %v211, %v219
    %v228 = vmul.f32 %v212, %v220
    %v229 = vmul.f32 %v221, %v173
    %v230 = vmul.f32 %v222, %v174
    %v231 = vmul.f32 %v223, %v175
    %v232 = vmul.f32 %v224, %v176
    %v233 = vmul.f32 %v225, %v177
    %v234 = vmul.f32 %v226, %v178
    %v235 = vmul.f32 %v227, %v179
    %v236 = vmul.f32 %v228, %v180
    %v237 = vand.u32 2147483647, %v93
    %vm238 = vcmp.le.f32.partialorder %v237, 0.7853982
    %vm239 = vcmp.lt.s32.totalorder %v93, 0
    %v240 = vand.u32 %v93, 2139095040
    %v241 = vshrl.u32 %v240, 23
    %v242 = vsub.s32 %v241, 127
    %v243 = vand.u32 2147483647, %v93
    %v244 = vand.u32 %v243, 8388607
    %v245 = vor.u32 %v244, 8388608
    %v246 = vsub.s32 0, %v245
    %v247 = vadd.s32 %v242, 1
    %vm248 = vcmp.gt.s32.totalorder %v247, 0
    %v249 = vsel %vm248, %v247, 0
    %v250 = vshrl.u32 %v249, 5
    %v251 = vand.u32 %v249, 31
    %v252 = vsub.s32 32, %v251
    %v253 = vshrl.u32 683565275, %v252
    %v254 = vshll.u32 683565275, %v251
    %v255 = vshrl.u32 2475754826, %v252
    %v256 = vor.u32 %v254, %v255
    %v257 = vshll.u32 2475754826, %v251
    %v258 = vshrl.u32 2131351028, %v252
    %v259 = vor.u32 %v257, %v258
    %v260 = vshll.u32 2131351028, %v251
    %v261 = vshrl.u32 2102212464, %v252
    %v262 = vor.u32 %v260, %v261
    %v263 = vshll.u32 2102212464, %v251
    %v264 = vshrl.u32 920167782, %v252
    %v265 = vor.u32 %v263, %v264
    %v266 = vshll.u32 920167782, %v251
    %v267 = vshrl.u32 1326507024, %v252
    %v268 = vor.u32 %v266, %v267
    %vm269 = vcmp.lt.s32.totalorder %v250, 1
    %vm270 = vcmp.lt.s32.totalorder %v250, 2
    %vm271 = vcmp.lt.s32.totalorder %v250, 3
    %vm272 = vcmp.lt.s32.totalorder %v250, 4
    %v273 = vsel %vm269, %v253, %v256
    %v274 = vsel %vm272, %v262, 2102212464
    %v275 = vsel %vm271, %v259, %v274
    %v276 = vsel %vm270, %v273, %v275
    %v277 = vsel %vm269, %v256, %v259
    %v278 = vsel %vm272, %v265, 920167782
    %v279 = vsel %vm271, %v262, %v278
    %v280 = vsel %vm270, %v277, %v279
    %v281 = vsel %vm269, %v259, %v262
    %v282 = vsel %vm272, %v268, 1326507024
    %v283 = vsel %vm271, %v265, %v282
    %v284 = vsel %vm270, %v281, %v283
    %v285 = vshll.u32 %v245, 8
    %v286 = vand.u32 %v285, 65535
    %v287 = vshrl.u32 %v285, 16
    %v288 = vand.u32 %v284, 65535
    %v289 = vshrl.u32 %v284, 16
    %v290 = vmul.u32 %v286, %v288
    %v291 = vmul.u32 %v286, %v289
    %v292 = vmul.u32 %v287, %v288
    %v293 = vmul.u32 %v287, %v289
    %v294 = vshll.u32 %v291, 16
    %v295 = vshrl.u32 %v291, 16
    %v296 = vshll.u32 %v292, 16
    %v297 = vshrl.u32 %v292, 16
    %vm298 = vc.u32 %v290, %v294
    %v299 = vsel %vm298, 1, 0
    %v300 = vadd.s32 %v290, %v294
    %v301 = vadd.s32 %v293, %v299
    %vm302 = vc.u32 %v300, %v296
    %v303 = vsel %vm302, 1, 0
    %v304 = vadd.s32 %v300, %v296
    %v305 = vadd.s32 %v301, %v303
    %v306 = vadd.s32 %v305, %v295
    %v307 = vadd.s32 %v306, %v297
    %v308 = vand.u32 %v285, 65535
    %v309 = vshrl.u32 %v285, 16
    %v310 = vand.u32 %v280, 65535
    %v311 = vshrl.u32 %v280, 16
    %v312 = vmul.u32 %v308, %v310
    %v313 = vmul.u32 %v308, %v311
    %v314 = vmul.u32 %v309, %v310
    %v315 = vmul.u32 %v309, %v311
    %v316 = vshll.u32 %v313, 16
    %v317 = vshrl.u32 %v313, 16
    %v318 = vshll.u32 %v314, 16
    %v319 = vshrl.u32 %v314, 16
    %vm320 = vc.u32 %v312, %v316
    %v321 = vsel %vm320, 1, 0
    %v322 = vadd.s32 %v312, %v316
    %v323 = vadd.s32 %v315, %v321
    %vm324 = vc.u32 %v322, %v318
    %v325 = vsel %vm324, 1, 0
    %v326 = vadd.s32 %v322, %v318
    %v327 = vadd.s32 %v323, %v325
    %v328 = vadd.s32 %v327, %v317
    %v329 = vadd.s32 %v328, %v319
    %v330 = vmul.u32 %v285, %v276
    %v331 = vadd.s32 %v307, %v326
    %vm332 = vc.u32 %v307, %v326
    %v333 = vadd.s32 %v329, 1
    %v334 = vsel %vm332, %v333, %v329
    %v335 = vadd.s32 %v330, %v334
    %v336 = vadd.s32 %v335, 536870912
    %v337 = vshrl.u32 %v336, 30
    %v338 = vshll.u32 %v337, 30
    %v339 = vsub.s32 %v335, %v338
    %vm340 = vcmp.lt.s32.totalorder %v339, 0
    %v341 = vsub.s32 0, %v339
    %v342 = vsel %vm340, %v341, %v339
    %v343 = vclz %v342
    %v344 = vsub.s32 %v343, 2
    %vm345 = vcmp.gt.s32.totalorder 0, %v344
    %v346 = vsel %vm345, 0, %v344
    %v347 = vsub.s32 32, %v346
    %v348 = vshll.u32 %v339, %v346
    %v349 = vshrl.u32 %v331, %v347
    %v350 = vor.u32 %v348, %v349
    %v351 = vsub.s32 4294967266, %v346
    %v352 = vadd.s32 %v351, 127
    %v353 = vshll.u32 %v352, 23
    %v354 = vor.u32 4788187, %v353
    %v355 = vand.u32 2147483647, %v354
    %v357 = vcvt.s32.f32 %v350
    %v358 = vmul.f32 %v357, %v355
    %v359 = vxor.u32 %v358, 2147483648
    %v360 = vsel %vm239, %v359, %v358
    %v361 = vsub.s32 4, %v337
    %v362 = vsel %vm239, %v361, %v337
    %v363 = vsel %vm238, %v93, %v360
    %v364 = vsel %vm238, 0, %v362
    %v365 = vmul.f32 %v363, %v363
    %v366 = vmul.f32 %v365, -0.001358992
    %v367 = vadd.f32 %v366, 0.041655596
    %v368 = vmul.f32 %v365, %v367
    %v369 = vadd.f32 %v368, -0.4999988
    %v370 = vmul.f32 %v365, %v369
    %v371 = vadd.f32 1.0, %v370
    %v372 = vmul.f32 %v363, %v363
    %v373 = vmul.f32 %v372, -0.00019511016
    %v374 = vadd.f32 %v373, 0.008332121
    %v375 = vmul.f32 %v372, %v374
    %v376 = vadd.f32 %v375, -0.16666654
    %v377 = vmul.f32 %v372, %v376
    %v378 = vadd.f32 %v377, 1.0
    %v379 = vmul.f32 %v378, %v363
    %vm380 = vweird.f32 %v93
    %v381 = vadd.s32 %v364, 3
    %v382 = vand.u32 %v381, 3
    %vm383 = vcmp.lt.s32.totalorder %v382, 2
    %vm384 = vcmp.eq.s32.totalorder %v382, 0
    %v385 = vxor.u32 %v379, 2147483648
    %v386 = vsel %vm384, %v371, %v385
    %vm387 = vcmp.eq.s32.totalorder %v382, 2
    %v388 = vxor.u32 %v371, 2147483648
    %v389 = vsel %vm387, %v388, %v379
    %v390 = vsel %vm383, %v386, %v389
    %v391 = vsel %vm380, nan, %v390
    %v392 = vand.u32 2147483647, %v94
    %vm393 = vcmp.le.f32.partialorder %v392, 0.7853982
    %vm394 = vcmp.lt.s32.totalorder %v94, 0
    %v395 = vand.u32 %v94, 2139095040
    %v396 = vshrl.u32 %v395, 23
    %v397 = vsub.s32 %v396, 127
    %v398 = vand.u32 2147483647, %v94
    %v399 = vand.u32 %v398, 8388607
    %v400 = vor.u32 %v399, 8388608
    %v401 = vsub.s32 0, %v400
    %v402 = vadd.s32 %v397, 1
    %vm403 = vcmp.gt.s32.totalorder %v402, 0
    %v404 = vsel %vm403, %v402, 0
    %v405 = vshrl.u32 %v404, 5
    %v406 = vand.u32 %v404, 31
    %v407 = vsub.s32 32, %v406
    %v408 = vshrl.u32 683565275, %v407
    %v409 = vshll.u32 683565275, %v406
    %v410 = vshrl.u32 2475754826, %v407
    %v411 = vor.u32 %v409, %v410
    %v412 = vshll.u32 2475754826, %v406
    %v413 = vshrl.u32 2131351028, %v407
    %v414 = vor.u32 %v412, %v413
    %v415 = vshll.u32 2131351028, %v406
    %v416 = vshrl.u32 2102212464, %v407
    %v417 = vor.u32 %v415, %v416
    %v418 = vshll.u32 2102212464, %v406
    %v419 = vshrl.u32 920167782, %v407
    %v420 = vor.u32 %v418, %v419
    %v421 = vshll.u32 920167782, %v406
    %v422 = vshrl.u32 1326507024, %v407
    %v423 = vor.u32 %v421, %v422
    %vm424 = vcmp.lt.s32.totalorder %v405, 1
    %vm425 = vcmp.lt.s32.totalorder %v405, 2
    %vm426 = vcmp.lt.s32.totalorder %v405, 3
    %vm427 = vcmp.lt.s32.totalorder %v405, 4
    %v428 = vsel %vm424, %v408, %v411
    %v429 = vsel %vm427, %v417, 2102212464
    %v430 = vsel %vm426, %v414, %v429
    %v431 = vsel %vm425, %v428, %v430
    %v432 = vsel %vm424, %v411, %v414
    %v433 = vsel %vm427, %v420, 920167782
    %v434 = vsel %vm426, %v417, %v433
    %v435 = vsel %vm425, %v432, %v434
    %v436 = vsel %vm424, %v414, %v417
    %v437 = vsel %vm427, %v423, 1326507024
    %v438 = vsel %vm426, %v420, %v437
    %v439 = vsel %vm425, %v436, %v438
    %v440 = vshll.u32 %v400, 8
    %v441 = vand.u32 %v440, 65535
    %v442 = vshrl.u32 %v440, 16
    %v443 = vand.u32 %v439, 65535
    %v444 = vshrl.u32 %v439, 16
    %v445 = vmul.u32 %v441, %v443
    %v446 = vmul.u32 %v441, %v444
    %v447 = vmul.u32 %v442, %v443
    %v448 = vmul.u32 %v442, %v444
    %v449 = vshll.u32 %v446, 16
    %v450 = vshrl.u32 %v446, 16
    %v451 = vshll.u32 %v447, 16
    %v452 = vshrl.u32 %v447, 16
    %vm453 = vc.u32 %v445, %v449
    %v454 = vsel %vm453, 1, 0
    %v455 = vadd.s32 %v445, %v449
    %v456 = vadd.s32 %v448, %v454
    %vm457 = vc.u32 %v455, %v451
    %v458 = vsel %vm457, 1, 0
    %v459 = vadd.s32 %v455, %v451
    %v460 = vadd.s32 %v456, %v458
    %v461 = vadd.s32 %v460, %v450
    %v462 = vadd.s32 %v461, %v452
    %v463 = vand.u32 %v440, 65535
    %v464 = vshrl.u32 %v440, 16
    %v465 = vand.u32 %v435, 65535
    %v466 = vshrl.u32 %v435, 16
    %v467 = vmul.u32 %v463, %v465
    %v468 = vmul.u32 %v463, %v466
    %v469 = vmul.u32 %v464, %v465
    %v470 = vmul.u32 %v464, %v466
    %v471 = vshll.u32 %v468, 16
    %v472 = vshrl.u32 %v468, 16
    %v473 = vshll.u32 %v469, 16
    %v474 = vshrl.u32 %v469, 16
    %vm475 = vc.u32 %v467, %v471
    %v476 = vsel %vm475, 1, 0
    %v477 = vadd.s32 %v467, %v471
    %v478 = vadd.s32 %v470, %v476
    %vm479 = vc.u32 %v477, %v473
    %v480 = vsel %vm479, 1, 0
    %v481 = vadd.s32 %v477, %v473
    %v482 = vadd.s32 %v478, %v480
    %v483 = vadd.s32 %v482, %v472
    %v484 = vadd.s32 %v483, %v474
    %v485 = vmul.u32 %v440, %v431
    %v486 = vadd.s32 %v462, %v481
    %vm487 = vc.u32 %v462, %v481
    %v488 = vadd.s32 %v484, 1
    %v489 = vsel %vm487, %v488, %v484
    %v490 = vadd.s32 %v485, %v489
    %v491 = vadd.s32 %v490, 536870912
    %v492 = vshrl.u32 %v491, 30
    %v493 = vshll.u32 %v492, 30
    %v494 = vsub.s32 %v490, %v493
    %vm495 = vcmp.lt.s32.totalorder %v494, 0
    %v496 = vsub.s32 0, %v494
    %v497 = vsel %vm495, %v496, %v494
    %v498 = vclz %v497
    %v499 = vsub.s32 %v498, 2
    %vm500 = vcmp.gt.s32.totalorder 0, %v499
    %v501 = vsel %vm500, 0, %v499
    %v502 = vsub.s32 32, %v501
    %v503 = vshll.u32 %v494, %v501
    %v504 = vshrl.u32 %v486, %v502
    %v505 = vor.u32 %v503, %v504
    %v506 = vsub.s32 4294967266, %v501
    %v507 = vadd.s32 %v506, 127
    %v508 = vshll.u32 %v507, 23
    %v509 = vor.u32 4788187, %v508
    %v510 = vand.u32 2147483647, %v509
    %v512 = vcvt.s32.f32 %v505
    %v513 = vmul.f32 %v512, %v510
    %v514 = vxor.u32 %v513, 2147483648
    %v515 = vsel %vm394, %v514, %v513
    %v516 = vsub.s32 4, %v492
    %v517 = vsel %vm394, %v516, %v492
    %v518 = vsel %vm393, %v94, %v515
    %v519 = vsel %vm393, 0, %v517
    %v520 = vmul.f32 %v518, %v518
    %v521 = vmul.f32 %v520, -0.001358992
    %v522 = vadd.f32 %v521, 0.041655596
    %v523 = vmul.f32 %v520, %v522
    %v524 = vadd.f32 %v523, -0.4999988
    %v525 = vmul.f32 %v520, %v524
    %v526 = vadd.f32 1.0, %v525
    %v527 = vmul.f32 %v518, %v518
    %v528 = vmul.f32 %v527, -0.00019511016
    %v529 = vadd.f32 %v528, 0.008332121
    %v530 = vmul.f32 %v527, %v529
    %v531 = vadd.f32 %v530, -0.16666654
    %v532 = vmul.f32 %v527, %v531
    %v533 = vadd.f32 %v532, 1.0
    %v534 = vmul.f32 %v533, %v518
    %vm535 = vweird.f32 %v94
    %v536 = vadd.s32 %v519, 3
    %v537 = vand.u32 %v536, 3
    %vm538 = vcmp.lt.s32.totalorder %v537, 2
    %vm539 = vcmp.eq.s32.totalorder %v537, 0
    %v540 = vxor.u32 %v534, 2147483648
    %v541 = vsel %vm539, %v526, %v540
    %vm542 = vcmp.eq.s32.totalorder %v537, 2
    %v543 = vxor.u32 %v526, 2147483648
    %v544 = vsel %vm542, %v543, %v534
    %v545 = vsel %vm538, %v541, %v544
    %v546 = vsel %vm535, nan, %v545
    %v547 = vand.u32 2147483647, %v95
    %vm548 = vcmp.le.f32.partialorder %v547, 0.7853982
    %vm549 = vcmp.lt.s32.totalorder %v95, 0
    %v550 = vand.u32 %v95, 2139095040
    %v551 = vshrl.u32 %v550, 23
    %v552 = vsub.s32 %v551, 127
    %v553 = vand.u32 2147483647, %v95
    %v554 = vand.u32 %v553, 8388607
    %v555 = vor.u32 %v554, 8388608
    %v556 = vsub.s32 0, %v555
    %v557 = vadd.s32 %v552, 1
    %vm558 = vcmp.gt.s32.totalorder %v557, 0
    %v559 = vsel %vm558, %v557, 0
    %v560 = vshrl.u32 %v559, 5
    %v561 = vand.u32 %v559, 31
    %v562 = vsub.s32 32, %v561
    %v563 = vshrl.u32 683565275, %v562
    %v564 = vshll.u32 683565275, %v561
    %v565 = vshrl.u32 2475754826, %v562
    %v566 = vor.u32 %v564, %v565
    %v567 = vshll.u32 2475754826, %v561
    %v568 = vshrl.u32 2131351028, %v562
    %v569 = vor.u32 %v567, %v568
    %v570 = vshll.u32 2131351028, %v561
    %v571 = vshrl.u32 2102212464, %v562
    %v572 = vor.u32 %v570, %v571
    %v573 = vshll.u32 2102212464, %v561
    %v574 = vshrl.u32 920167782, %v562
    %v575 = vor.u32 %v573, %v574
    %v576 = vshll.u32 920167782, %v561
    %v577 = vshrl.u32 1326507024, %v562
    %v578 = vor.u32 %v576, %v577
    %vm579 = vcmp.lt.s32.totalorder %v560, 1
    %vm580 = vcmp.lt.s32.totalorder %v560, 2
    %vm581 = vcmp.lt.s32.totalorder %v560, 3
    %vm582 = vcmp.lt.s32.totalorder %v560, 4
    %v583 = vsel %vm579, %v563, %v566
    %v584 = vsel %vm582, %v572, 2102212464
    %v585 = vsel %vm581, %v569, %v584
    %v586 = vsel %vm580, %v583, %v585
    %v587 = vsel %vm579, %v566, %v569
    %v588 = vsel %vm582, %v575, 920167782
    %v589 = vsel %vm581, %v572, %v588
    %v590 = vsel %vm580, %v587, %v589
    %v591 = vsel %vm579, %v569, %v572
    %v592 = vsel %vm582, %v578, 1326507024
    %v593 = vsel %vm581, %v575, %v592
    %v594 = vsel %vm580, %v591, %v593
    %v595 = vshll.u32 %v555, 8
    %v596 = vand.u32 %v595, 65535
    %v597 = vshrl.u32 %v595, 16
    %v598 = vand.u32 %v594, 65535
    %v599 = vshrl.u32 %v594, 16
    %v600 = vmul.u32 %v596, %v598
    %v601 = vmul.u32 %v596, %v599
    %v602 = vmul.u32 %v597, %v598
    %v603 = vmul.u32 %v597, %v599
    %v604 = vshll.u32 %v601, 16
    %v605 = vshrl.u32 %v601, 16
    %v606 = vshll.u32 %v602, 16
    %v607 = vshrl.u32 %v602, 16
    %vm608 = vc.u32 %v600, %v604
    %v609 = vsel %vm608, 1, 0
    %v610 = vadd.s32 %v600, %v604
    %v611 = vadd.s32 %v603, %v609
    %vm612 = vc.u32 %v610, %v606
    %v613 = vsel %vm612, 1, 0
    %v614 = vadd.s32 %v610, %v606
    %v615 = vadd.s32 %v611, %v613
    %v616 = vadd.s32 %v615, %v605
    %v617 = vadd.s32 %v616, %v607
    %v618 = vand.u32 %v595, 65535
    %v619 = vshrl.u32 %v595, 16
    %v620 = vand.u32 %v590, 65535
    %v621 = vshrl.u32 %v590, 16
    %v622 = vmul.u32 %v618, %v620
    %v623 = vmul.u32 %v618, %v621
    %v624 = vmul.u32 %v619, %v620
    %v625 = vmul.u32 %v619, %v621
    %v626 = vshll.u32 %v623, 16
    %v627 = vshrl.u32 %v623, 16
    %v628 = vshll.u32 %v624, 16
    %v629 = vshrl.u32 %v624, 16
    %vm630 = vc.u32 %v622, %v626
    %v631 = vsel %vm630, 1, 0
    %v632 = vadd.s32 %v622, %v626
    %v633 = vadd.s32 %v625, %v631
    %vm634 = vc.u32 %v632, %v628
    %v635 = vsel %vm634, 1, 0
    %v636 = vadd.s32 %v632, %v628
    %v637 = vadd.s32 %v633, %v635
    %v638 = vadd.s32 %v637, %v627
    %v639 = vadd.s32 %v638, %v629
    %v640 = vmul.u32 %v595, %v586
    %v641 = vadd.s32 %v617, %v636
    %vm642 = vc.u32 %v617, %v636
    %v643 = vadd.s32 %v639, 1
    %v644 = vsel %vm642, %v643, %v639
    %v645 = vadd.s32 %v640, %v644
    %v646 = vadd.s32 %v645, 536870912
    %v647 = vshrl.u32 %v646, 30
    %v648 = vshll.u32 %v647, 30
    %v649 = vsub.s32 %v645, %v648
    %vm650 = vcmp.lt.s32.totalorder %v649, 0
    %v651 = vsub.s32 0, %v649
    %v652 = vsel %vm650, %v651, %v649
    %v653 = vclz %v652
    %v654 = vsub.s32 %v653, 2
    %vm655 = vcmp.gt.s32.totalorder 0, %v654
    %v656 = vsel %vm655, 0, %v654
    %v657 = vsub.s32 32, %v656
    %v658 = vshll.u32 %v649, %v656
    %v659 = vshrl.u32 %v641, %v657
    %v660 = vor.u32 %v658, %v659
    %v661 = vsub.s32 4294967266, %v656
    %v662 = vadd.s32 %v661, 127
    %v663 = vshll.u32 %v662, 23
    %v664 = vor.u32 4788187, %v663
    %v665 = vand.u32 2147483647, %v664
    %v667 = vcvt.s32.f32 %v660
    %v668 = vmul.f32 %v667, %v665
    %v669 = vxor.u32 %v668, 2147483648
    %v670 = vsel %vm549, %v669, %v668
    %v671 = vsub.s32 4, %v647
    %v672 = vsel %vm549, %v671, %v647
    %v673 = vsel %vm548, %v95, %v670
    %v674 = vsel %vm548, 0, %v672
    %v675 = vmul.f32 %v673, %v673
    %v676 = vmul.f32 %v675, -0.001358992
    %v677 = vadd.f32 %v676, 0.041655596
    %v678 = vmul.f32 %v675, %v677
    %v679 = vadd.f32 %v678, -0.4999988
    %v680 = vmul.f32 %v675, %v679
    %v681 = vadd.f32 1.0, %v680
    %v682 = vmul.f32 %v673, %v673
    %v683 = vmul.f32 %v682, -0.00019511016
    %v684 = vadd.f32 %v683, 0.008332121
    %v685 = vmul.f32 %v682, %v684
    %v686 = vadd.f32 %v685, -0.16666654
    %v687 = vmul.f32 %v682, %v686
    %v688 = vadd.f32 %v687, 1.0
    %v689 = vmul.f32 %v688, %v673
    %vm690 = vweird.f32 %v95
    %v691 = vadd.s32 %v674, 3
    %v692 = vand.u32 %v691, 3
    %vm693 = vcmp.lt.s32.totalorder %v692, 2
    %vm694 = vcmp.eq.s32.totalorder %v692, 0
    %v695 = vxor.u32 %v689, 2147483648
    %v696 = vsel %vm694, %v681, %v695
    %vm697 = vcmp.eq.s32.totalorder %v692, 2
    %v698 = vxor.u32 %v681, 2147483648
    %v699 = vsel %vm697, %v698, %v689
    %v700 = vsel %vm693, %v696, %v699
    %v701 = vsel %vm690, nan, %v700
    %v702 = vand.u32 2147483647, %v96
    %vm703 = vcmp.le.f32.partialorder %v702, 0.7853982
    %vm704 = vcmp.lt.s32.totalorder %v96, 0
    %v705 = vand.u32 %v96, 2139095040
    %v706 = vshrl.u32 %v705, 23
    %v707 = vsub.s32 %v706, 127
    %v708 = vand.u32 2147483647, %v96
    %v709 = vand.u32 %v708, 8388607
    %v710 = vor.u32 %v709, 8388608
    %v711 = vsub.s32 0, %v710
    %v712 = vadd.s32 %v707, 1
    %vm713 = vcmp.gt.s32.totalorder %v712, 0
    %v714 = vsel %vm713, %v712, 0
    %v715 = vshrl.u32 %v714, 5
    %v716 = vand.u32 %v714, 31
    %v717 = vsub.s32 32, %v716
    %v718 = vshrl.u32 683565275, %v717
    %v719 = vshll.u32 683565275, %v716
    %v720 = vshrl.u32 2475754826, %v717
    %v721 = vor.u32 %v719, %v720
    %v722 = vshll.u32 2475754826, %v716
    %v723 = vshrl.u32 2131351028, %v717
    %v724 = vor.u32 %v722, %v723
    %v725 = vshll.u32 2131351028, %v716
    %v726 = vshrl.u32 2102212464, %v717
    %v727 = vor.u32 %v725, %v726
    %v728 = vshll.u32 2102212464, %v716
    %v729 = vshrl.u32 920167782, %v717
    %v730 = vor.u32 %v728, %v729
    %v731 = vshll.u32 920167782, %v716
    %v732 = vshrl.u32 1326507024, %v717
    %v733 = vor.u32 %v731, %v732
    %vm734 = vcmp.lt.s32.totalorder %v715, 1
    %vm735 = vcmp.lt.s32.totalorder %v715, 2
    %vm736 = vcmp.lt.s32.totalorder %v715, 3
    %vm737 = vcmp.lt.s32.totalorder %v715, 4
    %v738 = vsel %vm734, %v718, %v721
    %v739 = vsel %vm737, %v727, 2102212464
    %v740 = vsel %vm736, %v724, %v739
    %v741 = vsel %vm735, %v738, %v740
    %v742 = vsel %vm734, %v721, %v724
    %v743 = vsel %vm737, %v730, 920167782
    %v744 = vsel %vm736, %v727, %v743
    %v745 = vsel %vm735, %v742, %v744
    %v746 = vsel %vm734, %v724, %v727
    %v747 = vsel %vm737, %v733, 1326507024
    %v748 = vsel %vm736, %v730, %v747
    %v749 = vsel %vm735, %v746, %v748
    %v750 = vshll.u32 %v710, 8
    %v751 = vand.u32 %v750, 65535
    %v752 = vshrl.u32 %v750, 16
    %v753 = vand.u32 %v749, 65535
    %v754 = vshrl.u32 %v749, 16
    %v755 = vmul.u32 %v751, %v753
    %v756 = vmul.u32 %v751, %v754
    %v757 = vmul.u32 %v752, %v753
    %v758 = vmul.u32 %v752, %v754
    %v759 = vshll.u32 %v756, 16
    %v760 = vshrl.u32 %v756, 16
    %v761 = vshll.u32 %v757, 16
    %v762 = vshrl.u32 %v757, 16
    %vm763 = vc.u32 %v755, %v759
    %v764 = vsel %vm763, 1, 0
    %v765 = vadd.s32 %v755, %v759
    %v766 = vadd.s32 %v758, %v764
    %vm767 = vc.u32 %v765, %v761
    %v768 = vsel %vm767, 1, 0
    %v769 = vadd.s32 %v765, %v761
    %v770 = vadd.s32 %v766, %v768
    %v771 = vadd.s32 %v770, %v760
    %v772 = vadd.s32 %v771, %v762
    %v773 = vand.u32 %v750, 65535
    %v774 = vshrl.u32 %v750, 16
    %v775 = vand.u32 %v745, 65535
    %v776 = vshrl.u32 %v745, 16
    %v777 = vmul.u32 %v773, %v775
    %v778 = vmul.u32 %v773, %v776
    %v779 = vmul.u32 %v774, %v775
    %v780 = vmul.u32 %v774, %v776
    %v781 = vshll.u32 %v778, 16
    %v782 = vshrl.u32 %v778, 16
    %v783 = vshll.u32 %v779, 16
    %v784 = vshrl.u32 %v779, 16
    %vm785 = vc.u32 %v777, %v781
    %v786 = vsel %vm785, 1, 0
    %v787 = vadd.s32 %v777, %v781
    %v788 = vadd.s32 %v780, %v786
    %vm789 = vc.u32 %v787, %v783
    %v790 = vsel %vm789, 1, 0
    %v791 = vadd.s32 %v787, %v783
    %v792 = vadd.s32 %v788, %v790
    %v793 = vadd.s32 %v792, %v782
    %v794 = vadd.s32 %v793, %v784
    %v795 = vmul.u32 %v750, %v741
    %v796 = vadd.s32 %v772, %v791
    %vm797 = vc.u32 %v772, %v791
    %v798 = vadd.s32 %v794, 1
    %v799 = vsel %vm797, %v798, %v794
    %v800 = vadd.s32 %v795, %v799
    %v801 = vadd.s32 %v800, 536870912
    %v802 = vshrl.u32 %v801, 30
    %v803 = vshll.u32 %v802, 30
    %v804 = vsub.s32 %v800, %v803
    %vm805 = vcmp.lt.s32.totalorder %v804, 0
    %v806 = vsub.s32 0, %v804
    %v807 = vsel %vm805, %v806, %v804
    %v808 = vclz %v807
    %v809 = vsub.s32 %v808, 2
    %vm810 = vcmp.gt.s32.totalorder 0, %v809
    %v811 = vsel %vm810, 0, %v809
    %v812 = vsub.s32 32, %v811
    %v813 = vshll.u32 %v804, %v811
    %v814 = vshrl.u32 %v796, %v812
    %v815 = vor.u32 %v813, %v814
    %v816 = vsub.s32 4294967266, %v811
    %v817 = vadd.s32 %v816, 127
    %v818 = vshll.u32 %v817, 23
    %v819 = vor.u32 4788187, %v818
    %v820 = vand.u32 2147483647, %v819
    %v822 = vcvt.s32.f32 %v815
    %v823 = vmul.f32 %v822, %v820
    %v824 = vxor.u32 %v823, 2147483648
    %v825 = vsel %vm704, %v824, %v823
    %v826 = vsub.s32 4, %v802
    %v827 = vsel %vm704, %v826, %v802
    %v828 = vsel %vm703, %v96, %v825
    %v829 = vsel %vm703, 0, %v827
    %v830 = vmul.f32 %v828, %v828
    %v831 = vmul.f32 %v830, -0.001358992
    %v832 = vadd.f32 %v831, 0.041655596
    %v833 = vmul.f32 %v830, %v832
    %v834 = vadd.f32 %v833, -0.4999988
    %v835 = vmul.f32 %v830, %v834
    %v836 = vadd.f32 1.0, %v835
    %v837 = vmul.f32 %v828, %v828
    %v838 = vmul.f32 %v837, -0.00019511016
    %v839 = vadd.f32 %v838, 0.008332121
    %v840 = vmul.f32 %v837, %v839
    %v841 = vadd.f32 %v840, -0.16666654
    %v842 = vmul.f32 %v837, %v841
    %v843 = vadd.f32 %v842, 1.0
    %v844 = vmul.f32 %v843, %v828
    %vm845 = vweird.f32 %v96
    %v846 = vadd.s32 %v829, 3
    %v847 = vand.u32 %v846, 3
    %vm848 = vcmp.lt.s32.totalorder %v847, 2
    %vm849 = vcmp.eq.s32.totalorder %v847, 0
    %v850 = vxor.u32 %v844, 2147483648
    %v851 = vsel %vm849, %v836, %v850
    %vm852 = vcmp.eq.s32.totalorder %v847, 2
    %v853 = vxor.u32 %v836, 2147483648
    %v854 = vsel %vm852, %v853, %v844
    %v855 = vsel %vm848, %v851, %v854
    %v856 = vsel %vm845, nan, %v855
    %v857 = vand.u32 2147483647, %v97
    %vm858 = vcmp.le.f32.partialorder %v857, 0.7853982
    %vm859 = vcmp.lt.s32.totalorder %v97, 0
    %v860 = vand.u32 %v97, 2139095040
    %v861 = vshrl.u32 %v860, 23
    %v862 = vsub.s32 %v861, 127
    %v863 = vand.u32 2147483647, %v97
    %v864 = vand.u32 %v863, 8388607
    %v865 = vor.u32 %v864, 8388608
    %v866 = vsub.s32 0, %v865
    %v867 = vadd.s32 %v862, 1
    %vm868 = vcmp.gt.s32.totalorder %v867, 0
    %v869 = vsel %vm868, %v867, 0
    %v870 = vshrl.u32 %v869, 5
    %v871 = vand.u32 %v869, 31
    %v872 = vsub.s32 32, %v871
    %v873 = vshrl.u32 683565275, %v872
    %v874 = vshll.u32 683565275, %v871
    %v875 = vshrl.u32 2475754826, %v872
    %v876 = vor.u32 %v874, %v875
    %v877 = vshll.u32 2475754826, %v871
    %v878 = vshrl.u32 2131351028, %v872
    %v879 = vor.u32 %v877, %v878
    %v880 = vshll.u32 2131351028, %v871
    %v881 = vshrl.u32 2102212464, %v872
    %v882 = vor.u32 %v880, %v881
    %v883 = vshll.u32 2102212464, %v871
    %v884 = vshrl.u32 920167782, %v872
    %v885 = vor.u32 %v883, %v884
    %v886 = vshll.u32 920167782, %v871
    %v887 = vshrl.u32 1326507024, %v872
    %v888 = vor.u32 %v886, %v887
    %vm889 = vcmp.lt.s32.totalorder %v870, 1
    %vm890 = vcmp.lt.s32.totalorder %v870, 2
    %vm891 = vcmp.lt.s32.totalorder %v870, 3
    %vm892 = vcmp.lt.s32.totalorder %v870, 4
    %v893 = vsel %vm889, %v873, %v876
    %v894 = vsel %vm892, %v882, 2102212464
    %v895 = vsel %vm891, %v879, %v894
    %v896 = vsel %vm890, %v893, %v895
    %v897 = vsel %vm889, %v876, %v879
    %v898 = vsel %vm892, %v885, 920167782
    %v899 = vsel %vm891, %v882, %v898
    %v900 = vsel %vm890, %v897, %v899
    %v901 = vsel %vm889, %v879, %v882
    %v902 = vsel %vm892, %v888, 1326507024
    %v903 = vsel %vm891, %v885, %v902
    %v904 = vsel %vm890, %v901, %v903
    %v905 = vshll.u32 %v865, 8
    %v906 = vand.u32 %v905, 65535
    %v907 = vshrl.u32 %v905, 16
    %v908 = vand.u32 %v904, 65535
    %v909 = vshrl.u32 %v904, 16
    %v910 = vmul.u32 %v906, %v908
    %v911 = vmul.u32 %v906, %v909
    %v912 = vmul.u32 %v907, %v908
    %v913 = vmul.u32 %v907, %v909
    %v914 = vshll.u32 %v911, 16
    %v915 = vshrl.u32 %v911, 16
    %v916 = vshll.u32 %v912, 16
    %v917 = vshrl.u32 %v912, 16
    %vm918 = vc.u32 %v910, %v914
    %v919 = vsel %vm918, 1, 0
    %v920 = vadd.s32 %v910, %v914
    %v921 = vadd.s32 %v913, %v919
    %vm922 = vc.u32 %v920, %v916
    %v923 = vsel %vm922, 1, 0
    %v924 = vadd.s32 %v920, %v916
    %v925 = vadd.s32 %v921, %v923
    %v926 = vadd.s32 %v925, %v915
    %v927 = vadd.s32 %v926, %v917
    %v928 = vand.u32 %v905, 65535
    %v929 = vshrl.u32 %v905, 16
    %v930 = vand.u32 %v900, 65535
    %v931 = vshrl.u32 %v900, 16
    %v932 = vmul.u32 %v928, %v930
    %v933 = vmul.u32 %v928, %v931
    %v934 = vmul.u32 %v929, %v930
    %v935 = vmul.u32 %v929, %v931
    %v936 = vshll.u32 %v933, 16
    %v937 = vshrl.u32 %v933, 16
    %v938 = vshll.u32 %v934, 16
    %v939 = vshrl.u32 %v934, 16
    %vm940 = vc.u32 %v932, %v936
    %v941 = vsel %vm940, 1, 0
    %v942 = vadd.s32 %v932, %v936
    %v943 = vadd.s32 %v935, %v941
    %vm944 = vc.u32 %v942, %v938
    %v945 = vsel %vm944, 1, 0
    %v946 = vadd.s32 %v942, %v938
    %v947 = vadd.s32 %v943, %v945
    %v948 = vadd.s32 %v947, %v937
    %v949 = vadd.s32 %v948, %v939
    %v950 = vmul.u32 %v905, %v896
    %v951 = vadd.s32 %v927, %v946
    %vm952 = vc.u32 %v927, %v946
    %v953 = vadd.s32 %v949, 1
    %v954 = vsel %vm952, %v953, %v949
    %v955 = vadd.s32 %v950, %v954
    %v956 = vadd.s32 %v955, 536870912
    %v957 = vshrl.u32 %v956, 30
    %v958 = vshll.u32 %v957, 30
    %v959 = vsub.s32 %v955, %v958
    %vm960 = vcmp.lt.s32.totalorder %v959, 0
    %v961 = vsub.s32 0, %v959
    %v962 = vsel %vm960, %v961, %v959
    %v963 = vclz %v962
    %v964 = vsub.s32 %v963, 2
    %vm965 = vcmp.gt.s32.totalorder 0, %v964
    %v966 = vsel %vm965, 0, %v964
    %v967 = vsub.s32 32, %v966
    %v968 = vshll.u32 %v959, %v966
    %v969 = vshrl.u32 %v951, %v967
    %v970 = vor.u32 %v968, %v969
    %v971 = vsub.s32 4294967266, %v966
    %v972 = vadd.s32 %v971, 127
    %v973 = vshll.u32 %v972, 23
    %v974 = vor.u32 4788187, %v973
    %v975 = vand.u32 2147483647, %v974
    %v977 = vcvt.s32.f32 %v970
    %v978 = vmul.f32 %v977, %v975
    %v979 = vxor.u32 %v978, 2147483648
    %v980 = vsel %vm859, %v979, %v978
    %v981 = vsub.s32 4, %v957
    %v982 = vsel %vm859, %v981, %v957
    %v983 = vsel %vm858, %v97, %v980
    %v984 = vsel %vm858, 0, %v982
    %v985 = vmul.f32 %v983, %v983
    %v986 = vmul.f32 %v985, -0.001358992
    %v987 = vadd.f32 %v986, 0.041655596
    %v988 = vmul.f32 %v985, %v987
    %v989 = vadd.f32 %v988, -0.4999988
    %v990 = vmul.f32 %v985, %v989
    %v991 = vadd.f32 1.0, %v990
    %v992 = vmul.f32 %v983, %v983
    %v993 = vmul.f32 %v992, -0.00019511016
    %v994 = vadd.f32 %v993, 0.008332121
    %v995 = vmul.f32 %v992, %v994
    %v996 = vadd.f32 %v995, -0.16666654
    %v997 = vmul.f32 %v992, %v996
    %v998 = vadd.f32 %v997, 1.0
    %v999 = vmul.f32 %v998, %v983
    %vm1000 = vweird.f32 %v97
    %v1001 = vadd.s32 %v984, 3
    %v1002 = vand.u32 %v1001, 3
    %vm1003 = vcmp.lt.s32.totalorder %v1002, 2
    %vm1004 = vcmp.eq.s32.totalorder %v1002, 0
    %v1005 = vxor.u32 %v999, 2147483648
    %v1006 = vsel %vm1004, %v991, %v1005
    %vm1007 = vcmp.eq.s32.totalorder %v1002, 2
    %v1008 = vxor.u32 %v991, 2147483648
    %v1009 = vsel %vm1007, %v1008, %v999
    %v1010 = vsel %vm1003, %v1006, %v1009
    %v1011 = vsel %vm1000, nan, %v1010
    %v1012 = vand.u32 2147483647, %v98
    %vm1013 = vcmp.le.f32.partialorder %v1012, 0.7853982
    %vm1014 = vcmp.lt.s32.totalorder %v98, 0
    %v1015 = vand.u32 %v98, 2139095040
    %v1016 = vshrl.u32 %v1015, 23
    %v1017 = vsub.s32 %v1016, 127
    %v1018 = vand.u32 2147483647, %v98
    %v1019 = vand.u32 %v1018, 8388607
    %v1020 = vor.u32 %v1019, 8388608
    %v1021 = vsub.s32 0, %v1020
    %v1022 = vadd.s32 %v1017, 1
    %vm1023 = vcmp.gt.s32.totalorder %v1022, 0
    %v1024 = vsel %vm1023, %v1022, 0
    %v1025 = vshrl.u32 %v1024, 5
    %v1026 = vand.u32 %v1024, 31
    %v1027 = vsub.s32 32, %v1026
    %v1028 = vshrl.u32 683565275, %v1027
    %v1029 = vshll.u32 683565275, %v1026
    %v1030 = vshrl.u32 2475754826, %v1027
    %v1031 = vor.u32 %v1029, %v1030
    %v1032 = vshll.u32 2475754826, %v1026
    %v1033 = vshrl.u32 2131351028, %v1027
    %v1034 = vor.u32 %v1032, %v1033
    %v1035 = vshll.u32 2131351028, %v1026
    %v1036 = vshrl.u32 2102212464, %v1027
    %v1037 = vor.u32 %v1035, %v1036
    %v1038 = vshll.u32 2102212464, %v1026
    %v1039 = vshrl.u32 920167782, %v1027
    %v1040 = vor.u32 %v1038, %v1039
    %v1041 = vshll.u32 920167782, %v1026
    %v1042 = vshrl.u32 1326507024, %v1027
    %v1043 = vor.u32 %v1041, %v1042
    %vm1044 = vcmp.lt.s32.totalorder %v1025, 1
    %vm1045 = vcmp.lt.s32.totalorder %v1025, 2
    %vm1046 = vcmp.lt.s32.totalorder %v1025, 3
    %vm1047 = vcmp.lt.s32.totalorder %v1025, 4
    %v1048 = vsel %vm1044, %v1028, %v1031
    %v1049 = vsel %vm1047, %v1037, 2102212464
    %v1050 = vsel %vm1046, %v1034, %v1049
    %v1051 = vsel %vm1045, %v1048, %v1050
    %v1052 = vsel %vm1044, %v1031, %v1034
    %v1053 = vsel %vm1047, %v1040, 920167782
    %v1054 = vsel %vm1046, %v1037, %v1053
    %v1055 = vsel %vm1045, %v1052, %v1054
    %v1056 = vsel %vm1044, %v1034, %v1037
    %v1057 = vsel %vm1047, %v1043, 1326507024
    %v1058 = vsel %vm1046, %v1040, %v1057
    %v1059 = vsel %vm1045, %v1056, %v1058
    %v1060 = vshll.u32 %v1020, 8
    %v1061 = vand.u32 %v1060, 65535
    %v1062 = vshrl.u32 %v1060, 16
    %v1063 = vand.u32 %v1059, 65535
    %v1064 = vshrl.u32 %v1059, 16
    %v1065 = vmul.u32 %v1061, %v1063
    %v1066 = vmul.u32 %v1061, %v1064
    %v1067 = vmul.u32 %v1062, %v1063
    %v1068 = vmul.u32 %v1062, %v1064
    %v1069 = vshll.u32 %v1066, 16
    %v1070 = vshrl.u32 %v1066, 16
    %v1071 = vshll.u32 %v1067, 16
    %v1072 = vshrl.u32 %v1067, 16
    %vm1073 = vc.u32 %v1065, %v1069
    %v1074 = vsel %vm1073, 1, 0
    %v1075 = vadd.s32 %v1065, %v1069
    %v1076 = vadd.s32 %v1068, %v1074
    %vm1077 = vc.u32 %v1075, %v1071
    %v1078 = vsel %vm1077, 1, 0
    %v1079 = vadd.s32 %v1075, %v1071
    %v1080 = vadd.s32 %v1076, %v1078
    %v1081 = vadd.s32 %v1080, %v1070
    %v1082 = vadd.s32 %v1081, %v1072
    %v1083 = vand.u32 %v1060, 65535
    %v1084 = vshrl.u32 %v1060, 16
    %v1085 = vand.u32 %v1055, 65535
    %v1086 = vshrl.u32 %v1055, 16
    %v1087 = vmul.u32 %v1083, %v1085
    %v1088 = vmul.u32 %v1083, %v1086
    %v1089 = vmul.u32 %v1084, %v1085
    %v1090 = vmul.u32 %v1084, %v1086
    %v1091 = vshll.u32 %v1088, 16
    %v1092 = vshrl.u32 %v1088, 16
    %v1093 = vshll.u32 %v1089, 16
    %v1094 = vshrl.u32 %v1089, 16
    %vm1095 = vc.u32 %v1087, %v1091
    %v1096 = vsel %vm1095, 1, 0
    %v1097 = vadd.s32 %v1087, %v1091
    %v1098 = vadd.s32 %v1090, %v1096
    %vm1099 = vc.u32 %v1097, %v1093
    %v1100 = vsel %vm1099, 1, 0
    %v1101 = vadd.s32 %v1097, %v1093
    %v1102 = vadd.s32 %v1098, %v1100
    %v1103 = vadd.s32 %v1102, %v1092
    %v1104 = vadd.s32 %v1103, %v1094
    %v1105 = vmul.u32 %v1060, %v1051
    %v1106 = vadd.s32 %v1082, %v1101
    %vm1107 = vc.u32 %v1082, %v1101
    %v1108 = vadd.s32 %v1104, 1
    %v1109 = vsel %vm1107, %v1108, %v1104
    %v1110 = vadd.s32 %v1105, %v1109
    %v1111 = vadd.s32 %v1110, 536870912
    %v1112 = vshrl.u32 %v1111, 30
    %v1113 = vshll.u32 %v1112, 30
    %v1114 = vsub.s32 %v1110, %v1113
    %vm1115 = vcmp.lt.s32.totalorder %v1114, 0
    %v1116 = vsub.s32 0, %v1114
    %v1117 = vsel %vm1115, %v1116, %v1114
    %v1118 = vclz %v1117
    %v1119 = vsub.s32 %v1118, 2
    %vm1120 = vcmp.gt.s32.totalorder 0, %v1119
    %v1121 = vsel %vm1120, 0, %v1119
    %v1122 = vsub.s32 32, %v1121
    %v1123 = vshll.u32 %v1114, %v1121
    %v1124 = vshrl.u32 %v1106, %v1122
    %v1125 = vor.u32 %v1123, %v1124
    %v1126 = vsub.s32 4294967266, %v1121
    %v1127 = vadd.s32 %v1126, 127
    %v1128 = vshll.u32 %v1127, 23
    %v1129 = vor.u32 4788187, %v1128
    %v1130 = vand.u32 2147483647, %v1129
    %v1132 = vcvt.s32.f32 %v1125
    %v1133 = vmul.f32 %v1132, %v1130
    %v1134 = vxor.u32 %v1133, 2147483648
    %v1135 = vsel %vm1014, %v1134, %v1133
    %v1136 = vsub.s32 4, %v1112
    %v1137 = vsel %vm1014, %v1136, %v1112
    %v1138 = vsel %vm1013, %v98, %v1135
    %v1139 = vsel %vm1013, 0, %v1137
    %v1140 = vmul.f32 %v1138, %v1138
    %v1141 = vmul.f32 %v1140, -0.001358992
    %v1142 = vadd.f32 %v1141, 0.041655596
    %v1143 = vmul.f32 %v1140, %v1142
    %v1144 = vadd.f32 %v1143, -0.4999988
    %v1145 = vmul.f32 %v1140, %v1144
    %v1146 = vadd.f32 1.0, %v1145
    %v1147 = vmul.f32 %v1138, %v1138
    %v1148 = vmul.f32 %v1147, -0.00019511016
    %v1149 = vadd.f32 %v1148, 0.008332121
    %v1150 = vmul.f32 %v1147, %v1149
    %v1151 = vadd.f32 %v1150, -0.16666654
    %v1152 = vmul.f32 %v1147, %v1151
    %v1153 = vadd.f32 %v1152, 1.0
    %v1154 = vmul.f32 %v1153, %v1138
    %vm1155 = vweird.f32 %v98
    %v1156 = vadd.s32 %v1139, 3
    %v1157 = vand.u32 %v1156, 3
    %vm1158 = vcmp.lt.s32.totalorder %v1157, 2
    %vm1159 = vcmp.eq.s32.totalorder %v1157, 0
    %v1160 = vxor.u32 %v1154, 2147483648
    %v1161 = vsel %vm1159, %v1146, %v1160
    %vm1162 = vcmp.eq.s32.totalorder %v1157, 2
    %v1163 = vxor.u32 %v1146, 2147483648
    %v1164 = vsel %vm1162, %v1163, %v1154
    %v1165 = vsel %vm1158, %v1161, %v1164
    %v1166 = vsel %vm1155, nan, %v1165
    %v1167 = vand.u32 2147483647, %v99
    %vm1168 = vcmp.le.f32.partialorder %v1167, 0.7853982
    %vm1169 = vcmp.lt.s32.totalorder %v99, 0
    %v1170 = vand.u32 %v99, 2139095040
    %v1171 = vshrl.u32 %v1170, 23
    %v1172 = vsub.s32 %v1171, 127
    %v1173 = vand.u32 2147483647, %v99
    %v1174 = vand.u32 %v1173, 8388607
    %v1175 = vor.u32 %v1174, 8388608
    %v1176 = vsub.s32 0, %v1175
    %v1177 = vadd.s32 %v1172, 1
    %vm1178 = vcmp.gt.s32.totalorder %v1177, 0
    %v1179 = vsel %vm1178, %v1177, 0
    %v1180 = vshrl.u32 %v1179, 5
    %v1181 = vand.u32 %v1179, 31
    %v1182 = vsub.s32 32, %v1181
    %v1183 = vshrl.u32 683565275, %v1182
    %v1184 = vshll.u32 683565275, %v1181
    %v1185 = vshrl.u32 2475754826, %v1182
    %v1186 = vor.u32 %v1184, %v1185
    %v1187 = vshll.u32 2475754826, %v1181
    %v1188 = vshrl.u32 2131351028, %v1182
    %v1189 = vor.u32 %v1187, %v1188
    %v1190 = vshll.u32 2131351028, %v1181
    %v1191 = vshrl.u32 2102212464, %v1182
    %v1192 = vor.u32 %v1190, %v1191
    %v1193 = vshll.u32 2102212464, %v1181
    %v1194 = vshrl.u32 920167782, %v1182
    %v1195 = vor.u32 %v1193, %v1194
    %v1196 = vshll.u32 920167782, %v1181
    %v1197 = vshrl.u32 1326507024, %v1182
    %v1198 = vor.u32 %v1196, %v1197
    %vm1199 = vcmp.lt.s32.totalorder %v1180, 1
    %vm1200 = vcmp.lt.s32.totalorder %v1180, 2
    %vm1201 = vcmp.lt.s32.totalorder %v1180, 3
    %vm1202 = vcmp.lt.s32.totalorder %v1180, 4
    %v1203 = vsel %vm1199, %v1183, %v1186
    %v1204 = vsel %vm1202, %v1192, 2102212464
    %v1205 = vsel %vm1201, %v1189, %v1204
    %v1206 = vsel %vm1200, %v1203, %v1205
    %v1207 = vsel %vm1199, %v1186, %v1189
    %v1208 = vsel %vm1202, %v1195, 920167782
    %v1209 = vsel %vm1201, %v1192, %v1208
    %v1210 = vsel %vm1200, %v1207, %v1209
    %v1211 = vsel %vm1199, %v1189, %v1192
    %v1212 = vsel %vm1202, %v1198, 1326507024
    %v1213 = vsel %vm1201, %v1195, %v1212
    %v1214 = vsel %vm1200, %v1211, %v1213
    %v1215 = vshll.u32 %v1175, 8
    %v1216 = vand.u32 %v1215, 65535
    %v1217 = vshrl.u32 %v1215, 16
    %v1218 = vand.u32 %v1214, 65535
    %v1219 = vshrl.u32 %v1214, 16
    %v1220 = vmul.u32 %v1216, %v1218
    %v1221 = vmul.u32 %v1216, %v1219
    %v1222 = vmul.u32 %v1217, %v1218
    %v1223 = vmul.u32 %v1217, %v1219
    %v1224 = vshll.u32 %v1221, 16
    %v1225 = vshrl.u32 %v1221, 16
    %v1226 = vshll.u32 %v1222, 16
    %v1227 = vshrl.u32 %v1222, 16
    %vm1228 = vc.u32 %v1220, %v1224
    %v1229 = vsel %vm1228, 1, 0
    %v1230 = vadd.s32 %v1220, %v1224
    %v1231 = vadd.s32 %v1223, %v1229
    %vm1232 = vc.u32 %v1230, %v1226
    %v1233 = vsel %vm1232, 1, 0
    %v1234 = vadd.s32 %v1230, %v1226
    %v1235 = vadd.s32 %v1231, %v1233
    %v1236 = vadd.s32 %v1235, %v1225
    %v1237 = vadd.s32 %v1236, %v1227
    %v1238 = vand.u32 %v1215, 65535
    %v1239 = vshrl.u32 %v1215, 16
    %v1240 = vand.u32 %v1210, 65535
    %v1241 = vshrl.u32 %v1210, 16
    %v1242 = vmul.u32 %v1238, %v1240
    %v1243 = vmul.u32 %v1238, %v1241
    %v1244 = vmul.u32 %v1239, %v1240
    %v1245 = vmul.u32 %v1239, %v1241
    %v1246 = vshll.u32 %v1243, 16
    %v1247 = vshrl.u32 %v1243, 16
    %v1248 = vshll.u32 %v1244, 16
    %v1249 = vshrl.u32 %v1244, 16
    %vm1250 = vc.u32 %v1242, %v1246
    %v1251 = vsel %vm1250, 1, 0
    %v1252 = vadd.s32 %v1242, %v1246
    %v1253 = vadd.s32 %v1245, %v1251
    %vm1254 = vc.u32 %v1252, %v1248
    %v1255 = vsel %vm1254, 1, 0
    %v1256 = vadd.s32 %v1252, %v1248
    %v1257 = vadd.s32 %v1253, %v1255
    %v1258 = vadd.s32 %v1257, %v1247
    %v1259 = vadd.s32 %v1258, %v1249
    %v1260 = vmul.u32 %v1215, %v1206
    %v1261 = vadd.s32 %v1237, %v1256
    %vm1262 = vc.u32 %v1237, %v1256
    %v1263 = vadd.s32 %v1259, 1
    %v1264 = vsel %vm1262, %v1263, %v1259
    %v1265 = vadd.s32 %v1260, %v1264
    %v1266 = vadd.s32 %v1265, 536870912
    %v1267 = vshrl.u32 %v1266, 30
    %v1268 = vshll.u32 %v1267, 30
    %v1269 = vsub.s32 %v1265, %v1268
    %vm1270 = vcmp.lt.s32.totalorder %v1269, 0
    %v1271 = vsub.s32 0, %v1269
    %v1272 = vsel %vm1270, %v1271, %v1269
    %v1273 = vclz %v1272
    %v1274 = vsub.s32 %v1273, 2
    %vm1275 = vcmp.gt.s32.totalorder 0, %v1274
    %v1276 = vsel %vm1275, 0, %v1274
    %v1277 = vsub.s32 32, %v1276
    %v1278 = vshll.u32 %v1269, %v1276
    %v1279 = vshrl.u32 %v1261, %v1277
    %v1280 = vor.u32 %v1278, %v1279
    %v1281 = vsub.s32 4294967266, %v1276
    %v1282 = vadd.s32 %v1281, 127
    %v1283 = vshll.u32 %v1282, 23
    %v1284 = vor.u32 4788187, %v1283
    %v1285 = vand.u32 2147483647, %v1284
    %v1287 = vcvt.s32.f32 %v1280
    %v1288 = vmul.f32 %v1287, %v1285
    %v1289 = vxor.u32 %v1288, 2147483648
    %v1290 = vsel %vm1169, %v1289, %v1288
    %v1291 = vsub.s32 4, %v1267
    %v1292 = vsel %vm1169, %v1291, %v1267
    %v1293 = vsel %vm1168, %v99, %v1290
    %v1294 = vsel %vm1168, 0, %v1292
    %v1295 = vmul.f32 %v1293, %v1293
    %v1296 = vmul.f32 %v1295, -0.001358992
    %v1297 = vadd.f32 %v1296, 0.041655596
    %v1298 = vmul.f32 %v1295, %v1297
    %v1299 = vadd.f32 %v1298, -0.4999988
    %v1300 = vmul.f32 %v1295, %v1299
    %v1301 = vadd.f32 1.0, %v1300
    %v1302 = vmul.f32 %v1293, %v1293
    %v1303 = vmul.f32 %v1302, -0.00019511016
    %v1304 = vadd.f32 %v1303, 0.008332121
    %v1305 = vmul.f32 %v1302, %v1304
    %v1306 = vadd.f32 %v1305, -0.16666654
    %v1307 = vmul.f32 %v1302, %v1306
    %v1308 = vadd.f32 %v1307, 1.0
    %v1309 = vmul.f32 %v1308, %v1293
    %vm1310 = vweird.f32 %v99
    %v1311 = vadd.s32 %v1294, 3
    %v1312 = vand.u32 %v1311, 3
    %vm1313 = vcmp.lt.s32.totalorder %v1312, 2
    %vm1314 = vcmp.eq.s32.totalorder %v1312, 0
    %v1315 = vxor.u32 %v1309, 2147483648
    %v1316 = vsel %vm1314, %v1301, %v1315
    %vm1317 = vcmp.eq.s32.totalorder %v1312, 2
    %v1318 = vxor.u32 %v1301, 2147483648
    %v1319 = vsel %vm1317, %v1318, %v1309
    %v1320 = vsel %vm1313, %v1316, %v1319
    %v1321 = vsel %vm1310, nan, %v1320
    %v1322 = vand.u32 2147483647, %v100
    %vm1323 = vcmp.le.f32.partialorder %v1322, 0.7853982
    %vm1324 = vcmp.lt.s32.totalorder %v100, 0
    %v1325 = vand.u32 %v100, 2139095040
    %v1326 = vshrl.u32 %v1325, 23
    %v1327 = vsub.s32 %v1326, 127
    %v1328 = vand.u32 2147483647, %v100
    %v1329 = vand.u32 %v1328, 8388607
    %v1330 = vor.u32 %v1329, 8388608
    %v1331 = vsub.s32 0, %v1330
    %v1332 = vadd.s32 %v1327, 1
    %vm1333 = vcmp.gt.s32.totalorder %v1332, 0
    %v1334 = vsel %vm1333, %v1332, 0
    %v1335 = vshrl.u32 %v1334, 5
    %v1336 = vand.u32 %v1334, 31
    %v1337 = vsub.s32 32, %v1336
    %v1338 = vshrl.u32 683565275, %v1337
    %v1339 = vshll.u32 683565275, %v1336
    %v1340 = vshrl.u32 2475754826, %v1337
    %v1341 = vor.u32 %v1339, %v1340
    %v1342 = vshll.u32 2475754826, %v1336
    %v1343 = vshrl.u32 2131351028, %v1337
    %v1344 = vor.u32 %v1342, %v1343
    %v1345 = vshll.u32 2131351028, %v1336
    %v1346 = vshrl.u32 2102212464, %v1337
    %v1347 = vor.u32 %v1345, %v1346
    %v1348 = vshll.u32 2102212464, %v1336
    %v1349 = vshrl.u32 920167782, %v1337
    %v1350 = vor.u32 %v1348, %v1349
    %v1351 = vshll.u32 920167782, %v1336
    %v1352 = vshrl.u32 1326507024, %v1337
    %v1353 = vor.u32 %v1351, %v1352
    %vm1354 = vcmp.lt.s32.totalorder %v1335, 1
    %vm1355 = vcmp.lt.s32.totalorder %v1335, 2
    %vm1356 = vcmp.lt.s32.totalorder %v1335, 3
    %vm1357 = vcmp.lt.s32.totalorder %v1335, 4
    %v1358 = vsel %vm1354, %v1338, %v1341
    %v1359 = vsel %vm1357, %v1347, 2102212464
    %v1360 = vsel %vm1356, %v1344, %v1359
    %v1361 = vsel %vm1355, %v1358, %v1360
    %v1362 = vsel %vm1354, %v1341, %v1344
    %v1363 = vsel %vm1357, %v1350, 920167782
    %v1364 = vsel %vm1356, %v1347, %v1363
    %v1365 = vsel %vm1355, %v1362, %v1364
    %v1366 = vsel %vm1354, %v1344, %v1347
    %v1367 = vsel %vm1357, %v1353, 1326507024
    %v1368 = vsel %vm1356, %v1350, %v1367
    %v1369 = vsel %vm1355, %v1366, %v1368
    %v1370 = vshll.u32 %v1330, 8
    %v1371 = vand.u32 %v1370, 65535
    %v1372 = vshrl.u32 %v1370, 16
    %v1373 = vand.u32 %v1369, 65535
    %v1374 = vshrl.u32 %v1369, 16
    %v1375 = vmul.u32 %v1371, %v1373
    %v1376 = vmul.u32 %v1371, %v1374
    %v1377 = vmul.u32 %v1372, %v1373
    %v1378 = vmul.u32 %v1372, %v1374
    %v1379 = vshll.u32 %v1376, 16
    %v1380 = vshrl.u32 %v1376, 16
    %v1381 = vshll.u32 %v1377, 16
    %v1382 = vshrl.u32 %v1377, 16
    %vm1383 = vc.u32 %v1375, %v1379
    %v1384 = vsel %vm1383, 1, 0
    %v1385 = vadd.s32 %v1375, %v1379
    %v1386 = vadd.s32 %v1378, %v1384
    %vm1387 = vc.u32 %v1385, %v1381
    %v1388 = vsel %vm1387, 1, 0
    %v1389 = vadd.s32 %v1385, %v1381
    %v1390 = vadd.s32 %v1386, %v1388
    %v1391 = vadd.s32 %v1390, %v1380
    %v1392 = vadd.s32 %v1391, %v1382
    %v1393 = vand.u32 %v1370, 65535
    %v1394 = vshrl.u32 %v1370, 16
    %v1395 = vand.u32 %v1365, 65535
    %v1396 = vshrl.u32 %v1365, 16
    %v1397 = vmul.u32 %v1393, %v1395
    %v1398 = vmul.u32 %v1393, %v1396
    %v1399 = vmul.u32 %v1394, %v1395
    %v1400 = vmul.u32 %v1394, %v1396
    %v1401 = vshll.u32 %v1398, 16
    %v1402 = vshrl.u32 %v1398, 16
    %v1403 = vshll.u32 %v1399, 16
    %v1404 = vshrl.u32 %v1399, 16
    %vm1405 = vc.u32 %v1397, %v1401
    %v1406 = vsel %vm1405, 1, 0
    %v1407 = vadd.s32 %v1397, %v1401
    %v1408 = vadd.s32 %v1400, %v1406
    %vm1409 = vc.u32 %v1407, %v1403
    %v1410 = vsel %vm1409, 1, 0
    %v1411 = vadd.s32 %v1407, %v1403
    %v1412 = vadd.s32 %v1408, %v1410
    %v1413 = vadd.s32 %v1412, %v1402
    %v1414 = vadd.s32 %v1413, %v1404
    %v1415 = vmul.u32 %v1370, %v1361
    %v1416 = vadd.s32 %v1392, %v1411
    %vm1417 = vc.u32 %v1392, %v1411
    %v1418 = vadd.s32 %v1414, 1
    %v1419 = vsel %vm1417, %v1418, %v1414
    %v1420 = vadd.s32 %v1415, %v1419
    %v1421 = vadd.s32 %v1420, 536870912
    %v1422 = vshrl.u32 %v1421, 30
    %v1423 = vshll.u32 %v1422, 30
    %v1424 = vsub.s32 %v1420, %v1423
    %vm1425 = vcmp.lt.s32.totalorder %v1424, 0
    %v1426 = vsub.s32 0, %v1424
    %v1427 = vsel %vm1425, %v1426, %v1424
    %v1428 = vclz %v1427
    %v1429 = vsub.s32 %v1428, 2
    %vm1430 = vcmp.gt.s32.totalorder 0, %v1429
    %v1431 = vsel %vm1430, 0, %v1429
    %v1432 = vsub.s32 32, %v1431
    %v1433 = vshll.u32 %v1424, %v1431
    %v1434 = vshrl.u32 %v1416, %v1432
    %v1435 = vor.u32 %v1433, %v1434
    %v1436 = vsub.s32 4294967266, %v1431
    %v1437 = vadd.s32 %v1436, 127
    %v1438 = vshll.u32 %v1437, 23
    %v1439 = vor.u32 4788187, %v1438
    %v1440 = vand.u32 2147483647, %v1439
    %v1442 = vcvt.s32.f32 %v1435
    %v1443 = vmul.f32 %v1442, %v1440
    %v1444 = vxor.u32 %v1443, 2147483648
    %v1445 = vsel %vm1324, %v1444, %v1443
    %v1446 = vsub.s32 4, %v1422
    %v1447 = vsel %vm1324, %v1446, %v1422
    %v1448 = vsel %vm1323, %v100, %v1445
    %v1449 = vsel %vm1323, 0, %v1447
    %v1450 = vmul.f32 %v1448, %v1448
    %v1451 = vmul.f32 %v1450, -0.001358992
    %v1452 = vadd.f32 %v1451, 0.041655596
    %v1453 = vmul.f32 %v1450, %v1452
    %v1454 = vadd.f32 %v1453, -0.4999988
    %v1455 = vmul.f32 %v1450, %v1454
    %v1456 = vadd.f32 1.0, %v1455
    %v1457 = vmul.f32 %v1448, %v1448
    %v1458 = vmul.f32 %v1457, -0.00019511016
    %v1459 = vadd.f32 %v1458, 0.008332121
    %v1460 = vmul.f32 %v1457, %v1459
    %v1461 = vadd.f32 %v1460, -0.16666654
    %v1462 = vmul.f32 %v1457, %v1461
    %v1463 = vadd.f32 %v1462, 1.0
    %v1464 = vmul.f32 %v1463, %v1448
    %vm1465 = vweird.f32 %v100
    %v1466 = vadd.s32 %v1449, 3
    %v1467 = vand.u32 %v1466, 3
    %vm1468 = vcmp.lt.s32.totalorder %v1467, 2
    %vm1469 = vcmp.eq.s32.totalorder %v1467, 0
    %v1470 = vxor.u32 %v1464, 2147483648
    %v1471 = vsel %vm1469, %v1456, %v1470
    %vm1472 = vcmp.eq.s32.totalorder %v1467, 2
    %v1473 = vxor.u32 %v1456, 2147483648
    %v1474 = vsel %vm1472, %v1473, %v1464
    %v1475 = vsel %vm1468, %v1471, %v1474
    %v1476 = vsel %vm1465, nan, %v1475
    %v1477 = vmul.f32 %v93, %v93
    %v1478 = vmul.f32 %v94, %v94
    %v1479 = vmul.f32 %v95, %v95
    %v1480 = vmul.f32 %v96, %v96
    %v1481 = vmul.f32 %v97, %v97
    %v1482 = vmul.f32 %v98, %v98
    %v1483 = vmul.f32 %v99, %v99
    %v1484 = vmul.f32 %v100, %v100
    %v1485 = vsub.f32 0.0, %v1477
    %v1486 = vsub.f32 0.0, %v1478
    %v1487 = vsub.f32 0.0, %v1479
    %v1488 = vsub.f32 0.0, %v1480
    %v1489 = vsub.f32 0.0, %v1481
    %v1490 = vsub.f32 0.0, %v1482
    %v1491 = vsub.f32 0.0, %v1483
    %v1492 = vsub.f32 0.0, %v1484
    %v1493 = vmul.f32 %v1485, 1.442695
    %v1494 = vpow.pop %v1493
    %v1495 = vmul.f32 %v1486, 1.442695
    %v1496 = vpow.pop %v1495
    %v1497 = vmul.f32 %v1487, 1.442695
    %v1498 = vpow.pop %v1497
    %v1499 = vmul.f32 %v1488, 1.442695
    %v1500 = vpow.pop %v1499
    %v1501 = vmul.f32 %v1489, 1.442695
    %v1502 = vpow.pop %v1501
    %v1503 = vmul.f32 %v1490, 1.442695
    %v1504 = vpow.pop %v1503
    %v1505 = vmul.f32 %v1491, 1.442695
    %v1506 = vpow.pop %v1505
    %v1507 = vmul.f32 %v1492, 1.442695
    %v1508 = vpow.pop %v1507
    %v1509 = vpack.c.bf16 %v181, %v181
    %v1510 = vpack.c.bf16 %v182, %v182
    %v1511 = vpack.c.bf16 %v183, %v183
    %v1512 = vpack.c.bf16 %v184, %v184
    %v1513 = vpack.c.bf16 %v185, %v185
    %v1514 = vpack.c.bf16 %v186, %v186
    %v1515 = vpack.c.bf16 %v187, %v187
    %v1516 = vpack.c.bf16 %v188, %v188
    %v1517 = vld [vmem:[#allocation5] sm:$0xf]
    %v1518 = vld [vmem:[#allocation5 + $0x4] sm:$0xf]
    %v1519 = vld [vmem:[#allocation5 + $0x8] sm:$0xf]
    %v1520 = vld [vmem:[#allocation5 + $0xc] sm:$0xf]
    %v1521 = vld [vmem:[#allocation5 + $0x10] sm:$0xf]
    %v1522 = vld [vmem:[#allocation5 + $0x14] sm:$0xf]
    %v1523 = vld [vmem:[#allocation5 + $0x18] sm:$0xf]
    %v1524 = vld [vmem:[#allocation5 + $0x1c] sm:$0xf]
    %v1525 = vld [vmem:[#allocation5 + $0x20] sm:$0xf]
    %v1526 = vld [vmem:[#allocation5 + $0x24] sm:$0xf]
    %v1527 = vld [vmem:[#allocation5 + $0x28] sm:$0xf]
    %v1528 = vld [vmem:[#allocation5 + $0x2c] sm:$0xf]
    %v1529 = vld [vmem:[#allocation5 + $0x30] sm:$0xf]
    %v1530 = vld [vmem:[#allocation5 + $0x34] sm:$0xf]
    %v1531 = vld [vmem:[#allocation5 + $0x38] sm:$0xf]
    %v1532 = vld [vmem:[#allocation5 + $0x3c] sm:$0xf]
    %v1533 = vld [vmem:[#allocation5 + $0x40] sm:$0xf]
    %v1534 = vld [vmem:[#allocation5 + $0x44] sm:$0xf]
    %v1535 = vld [vmem:[#allocation5 + $0x48] sm:$0xf]
    %v1536 = vld [vmem:[#allocation5 + $0x4c] sm:$0xf]
    %v1537 = vld [vmem:[#allocation5 + $0x50] sm:$0xf]
    %v1538 = vld [vmem:[#allocation5 + $0x54] sm:$0xf]
    %v1539 = vld [vmem:[#allocation5 + $0x58] sm:$0xf]
    %v1540 = vld [vmem:[#allocation5 + $0x5c] sm:$0xf]
    %v1541 = vld [vmem:[#allocation5 + $0x60] sm:$0xf]
    %v1542 = vld [vmem:[#allocation5 + $0x64] sm:$0xf]
    %v1543 = vld [vmem:[#allocation5 + $0x68] sm:$0xf]
    %v1544 = vld [vmem:[#allocation5 + $0x6c] sm:$0xf]
    %v1545 = vld [vmem:[#allocation5 + $0x70] sm:$0xf]
    %v1546 = vld [vmem:[#allocation5 + $0x74] sm:$0xf]
    %v1547 = vld [vmem:[#allocation5 + $0x78] sm:$0xf]
    %v1548 = vld [vmem:[#allocation5 + $0x7c] sm:$0xf]
    %v1549 = vld [vmem:[#allocation5 + $0x80] sm:$0xf]
    %v1550 = vld [vmem:[#allocation5 + $0x84] sm:$0xf]
    %v1551 = vld [vmem:[#allocation5 + $0x88] sm:$0xf]
    %v1552 = vld [vmem:[#allocation5 + $0x8c] sm:$0xf]
    %v1553 = vld [vmem:[#allocation5 + $0x90] sm:$0xf]
    %v1554 = vld [vmem:[#allocation5 + $0x94] sm:$0xf]
    %v1555 = vld [vmem:[#allocation5 + $0x98] sm:$0xf]
    %v1556 = vld [vmem:[#allocation5 + $0x9c] sm:$0xf]
    %v1557 = vld [vmem:[#allocation5 + $0xa0] sm:$0xf]
    %v1558 = vld [vmem:[#allocation5 + $0xa4] sm:$0xf]
    %v1559 = vld [vmem:[#allocation5 + $0xa8] sm:$0xf]
    %v1560 = vld [vmem:[#allocation5 + $0xac] sm:$0xf]
    %v1561 = vld [vmem:[#allocation5 + $0xb0] sm:$0xf]
    %v1562 = vld [vmem:[#allocation5 + $0xb4] sm:$0xf]
    %v1563 = vld [vmem:[#allocation5 + $0xb8] sm:$0xf]
    %v1564 = vld [vmem:[#allocation5 + $0xbc] sm:$0xf]
    %v1565 = vld [vmem:[#allocation5 + $0xc0] sm:$0xf]
    %v1566 = vld [vmem:[#allocation5 + $0xc4] sm:$0xf]
    %v1567 = vld [vmem:[#allocation5 + $0xc8] sm:$0xf]
    %v1568 = vld [vmem:[#allocation5 + $0xcc] sm:$0xf]
    %v1569 = vld [vmem:[#allocation5 + $0xd0] sm:$0xf]
    %v1570 = vld [vmem:[#allocation5 + $0xd4] sm:$0xf]
    %v1571 = vld [vmem:[#allocation5 + $0xd8] sm:$0xf]
    %v1572 = vld [vmem:[#allocation5 + $0xdc] sm:$0xf]
    %v1573 = vld [vmem:[#allocation5 + $0xe0] sm:$0xf]
    %v1574 = vld [vmem:[#allocation5 + $0xe4] sm:$0xf]
    %v1575 = vld [vmem:[#allocation5 + $0xe8] sm:$0xf]
    %v1576 = vld [vmem:[#allocation5 + $0xec] sm:$0xf]
    %v1577 = vld [vmem:[#allocation5 + $0xf0] sm:$0xf]
    %v1578 = vld [vmem:[#allocation5 + $0xf4] sm:$0xf]
    %v1579 = vld [vmem:[#allocation5 + $0xf8] sm:$0xf]
    %v1580 = vld [vmem:[#allocation5 + $0xfc] sm:$0xf]
    %v1581 = vld [vmem:[#allocation5 + $0x100] sm:$0xf]
    %v1582 = vld [vmem:[#allocation5 + $0x104] sm:$0xf]
    %v1583 = vld [vmem:[#allocation5 + $0x108] sm:$0xf]
    %v1584 = vld [vmem:[#allocation5 + $0x10c] sm:$0xf]
    %v1585 = vld [vmem:[#allocation5 + $0x110] sm:$0xf]
    %v1586 = vld [vmem:[#allocation5 + $0x114] sm:$0xf]
    %v1587 = vld [vmem:[#allocation5 + $0x118] sm:$0xf]
    %v1588 = vld [vmem:[#allocation5 + $0x11c] sm:$0xf]
    %v1589 = vld [vmem:[#allocation5 + $0x120] sm:$0xf]
    %v1590 = vld [vmem:[#allocation5 + $0x124] sm:$0xf]
    %v1591 = vld [vmem:[#allocation5 + $0x128] sm:$0xf]
    %v1592 = vld [vmem:[#allocation5 + $0x12c] sm:$0xf]
    %v1593 = vld [vmem:[#allocation5 + $0x130] sm:$0xf]
    %v1594 = vld [vmem:[#allocation5 + $0x134] sm:$0xf]
    %v1595 = vld [vmem:[#allocation5 + $0x138] sm:$0xf]
    %v1596 = vld [vmem:[#allocation5 + $0x13c] sm:$0xf]
    %v1597 = vld [vmem:[#allocation5 + $0x140] sm:$0xf]
    %v1598 = vld [vmem:[#allocation5 + $0x144] sm:$0xf]
    %v1599 = vld [vmem:[#allocation5 + $0x148] sm:$0xf]
    %v1600 = vld [vmem:[#allocation5 + $0x14c] sm:$0xf]
    %v1601 = vld [vmem:[#allocation5 + $0x150] sm:$0xf]
    %v1602 = vld [vmem:[#allocation5 + $0x154] sm:$0xf]
    %v1603 = vld [vmem:[#allocation5 + $0x158] sm:$0xf]
    %v1604 = vld [vmem:[#allocation5 + $0x15c] sm:$0xf]
    %v1605 = vld [vmem:[#allocation5 + $0x160] sm:$0xf]
    %v1606 = vld [vmem:[#allocation5 + $0x164] sm:$0xf]
    %v1607 = vld [vmem:[#allocation5 + $0x168] sm:$0xf]
    %v1608 = vld [vmem:[#allocation5 + $0x16c] sm:$0xf]
    %v1609 = vld [vmem:[#allocation5 + $0x170] sm:$0xf]
    %v1610 = vld [vmem:[#allocation5 + $0x174] sm:$0xf]
    %v1611 = vld [vmem:[#allocation5 + $0x178] sm:$0xf]
    %v1612 = vld [vmem:[#allocation5 + $0x17c] sm:$0xf]
    %v1613 = vld [vmem:[#allocation5 + $0x180] sm:$0xf]
    %v1614 = vld [vmem:[#allocation5 + $0x184] sm:$0xf]
    %v1615 = vld [vmem:[#allocation5 + $0x188] sm:$0xf]
    %v1616 = vld [vmem:[#allocation5 + $0x18c] sm:$0xf]
    %v1617 = vld [vmem:[#allocation5 + $0x190] sm:$0xf]
    %v1618 = vld [vmem:[#allocation5 + $0x194] sm:$0xf]
    %v1619 = vld [vmem:[#allocation5 + $0x198] sm:$0xf]
    %v1620 = vld [vmem:[#allocation5 + $0x19c] sm:$0xf]
    %v1621 = vld [vmem:[#allocation5 + $0x1a0] sm:$0xf]
    %v1622 = vld [vmem:[#allocation5 + $0x1a4] sm:$0xf]
    %v1623 = vld [vmem:[#allocation5 + $0x1a8] sm:$0xf]
    %v1624 = vld [vmem:[#allocation5 + $0x1ac] sm:$0xf]
    %v1625 = vld [vmem:[#allocation5 + $0x1b0] sm:$0xf]
    %v1626 = vld [vmem:[#allocation5 + $0x1b4] sm:$0xf]
    %v1627 = vld [vmem:[#allocation5 + $0x1b8] sm:$0xf]
    %v1628 = vld [vmem:[#allocation5 + $0x1bc] sm:$0xf]
    %v1629 = vld [vmem:[#allocation5 + $0x1c0] sm:$0xf]
    %v1630 = vld [vmem:[#allocation5 + $0x1c4] sm:$0xf]
    %v1631 = vld [vmem:[#allocation5 + $0x1c8] sm:$0xf]
    %v1632 = vld [vmem:[#allocation5 + $0x1cc] sm:$0xf]
    %v1633 = vld [vmem:[#allocation5 + $0x1d0] sm:$0xf]
    %v1634 = vld [vmem:[#allocation5 + $0x1d4] sm:$0xf]
    %v1635 = vld [vmem:[#allocation5 + $0x1d8] sm:$0xf]
    %v1636 = vld [vmem:[#allocation5 + $0x1dc] sm:$0xf]
    %v1637 = vld [vmem:[#allocation5 + $0x1e0] sm:$0xf]
    %v1638 = vld [vmem:[#allocation5 + $0x1e4] sm:$0xf]
    %v1639 = vld [vmem:[#allocation5 + $0x1e8] sm:$0xf]
    %v1640 = vld [vmem:[#allocation5 + $0x1ec] sm:$0xf]
    %v1641 = vld [vmem:[#allocation5 + $0x1f0] sm:$0xf]
    %v1642 = vld [vmem:[#allocation5 + $0x1f4] sm:$0xf]
    %v1643 = vld [vmem:[#allocation5 + $0x1f8] sm:$0xf]
    %v1644 = vld [vmem:[#allocation5 + $0x1fc] sm:$0xf]
    %v1645 = vpack.c.bf16 %v229, %v229
    %v1646 = vpack.c.bf16 %v230, %v230
    %v1647 = vpack.c.bf16 %v231, %v231
    %v1648 = vpack.c.bf16 %v232, %v232
    %v1649 = vpack.c.bf16 %v233, %v233
    %v1650 = vpack.c.bf16 %v234, %v234
    %v1651 = vpack.c.bf16 %v235, %v235
    %v1652 = vpack.c.bf16 %v236, %v236
    %s1653 = scalar_lea.vmem [#allocation5], 512
    %v1654 = vld [vmem:[%s1653] sm:$0xf]
    %v1655 = vld [vmem:[%s1653 + $0x4] sm:$0xf]
    %v1656 = vld [vmem:[%s1653 + $0x8] sm:$0xf]
    %v1657 = vld [vmem:[%s1653 + $0xc] sm:$0xf]
    %v1658 = vld [vmem:[%s1653 + $0x10] sm:$0xf]
    %v1659 = vld [vmem:[%s1653 + $0x14] sm:$0xf]
    %v1660 = vld [vmem:[%s1653 + $0x18] sm:$0xf]
    %v1661 = vld [vmem:[%s1653 + $0x1c] sm:$0xf]
    %v1662 = vld [vmem:[%s1653 + $0x20] sm:$0xf]
    %v1663 = vld [vmem:[%s1653 + $0x24] sm:$0xf]
    %v1664 = vld [vmem:[%s1653 + $0x28] sm:$0xf]
    %v1665 = vld [vmem:[%s1653 + $0x2c] sm:$0xf]
    %v1666 = vld [vmem:[%s1653 + $0x30] sm:$0xf]
    %v1667 = vld [vmem:[%s1653 + $0x34] sm:$0xf]
    %v1668 = vld [vmem:[%s1653 + $0x38] sm:$0xf]
    %v1669 = vld [vmem:[%s1653 + $0x3c] sm:$0xf]
    %v1670 = vld [vmem:[%s1653 + $0x40] sm:$0xf]
    %v1671 = vld [vmem:[%s1653 + $0x44] sm:$0xf]
    %v1672 = vld [vmem:[%s1653 + $0x48] sm:$0xf]
    %v1673 = vld [vmem:[%s1653 + $0x4c] sm:$0xf]
    %v1674 = vld [vmem:[%s1653 + $0x50] sm:$0xf]
    %v1675 = vld [vmem:[%s1653 + $0x54] sm:$0xf]
    %v1676 = vld [vmem:[%s1653 + $0x58] sm:$0xf]
    %v1677 = vld [vmem:[%s1653 + $0x5c] sm:$0xf]
    %v1678 = vld [vmem:[%s1653 + $0x60] sm:$0xf]
    %v1679 = vld [vmem:[%s1653 + $0x64] sm:$0xf]
    %v1680 = vld [vmem:[%s1653 + $0x68] sm:$0xf]
    %v1681 = vld [vmem:[%s1653 + $0x6c] sm:$0xf]
    %v1682 = vld [vmem:[%s1653 + $0x70] sm:$0xf]
    %v1683 = vld [vmem:[%s1653 + $0x74] sm:$0xf]
    %v1684 = vld [vmem:[%s1653 + $0x78] sm:$0xf]
    %v1685 = vld [vmem:[%s1653 + $0x7c] sm:$0xf]
    %v1686 = vld [vmem:[%s1653 + $0x80] sm:$0xf]
    %v1687 = vld [vmem:[%s1653 + $0x84] sm:$0xf]
    %v1688 = vld [vmem:[%s1653 + $0x88] sm:$0xf]
    %v1689 = vld [vmem:[%s1653 + $0x8c] sm:$0xf]
    %v1690 = vld [vmem:[%s1653 + $0x90] sm:$0xf]
    %v1691 = vld [vmem:[%s1653 + $0x94] sm:$0xf]
    %v1692 = vld [vmem:[%s1653 + $0x98] sm:$0xf]
    %v1693 = vld [vmem:[%s1653 + $0x9c] sm:$0xf]
    %v1694 = vld [vmem:[%s1653 + $0xa0] sm:$0xf]
    %v1695 = vld [vmem:[%s1653 + $0xa4] sm:$0xf]
    %v1696 = vld [vmem:[%s1653 + $0xa8] sm:$0xf]
    %v1697 = vld [vmem:[%s1653 + $0xac] sm:$0xf]
    %v1698 = vld [vmem:[%s1653 + $0xb0] sm:$0xf]
    %v1699 = vld [vmem:[%s1653 + $0xb4] sm:$0xf]
    %v1700 = vld [vmem:[%s1653 + $0xb8] sm:$0xf]
    %v1701 = vld [vmem:[%s1653 + $0xbc] sm:$0xf]
    %v1702 = vld [vmem:[%s1653 + $0xc0] sm:$0xf]
    %v1703 = vld [vmem:[%s1653 + $0xc4] sm:$0xf]
    %v1704 = vld [vmem:[%s1653 + $0xc8] sm:$0xf]
    %v1705 = vld [vmem:[%s1653 + $0xcc] sm:$0xf]
    %v1706 = vld [vmem:[%s1653 + $0xd0] sm:$0xf]
    %v1707 = vld [vmem:[%s1653 + $0xd4] sm:$0xf]
    %v1708 = vld [vmem:[%s1653 + $0xd8] sm:$0xf]
    %v1709 = vld [vmem:[%s1653 + $0xdc] sm:$0xf]
    %v1710 = vld [vmem:[%s1653 + $0xe0] sm:$0xf]
    %v1711 = vld [vmem:[%s1653 + $0xe4] sm:$0xf]
    %v1712 = vld [vmem:[%s1653 + $0xe8] sm:$0xf]
    %v1713 = vld [vmem:[%s1653 + $0xec] sm:$0xf]
    %v1714 = vld [vmem:[%s1653 + $0xf0] sm:$0xf]
    %v1715 = vld [vmem:[%s1653 + $0xf4] sm:$0xf]
    %v1716 = vld [vmem:[%s1653 + $0xf8] sm:$0xf]
    %v1717 = vld [vmem:[%s1653 + $0xfc] sm:$0xf]
    %v1718 = vld [vmem:[%s1653 + $0x100] sm:$0xf]
    %v1719 = vld [vmem:[%s1653 + $0x104] sm:$0xf]
    %v1720 = vld [vmem:[%s1653 + $0x108] sm:$0xf]
    %v1721 = vld [vmem:[%s1653 + $0x10c] sm:$0xf]
    %v1722 = vld [vmem:[%s1653 + $0x110] sm:$0xf]
    %v1723 = vld [vmem:[%s1653 + $0x114] sm:$0xf]
    %v1724 = vld [vmem:[%s1653 + $0x118] sm:$0xf]
    %v1725 = vld [vmem:[%s1653 + $0x11c] sm:$0xf]
    %v1726 = vld [vmem:[%s1653 + $0x120] sm:$0xf]
    %v1727 = vld [vmem:[%s1653 + $0x124] sm:$0xf]
    %v1728 = vld [vmem:[%s1653 + $0x128] sm:$0xf]
    %v1729 = vld [vmem:[%s1653 + $0x12c] sm:$0xf]
    %v1730 = vld [vmem:[%s1653 + $0x130] sm:$0xf]
    %v1731 = vld [vmem:[%s1653 + $0x134] sm:$0xf]
    %v1732 = vld [vmem:[%s1653 + $0x138] sm:$0xf]
    %v1733 = vld [vmem:[%s1653 + $0x13c] sm:$0xf]
    %v1734 = vld [vmem:[%s1653 + $0x140] sm:$0xf]
    %v1735 = vld [vmem:[%s1653 + $0x144] sm:$0xf]
    %v1736 = vld [vmem:[%s1653 + $0x148] sm:$0xf]
    %v1737 = vld [vmem:[%s1653 + $0x14c] sm:$0xf]
    %v1738 = vld [vmem:[%s1653 + $0x150] sm:$0xf]
    %v1739 = vld [vmem:[%s1653 + $0x154] sm:$0xf]
    %v1740 = vld [vmem:[%s1653 + $0x158] sm:$0xf]
    %v1741 = vld [vmem:[%s1653 + $0x15c] sm:$0xf]
    %v1742 = vld [vmem:[%s1653 + $0x160] sm:$0xf]
    %v1743 = vld [vmem:[%s1653 + $0x164] sm:$0xf]
    %v1744 = vld [vmem:[%s1653 + $0x168] sm:$0xf]
    %v1745 = vld [vmem:[%s1653 + $0x16c] sm:$0xf]
    %v1746 = vld [vmem:[%s1653 + $0x170] sm:$0xf]
    %v1747 = vld [vmem:[%s1653 + $0x174] sm:$0xf]
    %v1748 = vld [vmem:[%s1653 + $0x178] sm:$0xf]
    %v1749 = vld [vmem:[%s1653 + $0x17c] sm:$0xf]
    %v1750 = vld [vmem:[%s1653 + $0x180] sm:$0xf]
    %v1751 = vld [vmem:[%s1653 + $0x184] sm:$0xf]
    %v1752 = vld [vmem:[%s1653 + $0x188] sm:$0xf]
    %v1753 = vld [vmem:[%s1653 + $0x18c] sm:$0xf]
    %v1754 = vld [vmem:[%s1653 + $0x190] sm:$0xf]
    %v1755 = vld [vmem:[%s1653 + $0x194] sm:$0xf]
    %v1756 = vld [vmem:[%s1653 + $0x198] sm:$0xf]
    %v1757 = vld [vmem:[%s1653 + $0x19c] sm:$0xf]
    %v1758 = vld [vmem:[%s1653 + $0x1a0] sm:$0xf]
    %v1759 = vld [vmem:[%s1653 + $0x1a4] sm:$0xf]
    %v1760 = vld [vmem:[%s1653 + $0x1a8] sm:$0xf]
    %v1761 = vld [vmem:[%s1653 + $0x1ac] sm:$0xf]
    %v1762 = vld [vmem:[%s1653 + $0x1b0] sm:$0xf]
    %v1763 = vld [vmem:[%s1653 + $0x1b4] sm:$0xf]
    %v1764 = vld [vmem:[%s1653 + $0x1b8] sm:$0xf]
    %v1765 = vld [vmem:[%s1653 + $0x1bc] sm:$0xf]
    %v1766 = vld [vmem:[%s1653 + $0x1c0] sm:$0xf]
    %v1767 = vld [vmem:[%s1653 + $0x1c4] sm:$0xf]
    %v1768 = vld [vmem:[%s1653 + $0x1c8] sm:$0xf]
    %v1769 = vld [vmem:[%s1653 + $0x1cc] sm:$0xf]
    %v1770 = vld [vmem:[%s1653 + $0x1d0] sm:$0xf]
    %v1771 = vld [vmem:[%s1653 + $0x1d4] sm:$0xf]
    %v1772 = vld [vmem:[%s1653 + $0x1d8] sm:$0xf]
    %v1773 = vld [vmem:[%s1653 + $0x1dc] sm:$0xf]
    %v1774 = vld [vmem:[%s1653 + $0x1e0] sm:$0xf]
    %v1775 = vld [vmem:[%s1653 + $0x1e4] sm:$0xf]
    %v1776 = vld [vmem:[%s1653 + $0x1e8] sm:$0xf]
    %v1777 = vld [vmem:[%s1653 + $0x1ec] sm:$0xf]
    %v1778 = vld [vmem:[%s1653 + $0x1f0] sm:$0xf]
    %v1779 = vld [vmem:[%s1653 + $0x1f4] sm:$0xf]
    %v1780 = vld [vmem:[%s1653 + $0x1f8] sm:$0xf]
    %v1781 = vld [vmem:[%s1653 + $0x1fc] sm:$0xf]
    %v1910 = vunpack.c.l.b16 %v1654
    %v1911 = vunpack.c.l.b16 %v1655
    %v1912 = vunpack.c.l.b16 %v1656
    %v1913 = vunpack.c.l.b16 %v1657
    %v1914 = vunpack.c.l.b16 %v1658
    %v1915 = vunpack.c.l.b16 %v1659
    %v1916 = vunpack.c.l.b16 %v1660
    %v1917 = vunpack.c.l.b16 %v1661
    %v1918 = vunpack.c.l.b16 %v1662
    %v1919 = vunpack.c.l.b16 %v1663
    %v1920 = vunpack.c.l.b16 %v1664
    %v1921 = vunpack.c.l.b16 %v1665
    %v1922 = vunpack.c.l.b16 %v1666
    %v1923 = vunpack.c.l.b16 %v1667
    %v1924 = vunpack.c.l.b16 %v1668
    %v1925 = vunpack.c.l.b16 %v1669
    %v1926 = vunpack.c.l.b16 %v1670
    %v1927 = vunpack.c.l.b16 %v1671
    %v1928 = vunpack.c.l.b16 %v1672
    %v1929 = vunpack.c.l.b16 %v1673
    %v1930 = vunpack.c.l.b16 %v1674
    %v1931 = vunpack.c.l.b16 %v1675
    %v1932 = vunpack.c.l.b16 %v1676
    %v1933 = vunpack.c.l.b16 %v1677
    %v1934 = vunpack.c.l.b16 %v1678
    %v1935 = vunpack.c.l.b16 %v1679
    %v1936 = vunpack.c.l.b16 %v1680
    %v1937 = vunpack.c.l.b16 %v1681
    %v1938 = vunpack.c.l.b16 %v1682
    %v1939 = vunpack.c.l.b16 %v1683
    %v1940 = vunpack.c.l.b16 %v1684
    %v1941 = vunpack.c.l.b16 %v1685
    %v1942 = vunpack.c.l.b16 %v1686
    %v1943 = vunpack.c.l.b16 %v1687
    %v1944 = vunpack.c.l.b16 %v1688
    %v1945 = vunpack.c.l.b16 %v1689
    %v1946 = vunpack.c.l.b16 %v1690
    %v1947 = vunpack.c.l.b16 %v1691
    %v1948 = vunpack.c.l.b16 %v1692
    %v1949 = vunpack.c.l.b16 %v1693
    %v1950 = vunpack.c.l.b16 %v1694
    %v1951 = vunpack.c.l.b16 %v1695
    %v1952 = vunpack.c.l.b16 %v1696
    %v1953 = vunpack.c.l.b16 %v1697
    %v1954 = vunpack.c.l.b16 %v1698
    %v1955 = vunpack.c.l.b16 %v1699
    %v1956 = vunpack.c.l.b16 %v1700
    %v1957 = vunpack.c.l.b16 %v1701
    %v1958 = vunpack.c.l.b16 %v1702
    %v1959 = vunpack.c.l.b16 %v1703
    %v1960 = vunpack.c.l.b16 %v1704
    %v1961 = vunpack.c.l.b16 %v1705
    %v1962 = vunpack.c.l.b16 %v1706
    %v1963 = vunpack.c.l.b16 %v1707
    %v1964 = vunpack.c.l.b16 %v1708
    %v1965 = vunpack.c.l.b16 %v1709
    %v1966 = vunpack.c.l.b16 %v1710
    %v1967 = vunpack.c.l.b16 %v1711
    %v1968 = vunpack.c.l.b16 %v1712
    %v1969 = vunpack.c.l.b16 %v1713
    %v1970 = vunpack.c.l.b16 %v1714
    %v1971 = vunpack.c.l.b16 %v1715
    %v1972 = vunpack.c.l.b16 %v1716
    %v1973 = vunpack.c.l.b16 %v1717
    %v1974 = vunpack.c.l.b16 %v1718
    %v1975 = vunpack.c.l.b16 %v1719
    %v1976 = vunpack.c.l.b16 %v1720
    %v1977 = vunpack.c.l.b16 %v1721
    %v1978 = vunpack.c.l.b16 %v1722
    %v1979 = vunpack.c.l.b16 %v1723
    %v1980 = vunpack.c.l.b16 %v1724
    %v1981 = vunpack.c.l.b16 %v1725
    %v1982 = vunpack.c.l.b16 %v1726
    %v1983 = vunpack.c.l.b16 %v1727
    %v1984 = vunpack.c.l.b16 %v1728
    %v1985 = vunpack.c.l.b16 %v1729
    %v1986 = vunpack.c.l.b16 %v1730
    %v1987 = vunpack.c.l.b16 %v1731
    %v1988 = vunpack.c.l.b16 %v1732
    %v1989 = vunpack.c.l.b16 %v1733
    %v1990 = vunpack.c.l.b16 %v1734
    %v1991 = vunpack.c.l.b16 %v1735
    %v1992 = vunpack.c.l.b16 %v1736
    %v1993 = vunpack.c.l.b16 %v1737
    %v1994 = vunpack.c.l.b16 %v1738
    %v1995 = vunpack.c.l.b16 %v1739
    %v1996 = vunpack.c.l.b16 %v1740
    %v1997 = vunpack.c.l.b16 %v1741
    %v1998 = vunpack.c.l.b16 %v1742
    %v1999 = vunpack.c.l.b16 %v1743
    %v2000 = vunpack.c.l.b16 %v1744
    %v2001 = vunpack.c.l.b16 %v1745
    %v2002 = vunpack.c.l.b16 %v1746
    %v2003 = vunpack.c.l.b16 %v1747
    %v2004 = vunpack.c.l.b16 %v1748
    %v2005 = vunpack.c.l.b16 %v1749
    %v2006 = vunpack.c.l.b16 %v1750
    %v2007 = vunpack.c.l.b16 %v1751
    %v2008 = vunpack.c.l.b16 %v1752
    %v2009 = vunpack.c.l.b16 %v1753
    %v2010 = vunpack.c.l.b16 %v1754
    %v2011 = vunpack.c.l.b16 %v1755
    %v2012 = vunpack.c.l.b16 %v1756
    %v2013 = vunpack.c.l.b16 %v1757
    %v2014 = vunpack.c.l.b16 %v1758
    %v2015 = vunpack.c.l.b16 %v1759
    %v2016 = vunpack.c.l.b16 %v1760
    %v2017 = vunpack.c.l.b16 %v1761
    %v2018 = vunpack.c.l.b16 %v1762
    %v2019 = vunpack.c.l.b16 %v1763
    %v2020 = vunpack.c.l.b16 %v1764
    %v2021 = vunpack.c.l.b16 %v1765
    %v2022 = vunpack.c.l.b16 %v1766
    %v2023 = vunpack.c.l.b16 %v1767
    %v2024 = vunpack.c.l.b16 %v1768
    %v2025 = vunpack.c.l.b16 %v1769
    %v2026 = vunpack.c.l.b16 %v1770
    %v2027 = vunpack.c.l.b16 %v1771
    %v2028 = vunpack.c.l.b16 %v1772
    %v2029 = vunpack.c.l.b16 %v1773
    %v2030 = vunpack.c.l.b16 %v1774
    %v2031 = vunpack.c.l.b16 %v1775
    %v2032 = vunpack.c.l.b16 %v1776
    %v2033 = vunpack.c.l.b16 %v1777
    %v2034 = vunpack.c.l.b16 %v1778
    %v2035 = vunpack.c.l.b16 %v1779
    %v2036 = vunpack.c.l.b16 %v1780
    %v2037 = vunpack.c.l.b16 %v1781
    %v2038 = vpack.c.b16 %v1911, %v1910
    %v2039 = vpack.c.b16 %v1913, %v1912
    %v2040 = vpack.c.b16 %v1915, %v1914
    %v2041 = vpack.c.b16 %v1917, %v1916
    %v2042 = vpack.c.b16 %v1919, %v1918
    %v2043 = vpack.c.b16 %v1921, %v1920
    %v2044 = vpack.c.b16 %v1923, %v1922
    %v2045 = vpack.c.b16 %v1925, %v1924
    %v2046 = vpack.c.b16 %v1927, %v1926
    %v2047 = vpack.c.b16 %v1929, %v1928
    %v2048 = vpack.c.b16 %v1931, %v1930
    %v2049 = vpack.c.b16 %v1933, %v1932
    %v2050 = vpack.c.b16 %v1935, %v1934
    %v2051 = vpack.c.b16 %v1937, %v1936
    %v2052 = vpack.c.b16 %v1939, %v1938
    %v2053 = vpack.c.b16 %v1941, %v1940
    %v2054 = vpack.c.b16 %v1943, %v1942
    %v2055 = vpack.c.b16 %v1945, %v1944
    %v2056 = vpack.c.b16 %v1947, %v1946
    %v2057 = vpack.c.b16 %v1949, %v1948
    %v2058 = vpack.c.b16 %v1951, %v1950
    %v2059 = vpack.c.b16 %v1953, %v1952
    %v2060 = vpack.c.b16 %v1955, %v1954
    %v2061 = vpack.c.b16 %v1957, %v1956
    %v2062 = vpack.c.b16 %v1959, %v1958
    %v2063 = vpack.c.b16 %v1961, %v1960
    %v2064 = vpack.c.b16 %v1963, %v1962
    %v2065 = vpack.c.b16 %v1965, %v1964
    %v2066 = vpack.c.b16 %v1967, %v1966
    %v2067 = vpack.c.b16 %v1969, %v1968
    %v2068 = vpack.c.b16 %v1971, %v1970
    %v2069 = vpack.c.b16 %v1973, %v1972
    %v2070 = vpack.c.b16 %v1975, %v1974
    %v2071 = vpack.c.b16 %v1977, %v1976
    %v2072 = vpack.c.b16 %v1979, %v1978
    %v2073 = vpack.c.b16 %v1981, %v1980
    %v2074 = vpack.c.b16 %v1983, %v1982
    %v2075 = vpack.c.b16 %v1985, %v1984
    %v2076 = vpack.c.b16 %v1987, %v1986
    %v2077 = vpack.c.b16 %v1989, %v1988
    %v2078 = vpack.c.b16 %v1991, %v1990
    %v2079 = vpack.c.b16 %v1993, %v1992
    %v2080 = vpack.c.b16 %v1995, %v1994
    %v2081 = vpack.c.b16 %v1997, %v1996
    %v2082 = vpack.c.b16 %v1999, %v1998
    %v2083 = vpack.c.b16 %v2001, %v2000
    %v2084 = vpack.c.b16 %v2003, %v2002
    %v2085 = vpack.c.b16 %v2005, %v2004
    %v2086 = vpack.c.b16 %v2007, %v2006
    %v2087 = vpack.c.b16 %v2009, %v2008
    %v2088 = vpack.c.b16 %v2011, %v2010
    %v2089 = vpack.c.b16 %v2013, %v2012
    %v2090 = vpack.c.b16 %v2015, %v2014
    %v2091 = vpack.c.b16 %v2017, %v2016
    %v2092 = vpack.c.b16 %v2019, %v2018
    %v2093 = vpack.c.b16 %v2021, %v2020
    %v2094 = vpack.c.b16 %v2023, %v2022
    %v2095 = vpack.c.b16 %v2025, %v2024
    %v2096 = vpack.c.b16 %v2027, %v2026
    %v2097 = vpack.c.b16 %v2029, %v2028
    %v2098 = vpack.c.b16 %v2031, %v2030
    %v2099 = vpack.c.b16 %v2033, %v2032
    %v2100 = vpack.c.b16 %v2035, %v2034
    %v2101 = vpack.c.b16 %v2037, %v2036
    %2166 = vmatpush.bf16.msra.mxu0 %v2045
    %2167 = vmatpush.bf16.msra.mxu0 %v2044
    %2168 = vmatpush.bf16.msra.mxu0 %v2043
    %2169 = vmatpush.bf16.msra.mxu0 %v2042
    %2170 = vmatpush.bf16.msra.mxu0 %v2041
    %2171 = vmatpush.bf16.msra.mxu0 %v2040
    %2172 = vmatpush.bf16.msra.mxu0 %v2039
    %2173 = vmatpush.bf16.msra.mxu0 %v2038
    %2174 = vmatmul.bf16.gmra.mxu0 %v1645
    %v2175 = vpop.f32.mrf.mxu0
    %v2176 = vadd.f32 0.0, %v2175
    %v2177 = vpop.f32.mrf.mxu0
    %2178 = vdwg.mxu0
    %2179 = vmatpush.bf16.msra.mxu0 %v2053
    %2180 = vmatpush.bf16.msra.mxu0 %v2052
    %2181 = vmatpush.bf16.msra.mxu0 %v2051
    %2182 = vmatpush.bf16.msra.mxu0 %v2050
    %2183 = vmatpush.bf16.msra.mxu0 %v2049
    %2184 = vmatpush.bf16.msra.mxu0 %v2048
    %2185 = vmatpush.bf16.msra.mxu0 %v2047
    %2186 = vmatpush.bf16.msra.mxu0 %v2046
    %2187 = vmatmul.bf16.gmra.mxu0 %v1646
    %v2188 = vpop.f32.mrf.mxu0
    %v2189 = vadd.f32 %v2176, %v2188
    %v2190 = vpop.f32.mrf.mxu0
    %2191 = vdwg.mxu0
    %2192 = vmatpush.bf16.msra.mxu0 %v2061
    %2193 = vmatpush.bf16.msra.mxu0 %v2060
    %2194 = vmatpush.bf16.msra.mxu0 %v2059
    %2195 = vmatpush.bf16.msra.mxu0 %v2058
    %2196 = vmatpush.bf16.msra.mxu0 %v2057
    %2197 = vmatpush.bf16.msra.mxu0 %v2056
    %2198 = vmatpush.bf16.msra.mxu0 %v2055
    %2199 = vmatpush.bf16.msra.mxu0 %v2054
    %2200 = vmatmul.bf16.gmra.mxu0 %v1647
    %v2201 = vpop.f32.mrf.mxu0
    %v2202 = vadd.f32 %v2189, %v2201
    %v2203 = vpop.f32.mrf.mxu0
    %2204 = vdwg.mxu0
    %2205 = vmatpush.bf16.msra.mxu0 %v2069
    %2206 = vmatpush.bf16.msra.mxu0 %v2068
    %2207 = vmatpush.bf16.msra.mxu0 %v2067
    %2208 = vmatpush.bf16.msra.mxu0 %v2066
    %2209 = vmatpush.bf16.msra.mxu0 %v2065
    %2210 = vmatpush.bf16.msra.mxu0 %v2064
    %2211 = vmatpush.bf16.msra.mxu0 %v2063
    %2212 = vmatpush.bf16.msra.mxu0 %v2062
    %2213 = vmatmul.bf16.gmra.mxu0 %v1648
    %v2214 = vpop.f32.mrf.mxu0
    %v2215 = vadd.f32 %v2202, %v2214
    %v2216 = vpop.f32.mrf.mxu0
    %2217 = vdwg.mxu0
    %2218 = vmatpush.bf16.msra.mxu0 %v2077
    %2219 = vmatpush.bf16.msra.mxu0 %v2076
    %2220 = vmatpush.bf16.msra.mxu0 %v2075
    %2221 = vmatpush.bf16.msra.mxu0 %v2074
    %2222 = vmatpush.bf16.msra.mxu0 %v2073
    %2223 = vmatpush.bf16.msra.mxu0 %v2072
    %2224 = vmatpush.bf16.msra.mxu0 %v2071
    %2225 = vmatpush.bf16.msra.mxu0 %v2070
    %2226 = vmatmul.bf16.gmra.mxu0 %v1649
    %v2227 = vpop.f32.mrf.mxu0
    %v2228 = vadd.f32 %v2215, %v2227
    %v2229 = vpop.f32.mrf.mxu0
    %2230 = vdwg.mxu0
    %2231 = vmatpush.bf16.msra.mxu0 %v2085
    %2232 = vmatpush.bf16.msra.mxu0 %v2084
    %2233 = vmatpush.bf16.msra.mxu0 %v2083
    %2234 = vmatpush.bf16.msra.mxu0 %v2082
    %2235 = vmatpush.bf16.msra.mxu0 %v2081
    %2236 = vmatpush.bf16.msra.mxu0 %v2080
    %2237 = vmatpush.bf16.msra.mxu0 %v2079
    %2238 = vmatpush.bf16.msra.mxu0 %v2078
    %2239 = vmatmul.bf16.gmra.mxu0 %v1650
    %v2240 = vpop.f32.mrf.mxu0
    %v2241 = vadd.f32 %v2228, %v2240
    %v2242 = vpop.f32.mrf.mxu0
    %2243 = vdwg.mxu0
    %2244 = vmatpush.bf16.msra.mxu0 %v2093
    %2245 = vmatpush.bf16.msra.mxu0 %v2092
    %2246 = vmatpush.bf16.msra.mxu0 %v2091
    %2247 = vmatpush.bf16.msra.mxu0 %v2090
    %2248 = vmatpush.bf16.msra.mxu0 %v2089
    %2249 = vmatpush.bf16.msra.mxu0 %v2088
    %2250 = vmatpush.bf16.msra.mxu0 %v2087
    %2251 = vmatpush.bf16.msra.mxu0 %v2086
    %2252 = vmatmul.bf16.gmra.mxu0 %v1651
    %v2253 = vpop.f32.mrf.mxu0
    %v2254 = vadd.f32 %v2241, %v2253
    %v2255 = vpop.f32.mrf.mxu0
    %2256 = vdwg.mxu0
    %2257 = vmatpush.bf16.msra.mxu0 %v2101
    %2258 = vmatpush.bf16.msra.mxu0 %v2100
    %2259 = vmatpush.bf16.msra.mxu0 %v2099
    %2260 = vmatpush.bf16.msra.mxu0 %v2098
    %2261 = vmatpush.bf16.msra.mxu0 %v2097
    %2262 = vmatpush.bf16.msra.mxu0 %v2096
    %2263 = vmatpush.bf16.msra.mxu0 %v2095
    %2264 = vmatpush.bf16.msra.mxu0 %v2094
    %2265 = vmatmul.bf16.gmra.mxu0 %v1652
    %v2266 = vpop.f32.mrf.mxu0
    %v2267 = vadd.f32 %v2254, %v2266
    %v2268 = vpop.f32.mrf.mxu0
    %2269 = vdwg.mxu0
    %v2398 = vunpack.c.l.b16 %v1517
    %v2399 = vunpack.c.l.b16 %v1518
    %v2400 = vunpack.c.l.b16 %v1519
    %v2401 = vunpack.c.l.b16 %v1520
    %v2402 = vunpack.c.l.b16 %v1521
    %v2403 = vunpack.c.l.b16 %v1522
    %v2404 = vunpack.c.l.b16 %v1523
    %v2405 = vunpack.c.l.b16 %v1524
    %v2406 = vunpack.c.l.b16 %v1525
    %v2407 = vunpack.c.l.b16 %v1526
    %v2408 = vunpack.c.l.b16 %v1527
    %v2409 = vunpack.c.l.b16 %v1528
    %v2410 = vunpack.c.l.b16 %v1529
    %v2411 = vunpack.c.l.b16 %v1530
    %v2412 = vunpack.c.l.b16 %v1531
    %v2413 = vunpack.c.l.b16 %v1532
    %v2414 = vunpack.c.l.b16 %v1533
    %v2415 = vunpack.c.l.b16 %v1534
    %v2416 = vunpack.c.l.b16 %v1535
    %v2417 = vunpack.c.l.b16 %v1536
    %v2418 = vunpack.c.l.b16 %v1537
    %v2419 = vunpack.c.l.b16 %v1538
    %v2420 = vunpack.c.l.b16 %v1539
    %v2421 = vunpack.c.l.b16 %v1540
    %v2422 = vunpack.c.l.b16 %v1541
    %v2423 = vunpack.c.l.b16 %v1542
    %v2424 = vunpack.c.l.b16 %v1543
    %v2425 = vunpack.c.l.b16 %v1544
    %v2426 = vunpack.c.l.b16 %v1545
    %v2427 = vunpack.c.l.b16 %v1546
    %v2428 = vunpack.c.l.b16 %v1547
    %v2429 = vunpack.c.l.b16 %v1548
    %v2430 = vunpack.c.l.b16 %v1549
    %v2431 = vunpack.c.l.b16 %v1550
    %v2432 = vunpack.c.l.b16 %v1551
    %v2433 = vunpack.c.l.b16 %v1552
    %v2434 = vunpack.c.l.b16 %v1553
    %v2435 = vunpack.c.l.b16 %v1554
    %v2436 = vunpack.c.l.b16 %v1555
    %v2437 = vunpack.c.l.b16 %v1556
    %v2438 = vunpack.c.l.b16 %v1557
    %v2439 = vunpack.c.l.b16 %v1558
    %v2440 = vunpack.c.l.b16 %v1559
    %v2441 = vunpack.c.l.b16 %v1560
    %v2442 = vunpack.c.l.b16 %v1561
    %v2443 = vunpack.c.l.b16 %v1562
    %v2444 = vunpack.c.l.b16 %v1563
    %v2445 = vunpack.c.l.b16 %v1564
    %v2446 = vunpack.c.l.b16 %v1565
    %v2447 = vunpack.c.l.b16 %v1566
    %v2448 = vunpack.c.l.b16 %v1567
    %v2449 = vunpack.c.l.b16 %v1568
    %v2450 = vunpack.c.l.b16 %v1569
    %v2451 = vunpack.c.l.b16 %v1570
    %v2452 = vunpack.c.l.b16 %v1571
    %v2453 = vunpack.c.l.b16 %v1572
    %v2454 = vunpack.c.l.b16 %v1573
    %v2455 = vunpack.c.l.b16 %v1574
    %v2456 = vunpack.c.l.b16 %v1575
    %v2457 = vunpack.c.l.b16 %v1576
    %v2458 = vunpack.c.l.b16 %v1577
    %v2459 = vunpack.c.l.b16 %v1578
    %v2460 = vunpack.c.l.b16 %v1579
    %v2461 = vunpack.c.l.b16 %v1580
    %v2462 = vunpack.c.l.b16 %v1581
    %v2463 = vunpack.c.l.b16 %v1582
    %v2464 = vunpack.c.l.b16 %v1583
    %v2465 = vunpack.c.l.b16 %v1584
    %v2466 = vunpack.c.l.b16 %v1585
    %v2467 = vunpack.c.l.b16 %v1586
    %v2468 = vunpack.c.l.b16 %v1587
    %v2469 = vunpack.c.l.b16 %v1588
    %v2470 = vunpack.c.l.b16 %v1589
    %v2471 = vunpack.c.l.b16 %v1590
    %v2472 = vunpack.c.l.b16 %v1591
    %v2473 = vunpack.c.l.b16 %v1592
    %v2474 = vunpack.c.l.b16 %v1593
    %v2475 = vunpack.c.l.b16 %v1594
    %v2476 = vunpack.c.l.b16 %v1595
    %v2477 = vunpack.c.l.b16 %v1596
    %v2478 = vunpack.c.l.b16 %v1597
    %v2479 = vunpack.c.l.b16 %v1598
    %v2480 = vunpack.c.l.b16 %v1599
    %v2481 = vunpack.c.l.b16 %v1600
    %v2482 = vunpack.c.l.b16 %v1601
    %v2483 = vunpack.c.l.b16 %v1602
    %v2484 = vunpack.c.l.b16 %v1603
    %v2485 = vunpack.c.l.b16 %v1604
    %v2486 = vunpack.c.l.b16 %v1605
    %v2487 = vunpack.c.l.b16 %v1606
    %v2488 = vunpack.c.l.b16 %v1607
    %v2489 = vunpack.c.l.b16 %v1608
    %v2490 = vunpack.c.l.b16 %v1609
    %v2491 = vunpack.c.l.b16 %v1610
    %v2492 = vunpack.c.l.b16 %v1611
    %v2493 = vunpack.c.l.b16 %v1612
    %v2494 = vunpack.c.l.b16 %v1613
    %v2495 = vunpack.c.l.b16 %v1614
    %v2496 = vunpack.c.l.b16 %v1615
    %v2497 = vunpack.c.l.b16 %v1616
    %v2498 = vunpack.c.l.b16 %v1617
    %v2499 = vunpack.c.l.b16 %v1618
    %v2500 = vunpack.c.l.b16 %v1619
    %v2501 = vunpack.c.l.b16 %v1620
    %v2502 = vunpack.c.l.b16 %v1621
    %v2503 = vunpack.c.l.b16 %v1622
    %v2504 = vunpack.c.l.b16 %v1623
    %v2505 = vunpack.c.l.b16 %v1624
    %v2506 = vunpack.c.l.b16 %v1625
    %v2507 = vunpack.c.l.b16 %v1626
    %v2508 = vunpack.c.l.b16 %v1627
    %v2509 = vunpack.c.l.b16 %v1628
    %v2510 = vunpack.c.l.b16 %v1629
    %v2511 = vunpack.c.l.b16 %v1630
    %v2512 = vunpack.c.l.b16 %v1631
    %v2513 = vunpack.c.l.b16 %v1632
    %v2514 = vunpack.c.l.b16 %v1633
    %v2515 = vunpack.c.l.b16 %v1634
    %v2516 = vunpack.c.l.b16 %v1635
    %v2517 = vunpack.c.l.b16 %v1636
    %v2518 = vunpack.c.l.b16 %v1637
    %v2519 = vunpack.c.l.b16 %v1638
    %v2520 = vunpack.c.l.b16 %v1639
    %v2521 = vunpack.c.l.b16 %v1640
    %v2522 = vunpack.c.l.b16 %v1641
    %v2523 = vunpack.c.l.b16 %v1642
    %v2524 = vunpack.c.l.b16 %v1643
    %v2525 = vunpack.c.l.b16 %v1644
    %v2526 = vpack.c.b16 %v2399, %v2398
    %v2527 = vpack.c.b16 %v2401, %v2400
    %v2528 = vpack.c.b16 %v2403, %v2402
    %v2529 = vpack.c.b16 %v2405, %v2404
    %v2530 = vpack.c.b16 %v2407, %v2406
    %v2531 = vpack.c.b16 %v2409, %v2408
    %v2532 = vpack.c.b16 %v2411, %v2410
    %v2533 = vpack.c.b16 %v2413, %v2412
    %v2534 = vpack.c.b16 %v2415, %v2414
    %v2535 = vpack.c.b16 %v2417, %v2416
    %v2536 = vpack.c.b16 %v2419, %v2418
    %v2537 = vpack.c.b16 %v2421, %v2420
    %v2538 = vpack.c.b16 %v2423, %v2422
    %v2539 = vpack.c.b16 %v2425, %v2424
    %v2540 = vpack.c.b16 %v2427, %v2426
    %v2541 = vpack.c.b16 %v2429, %v2428
    %v2542 = vpack.c.b16 %v2431, %v2430
    %v2543 = vpack.c.b16 %v2433, %v2432
    %v2544 = vpack.c.b16 %v2435, %v2434
    %v2545 = vpack.c.b16 %v2437, %v2436
    %v2546 = vpack.c.b16 %v2439, %v2438
    %v2547 = vpack.c.b16 %v2441, %v2440
    %v2548 = vpack.c.b16 %v2443, %v2442
    %v2549 = vpack.c.b16 %v2445, %v2444
    %v2550 = vpack.c.b16 %v2447, %v2446
    %v2551 = vpack.c.b16 %v2449, %v2448
    %v2552 = vpack.c.b16 %v2451, %v2450
    %v2553 = vpack.c.b16 %v2453, %v2452
    %v2554 = vpack.c.b16 %v2455, %v2454
    %v2555 = vpack.c.b16 %v2457, %v2456
    %v2556 = vpack.c.b16 %v2459, %v2458
    %v2557 = vpack.c.b16 %v2461, %v2460
    %v2558 = vpack.c.b16 %v2463, %v2462
    %v2559 = vpack.c.b16 %v2465, %v2464
    %v2560 = vpack.c.b16 %v2467, %v2466
    %v2561 = vpack.c.b16 %v2469, %v2468
    %v2562 = vpack.c.b16 %v2471, %v2470
    %v2563 = vpack.c.b16 %v2473, %v2472
    %v2564 = vpack.c.b16 %v2475, %v2474
    %v2565 = vpack.c.b16 %v2477, %v2476
    %v2566 = vpack.c.b16 %v2479, %v2478
    %v2567 = vpack.c.b16 %v2481, %v2480
    %v2568 = vpack.c.b16 %v2483, %v2482
    %v2569 = vpack.c.b16 %v2485, %v2484
    %v2570 = vpack.c.b16 %v2487, %v2486
    %v2571 = vpack.c.b16 %v2489, %v2488
    %v2572 = vpack.c.b16 %v2491, %v2490
    %v2573 = vpack.c.b16 %v2493, %v2492
    %v2574 = vpack.c.b16 %v2495, %v2494
    %v2575 = vpack.c.b16 %v2497, %v2496
    %v2576 = vpack.c.b16 %v2499, %v2498
    %v2577 = vpack.c.b16 %v2501, %v2500
    %v2578 = vpack.c.b16 %v2503, %v2502
    %v2579 = vpack.c.b16 %v2505, %v2504
    %v2580 = vpack.c.b16 %v2507, %v2506
    %v2581 = vpack.c.b16 %v2509, %v2508
    %v2582 = vpack.c.b16 %v2511, %v2510
    %v2583 = vpack.c.b16 %v2513, %v2512
    %v2584 = vpack.c.b16 %v2515, %v2514
    %v2585 = vpack.c.b16 %v2517, %v2516
    %v2586 = vpack.c.b16 %v2519, %v2518
    %v2587 = vpack.c.b16 %v2521, %v2520
    %v2588 = vpack.c.b16 %v2523, %v2522
    %v2589 = vpack.c.b16 %v2525, %v2524
    %2654 = vmatpush.bf16.msra.mxu0 %v2533
    %2655 = vmatpush.bf16.msra.mxu0 %v2532
    %2656 = vmatpush.bf16.msra.mxu0 %v2531
    %2657 = vmatpush.bf16.msra.mxu0 %v2530
    %2658 = vmatpush.bf16.msra.mxu0 %v2529
    %2659 = vmatpush.bf16.msra.mxu0 %v2528
    %2660 = vmatpush.bf16.msra.mxu0 %v2527
    %2661 = vmatpush.bf16.msra.mxu0 %v2526
    %2662 = vmatmul.bf16.gmra.mxu0 %v1509
    %v2663 = vpop.f32.mrf.mxu0
    %v2664 = vadd.f32 %v2267, %v2663
    %v2665 = vpop.f32.mrf.mxu0
    %2666 = vdwg.mxu0
    %2667 = vmatpush.bf16.msra.mxu0 %v2541
    %2668 = vmatpush.bf16.msra.mxu0 %v2540
    %2669 = vmatpush.bf16.msra.mxu0 %v2539
    %2670 = vmatpush.bf16.msra.mxu0 %v2538
    %2671 = vmatpush.bf16.msra.mxu0 %v2537
    %2672 = vmatpush.bf16.msra.mxu0 %v2536
    %2673 = vmatpush.bf16.msra.mxu0 %v2535
    %2674 = vmatpush.bf16.msra.mxu0 %v2534
    %2675 = vmatmul.bf16.gmra.mxu0 %v1510
    %v2676 = vpop.f32.mrf.mxu0
    %v2677 = vadd.f32 %v2664, %v2676
    %v2678 = vpop.f32.mrf.mxu0
    %2679 = vdwg.mxu0
    %2680 = vmatpush.bf16.msra.mxu0 %v2549
    %2681 = vmatpush.bf16.msra.mxu0 %v2548
    %2682 = vmatpush.bf16.msra.mxu0 %v2547
    %2683 = vmatpush.bf16.msra.mxu0 %v2546
    %2684 = vmatpush.bf16.msra.mxu0 %v2545
    %2685 = vmatpush.bf16.msra.mxu0 %v2544
    %2686 = vmatpush.bf16.msra.mxu0 %v2543
    %2687 = vmatpush.bf16.msra.mxu0 %v2542
    %2688 = vmatmul.bf16.gmra.mxu0 %v1511
    %v2689 = vpop.f32.mrf.mxu0
    %v2690 = vadd.f32 %v2677, %v2689
    %v2691 = vpop.f32.mrf.mxu0
    %2692 = vdwg.mxu0
    %2693 = vmatpush.bf16.msra.mxu0 %v2557
    %2694 = vmatpush.bf16.msra.mxu0 %v2556
    %2695 = vmatpush.bf16.msra.mxu0 %v2555
    %2696 = vmatpush.bf16.msra.mxu0 %v2554
    %2697 = vmatpush.bf16.msra.mxu0 %v2553
    %2698 = vmatpush.bf16.msra.mxu0 %v2552
    %2699 = vmatpush.bf16.msra.mxu0 %v2551
    %2700 = vmatpush.bf16.msra.mxu0 %v2550
    %2701 = vmatmul.bf16.gmra.mxu0 %v1512
    %v2702 = vpop.f32.mrf.mxu0
    %v2703 = vadd.f32 %v2690, %v2702
    %v2704 = vpop.f32.mrf.mxu0
    %2705 = vdwg.mxu0
    %2706 = vmatpush.bf16.msra.mxu0 %v2565
    %2707 = vmatpush.bf16.msra.mxu0 %v2564
    %2708 = vmatpush.bf16.msra.mxu0 %v2563
    %2709 = vmatpush.bf16.msra.mxu0 %v2562
    %2710 = vmatpush.bf16.msra.mxu0 %v2561
    %2711 = vmatpush.bf16.msra.mxu0 %v2560
    %2712 = vmatpush.bf16.msra.mxu0 %v2559
    %2713 = vmatpush.bf16.msra.mxu0 %v2558
    %2714 = vmatmul.bf16.gmra.mxu0 %v1513
    %v2715 = vpop.f32.mrf.mxu0
    %v2716 = vadd.f32 %v2703, %v2715
    %v2717 = vpop.f32.mrf.mxu0
    %2718 = vdwg.mxu0
    %2719 = vmatpush.bf16.msra.mxu0 %v2573
    %2720 = vmatpush.bf16.msra.mxu0 %v2572
    %2721 = vmatpush.bf16.msra.mxu0 %v2571
    %2722 = vmatpush.bf16.msra.mxu0 %v2570
    %2723 = vmatpush.bf16.msra.mxu0 %v2569
    %2724 = vmatpush.bf16.msra.mxu0 %v2568
    %2725 = vmatpush.bf16.msra.mxu0 %v2567
    %2726 = vmatpush.bf16.msra.mxu0 %v2566
    %2727 = vmatmul.bf16.gmra.mxu0 %v1514
    %v2728 = vpop.f32.mrf.mxu0
    %v2729 = vadd.f32 %v2716, %v2728
    %v2730 = vpop.f32.mrf.mxu0
    %2731 = vdwg.mxu0
    %2732 = vmatpush.bf16.msra.mxu0 %v2581
    %2733 = vmatpush.bf16.msra.mxu0 %v2580
    %2734 = vmatpush.bf16.msra.mxu0 %v2579
    %2735 = vmatpush.bf16.msra.mxu0 %v2578
    %2736 = vmatpush.bf16.msra.mxu0 %v2577
    %2737 = vmatpush.bf16.msra.mxu0 %v2576
    %2738 = vmatpush.bf16.msra.mxu0 %v2575
    %2739 = vmatpush.bf16.msra.mxu0 %v2574
    %2740 = vmatmul.bf16.gmra.mxu0 %v1515
    %v2741 = vpop.f32.mrf.mxu0
    %v2742 = vadd.f32 %v2729, %v2741
    %v2743 = vpop.f32.mrf.mxu0
    %2744 = vdwg.mxu0
    %2745 = vmatpush.bf16.msra.mxu0 %v2589
    %2746 = vmatpush.bf16.msra.mxu0 %v2588
    %2747 = vmatpush.bf16.msra.mxu0 %v2587
    %2748 = vmatpush.bf16.msra.mxu0 %v2586
    %2749 = vmatpush.bf16.msra.mxu0 %v2585
    %2750 = vmatpush.bf16.msra.mxu0 %v2584
    %2751 = vmatpush.bf16.msra.mxu0 %v2583
    %2752 = vmatpush.bf16.msra.mxu0 %v2582
    %2753 = vmatmul.bf16.gmra.mxu0 %v1516
    %v2754 = vpop.f32.mrf.mxu0
    %v2755 = vadd.f32 %v2742, %v2754
    %v2756 = vpop.f32.mrf.mxu0
    %2757 = vdwg.mxu0
    %v2758 = vpack.c.bf16 %v197, %v197
    %v2759 = vpack.c.bf16 %v198, %v198
    %v2760 = vpack.c.bf16 %v199, %v199
    %v2761 = vpack.c.bf16 %v200, %v200
    %v2762 = vpack.c.bf16 %v201, %v201
    %v2763 = vpack.c.bf16 %v202, %v202
    %v2764 = vpack.c.bf16 %v203, %v203
    %v2765 = vpack.c.bf16 %v204, %v204
    %s2766 = scalar_lea.vmem [#allocation5], 1024
    %v2767 = vld [vmem:[%s2766] sm:$0xf]
    %v2768 = vld [vmem:[%s2766 + $0x4] sm:$0xf]
    %v2769 = vld [vmem:[%s2766 + $0x8] sm:$0xf]
    %v2770 = vld [vmem:[%s2766 + $0xc] sm:$0xf]
    %v2771 = vld [vmem:[%s2766 + $0x10] sm:$0xf]
    %v2772 = vld [vmem:[%s2766 + $0x14] sm:$0xf]
    %v2773 = vld [vmem:[%s2766 + $0x18] sm:$0xf]
    %v2774 = vld [vmem:[%s2766 + $0x1c] sm:$0xf]
    %v2775 = vld [vmem:[%s2766 + $0x20] sm:$0xf]
    %v2776 = vld [vmem:[%s2766 + $0x24] sm:$0xf]
    %v2777 = vld [vmem:[%s2766 + $0x28] sm:$0xf]
    %v2778 = vld [vmem:[%s2766 + $0x2c] sm:$0xf]
    %v2779 = vld [vmem:[%s2766 + $0x30] sm:$0xf]
    %v2780 = vld [vmem:[%s2766 + $0x34] sm:$0xf]
    %v2781 = vld [vmem:[%s2766 + $0x38] sm:$0xf]
    %v2782 = vld [vmem:[%s2766 + $0x3c] sm:$0xf]
    %v2783 = vld [vmem:[%s2766 + $0x40] sm:$0xf]
    %v2784 = vld [vmem:[%s2766 + $0x44] sm:$0xf]
    %v2785 = vld [vmem:[%s2766 + $0x48] sm:$0xf]
    %v2786 = vld [vmem:[%s2766 + $0x4c] sm:$0xf]
    %v2787 = vld [vmem:[%s2766 + $0x50] sm:$0xf]
    %v2788 = vld [vmem:[%s2766 + $0x54] sm:$0xf]
    %v2789 = vld [vmem:[%s2766 + $0x58] sm:$0xf]
    %v2790 = vld [vmem:[%s2766 + $0x5c] sm:$0xf]
    %v2791 = vld [vmem:[%s2766 + $0x60] sm:$0xf]
    %v2792 = vld [vmem:[%s2766 + $0x64] sm:$0xf]
    %v2793 = vld [vmem:[%s2766 + $0x68] sm:$0xf]
    %v2794 = vld [vmem:[%s2766 + $0x6c] sm:$0xf]
    %v2795 = vld [vmem:[%s2766 + $0x70] sm:$0xf]
    %v2796 = vld [vmem:[%s2766 + $0x74] sm:$0xf]
    %v2797 = vld [vmem:[%s2766 + $0x78] sm:$0xf]
    %v2798 = vld [vmem:[%s2766 + $0x7c] sm:$0xf]
    %v2799 = vld [vmem:[%s2766 + $0x80] sm:$0xf]
    %v2800 = vld [vmem:[%s2766 + $0x84] sm:$0xf]
    %v2801 = vld [vmem:[%s2766 + $0x88] sm:$0xf]
    %v2802 = vld [vmem:[%s2766 + $0x8c] sm:$0xf]
    %v2803 = vld [vmem:[%s2766 + $0x90] sm:$0xf]
    %v2804 = vld [vmem:[%s2766 + $0x94] sm:$0xf]
    %v2805 = vld [vmem:[%s2766 + $0x98] sm:$0xf]
    %v2806 = vld [vmem:[%s2766 + $0x9c] sm:$0xf]
    %v2807 = vld [vmem:[%s2766 + $0xa0] sm:$0xf]
    %v2808 = vld [vmem:[%s2766 + $0xa4] sm:$0xf]
    %v2809 = vld [vmem:[%s2766 + $0xa8] sm:$0xf]
    %v2810 = vld [vmem:[%s2766 + $0xac] sm:$0xf]
    %v2811 = vld [vmem:[%s2766 + $0xb0] sm:$0xf]
    %v2812 = vld [vmem:[%s2766 + $0xb4] sm:$0xf]
    %v2813 = vld [vmem:[%s2766 + $0xb8] sm:$0xf]
    %v2814 = vld [vmem:[%s2766 + $0xbc] sm:$0xf]
    %v2815 = vld [vmem:[%s2766 + $0xc0] sm:$0xf]
    %v2816 = vld [vmem:[%s2766 + $0xc4] sm:$0xf]
    %v2817 = vld [vmem:[%s2766 + $0xc8] sm:$0xf]
    %v2818 = vld [vmem:[%s2766 + $0xcc] sm:$0xf]
    %v2819 = vld [vmem:[%s2766 + $0xd0] sm:$0xf]
    %v2820 = vld [vmem:[%s2766 + $0xd4] sm:$0xf]
    %v2821 = vld [vmem:[%s2766 + $0xd8] sm:$0xf]
    %v2822 = vld [vmem:[%s2766 + $0xdc] sm:$0xf]
    %v2823 = vld [vmem:[%s2766 + $0xe0] sm:$0xf]
    %v2824 = vld [vmem:[%s2766 + $0xe4] sm:$0xf]
    %v2825 = vld [vmem:[%s2766 + $0xe8] sm:$0xf]
    %v2826 = vld [vmem:[%s2766 + $0xec] sm:$0xf]
    %v2827 = vld [vmem:[%s2766 + $0xf0] sm:$0xf]
    %v2828 = vld [vmem:[%s2766 + $0xf4] sm:$0xf]
    %v2829 = vld [vmem:[%s2766 + $0xf8] sm:$0xf]
    %v2830 = vld [vmem:[%s2766 + $0xfc] sm:$0xf]
    %v2831 = vld [vmem:[%s2766 + $0x100] sm:$0xf]
    %v2832 = vld [vmem:[%s2766 + $0x104] sm:$0xf]
    %v2833 = vld [vmem:[%s2766 + $0x108] sm:$0xf]
    %v2834 = vld [vmem:[%s2766 + $0x10c] sm:$0xf]
    %v2835 = vld [vmem:[%s2766 + $0x110] sm:$0xf]
    %v2836 = vld [vmem:[%s2766 + $0x114] sm:$0xf]
    %v2837 = vld [vmem:[%s2766 + $0x118] sm:$0xf]
    %v2838 = vld [vmem:[%s2766 + $0x11c] sm:$0xf]
    %v2839 = vld [vmem:[%s2766 + $0x120] sm:$0xf]
    %v2840 = vld [vmem:[%s2766 + $0x124] sm:$0xf]
    %v2841 = vld [vmem:[%s2766 + $0x128] sm:$0xf]
    %v2842 = vld [vmem:[%s2766 + $0x12c] sm:$0xf]
    %v2843 = vld [vmem:[%s2766 + $0x130] sm:$0xf]
    %v2844 = vld [vmem:[%s2766 + $0x134] sm:$0xf]
    %v2845 = vld [vmem:[%s2766 + $0x138] sm:$0xf]
    %v2846 = vld [vmem:[%s2766 + $0x13c] sm:$0xf]
    %v2847 = vld [vmem:[%s2766 + $0x140] sm:$0xf]
    %v2848 = vld [vmem:[%s2766 + $0x144] sm:$0xf]
    %v2849 = vld [vmem:[%s2766 + $0x148] sm:$0xf]
    %v2850 = vld [vmem:[%s2766 + $0x14c] sm:$0xf]
    %v2851 = vld [vmem:[%s2766 + $0x150] sm:$0xf]
    %v2852 = vld [vmem:[%s2766 + $0x154] sm:$0xf]
    %v2853 = vld [vmem:[%s2766 + $0x158] sm:$0xf]
    %v2854 = vld [vmem:[%s2766 + $0x15c] sm:$0xf]
    %v2855 = vld [vmem:[%s2766 + $0x160] sm:$0xf]
    %v2856 = vld [vmem:[%s2766 + $0x164] sm:$0xf]
    %v2857 = vld [vmem:[%s2766 + $0x168] sm:$0xf]
    %v2858 = vld [vmem:[%s2766 + $0x16c] sm:$0xf]
    %v2859 = vld [vmem:[%s2766 + $0x170] sm:$0xf]
    %v2860 = vld [vmem:[%s2766 + $0x174] sm:$0xf]
    %v2861 = vld [vmem:[%s2766 + $0x178] sm:$0xf]
    %v2862 = vld [vmem:[%s2766 + $0x17c] sm:$0xf]
    %v2863 = vld [vmem:[%s2766 + $0x180] sm:$0xf]
    %v2864 = vld [vmem:[%s2766 + $0x184] sm:$0xf]
    %v2865 = vld [vmem:[%s2766 + $0x188] sm:$0xf]
    %v2866 = vld [vmem:[%s2766 + $0x18c] sm:$0xf]
    %v2867 = vld [vmem:[%s2766 + $0x190] sm:$0xf]
    %v2868 = vld [vmem:[%s2766 + $0x194] sm:$0xf]
    %v2869 = vld [vmem:[%s2766 + $0x198] sm:$0xf]
    %v2870 = vld [vmem:[%s2766 + $0x19c] sm:$0xf]
    %v2871 = vld [vmem:[%s2766 + $0x1a0] sm:$0xf]
    %v2872 = vld [vmem:[%s2766 + $0x1a4] sm:$0xf]
    %v2873 = vld [vmem:[%s2766 + $0x1a8] sm:$0xf]
    %v2874 = vld [vmem:[%s2766 + $0x1ac] sm:$0xf]
    %v2875 = vld [vmem:[%s2766 + $0x1b0] sm:$0xf]
    %v2876 = vld [vmem:[%s2766 + $0x1b4] sm:$0xf]
    %v2877 = vld [vmem:[%s2766 + $0x1b8] sm:$0xf]
    %v2878 = vld [vmem:[%s2766 + $0x1bc] sm:$0xf]
    %v2879 = vld [vmem:[%s2766 + $0x1c0] sm:$0xf]
    %v2880 = vld [vmem:[%s2766 + $0x1c4] sm:$0xf]
    %v2881 = vld [vmem:[%s2766 + $0x1c8] sm:$0xf]
    %v2882 = vld [vmem:[%s2766 + $0x1cc] sm:$0xf]
    %v2883 = vld [vmem:[%s2766 + $0x1d0] sm:$0xf]
    %v2884 = vld [vmem:[%s2766 + $0x1d4] sm:$0xf]
    %v2885 = vld [vmem:[%s2766 + $0x1d8] sm:$0xf]
    %v2886 = vld [vmem:[%s2766 + $0x1dc] sm:$0xf]
    %v2887 = vld [vmem:[%s2766 + $0x1e0] sm:$0xf]
    %v2888 = vld [vmem:[%s2766 + $0x1e4] sm:$0xf]
    %v2889 = vld [vmem:[%s2766 + $0x1e8] sm:$0xf]
    %v2890 = vld [vmem:[%s2766 + $0x1ec] sm:$0xf]
    %v2891 = vld [vmem:[%s2766 + $0x1f0] sm:$0xf]
    %v2892 = vld [vmem:[%s2766 + $0x1f4] sm:$0xf]
    %v2893 = vld [vmem:[%s2766 + $0x1f8] sm:$0xf]
    %v2894 = vld [vmem:[%s2766 + $0x1fc] sm:$0xf]
    %v3023 = vunpack.c.l.b16 %v2767
    %v3024 = vunpack.c.l.b16 %v2768
    %v3025 = vunpack.c.l.b16 %v2769
    %v3026 = vunpack.c.l.b16 %v2770
    %v3027 = vunpack.c.l.b16 %v2771
    %v3028 = vunpack.c.l.b16 %v2772
    %v3029 = vunpack.c.l.b16 %v2773
    %v3030 = vunpack.c.l.b16 %v2774
    %v3031 = vunpack.c.l.b16 %v2775
    %v3032 = vunpack.c.l.b16 %v2776
    %v3033 = vunpack.c.l.b16 %v2777
    %v3034 = vunpack.c.l.b16 %v2778
    %v3035 = vunpack.c.l.b16 %v2779
    %v3036 = vunpack.c.l.b16 %v2780
    %v3037 = vunpack.c.l.b16 %v2781
    %v3038 = vunpack.c.l.b16 %v2782
    %v3039 = vunpack.c.l.b16 %v2783
    %v3040 = vunpack.c.l.b16 %v2784
    %v3041 = vunpack.c.l.b16 %v2785
    %v3042 = vunpack.c.l.b16 %v2786
    %v3043 = vunpack.c.l.b16 %v2787
    %v3044 = vunpack.c.l.b16 %v2788
    %v3045 = vunpack.c.l.b16 %v2789
    %v3046 = vunpack.c.l.b16 %v2790
    %v3047 = vunpack.c.l.b16 %v2791
    %v3048 = vunpack.c.l.b16 %v2792
    %v3049 = vunpack.c.l.b16 %v2793
    %v3050 = vunpack.c.l.b16 %v2794
    %v3051 = vunpack.c.l.b16 %v2795
    %v3052 = vunpack.c.l.b16 %v2796
    %v3053 = vunpack.c.l.b16 %v2797
    %v3054 = vunpack.c.l.b16 %v2798
    %v3055 = vunpack.c.l.b16 %v2799
    %v3056 = vunpack.c.l.b16 %v2800
    %v3057 = vunpack.c.l.b16 %v2801
    %v3058 = vunpack.c.l.b16 %v2802
    %v3059 = vunpack.c.l.b16 %v2803
    %v3060 = vunpack.c.l.b16 %v2804
    %v3061 = vunpack.c.l.b16 %v2805
    %v3062 = vunpack.c.l.b16 %v2806
    %v3063 = vunpack.c.l.b16 %v2807
    %v3064 = vunpack.c.l.b16 %v2808
    %v3065 = vunpack.c.l.b16 %v2809
    %v3066 = vunpack.c.l.b16 %v2810
    %v3067 = vunpack.c.l.b16 %v2811
    %v3068 = vunpack.c.l.b16 %v2812
    %v3069 = vunpack.c.l.b16 %v2813
    %v3070 = vunpack.c.l.b16 %v2814
    %v3071 = vunpack.c.l.b16 %v2815
    %v3072 = vunpack.c.l.b16 %v2816
    %v3073 = vunpack.c.l.b16 %v2817
    %v3074 = vunpack.c.l.b16 %v2818
    %v3075 = vunpack.c.l.b16 %v2819
    %v3076 = vunpack.c.l.b16 %v2820
    %v3077 = vunpack.c.l.b16 %v2821
    %v3078 = vunpack.c.l.b16 %v2822
    %v3079 = vunpack.c.l.b16 %v2823
    %v3080 = vunpack.c.l.b16 %v2824
    %v3081 = vunpack.c.l.b16 %v2825
    %v3082 = vunpack.c.l.b16 %v2826
    %v3083 = vunpack.c.l.b16 %v2827
    %v3084 = vunpack.c.l.b16 %v2828
    %v3085 = vunpack.c.l.b16 %v2829
    %v3086 = vunpack.c.l.b16 %v2830
    %v3087 = vunpack.c.l.b16 %v2831
    %v3088 = vunpack.c.l.b16 %v2832
    %v3089 = vunpack.c.l.b16 %v2833
    %v3090 = vunpack.c.l.b16 %v2834
    %v3091 = vunpack.c.l.b16 %v2835
    %v3092 = vunpack.c.l.b16 %v2836
    %v3093 = vunpack.c.l.b16 %v2837
    %v3094 = vunpack.c.l.b16 %v2838
    %v3095 = vunpack.c.l.b16 %v2839
    %v3096 = vunpack.c.l.b16 %v2840
    %v3097 = vunpack.c.l.b16 %v2841
    %v3098 = vunpack.c.l.b16 %v2842
    %v3099 = vunpack.c.l.b16 %v2843
    %v3100 = vunpack.c.l.b16 %v2844
    %v3101 = vunpack.c.l.b16 %v2845
    %v3102 = vunpack.c.l.b16 %v2846
    %v3103 = vunpack.c.l.b16 %v2847
    %v3104 = vunpack.c.l.b16 %v2848
    %v3105 = vunpack.c.l.b16 %v2849
    %v3106 = vunpack.c.l.b16 %v2850
    %v3107 = vunpack.c.l.b16 %v2851
    %v3108 = vunpack.c.l.b16 %v2852
    %v3109 = vunpack.c.l.b16 %v2853
    %v3110 = vunpack.c.l.b16 %v2854
    %v3111 = vunpack.c.l.b16 %v2855
    %v3112 = vunpack.c.l.b16 %v2856
    %v3113 = vunpack.c.l.b16 %v2857
    %v3114 = vunpack.c.l.b16 %v2858
    %v3115 = vunpack.c.l.b16 %v2859
    %v3116 = vunpack.c.l.b16 %v2860
    %v3117 = vunpack.c.l.b16 %v2861
    %v3118 = vunpack.c.l.b16 %v2862
    %v3119 = vunpack.c.l.b16 %v2863
    %v3120 = vunpack.c.l.b16 %v2864
    %v3121 = vunpack.c.l.b16 %v2865
    %v3122 = vunpack.c.l.b16 %v2866
    %v3123 = vunpack.c.l.b16 %v2867
    %v3124 = vunpack.c.l.b16 %v2868
    %v3125 = vunpack.c.l.b16 %v2869
    %v3126 = vunpack.c.l.b16 %v2870
    %v3127 = vunpack.c.l.b16 %v2871
    %v3128 = vunpack.c.l.b16 %v2872
    %v3129 = vunpack.c.l.b16 %v2873
    %v3130 = vunpack.c.l.b16 %v2874
    %v3131 = vunpack.c.l.b16 %v2875
    %v3132 = vunpack.c.l.b16 %v2876
    %v3133 = vunpack.c.l.b16 %v2877
    %v3134 = vunpack.c.l.b16 %v2878
    %v3135 = vunpack.c.l.b16 %v2879
    %v3136 = vunpack.c.l.b16 %v2880
    %v3137 = vunpack.c.l.b16 %v2881
    %v3138 = vunpack.c.l.b16 %v2882
    %v3139 = vunpack.c.l.b16 %v2883
    %v3140 = vunpack.c.l.b16 %v2884
    %v3141 = vunpack.c.l.b16 %v2885
    %v3142 = vunpack.c.l.b16 %v2886
    %v3143 = vunpack.c.l.b16 %v2887
    %v3144 = vunpack.c.l.b16 %v2888
    %v3145 = vunpack.c.l.b16 %v2889
    %v3146 = vunpack.c.l.b16 %v2890
    %v3147 = vunpack.c.l.b16 %v2891
    %v3148 = vunpack.c.l.b16 %v2892
    %v3149 = vunpack.c.l.b16 %v2893
    %v3150 = vunpack.c.l.b16 %v2894
    %v3151 = vpack.c.b16 %v3024, %v3023
    %v3152 = vpack.c.b16 %v3026, %v3025
    %v3153 = vpack.c.b16 %v3028, %v3027
    %v3154 = vpack.c.b16 %v3030, %v3029
    %v3155 = vpack.c.b16 %v3032, %v3031
    %v3156 = vpack.c.b16 %v3034, %v3033
    %v3157 = vpack.c.b16 %v3036, %v3035
    %v3158 = vpack.c.b16 %v3038, %v3037
    %v3159 = vpack.c.b16 %v3040, %v3039
    %v3160 = vpack.c.b16 %v3042, %v3041
    %v3161 = vpack.c.b16 %v3044, %v3043
    %v3162 = vpack.c.b16 %v3046, %v3045
    %v3163 = vpack.c.b16 %v3048, %v3047
    %v3164 = vpack.c.b16 %v3050, %v3049
    %v3165 = vpack.c.b16 %v3052, %v3051
    %v3166 = vpack.c.b16 %v3054, %v3053
    %v3167 = vpack.c.b16 %v3056, %v3055
    %v3168 = vpack.c.b16 %v3058, %v3057
    %v3169 = vpack.c.b16 %v3060, %v3059
    %v3170 = vpack.c.b16 %v3062, %v3061
    %v3171 = vpack.c.b16 %v3064, %v3063
    %v3172 = vpack.c.b16 %v3066, %v3065
    %v3173 = vpack.c.b16 %v3068, %v3067
    %v3174 = vpack.c.b16 %v3070, %v3069
    %v3175 = vpack.c.b16 %v3072, %v3071
    %v3176 = vpack.c.b16 %v3074, %v3073
    %v3177 = vpack.c.b16 %v3076, %v3075
    %v3178 = vpack.c.b16 %v3078, %v3077
    %v3179 = vpack.c.b16 %v3080, %v3079
    %v3180 = vpack.c.b16 %v3082, %v3081
    %v3181 = vpack.c.b16 %v3084, %v3083
    %v3182 = vpack.c.b16 %v3086, %v3085
    %v3183 = vpack.c.b16 %v3088, %v3087
    %v3184 = vpack.c.b16 %v3090, %v3089
    %v3185 = vpack.c.b16 %v3092, %v3091
    %v3186 = vpack.c.b16 %v3094, %v3093
    %v3187 = vpack.c.b16 %v3096, %v3095
    %v3188 = vpack.c.b16 %v3098, %v3097
    %v3189 = vpack.c.b16 %v3100, %v3099
    %v3190 = vpack.c.b16 %v3102, %v3101
    %v3191 = vpack.c.b16 %v3104, %v3103
    %v3192 = vpack.c.b16 %v3106, %v3105
    %v3193 = vpack.c.b16 %v3108, %v3107
    %v3194 = vpack.c.b16 %v3110, %v3109
    %v3195 = vpack.c.b16 %v3112, %v3111
    %v3196 = vpack.c.b16 %v3114, %v3113
    %v3197 = vpack.c.b16 %v3116, %v3115
    %v3198 = vpack.c.b16 %v3118, %v3117
    %v3199 = vpack.c.b16 %v3120, %v3119
    %v3200 = vpack.c.b16 %v3122, %v3121
    %v3201 = vpack.c.b16 %v3124, %v3123
    %v3202 = vpack.c.b16 %v3126, %v3125
    %v3203 = vpack.c.b16 %v3128, %v3127
    %v3204 = vpack.c.b16 %v3130, %v3129
    %v3205 = vpack.c.b16 %v3132, %v3131
    %v3206 = vpack.c.b16 %v3134, %v3133
    %v3207 = vpack.c.b16 %v3136, %v3135
    %v3208 = vpack.c.b16 %v3138, %v3137
    %v3209 = vpack.c.b16 %v3140, %v3139
    %v3210 = vpack.c.b16 %v3142, %v3141
    %v3211 = vpack.c.b16 %v3144, %v3143
    %v3212 = vpack.c.b16 %v3146, %v3145
    %v3213 = vpack.c.b16 %v3148, %v3147
    %v3214 = vpack.c.b16 %v3150, %v3149
    %3279 = vmatpush.bf16.msra.mxu0 %v3158
    %3280 = vmatpush.bf16.msra.mxu0 %v3157
    %3281 = vmatpush.bf16.msra.mxu0 %v3156
    %3282 = vmatpush.bf16.msra.mxu0 %v3155
    %3283 = vmatpush.bf16.msra.mxu0 %v3154
    %3284 = vmatpush.bf16.msra.mxu0 %v3153
    %3285 = vmatpush.bf16.msra.mxu0 %v3152
    %3286 = vmatpush.bf16.msra.mxu0 %v3151
    %3287 = vmatmul.bf16.gmra.mxu0 %v2758
    %v3288 = vpop.f32.mrf.mxu0
    %v3289 = vadd.f32 0.0, %v3288
    %v3290 = vpop.f32.mrf.mxu0
    %3291 = vdwg.mxu0
    %3292 = vmatpush.bf16.msra.mxu0 %v3166
    %3293 = vmatpush.bf16.msra.mxu0 %v3165
    %3294 = vmatpush.bf16.msra.mxu0 %v3164
    %3295 = vmatpush.bf16.msra.mxu0 %v3163
    %3296 = vmatpush.bf16.msra.mxu0 %v3162
    %3297 = vmatpush.bf16.msra.mxu0 %v3161
    %3298 = vmatpush.bf16.msra.mxu0 %v3160
    %3299 = vmatpush.bf16.msra.mxu0 %v3159
    %3300 = vmatmul.bf16.gmra.mxu0 %v2759
    %v3301 = vpop.f32.mrf.mxu0
    %v3302 = vadd.f32 %v3289, %v3301
    %v3303 = vpop.f32.mrf.mxu0
    %3304 = vdwg.mxu0
    %3305 = vmatpush.bf16.msra.mxu0 %v3174
    %3306 = vmatpush.bf16.msra.mxu0 %v3173
    %3307 = vmatpush.bf16.msra.mxu0 %v3172
    %3308 = vmatpush.bf16.msra.mxu0 %v3171
    %3309 = vmatpush.bf16.msra.mxu0 %v3170
    %3310 = vmatpush.bf16.msra.mxu0 %v3169
    %3311 = vmatpush.bf16.msra.mxu0 %v3168
    %3312 = vmatpush.bf16.msra.mxu0 %v3167
    %3313 = vmatmul.bf16.gmra.mxu0 %v2760
    %v3314 = vpop.f32.mrf.mxu0
    %v3315 = vadd.f32 %v3302, %v3314
    %v3316 = vpop.f32.mrf.mxu0
    %3317 = vdwg.mxu0
    %3318 = vmatpush.bf16.msra.mxu0 %v3182
    %3319 = vmatpush.bf16.msra.mxu0 %v3181
    %3320 = vmatpush.bf16.msra.mxu0 %v3180
    %3321 = vmatpush.bf16.msra.mxu0 %v3179
    %3322 = vmatpush.bf16.msra.mxu0 %v3178
    %3323 = vmatpush.bf16.msra.mxu0 %v3177
    %3324 = vmatpush.bf16.msra.mxu0 %v3176
    %3325 = vmatpush.bf16.msra.mxu0 %v3175
    %3326 = vmatmul.bf16.gmra.mxu0 %v2761
    %v3327 = vpop.f32.mrf.mxu0
    %v3328 = vadd.f32 %v3315, %v3327
    %v3329 = vpop.f32.mrf.mxu0
    %3330 = vdwg.mxu0
    %3331 = vmatpush.bf16.msra.mxu0 %v3190
    %3332 = vmatpush.bf16.msra.mxu0 %v3189
    %3333 = vmatpush.bf16.msra.mxu0 %v3188
    %3334 = vmatpush.bf16.msra.mxu0 %v3187
    %3335 = vmatpush.bf16.msra.mxu0 %v3186
    %3336 = vmatpush.bf16.msra.mxu0 %v3185
    %3337 = vmatpush.bf16.msra.mxu0 %v3184
    %3338 = vmatpush.bf16.msra.mxu0 %v3183
    %3339 = vmatmul.bf16.gmra.mxu0 %v2762
    %v3340 = vpop.f32.mrf.mxu0
    %v3341 = vadd.f32 %v3328, %v3340
    %v3342 = vpop.f32.mrf.mxu0
    %3343 = vdwg.mxu0
    %3344 = vmatpush.bf16.msra.mxu0 %v3198
    %3345 = vmatpush.bf16.msra.mxu0 %v3197
    %3346 = vmatpush.bf16.msra.mxu0 %v3196
    %3347 = vmatpush.bf16.msra.mxu0 %v3195
    %3348 = vmatpush.bf16.msra.mxu0 %v3194
    %3349 = vmatpush.bf16.msra.mxu0 %v3193
    %3350 = vmatpush.bf16.msra.mxu0 %v3192
    %3351 = vmatpush.bf16.msra.mxu0 %v3191
    %3352 = vmatmul.bf16.gmra.mxu0 %v2763
    %v3353 = vpop.f32.mrf.mxu0
    %v3354 = vadd.f32 %v3341, %v3353
    %v3355 = vpop.f32.mrf.mxu0
    %3356 = vdwg.mxu0
    %3357 = vmatpush.bf16.msra.mxu0 %v3206
    %3358 = vmatpush.bf16.msra.mxu0 %v3205
    %3359 = vmatpush.bf16.msra.mxu0 %v3204
    %3360 = vmatpush.bf16.msra.mxu0 %v3203
    %3361 = vmatpush.bf16.msra.mxu0 %v3202
    %3362 = vmatpush.bf16.msra.mxu0 %v3201
    %3363 = vmatpush.bf16.msra.mxu0 %v3200
    %3364 = vmatpush.bf16.msra.mxu0 %v3199
    %3365 = vmatmul.bf16.gmra.mxu0 %v2764
    %v3366 = vpop.f32.mrf.mxu0
    %v3367 = vadd.f32 %v3354, %v3366
    %v3368 = vpop.f32.mrf.mxu0
    %3369 = vdwg.mxu0
    %3370 = vmatpush.bf16.msra.mxu0 %v3214
    %3371 = vmatpush.bf16.msra.mxu0 %v3213
    %3372 = vmatpush.bf16.msra.mxu0 %v3212
    %3373 = vmatpush.bf16.msra.mxu0 %v3211
    %3374 = vmatpush.bf16.msra.mxu0 %v3210
    %3375 = vmatpush.bf16.msra.mxu0 %v3209
    %3376 = vmatpush.bf16.msra.mxu0 %v3208
    %3377 = vmatpush.bf16.msra.mxu0 %v3207
    %3378 = vmatmul.bf16.gmra.mxu0 %v2765
    %v3379 = vpop.f32.mrf.mxu0
    %v3380 = vadd.f32 %v3367, %v3379
    %v3381 = vpop.f32.mrf.mxu0
    %3382 = vdwg.mxu0
    %v3383 = vadd.f32 %v2755, %v3380
    %v3384 = vpack.c.bf16 %v391, %v391
    %v3385 = vpack.c.bf16 %v546, %v546
    %v3386 = vpack.c.bf16 %v701, %v701
    %v3387 = vpack.c.bf16 %v856, %v856
    %v3388 = vpack.c.bf16 %v1011, %v1011
    %v3389 = vpack.c.bf16 %v1166, %v1166
    %v3390 = vpack.c.bf16 %v1321, %v1321
    %v3391 = vpack.c.bf16 %v1476, %v1476
    %s3392 = scalar_lea.vmem [#allocation5], 1536
    %v3393 = vld [vmem:[%s3392] sm:$0xf]
    %v3394 = vld [vmem:[%s3392 + $0x4] sm:$0xf]
    %v3395 = vld [vmem:[%s3392 + $0x8] sm:$0xf]
    %v3396 = vld [vmem:[%s3392 + $0xc] sm:$0xf]
    %v3397 = vld [vmem:[%s3392 + $0x10] sm:$0xf]
    %v3398 = vld [vmem:[%s3392 + $0x14] sm:$0xf]
    %v3399 = vld [vmem:[%s3392 + $0x18] sm:$0xf]
    %v3400 = vld [vmem:[%s3392 + $0x1c] sm:$0xf]
    %v3401 = vld [vmem:[%s3392 + $0x20] sm:$0xf]
    %v3402 = vld [vmem:[%s3392 + $0x24] sm:$0xf]
    %v3403 = vld [vmem:[%s3392 + $0x28] sm:$0xf]
    %v3404 = vld [vmem:[%s3392 + $0x2c] sm:$0xf]
    %v3405 = vld [vmem:[%s3392 + $0x30] sm:$0xf]
    %v3406 = vld [vmem:[%s3392 + $0x34] sm:$0xf]
    %v3407 = vld [vmem:[%s3392 + $0x38] sm:$0xf]
    %v3408 = vld [vmem:[%s3392 + $0x3c] sm:$0xf]
    %v3409 = vld [vmem:[%s3392 + $0x40] sm:$0xf]
    %v3410 = vld [vmem:[%s3392 + $0x44] sm:$0xf]
    %v3411 = vld [vmem:[%s3392 + $0x48] sm:$0xf]
    %v3412 = vld [vmem:[%s3392 + $0x4c] sm:$0xf]
    %v3413 = vld [vmem:[%s3392 + $0x50] sm:$0xf]
    %v3414 = vld [vmem:[%s3392 + $0x54] sm:$0xf]
    %v3415 = vld [vmem:[%s3392 + $0x58] sm:$0xf]
    %v3416 = vld [vmem:[%s3392 + $0x5c] sm:$0xf]
    %v3417 = vld [vmem:[%s3392 + $0x60] sm:$0xf]
    %v3418 = vld [vmem:[%s3392 + $0x64] sm:$0xf]
    %v3419 = vld [vmem:[%s3392 + $0x68] sm:$0xf]
    %v3420 = vld [vmem:[%s3392 + $0x6c] sm:$0xf]
    %v3421 = vld [vmem:[%s3392 + $0x70] sm:$0xf]
    %v3422 = vld [vmem:[%s3392 + $0x74] sm:$0xf]
    %v3423 = vld [vmem:[%s3392 + $0x78] sm:$0xf]
    %v3424 = vld [vmem:[%s3392 + $0x7c] sm:$0xf]
    %v3425 = vld [vmem:[%s3392 + $0x80] sm:$0xf]
    %v3426 = vld [vmem:[%s3392 + $0x84] sm:$0xf]
    %v3427 = vld [vmem:[%s3392 + $0x88] sm:$0xf]
    %v3428 = vld [vmem:[%s3392 + $0x8c] sm:$0xf]
    %v3429 = vld [vmem:[%s3392 + $0x90] sm:$0xf]
    %v3430 = vld [vmem:[%s3392 + $0x94] sm:$0xf]
    %v3431 = vld [vmem:[%s3392 + $0x98] sm:$0xf]
    %v3432 = vld [vmem:[%s3392 + $0x9c] sm:$0xf]
    %v3433 = vld [vmem:[%s3392 + $0xa0] sm:$0xf]
    %v3434 = vld [vmem:[%s3392 + $0xa4] sm:$0xf]
    %v3435 = vld [vmem:[%s3392 + $0xa8] sm:$0xf]
    %v3436 = vld [vmem:[%s3392 + $0xac] sm:$0xf]
    %v3437 = vld [vmem:[%s3392 + $0xb0] sm:$0xf]
    %v3438 = vld [vmem:[%s3392 + $0xb4] sm:$0xf]
    %v3439 = vld [vmem:[%s3392 + $0xb8] sm:$0xf]
    %v3440 = vld [vmem:[%s3392 + $0xbc] sm:$0xf]
    %v3441 = vld [vmem:[%s3392 + $0xc0] sm:$0xf]
    %v3442 = vld [vmem:[%s3392 + $0xc4] sm:$0xf]
    %v3443 = vld [vmem:[%s3392 + $0xc8] sm:$0xf]
    %v3444 = vld [vmem:[%s3392 + $0xcc] sm:$0xf]
    %v3445 = vld [vmem:[%s3392 + $0xd0] sm:$0xf]
    %v3446 = vld [vmem:[%s3392 + $0xd4] sm:$0xf]
    %v3447 = vld [vmem:[%s3392 + $0xd8] sm:$0xf]
    %v3448 = vld [vmem:[%s3392 + $0xdc] sm:$0xf]
    %v3449 = vld [vmem:[%s3392 + $0xe0] sm:$0xf]
    %v3450 = vld [vmem:[%s3392 + $0xe4] sm:$0xf]
    %v3451 = vld [vmem:[%s3392 + $0xe8] sm:$0xf]
    %v3452 = vld [vmem:[%s3392 + $0xec] sm:$0xf]
    %v3453 = vld [vmem:[%s3392 + $0xf0] sm:$0xf]
    %v3454 = vld [vmem:[%s3392 + $0xf4] sm:$0xf]
    %v3455 = vld [vmem:[%s3392 + $0xf8] sm:$0xf]
    %v3456 = vld [vmem:[%s3392 + $0xfc] sm:$0xf]
    %v3457 = vld [vmem:[%s3392 + $0x100] sm:$0xf]
    %v3458 = vld [vmem:[%s3392 + $0x104] sm:$0xf]
    %v3459 = vld [vmem:[%s3392 + $0x108] sm:$0xf]
    %v3460 = vld [vmem:[%s3392 + $0x10c] sm:$0xf]
    %v3461 = vld [vmem:[%s3392 + $0x110] sm:$0xf]
    %v3462 = vld [vmem:[%s3392 + $0x114] sm:$0xf]
    %v3463 = vld [vmem:[%s3392 + $0x118] sm:$0xf]
    %v3464 = vld [vmem:[%s3392 + $0x11c] sm:$0xf]
    %v3465 = vld [vmem:[%s3392 + $0x120] sm:$0xf]
    %v3466 = vld [vmem:[%s3392 + $0x124] sm:$0xf]
    %v3467 = vld [vmem:[%s3392 + $0x128] sm:$0xf]
    %v3468 = vld [vmem:[%s3392 + $0x12c] sm:$0xf]
    %v3469 = vld [vmem:[%s3392 + $0x130] sm:$0xf]
    %v3470 = vld [vmem:[%s3392 + $0x134] sm:$0xf]
    %v3471 = vld [vmem:[%s3392 + $0x138] sm:$0xf]
    %v3472 = vld [vmem:[%s3392 + $0x13c] sm:$0xf]
    %v3473 = vld [vmem:[%s3392 + $0x140] sm:$0xf]
    %v3474 = vld [vmem:[%s3392 + $0x144] sm:$0xf]
    %v3475 = vld [vmem:[%s3392 + $0x148] sm:$0xf]
    %v3476 = vld [vmem:[%s3392 + $0x14c] sm:$0xf]
    %v3477 = vld [vmem:[%s3392 + $0x150] sm:$0xf]
    %v3478 = vld [vmem:[%s3392 + $0x154] sm:$0xf]
    %v3479 = vld [vmem:[%s3392 + $0x158] sm:$0xf]
    %v3480 = vld [vmem:[%s3392 + $0x15c] sm:$0xf]
    %v3481 = vld [vmem:[%s3392 + $0x160] sm:$0xf]
    %v3482 = vld [vmem:[%s3392 + $0x164] sm:$0xf]
    %v3483 = vld [vmem:[%s3392 + $0x168] sm:$0xf]
    %v3484 = vld [vmem:[%s3392 + $0x16c] sm:$0xf]
    %v3485 = vld [vmem:[%s3392 + $0x170] sm:$0xf]
    %v3486 = vld [vmem:[%s3392 + $0x174] sm:$0xf]
    %v3487 = vld [vmem:[%s3392 + $0x178] sm:$0xf]
    %v3488 = vld [vmem:[%s3392 + $0x17c] sm:$0xf]
    %v3489 = vld [vmem:[%s3392 + $0x180] sm:$0xf]
    %v3490 = vld [vmem:[%s3392 + $0x184] sm:$0xf]
    %v3491 = vld [vmem:[%s3392 + $0x188] sm:$0xf]
    %v3492 = vld [vmem:[%s3392 + $0x18c] sm:$0xf]
    %v3493 = vld [vmem:[%s3392 + $0x190] sm:$0xf]
    %v3494 = vld [vmem:[%s3392 + $0x194] sm:$0xf]
    %v3495 = vld [vmem:[%s3392 + $0x198] sm:$0xf]
    %v3496 = vld [vmem:[%s3392 + $0x19c] sm:$0xf]
    %v3497 = vld [vmem:[%s3392 + $0x1a0] sm:$0xf]
    %v3498 = vld [vmem:[%s3392 + $0x1a4] sm:$0xf]
    %v3499 = vld [vmem:[%s3392 + $0x1a8] sm:$0xf]
    %v3500 = vld [vmem:[%s3392 + $0x1ac] sm:$0xf]
    %v3501 = vld [vmem:[%s3392 + $0x1b0] sm:$0xf]
    %v3502 = vld [vmem:[%s3392 + $0x1b4] sm:$0xf]
    %v3503 = vld [vmem:[%s3392 + $0x1b8] sm:$0xf]
    %v3504 = vld [vmem:[%s3392 + $0x1bc] sm:$0xf]
    %v3505 = vld [vmem:[%s3392 + $0x1c0] sm:$0xf]
    %v3506 = vld [vmem:[%s3392 + $0x1c4] sm:$0xf]
    %v3507 = vld [vmem:[%s3392 + $0x1c8] sm:$0xf]
    %v3508 = vld [vmem:[%s3392 + $0x1cc] sm:$0xf]
    %v3509 = vld [vmem:[%s3392 + $0x1d0] sm:$0xf]
    %v3510 = vld [vmem:[%s3392 + $0x1d4] sm:$0xf]
    %v3511 = vld [vmem:[%s3392 + $0x1d8] sm:$0xf]
    %v3512 = vld [vmem:[%s3392 + $0x1dc] sm:$0xf]
    %v3513 = vld [vmem:[%s3392 + $0x1e0] sm:$0xf]
    %v3514 = vld [vmem:[%s3392 + $0x1e4] sm:$0xf]
    %v3515 = vld [vmem:[%s3392 + $0x1e8] sm:$0xf]
    %v3516 = vld [vmem:[%s3392 + $0x1ec] sm:$0xf]
    %v3517 = vld [vmem:[%s3392 + $0x1f0] sm:$0xf]
    %v3518 = vld [vmem:[%s3392 + $0x1f4] sm:$0xf]
    %v3519 = vld [vmem:[%s3392 + $0x1f8] sm:$0xf]
    %v3520 = vld [vmem:[%s3392 + $0x1fc] sm:$0xf]
    %v3649 = vunpack.c.l.b16 %v3393
    %v3650 = vunpack.c.l.b16 %v3394
    %v3651 = vunpack.c.l.b16 %v3395
    %v3652 = vunpack.c.l.b16 %v3396
    %v3653 = vunpack.c.l.b16 %v3397
    %v3654 = vunpack.c.l.b16 %v3398
    %v3655 = vunpack.c.l.b16 %v3399
    %v3656 = vunpack.c.l.b16 %v3400
    %v3657 = vunpack.c.l.b16 %v3401
    %v3658 = vunpack.c.l.b16 %v3402
    %v3659 = vunpack.c.l.b16 %v3403
    %v3660 = vunpack.c.l.b16 %v3404
    %v3661 = vunpack.c.l.b16 %v3405
    %v3662 = vunpack.c.l.b16 %v3406
    %v3663 = vunpack.c.l.b16 %v3407
    %v3664 = vunpack.c.l.b16 %v3408
    %v3665 = vunpack.c.l.b16 %v3409
    %v3666 = vunpack.c.l.b16 %v3410
    %v3667 = vunpack.c.l.b16 %v3411
    %v3668 = vunpack.c.l.b16 %v3412
    %v3669 = vunpack.c.l.b16 %v3413
    %v3670 = vunpack.c.l.b16 %v3414
    %v3671 = vunpack.c.l.b16 %v3415
    %v3672 = vunpack.c.l.b16 %v3416
    %v3673 = vunpack.c.l.b16 %v3417
    %v3674 = vunpack.c.l.b16 %v3418
    %v3675 = vunpack.c.l.b16 %v3419
    %v3676 = vunpack.c.l.b16 %v3420
    %v3677 = vunpack.c.l.b16 %v3421
    %v3678 = vunpack.c.l.b16 %v3422
    %v3679 = vunpack.c.l.b16 %v3423
    %v3680 = vunpack.c.l.b16 %v3424
    %v3681 = vunpack.c.l.b16 %v3425
    %v3682 = vunpack.c.l.b16 %v3426
    %v3683 = vunpack.c.l.b16 %v3427
    %v3684 = vunpack.c.l.b16 %v3428
    %v3685 = vunpack.c.l.b16 %v3429
    %v3686 = vunpack.c.l.b16 %v3430
    %v3687 = vunpack.c.l.b16 %v3431
    %v3688 = vunpack.c.l.b16 %v3432
    %v3689 = vunpack.c.l.b16 %v3433
    %v3690 = vunpack.c.l.b16 %v3434
    %v3691 = vunpack.c.l.b16 %v3435
    %v3692 = vunpack.c.l.b16 %v3436
    %v3693 = vunpack.c.l.b16 %v3437
    %v3694 = vunpack.c.l.b16 %v3438
    %v3695 = vunpack.c.l.b16 %v3439
    %v3696 = vunpack.c.l.b16 %v3440
    %v3697 = vunpack.c.l.b16 %v3441
    %v3698 = vunpack.c.l.b16 %v3442
    %v3699 = vunpack.c.l.b16 %v3443
    %v3700 = vunpack.c.l.b16 %v3444
    %v3701 = vunpack.c.l.b16 %v3445
    %v3702 = vunpack.c.l.b16 %v3446
    %v3703 = vunpack.c.l.b16 %v3447
    %v3704 = vunpack.c.l.b16 %v3448
    %v3705 = vunpack.c.l.b16 %v3449
    %v3706 = vunpack.c.l.b16 %v3450
    %v3707 = vunpack.c.l.b16 %v3451
    %v3708 = vunpack.c.l.b16 %v3452
    %v3709 = vunpack.c.l.b16 %v3453
    %v3710 = vunpack.c.l.b16 %v3454
    %v3711 = vunpack.c.l.b16 %v3455
    %v3712 = vunpack.c.l.b16 %v3456
    %v3713 = vunpack.c.l.b16 %v3457
    %v3714 = vunpack.c.l.b16 %v3458
    %v3715 = vunpack.c.l.b16 %v3459
    %v3716 = vunpack.c.l.b16 %v3460
    %v3717 = vunpack.c.l.b16 %v3461
    %v3718 = vunpack.c.l.b16 %v3462
    %v3719 = vunpack.c.l.b16 %v3463
    %v3720 = vunpack.c.l.b16 %v3464
    %v3721 = vunpack.c.l.b16 %v3465
    %v3722 = vunpack.c.l.b16 %v3466
    %v3723 = vunpack.c.l.b16 %v3467
    %v3724 = vunpack.c.l.b16 %v3468
    %v3725 = vunpack.c.l.b16 %v3469
    %v3726 = vunpack.c.l.b16 %v3470
    %v3727 = vunpack.c.l.b16 %v3471
    %v3728 = vunpack.c.l.b16 %v3472
    %v3729 = vunpack.c.l.b16 %v3473
    %v3730 = vunpack.c.l.b16 %v3474
    %v3731 = vunpack.c.l.b16 %v3475
    %v3732 = vunpack.c.l.b16 %v3476
    %v3733 = vunpack.c.l.b16 %v3477
    %v3734 = vunpack.c.l.b16 %v3478
    %v3735 = vunpack.c.l.b16 %v3479
    %v3736 = vunpack.c.l.b16 %v3480
    %v3737 = vunpack.c.l.b16 %v3481
    %v3738 = vunpack.c.l.b16 %v3482
    %v3739 = vunpack.c.l.b16 %v3483
    %v3740 = vunpack.c.l.b16 %v3484
    %v3741 = vunpack.c.l.b16 %v3485
    %v3742 = vunpack.c.l.b16 %v3486
    %v3743 = vunpack.c.l.b16 %v3487
    %v3744 = vunpack.c.l.b16 %v3488
    %v3745 = vunpack.c.l.b16 %v3489
    %v3746 = vunpack.c.l.b16 %v3490
    %v3747 = vunpack.c.l.b16 %v3491
    %v3748 = vunpack.c.l.b16 %v3492
    %v3749 = vunpack.c.l.b16 %v3493
    %v3750 = vunpack.c.l.b16 %v3494
    %v3751 = vunpack.c.l.b16 %v3495
    %v3752 = vunpack.c.l.b16 %v3496
    %v3753 = vunpack.c.l.b16 %v3497
    %v3754 = vunpack.c.l.b16 %v3498
    %v3755 = vunpack.c.l.b16 %v3499
    %v3756 = vunpack.c.l.b16 %v3500
    %v3757 = vunpack.c.l.b16 %v3501
    %v3758 = vunpack.c.l.b16 %v3502
    %v3759 = vunpack.c.l.b16 %v3503
    %v3760 = vunpack.c.l.b16 %v3504
    %v3761 = vunpack.c.l.b16 %v3505
    %v3762 = vunpack.c.l.b16 %v3506
    %v3763 = vunpack.c.l.b16 %v3507
    %v3764 = vunpack.c.l.b16 %v3508
    %v3765 = vunpack.c.l.b16 %v3509
    %v3766 = vunpack.c.l.b16 %v3510
    %v3767 = vunpack.c.l.b16 %v3511
    %v3768 = vunpack.c.l.b16 %v3512
    %v3769 = vunpack.c.l.b16 %v3513
    %v3770 = vunpack.c.l.b16 %v3514
    %v3771 = vunpack.c.l.b16 %v3515
    %v3772 = vunpack.c.l.b16 %v3516
    %v3773 = vunpack.c.l.b16 %v3517
    %v3774 = vunpack.c.l.b16 %v3518
    %v3775 = vunpack.c.l.b16 %v3519
    %v3776 = vunpack.c.l.b16 %v3520
    %v3777 = vpack.c.b16 %v3650, %v3649
    %v3778 = vpack.c.b16 %v3652, %v3651
    %v3779 = vpack.c.b16 %v3654, %v3653
    %v3780 = vpack.c.b16 %v3656, %v3655
    %v3781 = vpack.c.b16 %v3658, %v3657
    %v3782 = vpack.c.b16 %v3660, %v3659
    %v3783 = vpack.c.b16 %v3662, %v3661
    %v3784 = vpack.c.b16 %v3664, %v3663
    %v3785 = vpack.c.b16 %v3666, %v3665
    %v3786 = vpack.c.b16 %v3668, %v3667
    %v3787 = vpack.c.b16 %v3670, %v3669
    %v3788 = vpack.c.b16 %v3672, %v3671
    %v3789 = vpack.c.b16 %v3674, %v3673
    %v3790 = vpack.c.b16 %v3676, %v3675
    %v3791 = vpack.c.b16 %v3678, %v3677
    %v3792 = vpack.c.b16 %v3680, %v3679
    %v3793 = vpack.c.b16 %v3682, %v3681
    %v3794 = vpack.c.b16 %v3684, %v3683
    %v3795 = vpack.c.b16 %v3686, %v3685
    %v3796 = vpack.c.b16 %v3688, %v3687
    %v3797 = vpack.c.b16 %v3690, %v3689
    %v3798 = vpack.c.b16 %v3692, %v3691
    %v3799 = vpack.c.b16 %v3694, %v3693
    %v3800 = vpack.c.b16 %v3696, %v3695
    %v3801 = vpack.c.b16 %v3698, %v3697
    %v3802 = vpack.c.b16 %v3700, %v3699
    %v3803 = vpack.c.b16 %v3702, %v3701
    %v3804 = vpack.c.b16 %v3704, %v3703
    %v3805 = vpack.c.b16 %v3706, %v3705
    %v3806 = vpack.c.b16 %v3708, %v3707
    %v3807 = vpack.c.b16 %v3710, %v3709
    %v3808 = vpack.c.b16 %v3712, %v3711
    %v3809 = vpack.c.b16 %v3714, %v3713
    %v3810 = vpack.c.b16 %v3716, %v3715
    %v3811 = vpack.c.b16 %v3718, %v3717
    %v3812 = vpack.c.b16 %v3720, %v3719
    %v3813 = vpack.c.b16 %v3722, %v3721
    %v3814 = vpack.c.b16 %v3724, %v3723
    %v3815 = vpack.c.b16 %v3726, %v3725
    %v3816 = vpack.c.b16 %v3728, %v3727
    %v3817 = vpack.c.b16 %v3730, %v3729
    %v3818 = vpack.c.b16 %v3732, %v3731
    %v3819 = vpack.c.b16 %v3734, %v3733
    %v3820 = vpack.c.b16 %v3736, %v3735
    %v3821 = vpack.c.b16 %v3738, %v3737
    %v3822 = vpack.c.b16 %v3740, %v3739
    %v3823 = vpack.c.b16 %v3742, %v3741
    %v3824 = vpack.c.b16 %v3744, %v3743
    %v3825 = vpack.c.b16 %v3746, %v3745
    %v3826 = vpack.c.b16 %v3748, %v3747
    %v3827 = vpack.c.b16 %v3750, %v3749
    %v3828 = vpack.c.b16 %v3752, %v3751
    %v3829 = vpack.c.b16 %v3754, %v3753
    %v3830 = vpack.c.b16 %v3756, %v3755
    %v3831 = vpack.c.b16 %v3758, %v3757
    %v3832 = vpack.c.b16 %v3760, %v3759
    %v3833 = vpack.c.b16 %v3762, %v3761
    %v3834 = vpack.c.b16 %v3764, %v3763
    %v3835 = vpack.c.b16 %v3766, %v3765
    %v3836 = vpack.c.b16 %v3768, %v3767
    %v3837 = vpack.c.b16 %v3770, %v3769
    %v3838 = vpack.c.b16 %v3772, %v3771
    %v3839 = vpack.c.b16 %v3774, %v3773
    %v3840 = vpack.c.b16 %v3776, %v3775
    %3905 = vmatpush.bf16.msra.mxu0 %v3784
    %3906 = vmatpush.bf16.msra.mxu0 %v3783
    %3907 = vmatpush.bf16.msra.mxu0 %v3782
    %3908 = vmatpush.bf16.msra.mxu0 %v3781
    %3909 = vmatpush.bf16.msra.mxu0 %v3780
    %3910 = vmatpush.bf16.msra.mxu0 %v3779
    %3911 = vmatpush.bf16.msra.mxu0 %v3778
    %3912 = vmatpush.bf16.msra.mxu0 %v3777
    %3913 = vmatmul.bf16.gmra.mxu0 %v3384
    %v3914 = vpop.f32.mrf.mxu0
    %v3915 = vadd.f32 0.0, %v3914
    %v3916 = vpop.f32.mrf.mxu0
    %3917 = vdwg.mxu0
    %3918 = vmatpush.bf16.msra.mxu0 %v3792
    %3919 = vmatpush.bf16.msra.mxu0 %v3791
    %3920 = vmatpush.bf16.msra.mxu0 %v3790
    %3921 = vmatpush.bf16.msra.mxu0 %v3789
    %3922 = vmatpush.bf16.msra.mxu0 %v3788
    %3923 = vmatpush.bf16.msra.mxu0 %v3787
    %3924 = vmatpush.bf16.msra.mxu0 %v3786
    %3925 = vmatpush.bf16.msra.mxu0 %v3785
    %3926 = vmatmul.bf16.gmra.mxu0 %v3385
    %v3927 = vpop.f32.mrf.mxu0
    %v3928 = vadd.f32 %v3915, %v3927
    %v3929 = vpop.f32.mrf.mxu0
    %3930 = vdwg.mxu0
    %3931 = vmatpush.bf16.msra.mxu0 %v3800
    %3932 = vmatpush.bf16.msra.mxu0 %v3799
    %3933 = vmatpush.bf16.msra.mxu0 %v3798
    %3934 = vmatpush.bf16.msra.mxu0 %v3797
    %3935 = vmatpush.bf16.msra.mxu0 %v3796
    %3936 = vmatpush.bf16.msra.mxu0 %v3795
    %3937 = vmatpush.bf16.msra.mxu0 %v3794
    %3938 = vmatpush.bf16.msra.mxu0 %v3793
    %3939 = vmatmul.bf16.gmra.mxu0 %v3386
    %v3940 = vpop.f32.mrf.mxu0
    %v3941 = vadd.f32 %v3928, %v3940
    %v3942 = vpop.f32.mrf.mxu0
    %3943 = vdwg.mxu0
    %3944 = vmatpush.bf16.msra.mxu0 %v3808
    %3945 = vmatpush.bf16.msra.mxu0 %v3807
    %3946 = vmatpush.bf16.msra.mxu0 %v3806
    %3947 = vmatpush.bf16.msra.mxu0 %v3805
    %3948 = vmatpush.bf16.msra.mxu0 %v3804
    %3949 = vmatpush.bf16.msra.mxu0 %v3803
    %3950 = vmatpush.bf16.msra.mxu0 %v3802
    %3951 = vmatpush.bf16.msra.mxu0 %v3801
    %3952 = vmatmul.bf16.gmra.mxu0 %v3387
    %v3953 = vpop.f32.mrf.mxu0
    %v3954 = vadd.f32 %v3941, %v3953
    %v3955 = vpop.f32.mrf.mxu0
    %3956 = vdwg.mxu0
    %3957 = vmatpush.bf16.msra.mxu0 %v3816
    %3958 = vmatpush.bf16.msra.mxu0 %v3815
    %3959 = vmatpush.bf16.msra.mxu0 %v3814
    %3960 = vmatpush.bf16.msra.mxu0 %v3813
    %3961 = vmatpush.bf16.msra.mxu0 %v3812
    %3962 = vmatpush.bf16.msra.mxu0 %v3811
    %3963 = vmatpush.bf16.msra.mxu0 %v3810
    %3964 = vmatpush.bf16.msra.mxu0 %v3809
    %3965 = vmatmul.bf16.gmra.mxu0 %v3388
    %v3966 = vpop.f32.mrf.mxu0
    %v3967 = vadd.f32 %v3954, %v3966
    %v3968 = vpop.f32.mrf.mxu0
    %3969 = vdwg.mxu0
    %3970 = vmatpush.bf16.msra.mxu0 %v3824
    %3971 = vmatpush.bf16.msra.mxu0 %v3823
    %3972 = vmatpush.bf16.msra.mxu0 %v3822
    %3973 = vmatpush.bf16.msra.mxu0 %v3821
    %3974 = vmatpush.bf16.msra.mxu0 %v3820
    %3975 = vmatpush.bf16.msra.mxu0 %v3819
    %3976 = vmatpush.bf16.msra.mxu0 %v3818
    %3977 = vmatpush.bf16.msra.mxu0 %v3817
    %3978 = vmatmul.bf16.gmra.mxu0 %v3389
    %v3979 = vpop.f32.mrf.mxu0
    %v3980 = vadd.f32 %v3967, %v3979
    %v3981 = vpop.f32.mrf.mxu0
    %3982 = vdwg.mxu0
    %3983 = vmatpush.bf16.msra.mxu0 %v3832
    %3984 = vmatpush.bf16.msra.mxu0 %v3831
    %3985 = vmatpush.bf16.msra.mxu0 %v3830
    %3986 = vmatpush.bf16.msra.mxu0 %v3829
    %3987 = vmatpush.bf16.msra.mxu0 %v3828
    %3988 = vmatpush.bf16.msra.mxu0 %v3827
    %3989 = vmatpush.bf16.msra.mxu0 %v3826
    %3990 = vmatpush.bf16.msra.mxu0 %v3825
    %3991 = vmatmul.bf16.gmra.mxu0 %v3390
    %v3992 = vpop.f32.mrf.mxu0
    %v3993 = vadd.f32 %v3980, %v3992
    %v3994 = vpop.f32.mrf.mxu0
    %3995 = vdwg.mxu0
    %3996 = vmatpush.bf16.msra.mxu0 %v3840
    %3997 = vmatpush.bf16.msra.mxu0 %v3839
    %3998 = vmatpush.bf16.msra.mxu0 %v3838
    %3999 = vmatpush.bf16.msra.mxu0 %v3837
    %4000 = vmatpush.bf16.msra.mxu0 %v3836
    %4001 = vmatpush.bf16.msra.mxu0 %v3835
    %4002 = vmatpush.bf16.msra.mxu0 %v3834
    %4003 = vmatpush.bf16.msra.mxu0 %v3833
    %4004 = vmatmul.bf16.gmra.mxu0 %v3391
    %v4005 = vpop.f32.mrf.mxu0
    %v4006 = vadd.f32 %v3993, %v4005
    %v4007 = vpop.f32.mrf.mxu0
    %4008 = vdwg.mxu0
    %v4009 = vadd.f32 %v3383, %v4006
    %v4010 = vpack.c.bf16 %v1494, %v1494
    %v4011 = vpack.c.bf16 %v1496, %v1496
    %v4012 = vpack.c.bf16 %v1498, %v1498
    %v4013 = vpack.c.bf16 %v1500, %v1500
    %v4014 = vpack.c.bf16 %v1502, %v1502
    %v4015 = vpack.c.bf16 %v1504, %v1504
    %v4016 = vpack.c.bf16 %v1506, %v1506
    %v4017 = vpack.c.bf16 %v1508, %v1508
    %s4018 = scalar_lea.vmem [#allocation5], 2048
    %v4019 = vld [vmem:[%s4018] sm:$0xf]
    %v4020 = vld [vmem:[%s4018 + $0x4] sm:$0xf]
    %v4021 = vld [vmem:[%s4018 + $0x8] sm:$0xf]
    %v4022 = vld [vmem:[%s4018 + $0xc] sm:$0xf]
    %v4023 = vld [vmem:[%s4018 + $0x10] sm:$0xf]
    %v4024 = vld [vmem:[%s4018 + $0x14] sm:$0xf]
    %v4025 = vld [vmem:[%s4018 + $0x18] sm:$0xf]
    %v4026 = vld [vmem:[%s4018 + $0x1c] sm:$0xf]
    %v4027 = vld [vmem:[%s4018 + $0x20] sm:$0xf]
    %v4028 = vld [vmem:[%s4018 + $0x24] sm:$0xf]
    %v4029 = vld [vmem:[%s4018 + $0x28] sm:$0xf]
    %v4030 = vld [vmem:[%s4018 + $0x2c] sm:$0xf]
    %v4031 = vld [vmem:[%s4018 + $0x30] sm:$0xf]
    %v4032 = vld [vmem:[%s4018 + $0x34] sm:$0xf]
    %v4033 = vld [vmem:[%s4018 + $0x38] sm:$0xf]
    %v4034 = vld [vmem:[%s4018 + $0x3c] sm:$0xf]
    %v4035 = vld [vmem:[%s4018 + $0x40] sm:$0xf]
    %v4036 = vld [vmem:[%s4018 + $0x44] sm:$0xf]
    %v4037 = vld [vmem:[%s4018 + $0x48] sm:$0xf]
    %v4038 = vld [vmem:[%s4018 + $0x4c] sm:$0xf]
    %v4039 = vld [vmem:[%s4018 + $0x50] sm:$0xf]
    %v4040 = vld [vmem:[%s4018 + $0x54] sm:$0xf]
    %v4041 = vld [vmem:[%s4018 + $0x58] sm:$0xf]
    %v4042 = vld [vmem:[%s4018 + $0x5c] sm:$0xf]
    %v4043 = vld [vmem:[%s4018 + $0x60] sm:$0xf]
    %v4044 = vld [vmem:[%s4018 + $0x64] sm:$0xf]
    %v4045 = vld [vmem:[%s4018 + $0x68] sm:$0xf]
    %v4046 = vld [vmem:[%s4018 + $0x6c] sm:$0xf]
    %v4047 = vld [vmem:[%s4018 + $0x70] sm:$0xf]
    %v4048 = vld [vmem:[%s4018 + $0x74] sm:$0xf]
    %v4049 = vld [vmem:[%s4018 + $0x78] sm:$0xf]
    %v4050 = vld [vmem:[%s4018 + $0x7c] sm:$0xf]
    %v4051 = vld [vmem:[%s4018 + $0x80] sm:$0xf]
    %v4052 = vld [vmem:[%s4018 + $0x84] sm:$0xf]
    %v4053 = vld [vmem:[%s4018 + $0x88] sm:$0xf]
    %v4054 = vld [vmem:[%s4018 + $0x8c] sm:$0xf]
    %v4055 = vld [vmem:[%s4018 + $0x90] sm:$0xf]
    %v4056 = vld [vmem:[%s4018 + $0x94] sm:$0xf]
    %v4057 = vld [vmem:[%s4018 + $0x98] sm:$0xf]
    %v4058 = vld [vmem:[%s4018 + $0x9c] sm:$0xf]
    %v4059 = vld [vmem:[%s4018 + $0xa0] sm:$0xf]
    %v4060 = vld [vmem:[%s4018 + $0xa4] sm:$0xf]
    %v4061 = vld [vmem:[%s4018 + $0xa8] sm:$0xf]
    %v4062 = vld [vmem:[%s4018 + $0xac] sm:$0xf]
    %v4063 = vld [vmem:[%s4018 + $0xb0] sm:$0xf]
    %v4064 = vld [vmem:[%s4018 + $0xb4] sm:$0xf]
    %v4065 = vld [vmem:[%s4018 + $0xb8] sm:$0xf]
    %v4066 = vld [vmem:[%s4018 + $0xbc] sm:$0xf]
    %v4067 = vld [vmem:[%s4018 + $0xc0] sm:$0xf]
    %v4068 = vld [vmem:[%s4018 + $0xc4] sm:$0xf]
    %v4069 = vld [vmem:[%s4018 + $0xc8] sm:$0xf]
    %v4070 = vld [vmem:[%s4018 + $0xcc] sm:$0xf]
    %v4071 = vld [vmem:[%s4018 + $0xd0] sm:$0xf]
    %v4072 = vld [vmem:[%s4018 + $0xd4] sm:$0xf]
    %v4073 = vld [vmem:[%s4018 + $0xd8] sm:$0xf]
    %v4074 = vld [vmem:[%s4018 + $0xdc] sm:$0xf]
    %v4075 = vld [vmem:[%s4018 + $0xe0] sm:$0xf]
    %v4076 = vld [vmem:[%s4018 + $0xe4] sm:$0xf]
    %v4077 = vld [vmem:[%s4018 + $0xe8] sm:$0xf]
    %v4078 = vld [vmem:[%s4018 + $0xec] sm:$0xf]
    %v4079 = vld [vmem:[%s4018 + $0xf0] sm:$0xf]
    %v4080 = vld [vmem:[%s4018 + $0xf4] sm:$0xf]
    %v4081 = vld [vmem:[%s4018 + $0xf8] sm:$0xf]
    %v4082 = vld [vmem:[%s4018 + $0xfc] sm:$0xf]
    %v4083 = vld [vmem:[%s4018 + $0x100] sm:$0xf]
    %v4084 = vld [vmem:[%s4018 + $0x104] sm:$0xf]
    %v4085 = vld [vmem:[%s4018 + $0x108] sm:$0xf]
    %v4086 = vld [vmem:[%s4018 + $0x10c] sm:$0xf]
    %v4087 = vld [vmem:[%s4018 + $0x110] sm:$0xf]
    %v4088 = vld [vmem:[%s4018 + $0x114] sm:$0xf]
    %v4089 = vld [vmem:[%s4018 + $0x118] sm:$0xf]
    %v4090 = vld [vmem:[%s4018 + $0x11c] sm:$0xf]
    %v4091 = vld [vmem:[%s4018 + $0x120] sm:$0xf]
    %v4092 = vld [vmem:[%s4018 + $0x124] sm:$0xf]
    %v4093 = vld [vmem:[%s4018 + $0x128] sm:$0xf]
    %v4094 = vld [vmem:[%s4018 + $0x12c] sm:$0xf]
    %v4095 = vld [vmem:[%s4018 + $0x130] sm:$0xf]
    %v4096 = vld [vmem:[%s4018 + $0x134] sm:$0xf]
    %v4097 = vld [vmem:[%s4018 + $0x138] sm:$0xf]
    %v4098 = vld [vmem:[%s4018 + $0x13c] sm:$0xf]
    %v4099 = vld [vmem:[%s4018 + $0x140] sm:$0xf]
    %v4100 = vld [vmem:[%s4018 + $0x144] sm:$0xf]
    %v4101 = vld [vmem:[%s4018 + $0x148] sm:$0xf]
    %v4102 = vld [vmem:[%s4018 + $0x14c] sm:$0xf]
    %v4103 = vld [vmem:[%s4018 + $0x150] sm:$0xf]
    %v4104 = vld [vmem:[%s4018 + $0x154] sm:$0xf]
    %v4105 = vld [vmem:[%s4018 + $0x158] sm:$0xf]
    %v4106 = vld [vmem:[%s4018 + $0x15c] sm:$0xf]
    %v4107 = vld [vmem:[%s4018 + $0x160] sm:$0xf]
    %v4108 = vld [vmem:[%s4018 + $0x164] sm:$0xf]
    %v4109 = vld [vmem:[%s4018 + $0x168] sm:$0xf]
    %v4110 = vld [vmem:[%s4018 + $0x16c] sm:$0xf]
    %v4111 = vld [vmem:[%s4018 + $0x170] sm:$0xf]
    %v4112 = vld [vmem:[%s4018 + $0x174] sm:$0xf]
    %v4113 = vld [vmem:[%s4018 + $0x178] sm:$0xf]
    %v4114 = vld [vmem:[%s4018 + $0x17c] sm:$0xf]
    %v4115 = vld [vmem:[%s4018 + $0x180] sm:$0xf]
    %v4116 = vld [vmem:[%s4018 + $0x184] sm:$0xf]
    %v4117 = vld [vmem:[%s4018 + $0x188] sm:$0xf]
    %v4118 = vld [vmem:[%s4018 + $0x18c] sm:$0xf]
    %v4119 = vld [vmem:[%s4018 + $0x190] sm:$0xf]
    %v4120 = vld [vmem:[%s4018 + $0x194] sm:$0xf]
    %v4121 = vld [vmem:[%s4018 + $0x198] sm:$0xf]
    %v4122 = vld [vmem:[%s4018 + $0x19c] sm:$0xf]
    %v4123 = vld [vmem:[%s4018 + $0x1a0] sm:$0xf]
    %v4124 = vld [vmem:[%s4018 + $0x1a4] sm:$0xf]
    %v4125 = vld [vmem:[%s4018 + $0x1a8] sm:$0xf]
    %v4126 = vld [vmem:[%s4018 + $0x1ac] sm:$0xf]
    %v4127 = vld [vmem:[%s4018 + $0x1b0] sm:$0xf]
    %v4128 = vld [vmem:[%s4018 + $0x1b4] sm:$0xf]
    %v4129 = vld [vmem:[%s4018 + $0x1b8] sm:$0xf]
    %v4130 = vld [vmem:[%s4018 + $0x1bc] sm:$0xf]
    %v4131 = vld [vmem:[%s4018 + $0x1c0] sm:$0xf]
    %v4132 = vld [vmem:[%s4018 + $0x1c4] sm:$0xf]
    %v4133 = vld [vmem:[%s4018 + $0x1c8] sm:$0xf]
    %v4134 = vld [vmem:[%s4018 + $0x1cc] sm:$0xf]
    %v4135 = vld [vmem:[%s4018 + $0x1d0] sm:$0xf]
    %v4136 = vld [vmem:[%s4018 + $0x1d4] sm:$0xf]
    %v4137 = vld [vmem:[%s4018 + $0x1d8] sm:$0xf]
    %v4138 = vld [vmem:[%s4018 + $0x1dc] sm:$0xf]
    %v4139 = vld [vmem:[%s4018 + $0x1e0] sm:$0xf]
    %v4140 = vld [vmem:[%s4018 + $0x1e4] sm:$0xf]
    %v4141 = vld [vmem:[%s4018 + $0x1e8] sm:$0xf]
    %v4142 = vld [vmem:[%s4018 + $0x1ec] sm:$0xf]
    %v4143 = vld [vmem:[%s4018 + $0x1f0] sm:$0xf]
    %v4144 = vld [vmem:[%s4018 + $0x1f4] sm:$0xf]
    %v4145 = vld [vmem:[%s4018 + $0x1f8] sm:$0xf]
    %v4146 = vld [vmem:[%s4018 + $0x1fc] sm:$0xf]
    %v4275 = vunpack.c.l.b16 %v4019
    %v4276 = vunpack.c.l.b16 %v4020
    %v4277 = vunpack.c.l.b16 %v4021
    %v4278 = vunpack.c.l.b16 %v4022
    %v4279 = vunpack.c.l.b16 %v4023
    %v4280 = vunpack.c.l.b16 %v4024
    %v4281 = vunpack.c.l.b16 %v4025
    %v4282 = vunpack.c.l.b16 %v4026
    %v4283 = vunpack.c.l.b16 %v4027
    %v4284 = vunpack.c.l.b16 %v4028
    %v4285 = vunpack.c.l.b16 %v4029
    %v4286 = vunpack.c.l.b16 %v4030
    %v4287 = vunpack.c.l.b16 %v4031
    %v4288 = vunpack.c.l.b16 %v4032
    %v4289 = vunpack.c.l.b16 %v4033
    %v4290 = vunpack.c.l.b16 %v4034
    %v4291 = vunpack.c.l.b16 %v4035
    %v4292 = vunpack.c.l.b16 %v4036
    %v4293 = vunpack.c.l.b16 %v4037
    %v4294 = vunpack.c.l.b16 %v4038
    %v4295 = vunpack.c.l.b16 %v4039
    %v4296 = vunpack.c.l.b16 %v4040
    %v4297 = vunpack.c.l.b16 %v4041
    %v4298 = vunpack.c.l.b16 %v4042
    %v4299 = vunpack.c.l.b16 %v4043
    %v4300 = vunpack.c.l.b16 %v4044
    %v4301 = vunpack.c.l.b16 %v4045
    %v4302 = vunpack.c.l.b16 %v4046
    %v4303 = vunpack.c.l.b16 %v4047
    %v4304 = vunpack.c.l.b16 %v4048
    %v4305 = vunpack.c.l.b16 %v4049
    %v4306 = vunpack.c.l.b16 %v4050
    %v4307 = vunpack.c.l.b16 %v4051
    %v4308 = vunpack.c.l.b16 %v4052
    %v4309 = vunpack.c.l.b16 %v4053
    %v4310 = vunpack.c.l.b16 %v4054
    %v4311 = vunpack.c.l.b16 %v4055
    %v4312 = vunpack.c.l.b16 %v4056
    %v4313 = vunpack.c.l.b16 %v4057
    %v4314 = vunpack.c.l.b16 %v4058
    %v4315 = vunpack.c.l.b16 %v4059
    %v4316 = vunpack.c.l.b16 %v4060
    %v4317 = vunpack.c.l.b16 %v4061
    %v4318 = vunpack.c.l.b16 %v4062
    %v4319 = vunpack.c.l.b16 %v4063
    %v4320 = vunpack.c.l.b16 %v4064
    %v4321 = vunpack.c.l.b16 %v4065
    %v4322 = vunpack.c.l.b16 %v4066
    %v4323 = vunpack.c.l.b16 %v4067
    %v4324 = vunpack.c.l.b16 %v4068
    %v4325 = vunpack.c.l.b16 %v4069
    %v4326 = vunpack.c.l.b16 %v4070
    %v4327 = vunpack.c.l.b16 %v4071
    %v4328 = vunpack.c.l.b16 %v4072
    %v4329 = vunpack.c.l.b16 %v4073
    %v4330 = vunpack.c.l.b16 %v4074
    %v4331 = vunpack.c.l.b16 %v4075
    %v4332 = vunpack.c.l.b16 %v4076
    %v4333 = vunpack.c.l.b16 %v4077
    %v4334 = vunpack.c.l.b16 %v4078
    %v4335 = vunpack.c.l.b16 %v4079
    %v4336 = vunpack.c.l.b16 %v4080
    %v4337 = vunpack.c.l.b16 %v4081
    %v4338 = vunpack.c.l.b16 %v4082
    %v4339 = vunpack.c.l.b16 %v4083
    %v4340 = vunpack.c.l.b16 %v4084
    %v4341 = vunpack.c.l.b16 %v4085
    %v4342 = vunpack.c.l.b16 %v4086
    %v4343 = vunpack.c.l.b16 %v4087
    %v4344 = vunpack.c.l.b16 %v4088
    %v4345 = vunpack.c.l.b16 %v4089
    %v4346 = vunpack.c.l.b16 %v4090
    %v4347 = vunpack.c.l.b16 %v4091
    %v4348 = vunpack.c.l.b16 %v4092
    %v4349 = vunpack.c.l.b16 %v4093
    %v4350 = vunpack.c.l.b16 %v4094
    %v4351 = vunpack.c.l.b16 %v4095
    %v4352 = vunpack.c.l.b16 %v4096
    %v4353 = vunpack.c.l.b16 %v4097
    %v4354 = vunpack.c.l.b16 %v4098
    %v4355 = vunpack.c.l.b16 %v4099
    %v4356 = vunpack.c.l.b16 %v4100
    %v4357 = vunpack.c.l.b16 %v4101
    %v4358 = vunpack.c.l.b16 %v4102
    %v4359 = vunpack.c.l.b16 %v4103
    %v4360 = vunpack.c.l.b16 %v4104
    %v4361 = vunpack.c.l.b16 %v4105
    %v4362 = vunpack.c.l.b16 %v4106
    %v4363 = vunpack.c.l.b16 %v4107
    %v4364 = vunpack.c.l.b16 %v4108
    %v4365 = vunpack.c.l.b16 %v4109
    %v4366 = vunpack.c.l.b16 %v4110
    %v4367 = vunpack.c.l.b16 %v4111
    %v4368 = vunpack.c.l.b16 %v4112
    %v4369 = vunpack.c.l.b16 %v4113
    %v4370 = vunpack.c.l.b16 %v4114
    %v4371 = vunpack.c.l.b16 %v4115
    %v4372 = vunpack.c.l.b16 %v4116
    %v4373 = vunpack.c.l.b16 %v4117
    %v4374 = vunpack.c.l.b16 %v4118
    %v4375 = vunpack.c.l.b16 %v4119
    %v4376 = vunpack.c.l.b16 %v4120
    %v4377 = vunpack.c.l.b16 %v4121
    %v4378 = vunpack.c.l.b16 %v4122
    %v4379 = vunpack.c.l.b16 %v4123
    %v4380 = vunpack.c.l.b16 %v4124
    %v4381 = vunpack.c.l.b16 %v4125
    %v4382 = vunpack.c.l.b16 %v4126
    %v4383 = vunpack.c.l.b16 %v4127
    %v4384 = vunpack.c.l.b16 %v4128
    %v4385 = vunpack.c.l.b16 %v4129
    %v4386 = vunpack.c.l.b16 %v4130
    %v4387 = vunpack.c.l.b16 %v4131
    %v4388 = vunpack.c.l.b16 %v4132
    %v4389 = vunpack.c.l.b16 %v4133
    %v4390 = vunpack.c.l.b16 %v4134
    %v4391 = vunpack.c.l.b16 %v4135
    %v4392 = vunpack.c.l.b16 %v4136
    %v4393 = vunpack.c.l.b16 %v4137
    %v4394 = vunpack.c.l.b16 %v4138
    %v4395 = vunpack.c.l.b16 %v4139
    %v4396 = vunpack.c.l.b16 %v4140
    %v4397 = vunpack.c.l.b16 %v4141
    %v4398 = vunpack.c.l.b16 %v4142
    %v4399 = vunpack.c.l.b16 %v4143
    %v4400 = vunpack.c.l.b16 %v4144
    %v4401 = vunpack.c.l.b16 %v4145
    %v4402 = vunpack.c.l.b16 %v4146
    %v4403 = vpack.c.b16 %v4276, %v4275
    %v4404 = vpack.c.b16 %v4278, %v4277
    %v4405 = vpack.c.b16 %v4280, %v4279
    %v4406 = vpack.c.b16 %v4282, %v4281
    %v4407 = vpack.c.b16 %v4284, %v4283
    %v4408 = vpack.c.b16 %v4286, %v4285
    %v4409 = vpack.c.b16 %v4288, %v4287
    %v4410 = vpack.c.b16 %v4290, %v4289
    %v4411 = vpack.c.b16 %v4292, %v4291
    %v4412 = vpack.c.b16 %v4294, %v4293
    %v4413 = vpack.c.b16 %v4296, %v4295
    %v4414 = vpack.c.b16 %v4298, %v4297
    %v4415 = vpack.c.b16 %v4300, %v4299
    %v4416 = vpack.c.b16 %v4302, %v4301
    %v4417 = vpack.c.b16 %v4304, %v4303
    %v4418 = vpack.c.b16 %v4306, %v4305
    %v4419 = vpack.c.b16 %v4308, %v4307
    %v4420 = vpack.c.b16 %v4310, %v4309
    %v4421 = vpack.c.b16 %v4312, %v4311
    %v4422 = vpack.c.b16 %v4314, %v4313
    %v4423 = vpack.c.b16 %v4316, %v4315
    %v4424 = vpack.c.b16 %v4318, %v4317
    %v4425 = vpack.c.b16 %v4320, %v4319
    %v4426 = vpack.c.b16 %v4322, %v4321
    %v4427 = vpack.c.b16 %v4324, %v4323
    %v4428 = vpack.c.b16 %v4326, %v4325
    %v4429 = vpack.c.b16 %v4328, %v4327
    %v4430 = vpack.c.b16 %v4330, %v4329
    %v4431 = vpack.c.b16 %v4332, %v4331
    %v4432 = vpack.c.b16 %v4334, %v4333
    %v4433 = vpack.c.b16 %v4336, %v4335
    %v4434 = vpack.c.b16 %v4338, %v4337
    %v4435 = vpack.c.b16 %v4340, %v4339
    %v4436 = vpack.c.b16 %v4342, %v4341
    %v4437 = vpack.c.b16 %v4344, %v4343
    %v4438 = vpack.c.b16 %v4346, %v4345
    %v4439 = vpack.c.b16 %v4348, %v4347
    %v4440 = vpack.c.b16 %v4350, %v4349
    %v4441 = vpack.c.b16 %v4352, %v4351
    %v4442 = vpack.c.b16 %v4354, %v4353
    %v4443 = vpack.c.b16 %v4356, %v4355
    %v4444 = vpack.c.b16 %v4358, %v4357
    %v4445 = vpack.c.b16 %v4360, %v4359
    %v4446 = vpack.c.b16 %v4362, %v4361
    %v4447 = vpack.c.b16 %v4364, %v4363
    %v4448 = vpack.c.b16 %v4366, %v4365
    %v4449 = vpack.c.b16 %v4368, %v4367
    %v4450 = vpack.c.b16 %v4370, %v4369
    %v4451 = vpack.c.b16 %v4372, %v4371
    %v4452 = vpack.c.b16 %v4374, %v4373
    %v4453 = vpack.c.b16 %v4376, %v4375
    %v4454 = vpack.c.b16 %v4378, %v4377
    %v4455 = vpack.c.b16 %v4380, %v4379
    %v4456 = vpack.c.b16 %v4382, %v4381
    %v4457 = vpack.c.b16 %v4384, %v4383
    %v4458 = vpack.c.b16 %v4386, %v4385
    %v4459 = vpack.c.b16 %v4388, %v4387
    %v4460 = vpack.c.b16 %v4390, %v4389
    %v4461 = vpack.c.b16 %v4392, %v4391
    %v4462 = vpack.c.b16 %v4394, %v4393
    %v4463 = vpack.c.b16 %v4396, %v4395
    %v4464 = vpack.c.b16 %v4398, %v4397
    %v4465 = vpack.c.b16 %v4400, %v4399
    %v4466 = vpack.c.b16 %v4402, %v4401
    %4531 = vmatpush.bf16.msra.mxu0 %v4410
    %4532 = vmatpush.bf16.msra.mxu0 %v4409
    %4533 = vmatpush.bf16.msra.mxu0 %v4408
    %4534 = vmatpush.bf16.msra.mxu0 %v4407
    %4535 = vmatpush.bf16.msra.mxu0 %v4406
    %4536 = vmatpush.bf16.msra.mxu0 %v4405
    %4537 = vmatpush.bf16.msra.mxu0 %v4404
    %4538 = vmatpush.bf16.msra.mxu0 %v4403
    %4539 = vmatmul.bf16.gmra.mxu0 %v4010
    %v4540 = vpop.f32.mrf.mxu0
    %v4541 = vadd.f32 0.0, %v4540
    %v4542 = vpop.f32.mrf.mxu0
    %4543 = vdwg.mxu0
    %4544 = vmatpush.bf16.msra.mxu0 %v4418
    %4545 = vmatpush.bf16.msra.mxu0 %v4417
    %4546 = vmatpush.bf16.msra.mxu0 %v4416
    %4547 = vmatpush.bf16.msra.mxu0 %v4415
    %4548 = vmatpush.bf16.msra.mxu0 %v4414
    %4549 = vmatpush.bf16.msra.mxu0 %v4413
    %4550 = vmatpush.bf16.msra.mxu0 %v4412
    %4551 = vmatpush.bf16.msra.mxu0 %v4411
    %4552 = vmatmul.bf16.gmra.mxu0 %v4011
    %v4553 = vpop.f32.mrf.mxu0
    %v4554 = vadd.f32 %v4541, %v4553
    %v4555 = vpop.f32.mrf.mxu0
    %4556 = vdwg.mxu0
    %4557 = vmatpush.bf16.msra.mxu0 %v4426
    %4558 = vmatpush.bf16.msra.mxu0 %v4425
    %4559 = vmatpush.bf16.msra.mxu0 %v4424
    %4560 = vmatpush.bf16.msra.mxu0 %v4423
    %4561 = vmatpush.bf16.msra.mxu0 %v4422
    %4562 = vmatpush.bf16.msra.mxu0 %v4421
    %4563 = vmatpush.bf16.msra.mxu0 %v4420
    %4564 = vmatpush.bf16.msra.mxu0 %v4419
    %4565 = vmatmul.bf16.gmra.mxu0 %v4012
    %v4566 = vpop.f32.mrf.mxu0
    %v4567 = vadd.f32 %v4554, %v4566
    %v4568 = vpop.f32.mrf.mxu0
    %4569 = vdwg.mxu0
    %4570 = vmatpush.bf16.msra.mxu0 %v4434
    %4571 = vmatpush.bf16.msra.mxu0 %v4433
    %4572 = vmatpush.bf16.msra.mxu0 %v4432
    %4573 = vmatpush.bf16.msra.mxu0 %v4431
    %4574 = vmatpush.bf16.msra.mxu0 %v4430
    %4575 = vmatpush.bf16.msra.mxu0 %v4429
    %4576 = vmatpush.bf16.msra.mxu0 %v4428
    %4577 = vmatpush.bf16.msra.mxu0 %v4427
    %4578 = vmatmul.bf16.gmra.mxu0 %v4013
    %v4579 = vpop.f32.mrf.mxu0
    %v4580 = vadd.f32 %v4567, %v4579
    %v4581 = vpop.f32.mrf.mxu0
    %4582 = vdwg.mxu0
    %4583 = vmatpush.bf16.msra.mxu0 %v4442
    %4584 = vmatpush.bf16.msra.mxu0 %v4441
    %4585 = vmatpush.bf16.msra.mxu0 %v4440
    %4586 = vmatpush.bf16.msra.mxu0 %v4439
    %4587 = vmatpush.bf16.msra.mxu0 %v4438
    %4588 = vmatpush.bf16.msra.mxu0 %v4437
    %4589 = vmatpush.bf16.msra.mxu0 %v4436
    %4590 = vmatpush.bf16.msra.mxu0 %v4435
    %4591 = vmatmul.bf16.gmra.mxu0 %v4014
    %v4592 = vpop.f32.mrf.mxu0
    %v4593 = vadd.f32 %v4580, %v4592
    %v4594 = vpop.f32.mrf.mxu0
    %4595 = vdwg.mxu0
    %4596 = vmatpush.bf16.msra.mxu0 %v4450
    %4597 = vmatpush.bf16.msra.mxu0 %v4449
    %4598 = vmatpush.bf16.msra.mxu0 %v4448
    %4599 = vmatpush.bf16.msra.mxu0 %v4447
    %4600 = vmatpush.bf16.msra.mxu0 %v4446
    %4601 = vmatpush.bf16.msra.mxu0 %v4445
    %4602 = vmatpush.bf16.msra.mxu0 %v4444
    %4603 = vmatpush.bf16.msra.mxu0 %v4443
    %4604 = vmatmul.bf16.gmra.mxu0 %v4015
    %v4605 = vpop.f32.mrf.mxu0
    %v4606 = vadd.f32 %v4593, %v4605
    %v4607 = vpop.f32.mrf.mxu0
    %4608 = vdwg.mxu0
    %4609 = vmatpush.bf16.msra.mxu0 %v4458
    %4610 = vmatpush.bf16.msra.mxu0 %v4457
    %4611 = vmatpush.bf16.msra.mxu0 %v4456
    %4612 = vmatpush.bf16.msra.mxu0 %v4455
    %4613 = vmatpush.bf16.msra.mxu0 %v4454
    %4614 = vmatpush.bf16.msra.mxu0 %v4453
    %4615 = vmatpush.bf16.msra.mxu0 %v4452
    %4616 = vmatpush.bf16.msra.mxu0 %v4451
    %4617 = vmatmul.bf16.gmra.mxu0 %v4016
    %v4618 = vpop.f32.mrf.mxu0
    %v4619 = vadd.f32 %v4606, %v4618
    %v4620 = vpop.f32.mrf.mxu0
    %4621 = vdwg.mxu0
    %4622 = vmatpush.bf16.msra.mxu0 %v4466
    %4623 = vmatpush.bf16.msra.mxu0 %v4465
    %4624 = vmatpush.bf16.msra.mxu0 %v4464
    %4625 = vmatpush.bf16.msra.mxu0 %v4463
    %4626 = vmatpush.bf16.msra.mxu0 %v4462
    %4627 = vmatpush.bf16.msra.mxu0 %v4461
    %4628 = vmatpush.bf16.msra.mxu0 %v4460
    %4629 = vmatpush.bf16.msra.mxu0 %v4459
    %4630 = vmatmul.bf16.gmra.mxu0 %v4017
    %v4631 = vpop.f32.mrf.mxu0
    %v4632 = vadd.f32 %v4619, %v4631
    %v4633 = vpop.f32.mrf.mxu0
    %4634 = vdwg.mxu0
    %v4635 = vadd.f32 %v4009, %v4632
    %v4636 = vld [vmem:[#allocation7] sm:$0x1]
    %v4638 = vperm.slane %v4636, 0
    %v4640 = vadd.f32 %v4635, %v4638
    %vm4641 = vcmp.ge.f32.partialorder %v4640, 0.0
    %v4642 = vand.u32 2147483647, %v4640
    %v4643 = vsub.f32 0.0, %v4642
    %v4644 = vmul.f32 %v4643, 1.442695
    %v4645 = vpow.pop %v4644
    %v4646 = vmul.f32 %v4645, %v4645
    %v4647 = vadd.f32 %v4645, 1.0
    %v4648 = vrcp.pop %v4647
    %v4649 = vadd.f32 %v4646, 1.0
    %v4650 = vrcp.pop %v4649
    %v4651 = vmax.f32 %v4640, 0.0
    %v4652 = vsel %vm4641, 1.0, %v4645
    %v4653 = vmul.f32 %v4652, %v4648
    %v4654 = vsel %vm4641, 1.0, -1.0
    %v4655 = vsub.f32 1.0, %v4646
    %v4656 = vmul.f32 %v4654, %v4655
    %v4657 = vmul.f32 %v4656, %v4650
    %v4658 = vand.u32 2147483647, %v4640
    %vm4659 = vcmp.le.f32.partialorder %v4658, 0.7853982
    %vm4660 = vcmp.lt.s32.totalorder %v4640, 0
    %v4661 = vand.u32 %v4640, 2139095040
    %v4662 = vshrl.u32 %v4661, 23
    %v4663 = vsub.s32 %v4662, 127
    %v4664 = vand.u32 2147483647, %v4640
    %v4665 = vand.u32 %v4664, 8388607
    %v4666 = vor.u32 %v4665, 8388608
    %v4667 = vsub.s32 0, %v4666
    %v4668 = vadd.s32 %v4663, 1
    %vm4669 = vcmp.gt.s32.totalorder %v4668, 0
    %v4670 = vsel %vm4669, %v4668, 0
    %v4671 = vshrl.u32 %v4670, 5
    %v4672 = vand.u32 %v4670, 31
    %v4673 = vsub.s32 32, %v4672
    %v4674 = vshrl.u32 683565275, %v4673
    %v4675 = vshll.u32 683565275, %v4672
    %v4676 = vshrl.u32 2475754826, %v4673
    %v4677 = vor.u32 %v4675, %v4676
    %v4678 = vshll.u32 2475754826, %v4672
    %v4679 = vshrl.u32 2131351028, %v4673
    %v4680 = vor.u32 %v4678, %v4679
    %v4681 = vshll.u32 2131351028, %v4672
    %v4682 = vshrl.u32 2102212464, %v4673
    %v4683 = vor.u32 %v4681, %v4682
    %v4684 = vshll.u32 2102212464, %v4672
    %v4685 = vshrl.u32 920167782, %v4673
    %v4686 = vor.u32 %v4684, %v4685
    %v4687 = vshll.u32 920167782, %v4672
    %v4688 = vshrl.u32 1326507024, %v4673
    %v4689 = vor.u32 %v4687, %v4688
    %vm4690 = vcmp.lt.s32.totalorder %v4671, 1
    %vm4691 = vcmp.lt.s32.totalorder %v4671, 2
    %vm4692 = vcmp.lt.s32.totalorder %v4671, 3
    %vm4693 = vcmp.lt.s32.totalorder %v4671, 4
    %v4694 = vsel %vm4690, %v4674, %v4677
    %v4695 = vsel %vm4693, %v4683, 2102212464
    %v4696 = vsel %vm4692, %v4680, %v4695
    %v4697 = vsel %vm4691, %v4694, %v4696
    %v4698 = vsel %vm4690, %v4677, %v4680
    %v4699 = vsel %vm4693, %v4686, 920167782
    %v4700 = vsel %vm4692, %v4683, %v4699
    %v4701 = vsel %vm4691, %v4698, %v4700
    %v4702 = vsel %vm4690, %v4680, %v4683
    %v4703 = vsel %vm4693, %v4689, 1326507024
    %v4704 = vsel %vm4692, %v4686, %v4703
    %v4705 = vsel %vm4691, %v4702, %v4704
    %v4706 = vshll.u32 %v4666, 8
    %v4707 = vand.u32 %v4706, 65535
    %v4708 = vshrl.u32 %v4706, 16
    %v4709 = vand.u32 %v4705, 65535
    %v4710 = vshrl.u32 %v4705, 16
    %v4711 = vmul.u32 %v4707, %v4709
    %v4712 = vmul.u32 %v4707, %v4710
    %v4713 = vmul.u32 %v4708, %v4709
    %v4714 = vmul.u32 %v4708, %v4710
    %v4715 = vshll.u32 %v4712, 16
    %v4716 = vshrl.u32 %v4712, 16
    %v4717 = vshll.u32 %v4713, 16
    %v4718 = vshrl.u32 %v4713, 16
    %vm4719 = vc.u32 %v4711, %v4715
    %v4720 = vsel %vm4719, 1, 0
    %v4721 = vadd.s32 %v4711, %v4715
    %v4722 = vadd.s32 %v4714, %v4720
    %vm4723 = vc.u32 %v4721, %v4717
    %v4724 = vsel %vm4723, 1, 0
    %v4725 = vadd.s32 %v4721, %v4717
    %v4726 = vadd.s32 %v4722, %v4724
    %v4727 = vadd.s32 %v4726, %v4716
    %v4728 = vadd.s32 %v4727, %v4718
    %v4729 = vand.u32 %v4706, 65535
    %v4730 = vshrl.u32 %v4706, 16
    %v4731 = vand.u32 %v4701, 65535
    %v4732 = vshrl.u32 %v4701, 16
    %v4733 = vmul.u32 %v4729, %v4731
    %v4734 = vmul.u32 %v4729, %v4732
    %v4735 = vmul.u32 %v4730, %v4731
    %v4736 = vmul.u32 %v4730, %v4732
    %v4737 = vshll.u32 %v4734, 16
    %v4738 = vshrl.u32 %v4734, 16
    %v4739 = vshll.u32 %v4735, 16
    %v4740 = vshrl.u32 %v4735, 16
    %vm4741 = vc.u32 %v4733, %v4737
    %v4742 = vsel %vm4741, 1, 0
    %v4743 = vadd.s32 %v4733, %v4737
    %v4744 = vadd.s32 %v4736, %v4742
    %vm4745 = vc.u32 %v4743, %v4739
    %v4746 = vsel %vm4745, 1, 0
    %v4747 = vadd.s32 %v4743, %v4739
    %v4748 = vadd.s32 %v4744, %v4746
    %v4749 = vadd.s32 %v4748, %v4738
    %v4750 = vadd.s32 %v4749, %v4740
    %v4751 = vmul.u32 %v4706, %v4697
    %v4752 = vadd.s32 %v4728, %v4747
    %vm4753 = vc.u32 %v4728, %v4747
    %v4754 = vadd.s32 %v4750, 1
    %v4755 = vsel %vm4753, %v4754, %v4750
    %v4756 = vadd.s32 %v4751, %v4755
    %v4757 = vadd.s32 %v4756, 536870912
    %v4758 = vshrl.u32 %v4757, 30
    %v4759 = vshll.u32 %v4758, 30
    %v4760 = vsub.s32 %v4756, %v4759
    %vm4761 = vcmp.lt.s32.totalorder %v4760, 0
    %v4762 = vsub.s32 0, %v4760
    %v4763 = vsel %vm4761, %v4762, %v4760
    %v4764 = vclz %v4763
    %v4765 = vsub.s32 %v4764, 2
    %vm4766 = vcmp.gt.s32.totalorder 0, %v4765
    %v4767 = vsel %vm4766, 0, %v4765
    %v4768 = vsub.s32 32, %v4767
    %v4769 = vshll.u32 %v4760, %v4767
    %v4770 = vshrl.u32 %v4752, %v4768
    %v4771 = vor.u32 %v4769, %v4770
    %v4772 = vsub.s32 4294967266, %v4767
    %v4773 = vadd.s32 %v4772, 127
    %v4774 = vshll.u32 %v4773, 23
    %v4775 = vor.u32 4788187, %v4774
    %v4776 = vand.u32 2147483647, %v4775
    %v4778 = vcvt.s32.f32 %v4771
    %v4779 = vmul.f32 %v4778, %v4776
    %v4780 = vxor.u32 %v4779, 2147483648
    %v4781 = vsel %vm4660, %v4780, %v4779
    %v4782 = vsub.s32 4, %v4758
    %v4783 = vsel %vm4660, %v4782, %v4758
    %v4784 = vsel %vm4659, %v4640, %v4781
    %v4785 = vsel %vm4659, 0, %v4783
    %v4786 = vmul.f32 %v4784, %v4784
    %v4787 = vmul.f32 %v4786, -0.001358992
    %v4788 = vadd.f32 %v4787, 0.041655596
    %v4789 = vmul.f32 %v4786, %v4788
    %v4790 = vadd.f32 %v4789, -0.4999988
    %v4791 = vmul.f32 %v4786, %v4790
    %v4792 = vadd.f32 1.0, %v4791
    %v4793 = vmul.f32 %v4784, %v4784
    %v4794 = vmul.f32 %v4793, -0.00019511016
    %v4795 = vadd.f32 %v4794, 0.008332121
    %v4796 = vmul.f32 %v4793, %v4795
    %v4797 = vadd.f32 %v4796, -0.16666654
    %v4798 = vmul.f32 %v4793, %v4797
    %v4799 = vadd.f32 %v4798, 1.0
    %v4800 = vmul.f32 %v4799, %v4784
    %vm4801 = vweird.f32 %v4640
    %v4802 = vadd.s32 %v4785, 3
    %v4803 = vand.u32 %v4802, 3
    %vm4804 = vcmp.lt.s32.totalorder %v4803, 2
    %vm4805 = vcmp.eq.s32.totalorder %v4803, 0
    %v4806 = vxor.u32 %v4800, 2147483648
    %v4807 = vsel %vm4805, %v4792, %v4806
    %vm4808 = vcmp.eq.s32.totalorder %v4803, 2
    %v4809 = vxor.u32 %v4792, 2147483648
    %v4810 = vsel %vm4808, %v4809, %v4800
    %v4811 = vsel %vm4804, %v4807, %v4810
    %v4812 = vsel %vm4801, nan, %v4811
    %v4813 = vmul.f32 %v4640, %v4640
    %v4814 = vsub.f32 0.0, %v4813
    %v4815 = vmul.f32 %v4814, 1.442695
    %v4816 = vpow.pop %v4815
    %v4817 = vpack.c.bf16 %v4651, %v4651
    %v4818 = vld [vmem:[#allocation8] sm:$0xf]
    %v4819 = vld [vmem:[#allocation8 + $0x4] sm:$0xf]
    %v4820 = vld [vmem:[#allocation8 + $0x8] sm:$0xf]
    %v4821 = vld [vmem:[#allocation8 + $0xc] sm:$0xf]
    %v4822 = vld [vmem:[#allocation8 + $0x10] sm:$0xf]
    %v4823 = vld [vmem:[#allocation8 + $0x14] sm:$0xf]
    %v4824 = vld [vmem:[#allocation8 + $0x18] sm:$0xf]
    %v4825 = vld [vmem:[#allocation8 + $0x1c] sm:$0xf]
    %v4826 = vld [vmem:[#allocation8 + $0x20] sm:$0xf]
    %v4827 = vld [vmem:[#allocation8 + $0x24] sm:$0xf]
    %v4828 = vld [vmem:[#allocation8 + $0x28] sm:$0xf]
    %v4829 = vld [vmem:[#allocation8 + $0x2c] sm:$0xf]
    %v4830 = vld [vmem:[#allocation8 + $0x30] sm:$0xf]
    %v4831 = vld [vmem:[#allocation8 + $0x34] sm:$0xf]
    %v4832 = vld [vmem:[#allocation8 + $0x38] sm:$0xf]
    %v4833 = vld [vmem:[#allocation8 + $0x3c] sm:$0xf]
    %v4834 = vpack.c.bf16 %v4657, %v4657
    %s4835 = scalar_lea.vmem [#allocation8], 64
    %v4836 = vld [vmem:[%s4835] sm:$0xf]
    %v4837 = vld [vmem:[%s4835 + $0x4] sm:$0xf]
    %v4838 = vld [vmem:[%s4835 + $0x8] sm:$0xf]
    %v4839 = vld [vmem:[%s4835 + $0xc] sm:$0xf]
    %v4840 = vld [vmem:[%s4835 + $0x10] sm:$0xf]
    %v4841 = vld [vmem:[%s4835 + $0x14] sm:$0xf]
    %v4842 = vld [vmem:[%s4835 + $0x18] sm:$0xf]
    %v4843 = vld [vmem:[%s4835 + $0x1c] sm:$0xf]
    %v4844 = vld [vmem:[%s4835 + $0x20] sm:$0xf]
    %v4845 = vld [vmem:[%s4835 + $0x24] sm:$0xf]
    %v4846 = vld [vmem:[%s4835 + $0x28] sm:$0xf]
    %v4847 = vld [vmem:[%s4835 + $0x2c] sm:$0xf]
    %v4848 = vld [vmem:[%s4835 + $0x30] sm:$0xf]
    %v4849 = vld [vmem:[%s4835 + $0x34] sm:$0xf]
    %v4850 = vld [vmem:[%s4835 + $0x38] sm:$0xf]
    %v4851 = vld [vmem:[%s4835 + $0x3c] sm:$0xf]
    %v4868 = vunpack.c.l.b16 %v4836
    %v4869 = vunpack.c.l.b16 %v4837
    %v4870 = vunpack.c.l.b16 %v4838
    %v4871 = vunpack.c.l.b16 %v4839
    %v4872 = vunpack.c.l.b16 %v4840
    %v4873 = vunpack.c.l.b16 %v4841
    %v4874 = vunpack.c.l.b16 %v4842
    %v4875 = vunpack.c.l.b16 %v4843
    %v4876 = vunpack.c.l.b16 %v4844
    %v4877 = vunpack.c.l.b16 %v4845
    %v4878 = vunpack.c.l.b16 %v4846
    %v4879 = vunpack.c.l.b16 %v4847
    %v4880 = vunpack.c.l.b16 %v4848
    %v4881 = vunpack.c.l.b16 %v4849
    %v4882 = vunpack.c.l.b16 %v4850
    %v4883 = vunpack.c.l.b16 %v4851
    %v4884 = vpack.c.b16 %v4869, %v4868
    %v4885 = vpack.c.b16 %v4871, %v4870
    %v4886 = vpack.c.b16 %v4873, %v4872
    %v4887 = vpack.c.b16 %v4875, %v4874
    %v4888 = vpack.c.b16 %v4877, %v4876
    %v4889 = vpack.c.b16 %v4879, %v4878
    %v4890 = vpack.c.b16 %v4881, %v4880
    %v4891 = vpack.c.b16 %v4883, %v4882
    %4900 = vmatpush.bf16.msra.mxu0 %v4891
    %4901 = vmatpush.bf16.msra.mxu0 %v4890
    %4902 = vmatpush.bf16.msra.mxu0 %v4889
    %4903 = vmatpush.bf16.msra.mxu0 %v4888
    %4904 = vmatpush.bf16.msra.mxu0 %v4887
    %4905 = vmatpush.bf16.msra.mxu0 %v4886
    %4906 = vmatpush.bf16.msra.mxu0 %v4885
    %4907 = vmatpush.bf16.msra.mxu0 %v4884
    %4908 = vmatmul.bf16.gmra.mxu0 %v4834
    %v4909 = vpop.f32.mrf.mxu0
    %v4910 = vadd.f32 0.0, %v4909
    %v4911 = vpop.f32.mrf.mxu0
    %4912 = vdwg.mxu0
    %v4929 = vunpack.c.l.b16 %v4818
    %v4930 = vunpack.c.l.b16 %v4819
    %v4931 = vunpack.c.l.b16 %v4820
    %v4932 = vunpack.c.l.b16 %v4821
    %v4933 = vunpack.c.l.b16 %v4822
    %v4934 = vunpack.c.l.b16 %v4823
    %v4935 = vunpack.c.l.b16 %v4824
    %v4936 = vunpack.c.l.b16 %v4825
    %v4937 = vunpack.c.l.b16 %v4826
    %v4938 = vunpack.c.l.b16 %v4827
    %v4939 = vunpack.c.l.b16 %v4828
    %v4940 = vunpack.c.l.b16 %v4829
    %v4941 = vunpack.c.l.b16 %v4830
    %v4942 = vunpack.c.l.b16 %v4831
    %v4943 = vunpack.c.l.b16 %v4832
    %v4944 = vunpack.c.l.b16 %v4833
    %v4945 = vpack.c.b16 %v4930, %v4929
    %v4946 = vpack.c.b16 %v4932, %v4931
    %v4947 = vpack.c.b16 %v4934, %v4933
    %v4948 = vpack.c.b16 %v4936, %v4935
    %v4949 = vpack.c.b16 %v4938, %v4937
    %v4950 = vpack.c.b16 %v4940, %v4939
    %v4951 = vpack.c.b16 %v4942, %v4941
    %v4952 = vpack.c.b16 %v4944, %v4943
    %4961 = vmatpush.bf16.msra.mxu0 %v4952
    %4962 = vmatpush.bf16.msra.mxu0 %v4951
    %4963 = vmatpush.bf16.msra.mxu0 %v4950
    %4964 = vmatpush.bf16.msra.mxu0 %v4949
    %4965 = vmatpush.bf16.msra.mxu0 %v4948
    %4966 = vmatpush.bf16.msra.mxu0 %v4947
    %4967 = vmatpush.bf16.msra.mxu0 %v4946
    %4968 = vmatpush.bf16.msra.mxu0 %v4945
    %4969 = vmatmul.bf16.gmra.mxu0 %v4817
    %v4970 = vpop.f32.mrf.mxu0
    %v4971 = vadd.f32 %v4910, %v4970
    %v4972 = vpop.f32.mrf.mxu0
    %4973 = vdwg.mxu0
    %v4974 = vpack.c.bf16 %v4653, %v4653
    %s4975 = scalar_lea.vmem [#allocation8], 128
    %v4976 = vld [vmem:[%s4975] sm:$0xf]
    %v4977 = vld [vmem:[%s4975 + $0x4] sm:$0xf]
    %v4978 = vld [vmem:[%s4975 + $0x8] sm:$0xf]
    %v4979 = vld [vmem:[%s4975 + $0xc] sm:$0xf]
    %v4980 = vld [vmem:[%s4975 + $0x10] sm:$0xf]
    %v4981 = vld [vmem:[%s4975 + $0x14] sm:$0xf]
    %v4982 = vld [vmem:[%s4975 + $0x18] sm:$0xf]
    %v4983 = vld [vmem:[%s4975 + $0x1c] sm:$0xf]
    %v4984 = vld [vmem:[%s4975 + $0x20] sm:$0xf]
    %v4985 = vld [vmem:[%s4975 + $0x24] sm:$0xf]
    %v4986 = vld [vmem:[%s4975 + $0x28] sm:$0xf]
    %v4987 = vld [vmem:[%s4975 + $0x2c] sm:$0xf]
    %v4988 = vld [vmem:[%s4975 + $0x30] sm:$0xf]
    %v4989 = vld [vmem:[%s4975 + $0x34] sm:$0xf]
    %v4990 = vld [vmem:[%s4975 + $0x38] sm:$0xf]
    %v4991 = vld [vmem:[%s4975 + $0x3c] sm:$0xf]
    %v5008 = vunpack.c.l.b16 %v4976
    %v5009 = vunpack.c.l.b16 %v4977
    %v5010 = vunpack.c.l.b16 %v4978
    %v5011 = vunpack.c.l.b16 %v4979
    %v5012 = vunpack.c.l.b16 %v4980
    %v5013 = vunpack.c.l.b16 %v4981
    %v5014 = vunpack.c.l.b16 %v4982
    %v5015 = vunpack.c.l.b16 %v4983
    %v5016 = vunpack.c.l.b16 %v4984
    %v5017 = vunpack.c.l.b16 %v4985
    %v5018 = vunpack.c.l.b16 %v4986
    %v5019 = vunpack.c.l.b16 %v4987
    %v5020 = vunpack.c.l.b16 %v4988
    %v5021 = vunpack.c.l.b16 %v4989
    %v5022 = vunpack.c.l.b16 %v4990
    %v5023 = vunpack.c.l.b16 %v4991
    %v5024 = vpack.c.b16 %v5009, %v5008
    %v5025 = vpack.c.b16 %v5011, %v5010
    %v5026 = vpack.c.b16 %v5013, %v5012
    %v5027 = vpack.c.b16 %v5015, %v5014
    %v5028 = vpack.c.b16 %v5017, %v5016
    %v5029 = vpack.c.b16 %v5019, %v5018
    %v5030 = vpack.c.b16 %v5021, %v5020
    %v5031 = vpack.c.b16 %v5023, %v5022
    %5040 = vmatpush.bf16.msra.mxu0 %v5031
    %5041 = vmatpush.bf16.msra.mxu0 %v5030
    %5042 = vmatpush.bf16.msra.mxu0 %v5029
    %5043 = vmatpush.bf16.msra.mxu0 %v5028
    %5044 = vmatpush.bf16.msra.mxu0 %v5027
    %5045 = vmatpush.bf16.msra.mxu0 %v5026
    %5046 = vmatpush.bf16.msra.mxu0 %v5025
    %5047 = vmatpush.bf16.msra.mxu0 %v5024
    %5048 = vmatmul.bf16.gmra.mxu0 %v4974
    %v5049 = vpop.f32.mrf.mxu0
    %v5050 = vadd.f32 0.0, %v5049
    %v5051 = vpop.f32.mrf.mxu0
    %5052 = vdwg.mxu0
    %v5053 = vadd.f32 %v4971, %v5050
    %v5054 = vpack.c.bf16 %v4812, %v4812
    %s5055 = scalar_lea.vmem [#allocation8], 192
    %v5056 = vld [vmem:[%s5055] sm:$0xf]
    %v5057 = vld [vmem:[%s5055 + $0x4] sm:$0xf]
    %v5058 = vld [vmem:[%s5055 + $0x8] sm:$0xf]
    %v5059 = vld [vmem:[%s5055 + $0xc] sm:$0xf]
    %v5060 = vld [vmem:[%s5055 + $0x10] sm:$0xf]
    %v5061 = vld [vmem:[%s5055 + $0x14] sm:$0xf]
    %v5062 = vld [vmem:[%s5055 + $0x18] sm:$0xf]
    %v5063 = vld [vmem:[%s5055 + $0x1c] sm:$0xf]
    %v5064 = vld [vmem:[%s5055 + $0x20] sm:$0xf]
    %v5065 = vld [vmem:[%s5055 + $0x24] sm:$0xf]
    %v5066 = vld [vmem:[%s5055 + $0x28] sm:$0xf]
    %v5067 = vld [vmem:[%s5055 + $0x2c] sm:$0xf]
    %v5068 = vld [vmem:[%s5055 + $0x30] sm:$0xf]
    %v5069 = vld [vmem:[%s5055 + $0x34] sm:$0xf]
    %v5070 = vld [vmem:[%s5055 + $0x38] sm:$0xf]
    %v5071 = vld [vmem:[%s5055 + $0x3c] sm:$0xf]
    %v5088 = vunpack.c.l.b16 %v5056
    %v5089 = vunpack.c.l.b16 %v5057
    %v5090 = vunpack.c.l.b16 %v5058
    %v5091 = vunpack.c.l.b16 %v5059
    %v5092 = vunpack.c.l.b16 %v5060
    %v5093 = vunpack.c.l.b16 %v5061
    %v5094 = vunpack.c.l.b16 %v5062
    %v5095 = vunpack.c.l.b16 %v5063
    %v5096 = vunpack.c.l.b16 %v5064
    %v5097 = vunpack.c.l.b16 %v5065
    %v5098 = vunpack.c.l.b16 %v5066
    %v5099 = vunpack.c.l.b16 %v5067
    %v5100 = vunpack.c.l.b16 %v5068
    %v5101 = vunpack.c.l.b16 %v5069
    %v5102 = vunpack.c.l.b16 %v5070
    %v5103 = vunpack.c.l.b16 %v5071
    %v5104 = vpack.c.b16 %v5089, %v5088
    %v5105 = vpack.c.b16 %v5091, %v5090
    %v5106 = vpack.c.b16 %v5093, %v5092
    %v5107 = vpack.c.b16 %v5095, %v5094
    %v5108 = vpack.c.b16 %v5097, %v5096
    %v5109 = vpack.c.b16 %v5099, %v5098
    %v5110 = vpack.c.b16 %v5101, %v5100
    %v5111 = vpack.c.b16 %v5103, %v5102
    %5120 = vmatpush.bf16.msra.mxu0 %v5111
    %5121 = vmatpush.bf16.msra.mxu0 %v5110
    %5122 = vmatpush.bf16.msra.mxu0 %v5109
    %5123 = vmatpush.bf16.msra.mxu0 %v5108
    %5124 = vmatpush.bf16.msra.mxu0 %v5107
    %5125 = vmatpush.bf16.msra.mxu0 %v5106
    %5126 = vmatpush.bf16.msra.mxu0 %v5105
    %5127 = vmatpush.bf16.msra.mxu0 %v5104
    %5128 = vmatmul.bf16.gmra.mxu0 %v5054
    %v5129 = vpop.f32.mrf.mxu0
    %v5130 = vadd.f32 0.0, %v5129
    %v5131 = vpop.f32.mrf.mxu0
    %5132 = vdwg.mxu0
    %v5133 = vadd.f32 %v5053, %v5130
    %v5134 = vpack.c.bf16 %v4816, %v4816
    %s5135 = scalar_lea.vmem [#allocation8], 256
    %v5136 = vld [vmem:[%s5135] sm:$0xf]
    %v5137 = vld [vmem:[%s5135 + $0x4] sm:$0xf]
    %v5138 = vld [vmem:[%s5135 + $0x8] sm:$0xf]
    %v5139 = vld [vmem:[%s5135 + $0xc] sm:$0xf]
    %v5140 = vld [vmem:[%s5135 + $0x10] sm:$0xf]
    %v5141 = vld [vmem:[%s5135 + $0x14] sm:$0xf]
    %v5142 = vld [vmem:[%s5135 + $0x18] sm:$0xf]
    %v5143 = vld [vmem:[%s5135 + $0x1c] sm:$0xf]
    %v5144 = vld [vmem:[%s5135 + $0x20] sm:$0xf]
    %v5145 = vld [vmem:[%s5135 + $0x24] sm:$0xf]
    %v5146 = vld [vmem:[%s5135 + $0x28] sm:$0xf]
    %v5147 = vld [vmem:[%s5135 + $0x2c] sm:$0xf]
    %v5148 = vld [vmem:[%s5135 + $0x30] sm:$0xf]
    %v5149 = vld [vmem:[%s5135 + $0x34] sm:$0xf]
    %v5150 = vld [vmem:[%s5135 + $0x38] sm:$0xf]
    %v5151 = vld [vmem:[%s5135 + $0x3c] sm:$0xf]
    %v5168 = vunpack.c.l.b16 %v5136
    %v5169 = vunpack.c.l.b16 %v5137
    %v5170 = vunpack.c.l.b16 %v5138
    %v5171 = vunpack.c.l.b16 %v5139
    %v5172 = vunpack.c.l.b16 %v5140
    %v5173 = vunpack.c.l.b16 %v5141
    %v5174 = vunpack.c.l.b16 %v5142
    %v5175 = vunpack.c.l.b16 %v5143
    %v5176 = vunpack.c.l.b16 %v5144
    %v5177 = vunpack.c.l.b16 %v5145
    %v5178 = vunpack.c.l.b16 %v5146
    %v5179 = vunpack.c.l.b16 %v5147
    %v5180 = vunpack.c.l.b16 %v5148
    %v5181 = vunpack.c.l.b16 %v5149
    %v5182 = vunpack.c.l.b16 %v5150
    %v5183 = vunpack.c.l.b16 %v5151
    %v5184 = vpack.c.b16 %v5169, %v5168
    %v5185 = vpack.c.b16 %v5171, %v5170
    %v5186 = vpack.c.b16 %v5173, %v5172
    %v5187 = vpack.c.b16 %v5175, %v5174
    %v5188 = vpack.c.b16 %v5177, %v5176
    %v5189 = vpack.c.b16 %v5179, %v5178
    %v5190 = vpack.c.b16 %v5181, %v5180
    %v5191 = vpack.c.b16 %v5183, %v5182
    %5200 = vmatpush.bf16.msra.mxu0 %v5191
    %5201 = vmatpush.bf16.msra.mxu0 %v5190
    %5202 = vmatpush.bf16.msra.mxu0 %v5189
    %5203 = vmatpush.bf16.msra.mxu0 %v5188
    %5204 = vmatpush.bf16.msra.mxu0 %v5187
    %5205 = vmatpush.bf16.msra.mxu0 %v5186
    %5206 = vmatpush.bf16.msra.mxu0 %v5185
    %5207 = vmatpush.bf16.msra.mxu0 %v5184
    %5208 = vmatmul.bf16.gmra.mxu0 %v5134
    %v5209 = vpop.f32.mrf.mxu0
    %v5210 = vadd.f32 0.0, %v5209
    %v5211 = vpop.f32.mrf.mxu0
    %5212 = vdwg.mxu0
    %v5213 = vadd.f32 %v5133, %v5210
    %v5214 = vld [vmem:[#allocation10] sm:$0x1]
    %v5216 = vperm.slane %v5214, 0
    %v5218 = vadd.f32 %v5213, %v5216
    %5219 = vst [vmem:[#allocation11] sm:$0xff] %v5218
    // Predicated region
    $region42: #{tpu_custom_call.1} parent=1 // pred_check
      _
    $region43: #{tpu_custom_call.1} parent=1 // pred_check_branch
      %5221 = sbr.rel (0) target = $region45
    $region44: #{tpu_custom_call.1} parent=1 // pred_region
      %5223 = vsyncadd [#allocation4], 0
      %s5225 = sshll.u32 [#allocation11], 4
      %s5226 = int_to_ptr.vmem [resolvable:$true] %s5225
      %s5227 = sshll.u32 %s5, 4
      %s5228 = int_to_ptr.hbm [resolvable:$true] %s5227
      %5230 = dma.vmem_to_hbm [thread:$0]  %s5226, 128, %s5228, [#allocation4]
    $region45: #{tpu_custom_call.1} parent=1 // pred_fallthru
      _
    // Predicated region
    $region46: #{tpu_custom_call.1} parent=1 // pred_check
      _
    $region47: #{tpu_custom_call.1} parent=1 // pred_check_branch
      %5232 = sbr.rel (0) target = $region49
    $region48: #{tpu_custom_call.1} parent=1 // pred_region
      %5234 = dma.done [#allocation4], 128
    $region49: #{tpu_custom_call.1} parent=1 // pred_fallthru
      _
    %5235 = vsyncpa [#allocation3], 1
    %5236 = vsyncpa [#allocation6], 1
    %5237 = vsyncpa [#allocation9], 1
    %5238 = vsyncpa [#allocation4], 1

</llo_original>
